<compile_context>
chip_gen: v6e
topology: v6e:2x2x1
jax: 0.10.0
libtpu: 0.0.40
codegen_flags: <defaults>
</compile_context>

<pallas_src>
import functools

import numpy as np
import jax
import jax.numpy as jnp
from jax.experimental import pallas as pl
from jax.experimental.pallas import tpu as pltpu


# ----------------------------- fused kernel ---------------------------------

def _cnn_kernel(x_ref, sel_ref, w1_ref, s1_ref, b1_ref,
                wa2, sa2, ba2, wb2, s22, b22,
                wa3, sa3, ba3, wb3, s23, b23,
                wa4, sa4, ba4, wb4, s24, b24,
                fcw_ref, fcb_ref,
                o_ref,
                xpad, col1, ca2, cb2, ca3, cb3, ca4, cb4,
                *, L, L_pool, cin0, k1, pad1):
    """Whole CNNModel forward for one batch row; everything VMEM-resident."""

    # ---- layer1: Conv1d(k=7, s=2, p=3) + BN + ReLU + MaxPool1d(3, 2, 1) ----
    # Computed as the stride-1 conv (length L) via one merged-tap im2col
    # matmul, then a 0/1 selection matmul that picks the three pooling
    # candidates per pooled position (folds conv-stride-2 + maxpool with no
    # strided loads).  Zero "pad" rows in SEL are safe post-ReLU (>= 0).
    xpad[0:pad1, :] = jnp.zeros((pad1, cin0), xpad.dtype)
    xpad[pad1:pad1 + L, :] = x_ref[...].astype(xpad.dtype)
    xpad[pad1 + L:2 * pad1 + L, :] = jnp.zeros((pad1, cin0), xpad.dtype)
    for k in range(k1):                       # im2col: tap-major columns
        col1[:, k * cin0:(k + 1) * cin0] = xpad[k:k + L, :]
    z = jnp.dot(col1[...], w1_ref[...], preferred_element_type=jnp.float32)
    z = jnp.maximum(z * s1_ref[...] + b1_ref[...], 0.0)          # (L, 64) f32
    cand = jnp.dot(sel_ref[...], z.astype(jnp.bfloat16),
                   preferred_element_type=jnp.float32)           # (3*L_pool, 64)
    h = jnp.maximum(jnp.maximum(cand[0:L_pool], cand[L_pool:2 * L_pool]),
                    cand[2 * L_pool:3 * L_pool])                 # (L_pool, 64)
    h = h.astype(jnp.bfloat16)

    # ---- fused ResidualBlock: conv1+bn1+relu, 1x1 downsample+bn (merged into
    # conv1's matmul as extra N columns), conv2+bn2+add+relu ----
    def block(hb, wa, sa, ba, wb, s2, b2, colA, colB):
        cin = wa.shape[0] // 3
        cout = wa.shape[1] // 2
        lp = hb.shape[0]
        zc = jnp.zeros((1, cin), colA.dtype)
        # k=3, pad=1 im2col: [shift-down(hb) | hb | shift-up(hb)] (boundary rows
        # zeroed each step; interior fully overwritten -> no stale data).
        colA[:, cin:2 * cin] = hb
        colA[0:1, 0:cin] = zc
        colA[1:lp, 0:cin] = hb[0:lp - 1]
        colA[0:lp - 1, 2 * cin:3 * cin] = hb[1:lp]
        colA[lp - 1:lp, 2 * cin:3 * cin] = zc
        t = jnp.dot(colA[...], wa[...], preferred_element_type=jnp.float32)
        t = t * sa[...] + ba[...]                                # [bn1 | bn_ds]
        y1 = jnp.maximum(t[:, 0:cout], 0.0).astype(jnp.bfloat16)  # conv1 path
        idn = t[:, cout:2 * cout]                                  # identity path

        zc2 = jnp.zeros((1, cout), colB.dtype)
        colB[:, cout:2 * cout] = y1
        colB[0:1, 0:cout] = zc2
        colB[1:lp, 0:cout] = y1[0:lp - 1]
        colB[0:lp - 1, 2 * cout:3 * cout] = y1[1:lp]
        colB[lp - 1:lp, 2 * cout:3 * cout] = zc2
        acc2 = jnp.dot(colB[...], wb[...], preferred_element_type=jnp.float32)
        return jnp.maximum(acc2 * s2[...] + b2[...] + idn, 0.0)   # (lp, cout) f32

    h = block(h, wa2, sa2, ba2, wb2, s22, b22, ca2, cb2).astype(jnp.bfloat16)
    h = block(h, wa3, sa3, ba3, wb3, s23, b23, ca3, cb3).astype(jnp.bfloat16)
    h = block(h, wa4, sa4, ba4, wb4, s24, b24, ca4, cb4)          # (L_pool, 512)

    # ---- fused AdaptiveAvgPool1d(1) + Linear ----
    pooled = jnp.sum(h, axis=0, keepdims=True) * (1.0 / L_pool)   # (1, 512) f32
    logits = jnp.dot(pooled, fcw_ref[...], preferred_element_type=jnp.float32)
    o_ref[...] = (logits + fcb_ref[...]).astype(o_ref.dtype)


# ----------------------------- wrapper ---------------------------------------

def cnn_model_forward(x, params):
    """x: (B, L, num_channels) -- same input the PyTorch module receives."""
    p = params
    B, L, cin0 = x.shape
    k1, pad1, stride1 = 7, 3, 2
    L_conv = (L + 2 * pad1 - k1) // stride1 + 1
    L_pool = (L_conv + 2 * 1 - 3) // 2 + 1
    num_classes = p["fc_w"].shape[-1]

    # layer1 weights: (K, Cin, 64) -> tap-major (K*Cin, 64) bf16 for one matmul.
    c1 = p["l1_w"].shape[-1]
    w1f = p["l1_w"].reshape(k1 * cin0, c1).astype(jnp.bfloat16)
    s1 = p["l1_s"].reshape(1, c1).astype(jnp.float32)
    b1 = p["l1_b"].reshape(1, c1).astype(jnp.float32)

    # 0/1 selection matrix folding conv stride-2 + MaxPool1d(3,2,1): pooled
    # position j takes max over stride-1 conv positions {4j-2, 4j, 4j+2}
    # (out-of-range -> zero row == -inf pad since pool input is post-ReLU).
    sel_np = np.zeros((3 * L_pool, L), np.float32)
    for j in range(L_pool):
        for t, idx in enumerate((2 * j - 1, 2 * j, 2 * j + 1)):
            if 0 <= idx < L_conv:
                sel_np[t * L_pool + j, 2 * idx] = 1.0
    sel = jnp.asarray(sel_np, jnp.bfloat16)

    def prep_block(bp):
        (w1, s1_, b1_), (w2, s2_, b2_), (wd, sd, bd) = bp
        _, cin, cout = w1.shape
        w1r = w1.reshape(3 * cin, cout)
        # 1x1 downsample merged as extra N columns aligned with the centre tap.
        wd_full = jnp.zeros((3 * cin, cout), w1.dtype).at[cin:2 * cin].set(wd[0])
        wa = jnp.concatenate([w1r, wd_full], axis=1).astype(jnp.bfloat16)
        sa = jnp.concatenate([s1_, sd]).reshape(1, 2 * cout).astype(jnp.float32)
        ba = jnp.concatenate([b1_, bd]).reshape(1, 2 * cout).astype(jnp.float32)
        wb = w2.reshape(3 * cout, cout).astype(jnp.bfloat16)
        return (wa, sa, ba, wb,
                s2_.reshape(1, cout).astype(jnp.float32),
                b2_.reshape(1, cout).astype(jnp.float32))

    blocks = [prep_block((p[n + "_c1"], p[n + "_c2"], p[n + "_d"]))
              for n in ("l2", "l3", "l4")]

    fc_w = p["fc_w"].astype(jnp.float32)
    fc_b = p["fc_b"].reshape(1, num_classes).astype(jnp.float32)

    args = [x.astype(jnp.float32), sel, w1f, s1, b1]
    in_specs = [
        pl.BlockSpec((pl.Squeezed(), L, cin0), lambda b: (b, 0, 0)),
        pl.BlockSpec(sel.shape, lambda b: (0, 0)),
        pl.BlockSpec(w1f.shape, lambda b: (0, 0)),
        pl.BlockSpec(s1.shape, lambda b: (0, 0)),
        pl.BlockSpec(b1.shape, lambda b: (0, 0)),
    ]
    for blk in blocks:
        for a in blk:
            args.append(a)
            in_specs.append(pl.BlockSpec(a.shape, lambda b: (0, 0)))
    args += [fc_w, fc_b]
    in_specs += [pl.BlockSpec(fc_w.shape, lambda b: (0, 0)),
                 pl.BlockSpec(fc_b.shape, lambda b: (0, 0))]

    chans = [c1] + [blk[3].shape[-1] for blk in blocks]      # (64,128,256,512)
    scratch_shapes = [
        pltpu.VMEM((L + 2 * pad1, cin0), jnp.bfloat16),       # padded raw input
        pltpu.VMEM((L, k1 * cin0), jnp.bfloat16),             # layer1 im2col
    ]
    for cin, cout in zip(chans[:-1], chans[1:]):
        scratch_shapes += [pltpu.VMEM((L_pool, 3 * cin), jnp.bfloat16),   # conv1 im2col
                           pltpu.VMEM((L_pool, 3 * cout), jnp.bfloat16)]  # conv2 im2col

    kernel = functools.partial(_cnn_kernel, L=L, L_pool=L_pool,
                               cin0=cin0, k1=k1, pad1=pad1)
    out = pl.pallas_call(
        kernel,
        out_shape=jax.ShapeDtypeStruct((B, 1, num_classes), jnp.float32),
        grid=(B,),
        in_specs=in_specs,
        out_specs=pl.BlockSpec((pl.Squeezed(), 1, num_classes), lambda b: (b, 0, 0)),
        scratch_shapes=scratch_shapes,
        compiler_params=pltpu.CompilerParams(dimension_semantics=("parallel",)),
    )(*args)
    return out.reshape(B, num_classes)


# ----------------------------- params -----------------------------------------

def init_params(key, num_channels, num_classes):
    keys = iter(jax.random.split(key, 64))

    def conv(cin, cout, k):
        # stored as (K, Cin, Cout) == transpose of torch's (Cout, Cin, K)
        return jax.random.normal(next(keys), (k, cin, cout), jnp.float32) / np.sqrt(cin * k)

    def bn(c):
        # inference-mode BN folded into scale/bias
        gamma = 1.0 + 0.1 * jax.random.normal(next(keys), (c,), jnp.float32)
        beta = 0.1 * jax.random.normal(next(keys), (c,), jnp.float32)
        mean = 0.1 * jax.random.normal(next(keys), (c,), jnp.float32)
        var = jax.random.uniform(next(keys), (c,), jnp.float32, 0.5, 1.5)
        scale = gamma / jnp.sqrt(var + 1e-5)
        bias = beta - mean * scale
        return scale, bias

    p = {}
    p["l1_w"] = conv(num_channels, 64, 7)
    p["l1_s"], p["l1_b"] = bn(64)
    for cin, cout, nm in ((64, 128, "l2"), (128, 256, "l3"), (256, 512, "l4")):
        s, b = bn(cout); p[nm + "_c1"] = (conv(cin, cout, 3), s, b)
        s, b = bn(cout); p[nm + "_c2"] = (conv(cout, cout, 3), s, b)
        s, b = bn(cout); p[nm + "_d"] = (conv(cin, cout, 1), s, b)
    p["fc_w"] = jax.random.normal(next(keys), (512, num_classes), jnp.float32) / np.sqrt(512)
    p["fc_b"] = 0.1 * jax.random.normal(next(keys), (num_classes,), jnp.float32)
    return p


# ----------------------------- main --------------------------------------------

if __name__ == "__main__":
    num_channels, num_classes = 4, 10
    B, L = 2, 16

    key = jax.random.PRNGKey(0)
    kx, kp = jax.random.split(key)
    x = jax.random.normal(kx, (B, L, num_channels), jnp.float32)
    params = init_params(kp, num_channels, num_classes)

    out = jax.jit(cnn_model_forward)(x, params)
    out = jax.block_until_ready(out)
    assert out.shape == (B, num_classes), out.shape
    assert bool(jnp.all(jnp.isfinite(out)))
    print("KERNEL_OK")
</pallas_src>

<mosaic_0001>
module attributes {stable_mosaic.version = 11 : i64} {
  func.func @_cnn_kernel(%arg0: i32, %arg1: memref<1x16x4xf32, #tpu.memory_space<vmem>>, %arg2: memref<12x16xbf16, #tpu.memory_space<vmem>>, %arg3: memref<28x64xbf16, #tpu.memory_space<vmem>>, %arg4: memref<1x64xf32, #tpu.memory_space<vmem>>, %arg5: memref<1x64xf32, #tpu.memory_space<vmem>>, %arg6: memref<192x256xbf16, #tpu.memory_space<vmem>>, %arg7: memref<1x256xf32, #tpu.memory_space<vmem>>, %arg8: memref<1x256xf32, #tpu.memory_space<vmem>>, %arg9: memref<384x128xbf16, #tpu.memory_space<vmem>>, %arg10: memref<1x128xf32, #tpu.memory_space<vmem>>, %arg11: memref<1x128xf32, #tpu.memory_space<vmem>>, %arg12: memref<384x512xbf16, #tpu.memory_space<vmem>>, %arg13: memref<1x512xf32, #tpu.memory_space<vmem>>, %arg14: memref<1x512xf32, #tpu.memory_space<vmem>>, %arg15: memref<768x256xbf16, #tpu.memory_space<vmem>>, %arg16: memref<1x256xf32, #tpu.memory_space<vmem>>, %arg17: memref<1x256xf32, #tpu.memory_space<vmem>>, %arg18: memref<768x1024xbf16, #tpu.memory_space<vmem>>, %arg19: memref<1x1024xf32, #tpu.memory_space<vmem>>, %arg20: memref<1x1024xf32, #tpu.memory_space<vmem>>, %arg21: memref<1536x512xbf16, #tpu.memory_space<vmem>>, %arg22: memref<1x512xf32, #tpu.memory_space<vmem>>, %arg23: memref<1x512xf32, #tpu.memory_space<vmem>>, %arg24: memref<512x10xf32, #tpu.memory_space<vmem>>, %arg25: memref<1x10xf32, #tpu.memory_space<vmem>>, %arg26: memref<1x1x10xf32, #tpu.memory_space<vmem>>, %arg27: memref<22x4xbf16, #tpu.memory_space<vmem>>, %arg28: memref<16x28xbf16, #tpu.memory_space<vmem>>, %arg29: memref<4x192xbf16, #tpu.memory_space<vmem>>, %arg30: memref<4x384xbf16, #tpu.memory_space<vmem>>, %arg31: memref<4x384xbf16, #tpu.memory_space<vmem>>, %arg32: memref<4x768xbf16, #tpu.memory_space<vmem>>, %arg33: memref<4x768xbf16, #tpu.memory_space<vmem>>, %arg34: memref<4x1536xbf16, #tpu.memory_space<vmem>>) attributes {dimension_semantics = [#tpu.dimension_semantics<parallel>], iteration_bounds = array<i64: 2>, scalar_prefetch = 0 : i64, scratch_operands = 8 : i64, tpu.core_type = #tpu.core_type<tc>, window_params = [{transform_indices = @transform_0, window_bounds = array<i64: 1, 16, 4>}, {pipeline_mode = #tpu.pipeline_mode<synchronous>, transform_indices = @transform_1, window_bounds = array<i64: 12, 16>}, {pipeline_mode = #tpu.pipeline_mode<synchronous>, transform_indices = @transform_2, window_bounds = array<i64: 28, 64>}, {pipeline_mode = #tpu.pipeline_mode<synchronous>, transform_indices = @transform_3, window_bounds = array<i64: 1, 64>}, {pipeline_mode = #tpu.pipeline_mode<synchronous>, transform_indices = @transform_4, window_bounds = array<i64: 1, 64>}, {pipeline_mode = #tpu.pipeline_mode<synchronous>, transform_indices = @transform_5, window_bounds = array<i64: 192, 256>}, {pipeline_mode = #tpu.pipeline_mode<synchronous>, transform_indices = @transform_6, window_bounds = array<i64: 1, 256>}, {pipeline_mode = #tpu.pipeline_mode<synchronous>, transform_indices = @transform_7, window_bounds = array<i64: 1, 256>}, {pipeline_mode = #tpu.pipeline_mode<synchronous>, transform_indices = @transform_8, window_bounds = array<i64: 384, 128>}, {pipeline_mode = #tpu.pipeline_mode<synchronous>, transform_indices = @transform_9, window_bounds = array<i64: 1, 128>}, {pipeline_mode = #tpu.pipeline_mode<synchronous>, transform_indices = @transform_10, window_bounds = array<i64: 1, 128>}, {pipeline_mode = #tpu.pipeline_mode<synchronous>, transform_indices = @transform_11, window_bounds = array<i64: 384, 512>}, {pipeline_mode = #tpu.pipeline_mode<synchronous>, transform_indices = @transform_12, window_bounds = array<i64: 1, 512>}, {pipeline_mode = #tpu.pipeline_mode<synchronous>, transform_indices = @transform_13, window_bounds = array<i64: 1, 512>}, {pipeline_mode = #tpu.pipeline_mode<synchronous>, transform_indices = @transform_14, window_bounds = array<i64: 768, 256>}, {pipeline_mode = #tpu.pipeline_mode<synchronous>, transform_indices = @transform_15, window_bounds = array<i64: 1, 256>}, {pipeline_mode = #tpu.pipeline_mode<synchronous>, transform_indices = @transform_16, window_bounds = array<i64: 1, 256>}, {pipeline_mode = #tpu.pipeline_mode<synchronous>, transform_indices = @transform_17, window_bounds = array<i64: 768, 1024>}, {pipeline_mode = #tpu.pipeline_mode<synchronous>, transform_indices = @transform_18, window_bounds = array<i64: 1, 1024>}, {pipeline_mode = #tpu.pipeline_mode<synchronous>, transform_indices = @transform_19, window_bounds = array<i64: 1, 1024>}, {pipeline_mode = #tpu.pipeline_mode<synchronous>, transform_indices = @transform_20, window_bounds = array<i64: 1536, 512>}, {pipeline_mode = #tpu.pipeline_mode<synchronous>, transform_indices = @transform_21, window_bounds = array<i64: 1, 512>}, {pipeline_mode = #tpu.pipeline_mode<synchronous>, transform_indices = @transform_22, window_bounds = array<i64: 1, 512>}, {pipeline_mode = #tpu.pipeline_mode<synchronous>, transform_indices = @transform_23, window_bounds = array<i64: 512, 10>}, {pipeline_mode = #tpu.pipeline_mode<synchronous>, transform_indices = @transform_24, window_bounds = array<i64: 1, 10>}, {transform_indices = @transform_25, window_bounds = array<i64: 1, 1, 10>}]} {
    %cst = arith.constant 0.000000e+00 : bf16
    %0 = vector.broadcast %cst : bf16 to vector<3x4xbf16>
    %c0 = arith.constant 0 : index
    %c0_0 = arith.constant 0 : index
    %1 = vector.load %arg27[%c0, %c0_0] : memref<22x4xbf16, #tpu.memory_space<vmem>>, vector<3x4xbf16>
    tpu.vector_store %arg27[%c0, %c0_0], %0 {strides = array<i32>} : memref<22x4xbf16, #tpu.memory_space<vmem>>, vector<3x4xbf16>,
    %c0_1 = arith.constant 0 : index
    %c0_2 = arith.constant 0 : index
    %c0_3 = arith.constant 0 : index
    %2 = vector.load %arg1[%c0_1, %c0_2, %c0_3] : memref<1x16x4xf32, #tpu.memory_space<vmem>>, vector<1x16x4xf32>
    %3 = vector.shape_cast %2 : vector<1x16x4xf32> to vector<16x4xf32>
    %4 = arith.truncf %3 : vector<16x4xf32> to vector<16x4xbf16>
    %c3 = arith.constant 3 : index
    %c0_4 = arith.constant 0 : index
    %5 = vector.load %arg27[%c3, %c0_4] : memref<22x4xbf16, #tpu.memory_space<vmem>>, vector<16x4xbf16>
    tpu.vector_store %arg27[%c3, %c0_4], %4 {strides = array<i32>} : memref<22x4xbf16, #tpu.memory_space<vmem>>, vector<16x4xbf16>,
    %cst_5 = arith.constant 0.000000e+00 : bf16
    %6 = vector.broadcast %cst_5 : bf16 to vector<3x4xbf16>
    %c19 = arith.constant 19 : index
    %c0_6 = arith.constant 0 : index
    %7 = vector.load %arg27[%c19, %c0_6] : memref<22x4xbf16, #tpu.memory_space<vmem>>, vector<3x4xbf16>
    tpu.vector_store %arg27[%c19, %c0_6], %6 {strides = array<i32>} : memref<22x4xbf16, #tpu.memory_space<vmem>>, vector<3x4xbf16>,
    %c0_7 = arith.constant 0 : index
    %c0_8 = arith.constant 0 : index
    %8 = vector.load %arg27[%c0_7, %c0_8] : memref<22x4xbf16, #tpu.memory_space<vmem>>, vector<16x4xbf16>
    %c0_9 = arith.constant 0 : index
    %c0_10 = arith.constant 0 : index
    %9 = vector.load %arg28[%c0_9, %c0_10] : memref<16x28xbf16, #tpu.memory_space<vmem>>, vector<16x4xbf16>
    tpu.vector_store %arg28[%c0_9, %c0_10], %8 {strides = array<i32>} : memref<16x28xbf16, #tpu.memory_space<vmem>>, vector<16x4xbf16>,
    %c1 = arith.constant 1 : index
    %c0_11 = arith.constant 0 : index
    %10 = vector.load %arg27[%c1, %c0_11] : memref<22x4xbf16, #tpu.memory_space<vmem>>, vector<16x4xbf16>
    %c0_12 = arith.constant 0 : index
    %c4 = arith.constant 4 : index
    %11 = vector.load %arg28[%c0_12, %c4] : memref<16x28xbf16, #tpu.memory_space<vmem>>, vector<16x4xbf16>
    tpu.vector_store %arg28[%c0_12, %c4], %10 {strides = array<i32>} : memref<16x28xbf16, #tpu.memory_space<vmem>>, vector<16x4xbf16>,
    %c2 = arith.constant 2 : index
    %c0_13 = arith.constant 0 : index
    %12 = vector.load %arg27[%c2, %c0_13] : memref<22x4xbf16, #tpu.memory_space<vmem>>, vector<16x4xbf16>
    %c0_14 = arith.constant 0 : index
    %c8 = arith.constant 8 : index
    %13 = vector.load %arg28[%c0_14, %c8] : memref<16x28xbf16, #tpu.memory_space<vmem>>, vector<16x4xbf16>
    tpu.vector_store %arg28[%c0_14, %c8], %12 {strides = array<i32>} : memref<16x28xbf16, #tpu.memory_space<vmem>>, vector<16x4xbf16>,
    %c3_15 = arith.constant 3 : index
    %c0_16 = arith.constant 0 : index
    %14 = vector.load %arg27[%c3_15, %c0_16] : memref<22x4xbf16, #tpu.memory_space<vmem>>, vector<16x4xbf16>
    %c0_17 = arith.constant 0 : index
    %c12 = arith.constant 12 : index
    %15 = vector.load %arg28[%c0_17, %c12] : memref<16x28xbf16, #tpu.memory_space<vmem>>, vector<16x4xbf16>
    tpu.vector_store %arg28[%c0_17, %c12], %14 {strides = array<i32>} : memref<16x28xbf16, #tpu.memory_space<vmem>>, vector<16x4xbf16>,
    %c4_18 = arith.constant 4 : index
    %c0_19 = arith.constant 0 : index
    %16 = vector.load %arg27[%c4_18, %c0_19] : memref<22x4xbf16, #tpu.memory_space<vmem>>, vector<16x4xbf16>
    %c0_20 = arith.constant 0 : index
    %c16 = arith.constant 16 : index
    %17 = vector.load %arg28[%c0_20, %c16] : memref<16x28xbf16, #tpu.memory_space<vmem>>, vector<16x4xbf16>
    tpu.vector_store %arg28[%c0_20, %c16], %16 {strides = array<i32>} : memref<16x28xbf16, #tpu.memory_space<vmem>>, vector<16x4xbf16>,
    %c5 = arith.constant 5 : index
    %c0_21 = arith.constant 0 : index
    %18 = vector.load %arg27[%c5, %c0_21] : memref<22x4xbf16, #tpu.memory_space<vmem>>, vector<16x4xbf16>
    %c0_22 = arith.constant 0 : index
    %c20 = arith.constant 20 : index
    %19 = vector.load %arg28[%c0_22, %c20] : memref<16x28xbf16, #tpu.memory_space<vmem>>, vector<16x4xbf16>
    tpu.vector_store %arg28[%c0_22, %c20], %18 {strides = array<i32>} : memref<16x28xbf16, #tpu.memory_space<vmem>>, vector<16x4xbf16>,
    %c6 = arith.constant 6 : index
    %c0_23 = arith.constant 0 : index
    %20 = vector.load %arg27[%c6, %c0_23] : memref<22x4xbf16, #tpu.memory_space<vmem>>, vector<16x4xbf16>
    %c0_24 = arith.constant 0 : index
    %c24 = arith.constant 24 : index
    %21 = vector.load %arg28[%c0_24, %c24] : memref<16x28xbf16, #tpu.memory_space<vmem>>, vector<16x4xbf16>
    tpu.vector_store %arg28[%c0_24, %c24], %20 {strides = array<i32>} : memref<16x28xbf16, #tpu.memory_space<vmem>>, vector<16x4xbf16>,
    %c0_25 = arith.constant 0 : index
    %c0_26 = arith.constant 0 : index
    %22 = vector.load %arg28[%c0_25, %c0_26] : memref<16x28xbf16, #tpu.memory_space<vmem>>, vector<16x28xbf16>
    %c0_27 = arith.constant 0 : index
    %c0_28 = arith.constant 0 : index
    %23 = vector.load %arg3[%c0_27, %c0_28] : memref<28x64xbf16, #tpu.memory_space<vmem>>, vector<28x64xbf16>
    %cst_29 = arith.constant dense<0.000000e+00> : vector<16x64xf32>
    %24 = tpu.matmul %22, %23, %cst_29 {dimension_numbers = #tpu.dot_dimension_numbers<[1], [0], [0], [1], [0, 0, 1, 1], [], []>} : vector<16x28xbf16>, vector<28x64xbf16>, vector<16x64xf32> -> vector<16x64xf32>
    %c0_30 = arith.constant 0 : index
    %c0_31 = arith.constant 0 : index
    %25 = vector.load %arg4[%c0_30, %c0_31] : memref<1x64xf32, #tpu.memory_space<vmem>>, vector<1x64xf32>
    %26 = vector.broadcast %25 : vector<1x64xf32> to vector<16x64xf32>
    %27 = arith.mulf %24, %26 : vector<16x64xf32>
    %c0_32 = arith.constant 0 : index
    %c0_33 = arith.constant 0 : index
    %28 = vector.load %arg5[%c0_32, %c0_33] : memref<1x64xf32, #tpu.memory_space<vmem>>, vector<1x64xf32>
    %29 = vector.broadcast %28 : vector<1x64xf32> to vector<16x64xf32>
    %30 = arith.addf %27, %29 : vector<16x64xf32>
    %cst_34 = arith.constant 0.000000e+00 : f32
    %31 = vector.broadcast %cst_34 : f32 to vector<16x64xf32>
    %32 = arith.maximumf %30, %31 : vector<16x64xf32>
    %c0_35 = arith.constant 0 : index
    %c0_36 = arith.constant 0 : index
    %33 = vector.load %arg2[%c0_35, %c0_36] : memref<12x16xbf16, #tpu.memory_space<vmem>>, vector<12x16xbf16>
    %34 = arith.truncf %32 : vector<16x64xf32> to vector<16x64xbf16>
    %cst_37 = arith.constant dense<0.000000e+00> : vector<12x64xf32>
    %35 = tpu.matmul %33, %34, %cst_37 {dimension_numbers = #tpu.dot_dimension_numbers<[1], [0], [0], [1], [0, 0, 1, 1], [], []>} : vector<12x16xbf16>, vector<16x64xbf16>, vector<12x64xf32> -> vector<12x64xf32>
    %36 = vector.extract_strided_slice %35 {offsets = [0, 0], sizes = [4, 64], strides = [1, 1]} : vector<12x64xf32> to vector<4x64xf32>
    %37 = vector.extract_strided_slice %35 {offsets = [4, 0], sizes = [4, 64], strides = [1, 1]} : vector<12x64xf32> to vector<4x64xf32>
    %38 = arith.maximumf %36, %37 : vector<4x64xf32>
    %39 = vector.extract_strided_slice %35 {offsets = [8, 0], sizes = [4, 64], strides = [1, 1]} : vector<12x64xf32> to vector<4x64xf32>
    %40 = arith.maximumf %38, %39 : vector<4x64xf32>
    %41 = arith.truncf %40 : vector<4x64xf32> to vector<4x64xbf16>
    %cst_38 = arith.constant 0.000000e+00 : bf16
    %42 = vector.broadcast %cst_38 : bf16 to vector<1x64xbf16>
    %c0_39 = arith.constant 0 : index
    %c64 = arith.constant 64 : index
    %43 = vector.load %arg29[%c0_39, %c64] : memref<4x192xbf16, #tpu.memory_space<vmem>>, vector<4x64xbf16>
    tpu.vector_store %arg29[%c0_39, %c64], %41 {strides = array<i32>} : memref<4x192xbf16, #tpu.memory_space<vmem>>, vector<4x64xbf16>,
    %c0_40 = arith.constant 0 : index
    %c0_41 = arith.constant 0 : index
    %44 = vector.load %arg29[%c0_40, %c0_41] : memref<4x192xbf16, #tpu.memory_space<vmem>>, vector<1x64xbf16>
    tpu.vector_store %arg29[%c0_40, %c0_41], %42 {strides = array<i32>} : memref<4x192xbf16, #tpu.memory_space<vmem>>, vector<1x64xbf16>,
    %45 = vector.extract_strided_slice %41 {offsets = [0, 0], sizes = [3, 64], strides = [1, 1]} : vector<4x64xbf16> to vector<3x64xbf16>
    %c1_42 = arith.constant 1 : index
    %c0_43 = arith.constant 0 : index
    %46 = vector.load %arg29[%c1_42, %c0_43] : memref<4x192xbf16, #tpu.memory_space<vmem>>, vector<3x64xbf16>
    tpu.vector_store %arg29[%c1_42, %c0_43], %45 {strides = array<i32>} : memref<4x192xbf16, #tpu.memory_space<vmem>>, vector<3x64xbf16>,
    %47 = vector.extract_strided_slice %41 {offsets = [1, 0], sizes = [3, 64], strides = [1, 1]} : vector<4x64xbf16> to vector<3x64xbf16>
    %c0_44 = arith.constant 0 : index
    %c128 = arith.constant 128 : index
    %48 = vector.load %arg29[%c0_44, %c128] : memref<4x192xbf16, #tpu.memory_space<vmem>>, vector<3x64xbf16>
    tpu.vector_store %arg29[%c0_44, %c128], %47 {strides = array<i32>} : memref<4x192xbf16, #tpu.memory_space<vmem>>, vector<3x64xbf16>,
    %c3_45 = arith.constant 3 : index
    %c128_46 = arith.constant 128 : index
    %49 = vector.load %arg29[%c3_45, %c128_46] : memref<4x192xbf16, #tpu.memory_space<vmem>>, vector<1x64xbf16>
    tpu.vector_store %arg29[%c3_45, %c128_46], %42 {strides = array<i32>} : memref<4x192xbf16, #tpu.memory_space<vmem>>, vector<1x64xbf16>,
    %c0_47 = arith.constant 0 : index
    %c0_48 = arith.constant 0 : index
    %50 = vector.load %arg29[%c0_47, %c0_48] : memref<4x192xbf16, #tpu.memory_space<vmem>>, vector<4x192xbf16>
    %c0_49 = arith.constant 0 : index
    %c0_50 = arith.constant 0 : index
    %51 = vector.load %arg6[%c0_49, %c0_50] : memref<192x256xbf16, #tpu.memory_space<vmem>>, vector<192x256xbf16>
    %cst_51 = arith.constant dense<0.000000e+00> : vector<4x256xf32>
    %52 = tpu.matmul %50, %51, %cst_51 {dimension_numbers = #tpu.dot_dimension_numbers<[1], [0], [0], [1], [0, 0, 1, 1], [], []>} : vector<4x192xbf16>, vector<192x256xbf16>, vector<4x256xf32> -> vector<4x256xf32>
    %c0_52 = arith.constant 0 : index
    %c0_53 = arith.constant 0 : index
    %53 = vector.load %arg7[%c0_52, %c0_53] : memref<1x256xf32, #tpu.memory_space<vmem>>, vector<1x256xf32>
    %54 = vector.broadcast %53 : vector<1x256xf32> to vector<4x256xf32>
    %55 = arith.mulf %52, %54 : vector<4x256xf32>
    %c0_54 = arith.constant 0 : index
    %c0_55 = arith.constant 0 : index
    %56 = vector.load %arg8[%c0_54, %c0_55] : memref<1x256xf32, #tpu.memory_space<vmem>>, vector<1x256xf32>
    %57 = vector.broadcast %56 : vector<1x256xf32> to vector<4x256xf32>
    %58 = arith.addf %55, %57 : vector<4x256xf32>
    %59 = vector.extract_strided_slice %58 {offsets = [0, 0], sizes = [4, 128], strides = [1, 1]} : vector<4x256xf32> to vector<4x128xf32>
    %cst_56 = arith.constant 0.000000e+00 : f32
    %60 = vector.broadcast %cst_56 : f32 to vector<4x128xf32>
    %61 = arith.maximumf %59, %60 : vector<4x128xf32>
    %62 = arith.truncf %61 : vector<4x128xf32> to vector<4x128xbf16>
    %63 = vector.extract_strided_slice %58 {offsets = [0, 128], sizes = [4, 128], strides = [1, 1]} : vector<4x256xf32> to vector<4x128xf32>
    %cst_57 = arith.constant 0.000000e+00 : bf16
    %64 = vector.broadcast %cst_57 : bf16 to vector<1x128xbf16>
    %c0_58 = arith.constant 0 : index
    %c128_59 = arith.constant 128 : index
    %65 = vector.load %arg30[%c0_58, %c128_59] : memref<4x384xbf16, #tpu.memory_space<vmem>>, vector<4x128xbf16>
    tpu.vector_store %arg30[%c0_58, %c128_59], %62 {strides = array<i32>} : memref<4x384xbf16, #tpu.memory_space<vmem>>, vector<4x128xbf16>,
    %c0_60 = arith.constant 0 : index
    %c0_61 = arith.constant 0 : index
    %66 = vector.load %arg30[%c0_60, %c0_61] : memref<4x384xbf16, #tpu.memory_space<vmem>>, vector<1x128xbf16>
    tpu.vector_store %arg30[%c0_60, %c0_61], %64 {strides = array<i32>} : memref<4x384xbf16, #tpu.memory_space<vmem>>, vector<1x128xbf16>,
    %67 = vector.extract_strided_slice %62 {offsets = [0, 0], sizes = [3, 128], strides = [1, 1]} : vector<4x128xbf16> to vector<3x128xbf16>
    %c1_62 = arith.constant 1 : index
    %c0_63 = arith.constant 0 : index
    %68 = vector.load %arg30[%c1_62, %c0_63] : memref<4x384xbf16, #tpu.memory_space<vmem>>, vector<3x128xbf16>
    tpu.vector_store %arg30[%c1_62, %c0_63], %67 {strides = array<i32>} : memref<4x384xbf16, #tpu.memory_space<vmem>>, vector<3x128xbf16>,
    %69 = vector.extract_strided_slice %62 {offsets = [1, 0], sizes = [3, 128], strides = [1, 1]} : vector<4x128xbf16> to vector<3x128xbf16>
    %c0_64 = arith.constant 0 : index
    %c256 = arith.constant 256 : index
    %70 = vector.load %arg30[%c0_64, %c256] : memref<4x384xbf16, #tpu.memory_space<vmem>>, vector<3x128xbf16>
    tpu.vector_store %arg30[%c0_64, %c256], %69 {strides = array<i32>} : memref<4x384xbf16, #tpu.memory_space<vmem>>, vector<3x128xbf16>,
    %c3_65 = arith.constant 3 : index
    %c256_66 = arith.constant 256 : index
    %71 = vector.load %arg30[%c3_65, %c256_66] : memref<4x384xbf16, #tpu.memory_space<vmem>>, vector<1x128xbf16>
    tpu.vector_store %arg30[%c3_65, %c256_66], %64 {strides = array<i32>} : memref<4x384xbf16, #tpu.memory_space<vmem>>, vector<1x128xbf16>,
    %c0_67 = arith.constant 0 : index
    %c0_68 = arith.constant 0 : index
    %72 = vector.load %arg30[%c0_67, %c0_68] : memref<4x384xbf16, #tpu.memory_space<vmem>>, vector<4x384xbf16>
    %c0_69 = arith.constant 0 : index
    %c0_70 = arith.constant 0 : index
    %73 = vector.load %arg9[%c0_69, %c0_70] : memref<384x128xbf16, #tpu.memory_space<vmem>>, vector<384x128xbf16>
    %cst_71 = arith.constant dense<0.000000e+00> : vector<4x128xf32>
    %74 = tpu.matmul %72, %73, %cst_71 {dimension_numbers = #tpu.dot_dimension_numbers<[1], [0], [0], [1], [0, 0, 1, 1], [], []>} : vector<4x384xbf16>, vector<384x128xbf16>, vector<4x128xf32> -> vector<4x128xf32>
    %c0_72 = arith.constant 0 : index
    %c0_73 = arith.constant 0 : index
    %75 = vector.load %arg10[%c0_72, %c0_73] : memref<1x128xf32, #tpu.memory_space<vmem>>, vector<1x128xf32>
    %76 = vector.broadcast %75 : vector<1x128xf32> to vector<4x128xf32>
    %77 = arith.mulf %74, %76 : vector<4x128xf32>
    %c0_74 = arith.constant 0 : index
    %c0_75 = arith.constant 0 : index
    %78 = vector.load %arg11[%c0_74, %c0_75] : memref<1x128xf32, #tpu.memory_space<vmem>>, vector<1x128xf32>
    %79 = vector.broadcast %78 : vector<1x128xf32> to vector<4x128xf32>
    %80 = arith.addf %77, %79 : vector<4x128xf32>
    %81 = arith.addf %80, %63 : vector<4x128xf32>
    %cst_76 = arith.constant 0.000000e+00 : f32
    %82 = vector.broadcast %cst_76 : f32 to vector<4x128xf32>
    %83 = arith.maximumf %81, %82 : vector<4x128xf32>
    %84 = arith.truncf %83 : vector<4x128xf32> to vector<4x128xbf16>
    %cst_77 = arith.constant 0.000000e+00 : bf16
    %85 = vector.broadcast %cst_77 : bf16 to vector<1x128xbf16>
    %c0_78 = arith.constant 0 : index
    %c128_79 = arith.constant 128 : index
    %86 = vector.load %arg31[%c0_78, %c128_79] : memref<4x384xbf16, #tpu.memory_space<vmem>>, vector<4x128xbf16>
    tpu.vector_store %arg31[%c0_78, %c128_79], %84 {strides = array<i32>} : memref<4x384xbf16, #tpu.memory_space<vmem>>, vector<4x128xbf16>,
    %c0_80 = arith.constant 0 : index
    %c0_81 = arith.constant 0 : index
    %87 = vector.load %arg31[%c0_80, %c0_81] : memref<4x384xbf16, #tpu.memory_space<vmem>>, vector<1x128xbf16>
    tpu.vector_store %arg31[%c0_80, %c0_81], %85 {strides = array<i32>} : memref<4x384xbf16, #tpu.memory_space<vmem>>, vector<1x128xbf16>,
    %88 = vector.extract_strided_slice %84 {offsets = [0, 0], sizes = [3, 128], strides = [1, 1]} : vector<4x128xbf16> to vector<3x128xbf16>
    %c1_82 = arith.constant 1 : index
    %c0_83 = arith.constant 0 : index
    %89 = vector.load %arg31[%c1_82, %c0_83] : memref<4x384xbf16, #tpu.memory_space<vmem>>, vector<3x128xbf16>
    tpu.vector_store %arg31[%c1_82, %c0_83], %88 {strides = array<i32>} : memref<4x384xbf16, #tpu.memory_space<vmem>>, vector<3x128xbf16>,
    %90 = vector.extract_strided_slice %84 {offsets = [1, 0], sizes = [3, 128], strides = [1, 1]} : vector<4x128xbf16> to vector<3x128xbf16>
    %c0_84 = arith.constant 0 : index
    %c256_85 = arith.constant 256 : index
    %91 = vector.load %arg31[%c0_84, %c256_85] : memref<4x384xbf16, #tpu.memory_space<vmem>>, vector<3x128xbf16>
    tpu.vector_store %arg31[%c0_84, %c256_85], %90 {strides = array<i32>} : memref<4x384xbf16, #tpu.memory_space<vmem>>, vector<3x128xbf16>,
    %c3_86 = arith.constant 3 : index
    %c256_87 = arith.constant 256 : index
    %92 = vector.load %arg31[%c3_86, %c256_87] : memref<4x384xbf16, #tpu.memory_space<vmem>>, vector<1x128xbf16>
    tpu.vector_store %arg31[%c3_86, %c256_87], %85 {strides = array<i32>} : memref<4x384xbf16, #tpu.memory_space<vmem>>, vector<1x128xbf16>,
    %c0_88 = arith.constant 0 : index
    %c0_89 = arith.constant 0 : index
    %93 = vector.load %arg31[%c0_88, %c0_89] : memref<4x384xbf16, #tpu.memory_space<vmem>>, vector<4x384xbf16>
    %c0_90 = arith.constant 0 : index
    %c0_91 = arith.constant 0 : index
    %94 = vector.load %arg12[%c0_90, %c0_91] : memref<384x512xbf16, #tpu.memory_space<vmem>>, vector<384x512xbf16>
    %cst_92 = arith.constant dense<0.000000e+00> : vector<4x512xf32>
    %95 = tpu.matmul %93, %94, %cst_92 {dimension_numbers = #tpu.dot_dimension_numbers<[1], [0], [0], [1], [0, 0, 1, 1], [], []>} : vector<4x384xbf16>, vector<384x512xbf16>, vector<4x512xf32> -> vector<4x512xf32>
    %c0_93 = arith.constant 0 : index
    %c0_94 = arith.constant 0 : index
    %96 = vector.load %arg13[%c0_93, %c0_94] : memref<1x512xf32, #tpu.memory_space<vmem>>, vector<1x512xf32>
    %97 = vector.broadcast %96 : vector<1x512xf32> to vector<4x512xf32>
    %98 = arith.mulf %95, %97 : vector<4x512xf32>
    %c0_95 = arith.constant 0 : index
    %c0_96 = arith.constant 0 : index
    %99 = vector.load %arg14[%c0_95, %c0_96] : memref<1x512xf32, #tpu.memory_space<vmem>>, vector<1x512xf32>
    %100 = vector.broadcast %99 : vector<1x512xf32> to vector<4x512xf32>
    %101 = arith.addf %98, %100 : vector<4x512xf32>
    %102 = vector.extract_strided_slice %101 {offsets = [0, 0], sizes = [4, 256], strides = [1, 1]} : vector<4x512xf32> to vector<4x256xf32>
    %cst_97 = arith.constant 0.000000e+00 : f32
    %103 = vector.broadcast %cst_97 : f32 to vector<4x256xf32>
    %104 = arith.maximumf %102, %103 : vector<4x256xf32>
    %105 = arith.truncf %104 : vector<4x256xf32> to vector<4x256xbf16>
    %106 = vector.extract_strided_slice %101 {offsets = [0, 256], sizes = [4, 256], strides = [1, 1]} : vector<4x512xf32> to vector<4x256xf32>
    %cst_98 = arith.constant 0.000000e+00 : bf16
    %107 = vector.broadcast %cst_98 : bf16 to vector<1x256xbf16>
    %c0_99 = arith.constant 0 : index
    %c256_100 = arith.constant 256 : index
    %108 = vector.load %arg32[%c0_99, %c256_100] : memref<4x768xbf16, #tpu.memory_space<vmem>>, vector<4x256xbf16>
    tpu.vector_store %arg32[%c0_99, %c256_100], %105 {strides = array<i32>} : memref<4x768xbf16, #tpu.memory_space<vmem>>, vector<4x256xbf16>,
    %c0_101 = arith.constant 0 : index
    %c0_102 = arith.constant 0 : index
    %109 = vector.load %arg32[%c0_101, %c0_102] : memref<4x768xbf16, #tpu.memory_space<vmem>>, vector<1x256xbf16>
    tpu.vector_store %arg32[%c0_101, %c0_102], %107 {strides = array<i32>} : memref<4x768xbf16, #tpu.memory_space<vmem>>, vector<1x256xbf16>,
    %110 = vector.extract_strided_slice %105 {offsets = [0, 0], sizes = [3, 256], strides = [1, 1]} : vector<4x256xbf16> to vector<3x256xbf16>
    %c1_103 = arith.constant 1 : index
    %c0_104 = arith.constant 0 : index
    %111 = vector.load %arg32[%c1_103, %c0_104] : memref<4x768xbf16, #tpu.memory_space<vmem>>, vector<3x256xbf16>
    tpu.vector_store %arg32[%c1_103, %c0_104], %110 {strides = array<i32>} : memref<4x768xbf16, #tpu.memory_space<vmem>>, vector<3x256xbf16>,
    %112 = vector.extract_strided_slice %105 {offsets = [1, 0], sizes = [3, 256], strides = [1, 1]} : vector<4x256xbf16> to vector<3x256xbf16>
    %c0_105 = arith.constant 0 : index
    %c512 = arith.constant 512 : index
    %113 = vector.load %arg32[%c0_105, %c512] : memref<4x768xbf16, #tpu.memory_space<vmem>>, vector<3x256xbf16>
    tpu.vector_store %arg32[%c0_105, %c512], %112 {strides = array<i32>} : memref<4x768xbf16, #tpu.memory_space<vmem>>, vector<3x256xbf16>,
    %c3_106 = arith.constant 3 : index
    %c512_107 = arith.constant 512 : index
    %114 = vector.load %arg32[%c3_106, %c512_107] : memref<4x768xbf16, #tpu.memory_space<vmem>>, vector<1x256xbf16>
    tpu.vector_store %arg32[%c3_106, %c512_107], %107 {strides = array<i32>} : memref<4x768xbf16, #tpu.memory_space<vmem>>, vector<1x256xbf16>,
    %c0_108 = arith.constant 0 : index
    %c0_109 = arith.constant 0 : index
    %115 = vector.load %arg32[%c0_108, %c0_109] : memref<4x768xbf16, #tpu.memory_space<vmem>>, vector<4x768xbf16>
    %c0_110 = arith.constant 0 : index
    %c0_111 = arith.constant 0 : index
    %116 = vector.load %arg15[%c0_110, %c0_111] : memref<768x256xbf16, #tpu.memory_space<vmem>>, vector<768x256xbf16>
    %cst_112 = arith.constant dense<0.000000e+00> : vector<4x256xf32>
    %117 = tpu.matmul %115, %116, %cst_112 {dimension_numbers = #tpu.dot_dimension_numbers<[1], [0], [0], [1], [0, 0, 1, 1], [], []>} : vector<4x768xbf16>, vector<768x256xbf16>, vector<4x256xf32> -> vector<4x256xf32>
    %c0_113 = arith.constant 0 : index
    %c0_114 = arith.constant 0 : index
    %118 = vector.load %arg16[%c0_113, %c0_114] : memref<1x256xf32, #tpu.memory_space<vmem>>, vector<1x256xf32>
    %119 = vector.broadcast %118 : vector<1x256xf32> to vector<4x256xf32>
    %120 = arith.mulf %117, %119 : vector<4x256xf32>
    %c0_115 = arith.constant 0 : index
    %c0_116 = arith.constant 0 : index
    %121 = vector.load %arg17[%c0_115, %c0_116] : memref<1x256xf32, #tpu.memory_space<vmem>>, vector<1x256xf32>
    %122 = vector.broadcast %121 : vector<1x256xf32> to vector<4x256xf32>
    %123 = arith.addf %120, %122 : vector<4x256xf32>
    %124 = arith.addf %123, %106 : vector<4x256xf32>
    %cst_117 = arith.constant 0.000000e+00 : f32
    %125 = vector.broadcast %cst_117 : f32 to vector<4x256xf32>
    %126 = arith.maximumf %124, %125 : vector<4x256xf32>
    %127 = arith.truncf %126 : vector<4x256xf32> to vector<4x256xbf16>
    %cst_118 = arith.constant 0.000000e+00 : bf16
    %128 = vector.broadcast %cst_118 : bf16 to vector<1x256xbf16>
    %c0_119 = arith.constant 0 : index
    %c256_120 = arith.constant 256 : index
    %129 = vector.load %arg33[%c0_119, %c256_120] : memref<4x768xbf16, #tpu.memory_space<vmem>>, vector<4x256xbf16>
    tpu.vector_store %arg33[%c0_119, %c256_120], %127 {strides = array<i32>} : memref<4x768xbf16, #tpu.memory_space<vmem>>, vector<4x256xbf16>,
    %c0_121 = arith.constant 0 : index
    %c0_122 = arith.constant 0 : index
    %130 = vector.load %arg33[%c0_121, %c0_122] : memref<4x768xbf16, #tpu.memory_space<vmem>>, vector<1x256xbf16>
    tpu.vector_store %arg33[%c0_121, %c0_122], %128 {strides = array<i32>} : memref<4x768xbf16, #tpu.memory_space<vmem>>, vector<1x256xbf16>,
    %131 = vector.extract_strided_slice %127 {offsets = [0, 0], sizes = [3, 256], strides = [1, 1]} : vector<4x256xbf16> to vector<3x256xbf16>
    %c1_123 = arith.constant 1 : index
    %c0_124 = arith.constant 0 : index
    %132 = vector.load %arg33[%c1_123, %c0_124] : memref<4x768xbf16, #tpu.memory_space<vmem>>, vector<3x256xbf16>
    tpu.vector_store %arg33[%c1_123, %c0_124], %131 {strides = array<i32>} : memref<4x768xbf16, #tpu.memory_space<vmem>>, vector<3x256xbf16>,
    %133 = vector.extract_strided_slice %127 {offsets = [1, 0], sizes = [3, 256], strides = [1, 1]} : vector<4x256xbf16> to vector<3x256xbf16>
    %c0_125 = arith.constant 0 : index
    %c512_126 = arith.constant 512 : index
    %134 = vector.load %arg33[%c0_125, %c512_126] : memref<4x768xbf16, #tpu.memory_space<vmem>>, vector<3x256xbf16>
    tpu.vector_store %arg33[%c0_125, %c512_126], %133 {strides = array<i32>} : memref<4x768xbf16, #tpu.memory_space<vmem>>, vector<3x256xbf16>,
    %c3_127 = arith.constant 3 : index
    %c512_128 = arith.constant 512 : index
    %135 = vector.load %arg33[%c3_127, %c512_128] : memref<4x768xbf16, #tpu.memory_space<vmem>>, vector<1x256xbf16>
    tpu.vector_store %arg33[%c3_127, %c512_128], %128 {strides = array<i32>} : memref<4x768xbf16, #tpu.memory_space<vmem>>, vector<1x256xbf16>,
    %c0_129 = arith.constant 0 : index
    %c0_130 = arith.constant 0 : index
    %136 = vector.load %arg33[%c0_129, %c0_130] : memref<4x768xbf16, #tpu.memory_space<vmem>>, vector<4x768xbf16>
    %c0_131 = arith.constant 0 : index
    %c0_132 = arith.constant 0 : index
    %137 = vector.load %arg18[%c0_131, %c0_132] : memref<768x1024xbf16, #tpu.memory_space<vmem>>, vector<768x1024xbf16>
    %cst_133 = arith.constant dense<0.000000e+00> : vector<4x1024xf32>
    %138 = tpu.matmul %136, %137, %cst_133 {dimension_numbers = #tpu.dot_dimension_numbers<[1], [0], [0], [1], [0, 0, 1, 1], [], []>} : vector<4x768xbf16>, vector<768x1024xbf16>, vector<4x1024xf32> -> vector<4x1024xf32>
    %c0_134 = arith.constant 0 : index
    %c0_135 = arith.constant 0 : index
    %139 = vector.load %arg19[%c0_134, %c0_135] : memref<1x1024xf32, #tpu.memory_space<vmem>>, vector<1x1024xf32>
    %140 = vector.broadcast %139 : vector<1x1024xf32> to vector<4x1024xf32>
    %141 = arith.mulf %138, %140 : vector<4x1024xf32>
    %c0_136 = arith.constant 0 : index
    %c0_137 = arith.constant 0 : index
    %142 = vector.load %arg20[%c0_136, %c0_137] : memref<1x1024xf32, #tpu.memory_space<vmem>>, vector<1x1024xf32>
    %143 = vector.broadcast %142 : vector<1x1024xf32> to vector<4x1024xf32>
    %144 = arith.addf %141, %143 : vector<4x1024xf32>
    %145 = vector.extract_strided_slice %144 {offsets = [0, 0], sizes = [4, 512], strides = [1, 1]} : vector<4x1024xf32> to vector<4x512xf32>
    %cst_138 = arith.constant 0.000000e+00 : f32
    %146 = vector.broadcast %cst_138 : f32 to vector<4x512xf32>
    %147 = arith.maximumf %145, %146 : vector<4x512xf32>
    %148 = arith.truncf %147 : vector<4x512xf32> to vector<4x512xbf16>
    %149 = vector.extract_strided_slice %144 {offsets = [0, 512], sizes = [4, 512], strides = [1, 1]} : vector<4x1024xf32> to vector<4x512xf32>
    %cst_139 = arith.constant 0.000000e+00 : bf16
    %150 = vector.broadcast %cst_139 : bf16 to vector<1x512xbf16>
    %c0_140 = arith.constant 0 : index
    %c512_141 = arith.constant 512 : index
    %151 = vector.load %arg34[%c0_140, %c512_141] : memref<4x1536xbf16, #tpu.memory_space<vmem>>, vector<4x512xbf16>
    tpu.vector_store %arg34[%c0_140, %c512_141], %148 {strides = array<i32>} : memref<4x1536xbf16, #tpu.memory_space<vmem>>, vector<4x512xbf16>,
    %c0_142 = arith.constant 0 : index
    %c0_143 = arith.constant 0 : index
    %152 = vector.load %arg34[%c0_142, %c0_143] : memref<4x1536xbf16, #tpu.memory_space<vmem>>, vector<1x512xbf16>
    tpu.vector_store %arg34[%c0_142, %c0_143], %150 {strides = array<i32>} : memref<4x1536xbf16, #tpu.memory_space<vmem>>, vector<1x512xbf16>,
    %153 = vector.extract_strided_slice %148 {offsets = [0, 0], sizes = [3, 512], strides = [1, 1]} : vector<4x512xbf16> to vector<3x512xbf16>
    %c1_144 = arith.constant 1 : index
    %c0_145 = arith.constant 0 : index
    %154 = vector.load %arg34[%c1_144, %c0_145] : memref<4x1536xbf16, #tpu.memory_space<vmem>>, vector<3x512xbf16>
    tpu.vector_store %arg34[%c1_144, %c0_145], %153 {strides = array<i32>} : memref<4x1536xbf16, #tpu.memory_space<vmem>>, vector<3x512xbf16>,
    %155 = vector.extract_strided_slice %148 {offsets = [1, 0], sizes = [3, 512], strides = [1, 1]} : vector<4x512xbf16> to vector<3x512xbf16>
    %c0_146 = arith.constant 0 : index
    %c1024 = arith.constant 1024 : index
    %156 = vector.load %arg34[%c0_146, %c1024] : memref<4x1536xbf16, #tpu.memory_space<vmem>>, vector<3x512xbf16>
    tpu.vector_store %arg34[%c0_146, %c1024], %155 {strides = array<i32>} : memref<4x1536xbf16, #tpu.memory_space<vmem>>, vector<3x512xbf16>,
    %c3_147 = arith.constant 3 : index
    %c1024_148 = arith.constant 1024 : index
    %157 = vector.load %arg34[%c3_147, %c1024_148] : memref<4x1536xbf16, #tpu.memory_space<vmem>>, vector<1x512xbf16>
    tpu.vector_store %arg34[%c3_147, %c1024_148], %150 {strides = array<i32>} : memref<4x1536xbf16, #tpu.memory_space<vmem>>, vector<1x512xbf16>,
    %c0_149 = arith.constant 0 : index
    %c0_150 = arith.constant 0 : index
    %158 = vector.load %arg34[%c0_149, %c0_150] : memref<4x1536xbf16, #tpu.memory_space<vmem>>, vector<4x1536xbf16>
    %c0_151 = arith.constant 0 : index
    %c0_152 = arith.constant 0 : index
    %159 = vector.load %arg21[%c0_151, %c0_152] : memref<1536x512xbf16, #tpu.memory_space<vmem>>, vector<1536x512xbf16>
    %cst_153 = arith.constant dense<0.000000e+00> : vector<4x512xf32>
    %160 = tpu.matmul %158, %159, %cst_153 {dimension_numbers = #tpu.dot_dimension_numbers<[1], [0], [0], [1], [0, 0, 1, 1], [], []>} : vector<4x1536xbf16>, vector<1536x512xbf16>, vector<4x512xf32> -> vector<4x512xf32>
    %c0_154 = arith.constant 0 : index
    %c0_155 = arith.constant 0 : index
    %161 = vector.load %arg22[%c0_154, %c0_155] : memref<1x512xf32, #tpu.memory_space<vmem>>, vector<1x512xf32>
    %162 = vector.broadcast %161 : vector<1x512xf32> to vector<4x512xf32>
    %163 = arith.mulf %160, %162 : vector<4x512xf32>
    %c0_156 = arith.constant 0 : index
    %c0_157 = arith.constant 0 : index
    %164 = vector.load %arg23[%c0_156, %c0_157] : memref<1x512xf32, #tpu.memory_space<vmem>>, vector<1x512xf32>
    %165 = vector.broadcast %164 : vector<1x512xf32> to vector<4x512xf32>
    %166 = arith.addf %163, %165 : vector<4x512xf32>
    %167 = arith.addf %166, %149 : vector<4x512xf32>
    %cst_158 = arith.constant 0.000000e+00 : f32
    %168 = vector.broadcast %cst_158 : f32 to vector<4x512xf32>
    %169 = arith.maximumf %167, %168 : vector<4x512xf32>
    %cst_159 = arith.constant dense<0.000000e+00> : vector<512xf32>
    %170 = vector.multi_reduction <add>, %169, %cst_159 [0] : vector<4x512xf32> to vector<512xf32>
    %171 = vector.shape_cast %170 : vector<512xf32> to vector<1x512xf32>
    %cst_160 = arith.constant 2.500000e-01 : f32
    %172 = vector.broadcast %cst_160 : f32 to vector<1x512xf32>
    %173 = arith.mulf %171, %172 : vector<1x512xf32>
    %c0_161 = arith.constant 0 : index
    %c0_162 = arith.constant 0 : index
    %174 = vector.load %arg24[%c0_161, %c0_162] : memref<512x10xf32, #tpu.memory_space<vmem>>, vector<512x10xf32>
    %cst_163 = arith.constant dense<0.000000e+00> : vector<1x10xf32>
    %175 = tpu.matmul %173, %174, %cst_163 {dimension_numbers = #tpu.dot_dimension_numbers<[1], [0], [0], [1], [0, 0, 1, 1], [], []>} : vector<1x512xf32>, vector<512x10xf32>, vector<1x10xf32> -> vector<1x10xf32>
    %c0_164 = arith.constant 0 : index
    %c0_165 = arith.constant 0 : index
    %176 = vector.load %arg25[%c0_164, %c0_165] : memref<1x10xf32, #tpu.memory_space<vmem>>, vector<1x10xf32>
    %177 = arith.addf %175, %176 : vector<1x10xf32>
    %c0_166 = arith.constant 0 : index
    %c0_167 = arith.constant 0 : index
    %c0_168 = arith.constant 0 : index
    %178 = vector.load %arg26[%c0_166, %c0_167, %c0_168] : memref<1x1x10xf32, #tpu.memory_space<vmem>>, vector<1x1x10xf32>
    %179 = vector.shape_cast %178 : vector<1x1x10xf32> to vector<1x10xf32>
    %180 = vector.shape_cast %177 : vector<1x10xf32> to vector<1x1x10xf32>
    tpu.vector_store %arg26[%c0_166, %c0_167, %c0_168], %180 {strides = array<i32>} : memref<1x1x10xf32, #tpu.memory_space<vmem>>, vector<1x1x10xf32>,
    return
  }
  func.func @transform_0(%arg0: i32) -> (i32, i32, i32) {
    %c0_i32 = arith.constant 0 : i32
    %c0_i32_0 = arith.constant 0 : i32
    %c0_i32_1 = arith.constant 0 : i32
    return %arg0, %c0_i32, %c0_i32_0 : i32, i32, i32
  }
  func.func @transform_1(%arg0: i32) -> (i32, i32) {
    %c0_i32 = arith.constant 0 : i32
    %c0_i32_0 = arith.constant 0 : i32
    %c0_i32_1 = arith.constant 0 : i32
    return %c0_i32, %c0_i32_0 : i32, i32
  }
  func.func @transform_2(%arg0: i32) -> (i32, i32) {
    %c0_i32 = arith.constant 0 : i32
    %c0_i32_0 = arith.constant 0 : i32
    %c0_i32_1 = arith.constant 0 : i32
    return %c0_i32, %c0_i32_0 : i32, i32
  }
  func.func @transform_3(%arg0: i32) -> (i32, i32) {
    %c0_i32 = arith.constant 0 : i32
    %c0_i32_0 = arith.constant 0 : i32
    %c0_i32_1 = arith.constant 0 : i32
    return %c0_i32, %c0_i32_0 : i32, i32
  }
  func.func @transform_4(%arg0: i32) -> (i32, i32) {
    %c0_i32 = arith.constant 0 : i32
    %c0_i32_0 = arith.constant 0 : i32
    %c0_i32_1 = arith.constant 0 : i32
    return %c0_i32, %c0_i32_0 : i32, i32
  }
  func.func @transform_5(%arg0: i32) -> (i32, i32) {
    %c0_i32 = arith.constant 0 : i32
    %c0_i32_0 = arith.constant 0 : i32
    %c0_i32_1 = arith.constant 0 : i32
    return %c0_i32, %c0_i32_0 : i32, i32
  }
  func.func @transform_6(%arg0: i32) -> (i32, i32) {
    %c0_i32 = arith.constant 0 : i32
    %c0_i32_0 = arith.constant 0 : i32
    %c0_i32_1 = arith.constant 0 : i32
    return %c0_i32, %c0_i32_0 : i32, i32
  }
  func.func @transform_7(%arg0: i32) -> (i32, i32) {
    %c0_i32 = arith.constant 0 : i32
    %c0_i32_0 = arith.constant 0 : i32
    %c0_i32_1 = arith.constant 0 : i32
    return %c0_i32, %c0_i32_0 : i32, i32
  }
  func.func @transform_8(%arg0: i32) -> (i32, i32) {
    %c0_i32 = arith.constant 0 : i32
    %c0_i32_0 = arith.constant 0 : i32
    %c0_i32_1 = arith.constant 0 : i32
    return %c0_i32, %c0_i32_0 : i32, i32
  }
  func.func @transform_9(%arg0: i32) -> (i32, i32) {
    %c0_i32 = arith.constant 0 : i32
    %c0_i32_0 = arith.constant 0 : i32
    %c0_i32_1 = arith.constant 0 : i32
    return %c0_i32, %c0_i32_0 : i32, i32
  }
  func.func @transform_10(%arg0: i32) -> (i32, i32) {
    %c0_i32 = arith.constant 0 : i32
    %c0_i32_0 = arith.constant 0 : i32
    %c0_i32_1 = arith.constant 0 : i32
    return %c0_i32, %c0_i32_0 : i32, i32
  }
  func.func @transform_11(%arg0: i32) -> (i32, i32) {
    %c0_i32 = arith.constant 0 : i32
    %c0_i32_0 = arith.constant 0 : i32
    %c0_i32_1 = arith.constant 0 : i32
    return %c0_i32, %c0_i32_0 : i32, i32
  }
  func.func @transform_12(%arg0: i32) -> (i32, i32) {
    %c0_i32 = arith.constant 0 : i32
    %c0_i32_0 = arith.constant 0 : i32
    %c0_i32_1 = arith.constant 0 : i32
    return %c0_i32, %c0_i32_0 : i32, i32
  }
  func.func @transform_13(%arg0: i32) -> (i32, i32) {
    %c0_i32 = arith.constant 0 : i32
    %c0_i32_0 = arith.constant 0 : i32
    %c0_i32_1 = arith.constant 0 : i32
    return %c0_i32, %c0_i32_0 : i32, i32
  }
  func.func @transform_14(%arg0: i32) -> (i32, i32) {
    %c0_i32 = arith.constant 0 : i32
    %c0_i32_0 = arith.constant 0 : i32
    %c0_i32_1 = arith.constant 0 : i32
    return %c0_i32, %c0_i32_0 : i32, i32
  }
  func.func @transform_15(%arg0: i32) -> (i32, i32) {
    %c0_i32 = arith.constant 0 : i32
    %c0_i32_0 = arith.constant 0 : i32
    %c0_i32_1 = arith.constant 0 : i32
    return %c0_i32, %c0_i32_0 : i32, i32
  }
  func.func @transform_16(%arg0: i32) -> (i32, i32) {
    %c0_i32 = arith.constant 0 : i32
    %c0_i32_0 = arith.constant 0 : i32
    %c0_i32_1 = arith.constant 0 : i32
    return %c0_i32, %c0_i32_0 : i32, i32
  }
  func.func @transform_17(%arg0: i32) -> (i32, i32) {
    %c0_i32 = arith.constant 0 : i32
    %c0_i32_0 = arith.constant 0 : i32
    %c0_i32_1 = arith.constant 0 : i32
    return %c0_i32, %c0_i32_0 : i32, i32
  }
  func.func @transform_18(%arg0: i32) -> (i32, i32) {
    %c0_i32 = arith.constant 0 : i32
    %c0_i32_0 = arith.constant 0 : i32
    %c0_i32_1 = arith.constant 0 : i32
    return %c0_i32, %c0_i32_0 : i32, i32
  }
  func.func @transform_19(%arg0: i32) -> (i32, i32) {
    %c0_i32 = arith.constant 0 : i32
    %c0_i32_0 = arith.constant 0 : i32
    %c0_i32_1 = arith.constant 0 : i32
    return %c0_i32, %c0_i32_0 : i32, i32
  }
  func.func @transform_20(%arg0: i32) -> (i32, i32) {
    %c0_i32 = arith.constant 0 : i32
    %c0_i32_0 = arith.constant 0 : i32
    %c0_i32_1 = arith.constant 0 : i32
    return %c0_i32, %c0_i32_0 : i32, i32
  }
  func.func @transform_21(%arg0: i32) -> (i32, i32) {
    %c0_i32 = arith.constant 0 : i32
    %c0_i32_0 = arith.constant 0 : i32
    %c0_i32_1 = arith.constant 0 : i32
    return %c0_i32, %c0_i32_0 : i32, i32
  }
  func.func @transform_22(%arg0: i32) -> (i32, i32) {
    %c0_i32 = arith.constant 0 : i32
    %c0_i32_0 = arith.constant 0 : i32
    %c0_i32_1 = arith.constant 0 : i32
    return %c0_i32, %c0_i32_0 : i32, i32
  }
  func.func @transform_23(%arg0: i32) -> (i32, i32) {
    %c0_i32 = arith.constant 0 : i32
    %c0_i32_0 = arith.constant 0 : i32
    %c0_i32_1 = arith.constant 0 : i32
    return %c0_i32, %c0_i32_0 : i32, i32
  }
  func.func @transform_24(%arg0: i32) -> (i32, i32) {
    %c0_i32 = arith.constant 0 : i32
    %c0_i32_0 = arith.constant 0 : i32
    %c0_i32_1 = arith.constant 0 : i32
    return %c0_i32, %c0_i32_0 : i32, i32
  }
  func.func @transform_25(%arg0: i32) -> (i32, i32, i32) {
    %c0_i32 = arith.constant 0 : i32
    %c0_i32_0 = arith.constant 0 : i32
    %c0_i32_1 = arith.constant 0 : i32
    return %arg0, %c0_i32, %c0_i32_0 : i32, i32, i32
  }
}

</mosaic_0001>

<llo_original>
// kernel: cnn_model_forward.1
$region0: #{cnn_model_forward.1}
  #allocation0 [shape = 'u32[]', space=smem, size = 0x4, offset = 0x4, fixed_abs, tag = 'smem constant byte address 0x4 - core index']
  #allocation1 [shape = 'u32[144,128]{1,0:T(1,128)}', space=vmem, size = 0x12000, scoped, tag = 'internal scratch']
  #allocation2 [shape = 'bf16[22,4]{1,0:T(8,128)(2,1)}', space=vmem, size = 0x1800, scoped, tag = 'scratch operand']
  #allocation3 [shape = 'bf16[16,28]{1,0:T(8,128)(2,1)}', space=vmem, size = 0x1000, scoped, tag = 'scratch operand']
  #allocation4 [shape = 'bf16[4,192]{1,0:T(4,128)(2,1)}', space=vmem, size = 0x800, scoped, tag = 'scratch operand']
  #allocation5 [shape = 'bf16[4,384]{1,0:T(4,128)(2,1)}', space=vmem, size = 0xc00, scoped, tag = 'scratch operand']
  #allocation6 [shape = 'bf16[4,384]{1,0:T(4,128)(2,1)}', space=vmem, size = 0xc00, scoped, tag = 'scratch operand']
  #allocation7 [shape = 'bf16[4,768]{1,0:T(4,128)(2,1)}', space=vmem, size = 0x1800, scoped, tag = 'scratch operand']
  #allocation8 [shape = 'bf16[4,768]{1,0:T(4,128)(2,1)}', space=vmem, size = 0x1800, scoped, tag = 'scratch operand']
  #allocation9 [shape = 'bf16[4,1536]{1,0:T(4,128)(2,1)}', space=vmem, size = 0x3000, scoped, tag = 'scratch operand']
  %s0 = inlined_call_operand.vmem [shape: f32[2,16,4], index: 0, kind: input, shape index: {}]
  %s1 = inlined_call_operand.vmem [shape: bf16[12,16], index: 1, kind: input, shape index: {}]
  %s2 = inlined_call_operand.vmem [shape: bf16[28,64], index: 2, kind: input, shape index: {}]
  %s3 = inlined_call_operand.vmem [shape: f32[1,64], index: 3, kind: input, shape index: {}]
  %s4 = inlined_call_operand.vmem [shape: f32[1,64], index: 4, kind: input, shape index: {}]
  %s5 = inlined_call_operand.vmem [shape: bf16[192,256], index: 5, kind: input, shape index: {}]
  %s6 = inlined_call_operand.vmem [shape: f32[1,256], index: 6, kind: input, shape index: {}]
  %s7 = inlined_call_operand.vmem [shape: f32[1,256], index: 7, kind: input, shape index: {}]
  %s8 = inlined_call_operand.vmem [shape: bf16[384,128], index: 8, kind: input, shape index: {}]
  %s9 = inlined_call_operand.vmem [shape: f32[1,128], index: 9, kind: input, shape index: {}]
  %s10 = inlined_call_operand.vmem [shape: f32[1,128], index: 10, kind: input, shape index: {}]
  %s11 = inlined_call_operand.vmem [shape: bf16[384,512], index: 11, kind: input, shape index: {}]
  %s12 = inlined_call_operand.vmem [shape: f32[1,512], index: 12, kind: input, shape index: {}]
  %s13 = inlined_call_operand.vmem [shape: f32[1,512], index: 13, kind: input, shape index: {}]
  %s14 = inlined_call_operand.vmem [shape: bf16[768,256], index: 14, kind: input, shape index: {}]
  %s15 = inlined_call_operand.vmem [shape: f32[1,256], index: 15, kind: input, shape index: {}]
  %s16 = inlined_call_operand.vmem [shape: f32[1,256], index: 16, kind: input, shape index: {}]
  %s17 = inlined_call_operand.vmem [shape: bf16[768,1024], index: 17, kind: input, shape index: {}]
  %s18 = inlined_call_operand.vmem [shape: f32[1,1024], index: 18, kind: input, shape index: {}]
  %s19 = inlined_call_operand.vmem [shape: f32[1,1024], index: 19, kind: input, shape index: {}]
  %s20 = inlined_call_operand.vmem [shape: bf16[1536,512], index: 20, kind: input, shape index: {}]
  %s21 = inlined_call_operand.vmem [shape: f32[1,512], index: 21, kind: input, shape index: {}]
  %s22 = inlined_call_operand.vmem [shape: f32[1,512], index: 22, kind: input, shape index: {}]
  %s23 = inlined_call_operand.vmem [shape: f32[512,10], index: 23, kind: input, shape index: {}]
  %s24 = inlined_call_operand.vmem [shape: f32[1,10], index: 24, kind: input, shape index: {}]
  %s25 = inlined_call_operand.hbm [shape: f32[2,1,10], index: 25, kind: output, shape index: {}]
  %s26 = sld [smem:[#allocation0]]
  $region133: #{cnn_model_forward.1} parent=0
    _
  %s28 = ssub.s32 1, %s26
  %s29 = scalar_select 0, %s28, %s26
  $region1: #{cnn_model_forward.1} parent=0
    #allocation10 [shape = 'u8[1024]{0}', space=vmem, size = 0x400, scoped, tag = 'output window, operand 0']
    #allocation11 [shape = 's32[2]{0}', space=sflag, size = 0x8, scoped, tag = 'scoped memory for cnn_model_forward.1']
    %30 = vsyncpa [#allocation11], 0
    %s31 = scalar_lea.sflag [#allocation11], 1
    %32 = vsyncpa %s31, 0
    loop: start=0, step=1, limit=4
    $region2: #{cnn_model_forward.1} parent=1 // loop_pre_header
      _
    $region3: #{cnn_model_forward.1} parent=1 // loop_header
      %s34 = sphi 0, %s38
      %p35 = scmp.ge.s32.totalorder %s34, 4
      %s44 = sphi 0, %s46
      %s47 = sphi 0, %s44
      %s48 = sphi 0, %s47
      %s64 = sphi 0, %s48
      %s68 = sphi 0, %s68
      %s70 = sphi 0, %s68
      %s71 = sphi 0, %s70
      %s85 = sphi 0, %s71
      %s89 = sphi 0, %s89
      %s91 = sphi 0, %s89
      %s92 = sphi 0, %s91
      %s106 = sphi 0, %s92
      %s110 = sphi 0, %s110
      %s112 = sphi 0, %s110
      %s113 = sphi 0, %s112
      %s127 = sphi 0, %s113
      %s131 = sphi 0, %s131
      %s133 = sphi 0, %s131
      %s134 = sphi 0, %s133
      %s148 = sphi 0, %s134
      %s152 = sphi 0, %s152
      %s154 = sphi 0, %s152
      %s155 = sphi 0, %s154
      %s169 = sphi 0, %s155
      %s173 = sphi 0, %s173
      %s175 = sphi 0, %s173
      %s176 = sphi 0, %s175
      %s190 = sphi 0, %s176
      %s194 = sphi 0, %s194
      %s196 = sphi 0, %s194
      %s197 = sphi 0, %s196
      %s211 = sphi 0, %s197
      %s215 = sphi 0, %s215
      %s217 = sphi 0, %s215
      %s218 = sphi 0, %s217
      %s232 = sphi 0, %s218
      %s236 = sphi 0, %s236
      %s238 = sphi 0, %s236
      %s239 = sphi 0, %s238
      %s253 = sphi 0, %s239
      %s257 = sphi 0, %s257
      %s259 = sphi 0, %s257
      %s260 = sphi 0, %s259
      %s274 = sphi 0, %s260
      %s278 = sphi 0, %s278
      %s280 = sphi 0, %s278
      %s281 = sphi 0, %s280
      %s295 = sphi 0, %s281
      %s299 = sphi 0, %s299
      %s301 = sphi 0, %s299
      %s302 = sphi 0, %s301
      %s316 = sphi 0, %s302
      %s320 = sphi 0, %s320
      %s322 = sphi 0, %s320
      %s323 = sphi 0, %s322
      %s337 = sphi 0, %s323
      %s341 = sphi 0, %s341
      %s343 = sphi 0, %s341
      %s344 = sphi 0, %s343
      %s358 = sphi 0, %s344
      %s362 = sphi 0, %s362
      %s364 = sphi 0, %s362
      %s365 = sphi 0, %s364
      %s379 = sphi 0, %s365
      %s383 = sphi 0, %s383
      %s385 = sphi 0, %s383
      %s386 = sphi 0, %s385
      %s400 = sphi 0, %s386
      %s404 = sphi 0, %s404
      %s406 = sphi 0, %s404
      %s407 = sphi 0, %s406
      %s421 = sphi 0, %s407
      %s425 = sphi 0, %s425
      %s427 = sphi 0, %s425
      %s428 = sphi 0, %s427
      %s442 = sphi 0, %s428
      %s446 = sphi 0, %s446
      %s448 = sphi 0, %s446
      %s449 = sphi 0, %s448
      %s463 = sphi 0, %s449
      %s467 = sphi 0, %s467
      %s469 = sphi 0, %s467
      %s470 = sphi 0, %s469
      %s484 = sphi 0, %s470
      %s488 = sphi 0, %s488
      %s490 = sphi 0, %s488
      %s491 = sphi 0, %s490
      %s505 = sphi 0, %s491
      %s509 = sphi 0, %s509
      %s511 = sphi 0, %s509
      %s512 = sphi 0, %s511
      %s526 = sphi 0, %s512
      %s530 = sphi 0, %s530
      %s532 = sphi 0, %s530
      %s533 = sphi 0, %s532
      %s547 = sphi 0, %s533
      %s551 = sphi 0, %s551
      %s553 = sphi 0, %s551
      %s554 = sphi 0, %s553
      %s568 = sphi 0, %s554
      %s574 = sphi 0, %s576
      %s577 = sphi 0, %s574
      %s578 = sphi 0, %s577
      %s594 = sphi 0, %s578
    $region4: #{cnn_model_forward.1} parent=1 // loop_header_branch
      %37 = sbr.rel (%p35) target = $region8
    $region5: #{cnn_model_forward.1} parent=1 // loop_body
      %s39 = ssub.s32 %s34, 1
      %s40 = ssub.s32 %s34, 2
      %s41 = sadd.s32 %s34, 1
      %s42 = ssub.s32 %s34, %s41
      %p43 = scmp.eq.s32.totalorder %s42, 0
      %s45 = sadd.s32 %s44, 1
      %s46 = scalar_select %p43, %s44, %s45
      %p49 = pneg %p43
      %p50 = scmp.eq.s32.totalorder %s34, 1
      %p51 = por %p49, %p50
      %p52 = scmp.ne.s32.totalorder %s44, %s47
      %p53 = scmp.eq.s32.totalorder %s34, 0
      %p54 = por %p52, %p53
      %p55 = scmp.ne.s32.totalorder %s44, %s47
      %p56 = scmp.eq.s32.totalorder %s39, 1
      %p57 = por %p55, %p56
      %p58 = scmp.ne.s32.totalorder %s47, %s48
      %p59 = scmp.eq.s32.totalorder %s39, 0
      %p60 = por %p58, %p59
      %p61 = scmp.ne.s32.totalorder %s47, %s48
      %p62 = scmp.eq.s32.totalorder %s40, 1
      %p63 = por %p61, %p62
      %p65 = scmp.ne.s32.totalorder %s48, %s64
      %p66 = scmp.eq.s32.totalorder %s40, 0
      %p67 = por %p65, %p66
      %s69 = sadd.s32 %s68, 1
      %p72 = scmp.eq.s32.totalorder %s34, 1
      %p73 = scmp.ne.s32.totalorder %s68, %s70
      %p74 = scmp.eq.s32.totalorder %s34, 0
      %p75 = por %p73, %p74
      %p76 = scmp.ne.s32.totalorder %s68, %s70
      %p77 = scmp.eq.s32.totalorder %s39, 1
      %p78 = por %p76, %p77
      %p79 = scmp.ne.s32.totalorder %s70, %s71
      %p80 = scmp.eq.s32.totalorder %s39, 0
      %p81 = por %p79, %p80
      %p82 = scmp.ne.s32.totalorder %s70, %s71
      %p83 = scmp.eq.s32.totalorder %s40, 1
      %p84 = por %p82, %p83
      %p86 = scmp.ne.s32.totalorder %s71, %s85
      %p87 = scmp.eq.s32.totalorder %s40, 0
      %p88 = por %p86, %p87
      %s90 = sadd.s32 %s89, 1
      %p93 = scmp.eq.s32.totalorder %s34, 1
      %p94 = scmp.ne.s32.totalorder %s89, %s91
      %p95 = scmp.eq.s32.totalorder %s34, 0
      %p96 = por %p94, %p95
      %p97 = scmp.ne.s32.totalorder %s89, %s91
      %p98 = scmp.eq.s32.totalorder %s39, 1
      %p99 = por %p97, %p98
      %p100 = scmp.ne.s32.totalorder %s91, %s92
      %p101 = scmp.eq.s32.totalorder %s39, 0
      %p102 = por %p100, %p101
      %p103 = scmp.ne.s32.totalorder %s91, %s92
      %p104 = scmp.eq.s32.totalorder %s40, 1
      %p105 = por %p103, %p104
      %p107 = scmp.ne.s32.totalorder %s92, %s106
      %p108 = scmp.eq.s32.totalorder %s40, 0
      %p109 = por %p107, %p108
      %s111 = sadd.s32 %s110, 1
      %p114 = scmp.eq.s32.totalorder %s34, 1
      %p115 = scmp.ne.s32.totalorder %s110, %s112
      %p116 = scmp.eq.s32.totalorder %s34, 0
      %p117 = por %p115, %p116
      %p118 = scmp.ne.s32.totalorder %s110, %s112
      %p119 = scmp.eq.s32.totalorder %s39, 1
      %p120 = por %p118, %p119
      %p121 = scmp.ne.s32.totalorder %s112, %s113
      %p122 = scmp.eq.s32.totalorder %s39, 0
      %p123 = por %p121, %p122
      %p124 = scmp.ne.s32.totalorder %s112, %s113
      %p125 = scmp.eq.s32.totalorder %s40, 1
      %p126 = por %p124, %p125
      %p128 = scmp.ne.s32.totalorder %s113, %s127
      %p129 = scmp.eq.s32.totalorder %s40, 0
      %p130 = por %p128, %p129
      %s132 = sadd.s32 %s131, 1
      %p135 = scmp.eq.s32.totalorder %s34, 1
      %p136 = scmp.ne.s32.totalorder %s131, %s133
      %p137 = scmp.eq.s32.totalorder %s34, 0
      %p138 = por %p136, %p137
      %p139 = scmp.ne.s32.totalorder %s131, %s133
      %p140 = scmp.eq.s32.totalorder %s39, 1
      %p141 = por %p139, %p140
      %p142 = scmp.ne.s32.totalorder %s133, %s134
      %p143 = scmp.eq.s32.totalorder %s39, 0
      %p144 = por %p142, %p143
      %p145 = scmp.ne.s32.totalorder %s133, %s134
      %p146 = scmp.eq.s32.totalorder %s40, 1
      %p147 = por %p145, %p146
      %p149 = scmp.ne.s32.totalorder %s134, %s148
      %p150 = scmp.eq.s32.totalorder %s40, 0
      %p151 = por %p149, %p150
      %s153 = sadd.s32 %s152, 1
      %p156 = scmp.eq.s32.totalorder %s34, 1
      %p157 = scmp.ne.s32.totalorder %s152, %s154
      %p158 = scmp.eq.s32.totalorder %s34, 0
      %p159 = por %p157, %p158
      %p160 = scmp.ne.s32.totalorder %s152, %s154
      %p161 = scmp.eq.s32.totalorder %s39, 1
      %p162 = por %p160, %p161
      %p163 = scmp.ne.s32.totalorder %s154, %s155
      %p164 = scmp.eq.s32.totalorder %s39, 0
      %p165 = por %p163, %p164
      %p166 = scmp.ne.s32.totalorder %s154, %s155
      %p167 = scmp.eq.s32.totalorder %s40, 1
      %p168 = por %p166, %p167
      %p170 = scmp.ne.s32.totalorder %s155, %s169
      %p171 = scmp.eq.s32.totalorder %s40, 0
      %p172 = por %p170, %p171
      %s174 = sadd.s32 %s173, 1
      %p177 = scmp.eq.s32.totalorder %s34, 1
      %p178 = scmp.ne.s32.totalorder %s173, %s175
      %p179 = scmp.eq.s32.totalorder %s34, 0
      %p180 = por %p178, %p179
      %p181 = scmp.ne.s32.totalorder %s173, %s175
      %p182 = scmp.eq.s32.totalorder %s39, 1
      %p183 = por %p181, %p182
      %p184 = scmp.ne.s32.totalorder %s175, %s176
      %p185 = scmp.eq.s32.totalorder %s39, 0
      %p186 = por %p184, %p185
      %p187 = scmp.ne.s32.totalorder %s175, %s176
      %p188 = scmp.eq.s32.totalorder %s40, 1
      %p189 = por %p187, %p188
      %p191 = scmp.ne.s32.totalorder %s176, %s190
      %p192 = scmp.eq.s32.totalorder %s40, 0
      %p193 = por %p191, %p192
      %s195 = sadd.s32 %s194, 1
      %p198 = scmp.eq.s32.totalorder %s34, 1
      %p199 = scmp.ne.s32.totalorder %s194, %s196
      %p200 = scmp.eq.s32.totalorder %s34, 0
      %p201 = por %p199, %p200
      %p202 = scmp.ne.s32.totalorder %s194, %s196
      %p203 = scmp.eq.s32.totalorder %s39, 1
      %p204 = por %p202, %p203
      %p205 = scmp.ne.s32.totalorder %s196, %s197
      %p206 = scmp.eq.s32.totalorder %s39, 0
      %p207 = por %p205, %p206
      %p208 = scmp.ne.s32.totalorder %s196, %s197
      %p209 = scmp.eq.s32.totalorder %s40, 1
      %p210 = por %p208, %p209
      %p212 = scmp.ne.s32.totalorder %s197, %s211
      %p213 = scmp.eq.s32.totalorder %s40, 0
      %p214 = por %p212, %p213
      %s216 = sadd.s32 %s215, 1
      %p219 = scmp.eq.s32.totalorder %s34, 1
      %p220 = scmp.ne.s32.totalorder %s215, %s217
      %p221 = scmp.eq.s32.totalorder %s34, 0
      %p222 = por %p220, %p221
      %p223 = scmp.ne.s32.totalorder %s215, %s217
      %p224 = scmp.eq.s32.totalorder %s39, 1
      %p225 = por %p223, %p224
      %p226 = scmp.ne.s32.totalorder %s217, %s218
      %p227 = scmp.eq.s32.totalorder %s39, 0
      %p228 = por %p226, %p227
      %p229 = scmp.ne.s32.totalorder %s217, %s218
      %p230 = scmp.eq.s32.totalorder %s40, 1
      %p231 = por %p229, %p230
      %p233 = scmp.ne.s32.totalorder %s218, %s232
      %p234 = scmp.eq.s32.totalorder %s40, 0
      %p235 = por %p233, %p234
      %s237 = sadd.s32 %s236, 1
      %p240 = scmp.eq.s32.totalorder %s34, 1
      %p241 = scmp.ne.s32.totalorder %s236, %s238
      %p242 = scmp.eq.s32.totalorder %s34, 0
      %p243 = por %p241, %p242
      %p244 = scmp.ne.s32.totalorder %s236, %s238
      %p245 = scmp.eq.s32.totalorder %s39, 1
      %p246 = por %p244, %p245
      %p247 = scmp.ne.s32.totalorder %s238, %s239
      %p248 = scmp.eq.s32.totalorder %s39, 0
      %p249 = por %p247, %p248
      %p250 = scmp.ne.s32.totalorder %s238, %s239
      %p251 = scmp.eq.s32.totalorder %s40, 1
      %p252 = por %p250, %p251
      %p254 = scmp.ne.s32.totalorder %s239, %s253
      %p255 = scmp.eq.s32.totalorder %s40, 0
      %p256 = por %p254, %p255
      %s258 = sadd.s32 %s257, 1
      %p261 = scmp.eq.s32.totalorder %s34, 1
      %p262 = scmp.ne.s32.totalorder %s257, %s259
      %p263 = scmp.eq.s32.totalorder %s34, 0
      %p264 = por %p262, %p263
      %p265 = scmp.ne.s32.totalorder %s257, %s259
      %p266 = scmp.eq.s32.totalorder %s39, 1
      %p267 = por %p265, %p266
      %p268 = scmp.ne.s32.totalorder %s259, %s260
      %p269 = scmp.eq.s32.totalorder %s39, 0
      %p270 = por %p268, %p269
      %p271 = scmp.ne.s32.totalorder %s259, %s260
      %p272 = scmp.eq.s32.totalorder %s40, 1
      %p273 = por %p271, %p272
      %p275 = scmp.ne.s32.totalorder %s260, %s274
      %p276 = scmp.eq.s32.totalorder %s40, 0
      %p277 = por %p275, %p276
      %s279 = sadd.s32 %s278, 1
      %p282 = scmp.eq.s32.totalorder %s34, 1
      %p283 = scmp.ne.s32.totalorder %s278, %s280
      %p284 = scmp.eq.s32.totalorder %s34, 0
      %p285 = por %p283, %p284
      %p286 = scmp.ne.s32.totalorder %s278, %s280
      %p287 = scmp.eq.s32.totalorder %s39, 1
      %p288 = por %p286, %p287
      %p289 = scmp.ne.s32.totalorder %s280, %s281
      %p290 = scmp.eq.s32.totalorder %s39, 0
      %p291 = por %p289, %p290
      %p292 = scmp.ne.s32.totalorder %s280, %s281
      %p293 = scmp.eq.s32.totalorder %s40, 1
      %p294 = por %p292, %p293
      %p296 = scmp.ne.s32.totalorder %s281, %s295
      %p297 = scmp.eq.s32.totalorder %s40, 0
      %p298 = por %p296, %p297
      %s300 = sadd.s32 %s299, 1
      %p303 = scmp.eq.s32.totalorder %s34, 1
      %p304 = scmp.ne.s32.totalorder %s299, %s301
      %p305 = scmp.eq.s32.totalorder %s34, 0
      %p306 = por %p304, %p305
      %p307 = scmp.ne.s32.totalorder %s299, %s301
      %p308 = scmp.eq.s32.totalorder %s39, 1
      %p309 = por %p307, %p308
      %p310 = scmp.ne.s32.totalorder %s301, %s302
      %p311 = scmp.eq.s32.totalorder %s39, 0
      %p312 = por %p310, %p311
      %p313 = scmp.ne.s32.totalorder %s301, %s302
      %p314 = scmp.eq.s32.totalorder %s40, 1
      %p315 = por %p313, %p314
      %p317 = scmp.ne.s32.totalorder %s302, %s316
      %p318 = scmp.eq.s32.totalorder %s40, 0
      %p319 = por %p317, %p318
      %s321 = sadd.s32 %s320, 1
      %p324 = scmp.eq.s32.totalorder %s34, 1
      %p325 = scmp.ne.s32.totalorder %s320, %s322
      %p326 = scmp.eq.s32.totalorder %s34, 0
      %p327 = por %p325, %p326
      %p328 = scmp.ne.s32.totalorder %s320, %s322
      %p329 = scmp.eq.s32.totalorder %s39, 1
      %p330 = por %p328, %p329
      %p331 = scmp.ne.s32.totalorder %s322, %s323
      %p332 = scmp.eq.s32.totalorder %s39, 0
      %p333 = por %p331, %p332
      %p334 = scmp.ne.s32.totalorder %s322, %s323
      %p335 = scmp.eq.s32.totalorder %s40, 1
      %p336 = por %p334, %p335
      %p338 = scmp.ne.s32.totalorder %s323, %s337
      %p339 = scmp.eq.s32.totalorder %s40, 0
      %p340 = por %p338, %p339
      %s342 = sadd.s32 %s341, 1
      %p345 = scmp.eq.s32.totalorder %s34, 1
      %p346 = scmp.ne.s32.totalorder %s341, %s343
      %p347 = scmp.eq.s32.totalorder %s34, 0
      %p348 = por %p346, %p347
      %p349 = scmp.ne.s32.totalorder %s341, %s343
      %p350 = scmp.eq.s32.totalorder %s39, 1
      %p351 = por %p349, %p350
      %p352 = scmp.ne.s32.totalorder %s343, %s344
      %p353 = scmp.eq.s32.totalorder %s39, 0
      %p354 = por %p352, %p353
      %p355 = scmp.ne.s32.totalorder %s343, %s344
      %p356 = scmp.eq.s32.totalorder %s40, 1
      %p357 = por %p355, %p356
      %p359 = scmp.ne.s32.totalorder %s344, %s358
      %p360 = scmp.eq.s32.totalorder %s40, 0
      %p361 = por %p359, %p360
      %s363 = sadd.s32 %s362, 1
      %p366 = scmp.eq.s32.totalorder %s34, 1
      %p367 = scmp.ne.s32.totalorder %s362, %s364
      %p368 = scmp.eq.s32.totalorder %s34, 0
      %p369 = por %p367, %p368
      %p370 = scmp.ne.s32.totalorder %s362, %s364
      %p371 = scmp.eq.s32.totalorder %s39, 1
      %p372 = por %p370, %p371
      %p373 = scmp.ne.s32.totalorder %s364, %s365
      %p374 = scmp.eq.s32.totalorder %s39, 0
      %p375 = por %p373, %p374
      %p376 = scmp.ne.s32.totalorder %s364, %s365
      %p377 = scmp.eq.s32.totalorder %s40, 1
      %p378 = por %p376, %p377
      %p380 = scmp.ne.s32.totalorder %s365, %s379
      %p381 = scmp.eq.s32.totalorder %s40, 0
      %p382 = por %p380, %p381
      %s384 = sadd.s32 %s383, 1
      %p387 = scmp.eq.s32.totalorder %s34, 1
      %p388 = scmp.ne.s32.totalorder %s383, %s385
      %p389 = scmp.eq.s32.totalorder %s34, 0
      %p390 = por %p388, %p389
      %p391 = scmp.ne.s32.totalorder %s383, %s385
      %p392 = scmp.eq.s32.totalorder %s39, 1
      %p393 = por %p391, %p392
      %p394 = scmp.ne.s32.totalorder %s385, %s386
      %p395 = scmp.eq.s32.totalorder %s39, 0
      %p396 = por %p394, %p395
      %p397 = scmp.ne.s32.totalorder %s385, %s386
      %p398 = scmp.eq.s32.totalorder %s40, 1
      %p399 = por %p397, %p398
      %p401 = scmp.ne.s32.totalorder %s386, %s400
      %p402 = scmp.eq.s32.totalorder %s40, 0
      %p403 = por %p401, %p402
      %s405 = sadd.s32 %s404, 1
      %p408 = scmp.eq.s32.totalorder %s34, 1
      %p409 = scmp.ne.s32.totalorder %s404, %s406
      %p410 = scmp.eq.s32.totalorder %s34, 0
      %p411 = por %p409, %p410
      %p412 = scmp.ne.s32.totalorder %s404, %s406
      %p413 = scmp.eq.s32.totalorder %s39, 1
      %p414 = por %p412, %p413
      %p415 = scmp.ne.s32.totalorder %s406, %s407
      %p416 = scmp.eq.s32.totalorder %s39, 0
      %p417 = por %p415, %p416
      %p418 = scmp.ne.s32.totalorder %s406, %s407
      %p419 = scmp.eq.s32.totalorder %s40, 1
      %p420 = por %p418, %p419
      %p422 = scmp.ne.s32.totalorder %s407, %s421
      %p423 = scmp.eq.s32.totalorder %s40, 0
      %p424 = por %p422, %p423
      %s426 = sadd.s32 %s425, 1
      %p429 = scmp.eq.s32.totalorder %s34, 1
      %p430 = scmp.ne.s32.totalorder %s425, %s427
      %p431 = scmp.eq.s32.totalorder %s34, 0
      %p432 = por %p430, %p431
      %p433 = scmp.ne.s32.totalorder %s425, %s427
      %p434 = scmp.eq.s32.totalorder %s39, 1
      %p435 = por %p433, %p434
      %p436 = scmp.ne.s32.totalorder %s427, %s428
      %p437 = scmp.eq.s32.totalorder %s39, 0
      %p438 = por %p436, %p437
      %p439 = scmp.ne.s32.totalorder %s427, %s428
      %p440 = scmp.eq.s32.totalorder %s40, 1
      %p441 = por %p439, %p440
      %p443 = scmp.ne.s32.totalorder %s428, %s442
      %p444 = scmp.eq.s32.totalorder %s40, 0
      %p445 = por %p443, %p444
      %s447 = sadd.s32 %s446, 1
      %p450 = scmp.eq.s32.totalorder %s34, 1
      %p451 = scmp.ne.s32.totalorder %s446, %s448
      %p452 = scmp.eq.s32.totalorder %s34, 0
      %p453 = por %p451, %p452
      %p454 = scmp.ne.s32.totalorder %s446, %s448
      %p455 = scmp.eq.s32.totalorder %s39, 1
      %p456 = por %p454, %p455
      %p457 = scmp.ne.s32.totalorder %s448, %s449
      %p458 = scmp.eq.s32.totalorder %s39, 0
      %p459 = por %p457, %p458
      %p460 = scmp.ne.s32.totalorder %s448, %s449
      %p461 = scmp.eq.s32.totalorder %s40, 1
      %p462 = por %p460, %p461
      %p464 = scmp.ne.s32.totalorder %s449, %s463
      %p465 = scmp.eq.s32.totalorder %s40, 0
      %p466 = por %p464, %p465
      %s468 = sadd.s32 %s467, 1
      %p471 = scmp.eq.s32.totalorder %s34, 1
      %p472 = scmp.ne.s32.totalorder %s467, %s469
      %p473 = scmp.eq.s32.totalorder %s34, 0
      %p474 = por %p472, %p473
      %p475 = scmp.ne.s32.totalorder %s467, %s469
      %p476 = scmp.eq.s32.totalorder %s39, 1
      %p477 = por %p475, %p476
      %p478 = scmp.ne.s32.totalorder %s469, %s470
      %p479 = scmp.eq.s32.totalorder %s39, 0
      %p480 = por %p478, %p479
      %p481 = scmp.ne.s32.totalorder %s469, %s470
      %p482 = scmp.eq.s32.totalorder %s40, 1
      %p483 = por %p481, %p482
      %p485 = scmp.ne.s32.totalorder %s470, %s484
      %p486 = scmp.eq.s32.totalorder %s40, 0
      %p487 = por %p485, %p486
      %s489 = sadd.s32 %s488, 1
      %p492 = scmp.eq.s32.totalorder %s34, 1
      %p493 = scmp.ne.s32.totalorder %s488, %s490
      %p494 = scmp.eq.s32.totalorder %s34, 0
      %p495 = por %p493, %p494
      %p496 = scmp.ne.s32.totalorder %s488, %s490
      %p497 = scmp.eq.s32.totalorder %s39, 1
      %p498 = por %p496, %p497
      %p499 = scmp.ne.s32.totalorder %s490, %s491
      %p500 = scmp.eq.s32.totalorder %s39, 0
      %p501 = por %p499, %p500
      %p502 = scmp.ne.s32.totalorder %s490, %s491
      %p503 = scmp.eq.s32.totalorder %s40, 1
      %p504 = por %p502, %p503
      %p506 = scmp.ne.s32.totalorder %s491, %s505
      %p507 = scmp.eq.s32.totalorder %s40, 0
      %p508 = por %p506, %p507
      %s510 = sadd.s32 %s509, 1
      %p513 = scmp.eq.s32.totalorder %s34, 1
      %p514 = scmp.ne.s32.totalorder %s509, %s511
      %p515 = scmp.eq.s32.totalorder %s34, 0
      %p516 = por %p514, %p515
      %p517 = scmp.ne.s32.totalorder %s509, %s511
      %p518 = scmp.eq.s32.totalorder %s39, 1
      %p519 = por %p517, %p518
      %p520 = scmp.ne.s32.totalorder %s511, %s512
      %p521 = scmp.eq.s32.totalorder %s39, 0
      %p522 = por %p520, %p521
      %p523 = scmp.ne.s32.totalorder %s511, %s512
      %p524 = scmp.eq.s32.totalorder %s40, 1
      %p525 = por %p523, %p524
      %p527 = scmp.ne.s32.totalorder %s512, %s526
      %p528 = scmp.eq.s32.totalorder %s40, 0
      %p529 = por %p527, %p528
      %s531 = sadd.s32 %s530, 1
      %p534 = scmp.eq.s32.totalorder %s34, 1
      %p535 = scmp.ne.s32.totalorder %s530, %s532
      %p536 = scmp.eq.s32.totalorder %s34, 0
      %p537 = por %p535, %p536
      %p538 = scmp.ne.s32.totalorder %s530, %s532
      %p539 = scmp.eq.s32.totalorder %s39, 1
      %p540 = por %p538, %p539
      %p541 = scmp.ne.s32.totalorder %s532, %s533
      %p542 = scmp.eq.s32.totalorder %s39, 0
      %p543 = por %p541, %p542
      %p544 = scmp.ne.s32.totalorder %s532, %s533
      %p545 = scmp.eq.s32.totalorder %s40, 1
      %p546 = por %p544, %p545
      %p548 = scmp.ne.s32.totalorder %s533, %s547
      %p549 = scmp.eq.s32.totalorder %s40, 0
      %p550 = por %p548, %p549
      %s552 = sadd.s32 %s551, 1
      %p555 = scmp.eq.s32.totalorder %s34, 1
      %p556 = scmp.ne.s32.totalorder %s551, %s553
      %p557 = scmp.eq.s32.totalorder %s34, 0
      %p558 = por %p556, %p557
      %p559 = scmp.ne.s32.totalorder %s551, %s553
      %p560 = scmp.eq.s32.totalorder %s39, 1
      %p561 = por %p559, %p560
      %p562 = scmp.ne.s32.totalorder %s553, %s554
      %p563 = scmp.eq.s32.totalorder %s39, 0
      %p564 = por %p562, %p563
      %p565 = scmp.ne.s32.totalorder %s553, %s554
      %p566 = scmp.eq.s32.totalorder %s40, 1
      %p567 = por %p565, %p566
      %p569 = scmp.ne.s32.totalorder %s554, %s568
      %p570 = scmp.eq.s32.totalorder %s40, 0
      %p571 = por %p569, %p570
      %s572 = ssub.s32 %s34, %s41
      %p573 = scmp.eq.s32.totalorder %s572, 0
      %s575 = sadd.s32 %s574, 1
      %s576 = scalar_select %p573, %s574, %s575
      %p579 = pneg %p573
      %p580 = scmp.eq.s32.totalorder %s34, 1
      %p581 = por %p579, %p580
      %p582 = scmp.ne.s32.totalorder %s574, %s577
      %p583 = scmp.eq.s32.totalorder %s34, 0
      %p584 = por %p582, %p583
      %p585 = scmp.ne.s32.totalorder %s574, %s577
      %p586 = scmp.eq.s32.totalorder %s39, 1
      %p587 = por %p585, %p586
      %p588 = scmp.ne.s32.totalorder %s577, %s578
      %p589 = scmp.eq.s32.totalorder %s39, 0
      %p590 = por %p588, %p589
      %p591 = scmp.ne.s32.totalorder %s577, %s578
      %p592 = scmp.eq.s32.totalorder %s40, 1
      %p593 = por %p591, %p592
      %p595 = scmp.ne.s32.totalorder %s578, %s594
      %p596 = scmp.eq.s32.totalorder %s40, 0
      %p597 = por %p595, %p596
      %p598 = scmp.le.s32.totalorder 1, %s34
      %p599 = scmp.lt.s32.totalorder %s34, 3
      %p600 = pnand %p598, %p599
      %p601 = pneg %p600
      // Predicated region
      $region9: #{cnn_model_forward.1} parent=5 // pred_check
        _
      $region10: #{cnn_model_forward.1} parent=5 // pred_check_branch
        %603 = sbr.rel (%p600) target = $region12
      $region11: #{cnn_model_forward.1} parent=5 // pred_region
        %s604 = ssub.s32 %s34, 1
        // Predicated region
        $region13: #{cnn_model_forward.1} parent=11 // pred_check
          %p605 = pneg %p81
        $region14: #{cnn_model_forward.1} parent=11 // pred_check_branch
          %607 = sbr.rel (%p605) target = $region16
        $region15: #{cnn_model_forward.1} parent=11 // pred_region
          _
        $region16: #{cnn_model_forward.1} parent=11 // pred_fallthru
          _
        // Predicated region
        $region17: #{cnn_model_forward.1} parent=11 // pred_check
          %p608 = pneg %p102
        $region18: #{cnn_model_forward.1} parent=11 // pred_check_branch
          %610 = sbr.rel (%p608) target = $region20
        $region19: #{cnn_model_forward.1} parent=11 // pred_region
          _
        $region20: #{cnn_model_forward.1} parent=11 // pred_fallthru
          _
        // Predicated region
        $region21: #{cnn_model_forward.1} parent=11 // pred_check
          %p611 = pneg %p123
        $region22: #{cnn_model_forward.1} parent=11 // pred_check_branch
          %613 = sbr.rel (%p611) target = $region24
        $region23: #{cnn_model_forward.1} parent=11 // pred_region
          _
        $region24: #{cnn_model_forward.1} parent=11 // pred_fallthru
          _
        // Predicated region
        $region25: #{cnn_model_forward.1} parent=11 // pred_check
          %p614 = pneg %p144
        $region26: #{cnn_model_forward.1} parent=11 // pred_check_branch
          %616 = sbr.rel (%p614) target = $region28
        $region27: #{cnn_model_forward.1} parent=11 // pred_region
          _
        $region28: #{cnn_model_forward.1} parent=11 // pred_fallthru
          _
        // Predicated region
        $region29: #{cnn_model_forward.1} parent=11 // pred_check
          %p617 = pneg %p165
        $region30: #{cnn_model_forward.1} parent=11 // pred_check_branch
          %619 = sbr.rel (%p617) target = $region32
        $region31: #{cnn_model_forward.1} parent=11 // pred_region
          _
        $region32: #{cnn_model_forward.1} parent=11 // pred_fallthru
          _
        // Predicated region
        $region33: #{cnn_model_forward.1} parent=11 // pred_check
          %p620 = pneg %p186
        $region34: #{cnn_model_forward.1} parent=11 // pred_check_branch
          %622 = sbr.rel (%p620) target = $region36
        $region35: #{cnn_model_forward.1} parent=11 // pred_region
          _
        $region36: #{cnn_model_forward.1} parent=11 // pred_fallthru
          _
        // Predicated region
        $region37: #{cnn_model_forward.1} parent=11 // pred_check
          %p623 = pneg %p207
        $region38: #{cnn_model_forward.1} parent=11 // pred_check_branch
          %625 = sbr.rel (%p623) target = $region40
        $region39: #{cnn_model_forward.1} parent=11 // pred_region
          _
        $region40: #{cnn_model_forward.1} parent=11 // pred_fallthru
          _
        // Predicated region
        $region41: #{cnn_model_forward.1} parent=11 // pred_check
          %p626 = pneg %p228
        $region42: #{cnn_model_forward.1} parent=11 // pred_check_branch
          %628 = sbr.rel (%p626) target = $region44
        $region43: #{cnn_model_forward.1} parent=11 // pred_region
          _
        $region44: #{cnn_model_forward.1} parent=11 // pred_fallthru
          _
        // Predicated region
        $region45: #{cnn_model_forward.1} parent=11 // pred_check
          %p629 = pneg %p249
        $region46: #{cnn_model_forward.1} parent=11 // pred_check_branch
          %631 = sbr.rel (%p629) target = $region48
        $region47: #{cnn_model_forward.1} parent=11 // pred_region
          _
        $region48: #{cnn_model_forward.1} parent=11 // pred_fallthru
          _
        // Predicated region
        $region49: #{cnn_model_forward.1} parent=11 // pred_check
          %p632 = pneg %p270
        $region50: #{cnn_model_forward.1} parent=11 // pred_check_branch
          %634 = sbr.rel (%p632) target = $region52
        $region51: #{cnn_model_forward.1} parent=11 // pred_region
          _
        $region52: #{cnn_model_forward.1} parent=11 // pred_fallthru
          _
        // Predicated region
        $region53: #{cnn_model_forward.1} parent=11 // pred_check
          %p635 = pneg %p291
        $region54: #{cnn_model_forward.1} parent=11 // pred_check_branch
          %637 = sbr.rel (%p635) target = $region56
        $region55: #{cnn_model_forward.1} parent=11 // pred_region
          _
        $region56: #{cnn_model_forward.1} parent=11 // pred_fallthru
          _
        // Predicated region
        $region57: #{cnn_model_forward.1} parent=11 // pred_check
          %p638 = pneg %p312
        $region58: #{cnn_model_forward.1} parent=11 // pred_check_branch
          %640 = sbr.rel (%p638) target = $region60
        $region59: #{cnn_model_forward.1} parent=11 // pred_region
          _
        $region60: #{cnn_model_forward.1} parent=11 // pred_fallthru
          _
        // Predicated region
        $region61: #{cnn_model_forward.1} parent=11 // pred_check
          %p641 = pneg %p333
        $region62: #{cnn_model_forward.1} parent=11 // pred_check_branch
          %643 = sbr.rel (%p641) target = $region64
        $region63: #{cnn_model_forward.1} parent=11 // pred_region
          _
        $region64: #{cnn_model_forward.1} parent=11 // pred_fallthru
          _
        // Predicated region
        $region65: #{cnn_model_forward.1} parent=11 // pred_check
          %p644 = pneg %p354
        $region66: #{cnn_model_forward.1} parent=11 // pred_check_branch
          %646 = sbr.rel (%p644) target = $region68
        $region67: #{cnn_model_forward.1} parent=11 // pred_region
          _
        $region68: #{cnn_model_forward.1} parent=11 // pred_fallthru
          _
        // Predicated region
        $region69: #{cnn_model_forward.1} parent=11 // pred_check
          %p647 = pneg %p375
        $region70: #{cnn_model_forward.1} parent=11 // pred_check_branch
          %649 = sbr.rel (%p647) target = $region72
        $region71: #{cnn_model_forward.1} parent=11 // pred_region
          _
        $region72: #{cnn_model_forward.1} parent=11 // pred_fallthru
          _
        // Predicated region
        $region73: #{cnn_model_forward.1} parent=11 // pred_check
          %p650 = pneg %p396
        $region74: #{cnn_model_forward.1} parent=11 // pred_check_branch
          %652 = sbr.rel (%p650) target = $region76
        $region75: #{cnn_model_forward.1} parent=11 // pred_region
          _
        $region76: #{cnn_model_forward.1} parent=11 // pred_fallthru
          _
        // Predicated region
        $region77: #{cnn_model_forward.1} parent=11 // pred_check
          %p653 = pneg %p417
        $region78: #{cnn_model_forward.1} parent=11 // pred_check_branch
          %655 = sbr.rel (%p653) target = $region80
        $region79: #{cnn_model_forward.1} parent=11 // pred_region
          _
        $region80: #{cnn_model_forward.1} parent=11 // pred_fallthru
          _
        // Predicated region
        $region81: #{cnn_model_forward.1} parent=11 // pred_check
          %p656 = pneg %p438
        $region82: #{cnn_model_forward.1} parent=11 // pred_check_branch
          %658 = sbr.rel (%p656) target = $region84
        $region83: #{cnn_model_forward.1} parent=11 // pred_region
          _
        $region84: #{cnn_model_forward.1} parent=11 // pred_fallthru
          _
        // Predicated region
        $region85: #{cnn_model_forward.1} parent=11 // pred_check
          %p659 = pneg %p459
        $region86: #{cnn_model_forward.1} parent=11 // pred_check_branch
          %661 = sbr.rel (%p659) target = $region88
        $region87: #{cnn_model_forward.1} parent=11 // pred_region
          _
        $region88: #{cnn_model_forward.1} parent=11 // pred_fallthru
          _
        // Predicated region
        $region89: #{cnn_model_forward.1} parent=11 // pred_check
          %p662 = pneg %p480
        $region90: #{cnn_model_forward.1} parent=11 // pred_check_branch
          %664 = sbr.rel (%p662) target = $region92
        $region91: #{cnn_model_forward.1} parent=11 // pred_region
          _
        $region92: #{cnn_model_forward.1} parent=11 // pred_fallthru
          _
        // Predicated region
        $region93: #{cnn_model_forward.1} parent=11 // pred_check
          %p665 = pneg %p501
        $region94: #{cnn_model_forward.1} parent=11 // pred_check_branch
          %667 = sbr.rel (%p665) target = $region96
        $region95: #{cnn_model_forward.1} parent=11 // pred_region
          _
        $region96: #{cnn_model_forward.1} parent=11 // pred_fallthru
          _
        // Predicated region
        $region97: #{cnn_model_forward.1} parent=11 // pred_check
          %p668 = pneg %p522
        $region98: #{cnn_model_forward.1} parent=11 // pred_check_branch
          %670 = sbr.rel (%p668) target = $region100
        $region99: #{cnn_model_forward.1} parent=11 // pred_region
          _
        $region100: #{cnn_model_forward.1} parent=11 // pred_fallthru
          _
        // Predicated region
        $region101: #{cnn_model_forward.1} parent=11 // pred_check
          %p671 = pneg %p543
        $region102: #{cnn_model_forward.1} parent=11 // pred_check_branch
          %673 = sbr.rel (%p671) target = $region104
        $region103: #{cnn_model_forward.1} parent=11 // pred_region
          _
        $region104: #{cnn_model_forward.1} parent=11 // pred_fallthru
          _
        // Predicated region
        $region105: #{cnn_model_forward.1} parent=11 // pred_check
          %p674 = pneg %p564
        $region106: #{cnn_model_forward.1} parent=11 // pred_check_branch
          %676 = sbr.rel (%p674) target = $region108
        $region107: #{cnn_model_forward.1} parent=11 // pred_region
          _
        $region108: #{cnn_model_forward.1} parent=11 // pred_fallthru
          _
      $region12: #{cnn_model_forward.1} parent=5 // pred_fallthru
        _
      %p677 = scmp.lt.s32.totalorder %s34, 2
      // Predicated region
      $region109: #{cnn_model_forward.1} parent=5 // pred_check
        %p678 = pneg %p677
      $region110: #{cnn_model_forward.1} parent=5 // pred_check_branch
        %680 = sbr.rel (%p678) target = $region112
      $region111: #{cnn_model_forward.1} parent=5 // pred_region
        // Predicated region
        $region113: #{cnn_model_forward.1} parent=111 // pred_check
          %p681 = pneg %p54
        $region114: #{cnn_model_forward.1} parent=111 // pred_check_branch
          %683 = sbr.rel (%p681) target = $region116
        $region115: #{cnn_model_forward.1} parent=111 // pred_region
          %p684 = scmp.lt.s32.totalorder %s34, 1
          %s685 = scalar_select %p684, %s34, 1
          %s686 = smul.addr %s685, 2
          %s687 = smul.addr %s686, 8
          %s688 = scalar_lea.vmem %s0, %s687
        $region116: #{cnn_model_forward.1} parent=111 // pred_fallthru
          _
      $region112: #{cnn_model_forward.1} parent=5 // pred_fallthru
        _
      %p689 = scmp.le.s32.totalorder 1, %s34
      %p690 = scmp.lt.s32.totalorder %s34, 3
      %p691 = pnand %p689, %p690
      %p692 = pneg %p691
      // Predicated region
      $region117: #{cnn_model_forward.1} parent=5 // pred_check
        _
      $region118: #{cnn_model_forward.1} parent=5 // pred_check_branch
        %694 = sbr.rel (%p691) target = $region120
      $region119: #{cnn_model_forward.1} parent=5 // pred_region
        %s695 = ssub.s32 %s34, 1
        %p696 = scmp.lt.s32.totalorder %s39, 1
        %s697 = scalar_select %p696, %s39, 1
        %s698 = smul.addr %s697, 2
        %s699 = smul.addr %s698, 8
        %s700 = scalar_lea.vmem %s0, %s699
        %p701 = pneg %p60
        %p702 = pneg %p57
        %p703 = pneg %p81
        %p704 = pneg %p78
        %p705 = pneg %p102
        %p706 = pneg %p99
        %p707 = pneg %p123
        %p708 = pneg %p120
        %p709 = pneg %p144
        %p710 = pneg %p141
        %p711 = pneg %p165
        %p712 = pneg %p162
        %p713 = pneg %p186
        %p714 = pneg %p183
        %p715 = pneg %p207
        %p716 = pneg %p204
        %p717 = pneg %p228
        %p718 = pneg %p225
        %p719 = pneg %p249
        %p720 = pneg %p246
        %p721 = pneg %p270
        %p722 = pneg %p267
        %p723 = pneg %p291
        %p724 = pneg %p288
        %p725 = pneg %p312
        %p726 = pneg %p309
        %p727 = pneg %p333
        %p728 = pneg %p330
        %p729 = pneg %p354
        %p730 = pneg %p351
        %p731 = pneg %p375
        %p732 = pneg %p372
        %p733 = pneg %p396
        %p734 = pneg %p393
        %p735 = pneg %p417
        %p736 = pneg %p414
        %p737 = pneg %p438
        %p738 = pneg %p435
        %p739 = pneg %p459
        %p740 = pneg %p456
        %p741 = pneg %p480
        %p742 = pneg %p477
        %p743 = pneg %p501
        %p744 = pneg %p498
        %p745 = pneg %p522
        %p746 = pneg %p519
        %p747 = pneg %p543
        %p748 = pneg %p540
        %p749 = pneg %p564
        %p750 = pneg %p561
        %p751 = pneg %p590
        %p752 = pneg %p587
        %s753 = sand.u32 %s577, 1
        %s754 = scalar_lea.sflag [#allocation11], %s753
        %s755 = sand.u32 %s577, 1
        %s756 = scalar_lea.vmem [#allocation10], %s755
        %p757 = scmp.lt.s32.totalorder %s39, 1
        %s758 = scalar_select %p757, %s39, 1
        %s759 = smul.addr %s758, 2
        %s760 = smul.addr %s759, 8
        %s761 = scalar_lea.vmem %s0, %s760
        %vm763 = vcmask 25600
        %vm764 = vsmask.f32 1280
        %vm765 = vmand %vm763, %vm764
        %v766 = vld [vmem:[#allocation2] sm:$0x3]
        %v767 = vsel %vm765, 0, %v766
        %768 = vst [vmem:[#allocation2] sm:$0x3] %v767
        %v769 = vld [vmem:[%s761] sm:$0xff]
        %v770 = vld [vmem:[%s761 + $0x8] sm:$0xff]
        %v771 = vpack.c.bf16 %v770, %v769
        %v773 = vunpack.c.l.b16 %v771
        %v774 = vunpack.c.h.b16 %v771
        %v775 = vpack.c.b16 %v773, %v773
        %v776 = vpack.c.b16 %v774, %v774
        %vm777 = vsmask.f32 5392
        %vm778 = vmor %vm764, %vm777
        %v780 = vshrl.u32 %v775, 16
        %v782 = vrot.slane %v780, 6
        %v783 = vshll.u32 %v775, 16
        %v785 = vrot.slane %v783, 7
        %v786 = vor.u32 %v782, %v785
        %v787 = vrot.slane %v786, 4
        %v789 = vshrl.u32 %v776, 16
        %v791 = vrot.slane %v789, 6
        %v792 = vshll.u32 %v776, 16
        %v794 = vrot.slane %v792, 7
        %v795 = vor.u32 %v791, %v794
        %v796 = vsel %vm778, %v787, %v795
        %v797 = vrot.slane %v795, 4
        %vm801 = vcmask 27649
        %vm802 = vsmask.f32 7942
        %vm803 = vmand %vm801, %vm802
        %v804 = vld [vmem:[#allocation2] sm:$0xe]
        %v805 = vsel %vm803, %v786, %v804
        %806 = vst [vmem:[#allocation2] sm:$0xe] %v805
        %vm807 = vcmask 27648
        %808 = vst.msk [vmem:[#allocation2 + $0x4] sm:$0xf] %vm807, %v796
        %v809 = vld [vmem:[#allocation2 + $0x8] sm:$0x3]
        %v810 = vsel %vm765, %v797, %v809
        %811 = vst [vmem:[#allocation2 + $0x8] sm:$0x3] %v810
        %vm812 = vcmask 26625
        %vm813 = vmand %vm812, %vm802
        %v814 = vld [vmem:[#allocation2 + $0x8] sm:$0x6]
        %v815 = vsel %vm813, 0, %v814
        %816 = vst [vmem:[#allocation2 + $0x8] sm:$0x6] %v815
        %v817 = vld [vmem:[#allocation2] sm:$0xf]
        %v818 = vld [vmem:[#allocation2 + $0x4] sm:$0xf]
        %819 = vst.msk [vmem:[#allocation3] sm:$0xf] %vm807, %v817
        %820 = vst.msk [vmem:[#allocation3 + $0x4] sm:$0xf] %vm807, %v818
        %v821 = vld [vmem:[#allocation2] sm:$0xf]
        %v822 = vld [vmem:[#allocation2 + $0x4] sm:$0xf]
        %v823 = vld [vmem:[#allocation2 + $0x8] sm:$0x1]
        %vm824 = vsmask.f32 3328
        %vm825 = vsmask.f32 7440
        %vm826 = vmor %vm824, %vm825
        %v828 = vshrl.u32 %v821, 16
        %v830 = vrot.slane %v828, 4
        %v831 = vshll.u32 %v821, 16
        %v833 = vrot.slane %v831, 5
        %v834 = vor.u32 %v830, %v833
        %v835 = vrot.slane %v834, 4
        %v837 = vshll.u32 %v822, 16
        %v839 = vrot.slane %v837, 5
        %v840 = vsel %vm826, %v835, %v839
        %v841 = vshrl.u32 %v822, 16
        %v843 = vrot.slane %v841, 4
        %v844 = vor.u32 %v843, %v839
        %v845 = vrot.slane %v844, 4
        %v847 = vshll.u32 %v823, 16
        %v849 = vrot.slane %v847, 5
        %v850 = vsel %vm826, %v845, %v849
        %851 = vrot.lane.b32.xlu0 %v840, 4
        %v852 = vpop.permute.xlu0 %851
        %853 = vrot.lane.b32.xlu0 %v850, 4
        %v854 = vpop.permute.xlu0 %853
        %vm857 = vcmask 60448
        %858 = vst.msk [vmem:[#allocation3] sm:$0xf] %vm857, %v852
        %859 = vst.msk [vmem:[#allocation3 + $0x4] sm:$0xf] %vm857, %v854
        %v860 = vld [vmem:[#allocation2] sm:$0xe]
        %v861 = vld [vmem:[#allocation2 + $0x4] sm:$0xf]
        %v862 = vld [vmem:[#allocation2 + $0x8] sm:$0x1]
        %vm866 = vcmask 1042432
        %vm867 = vcmask 1046532
        %vm868 = vmor %vm866, %vm867
        %v869 = vrot.slane %v860, 5
        %v870 = vrot.slane %v869, 4
        %v871 = vrot.slane %v861, 5
        %v872 = vsel %vm868, %v870, %v871
        %v873 = vrot.slane %v871, 4
        %v874 = vrot.slane %v862, 5
        %v875 = vsel %vm868, %v873, %v874
        %876 = vrot.lane.b32.xlu0 %v872, 8
        %v877 = vpop.permute.xlu0 %876
        %878 = vrot.lane.b32.xlu0 %v875, 8
        %v879 = vpop.permute.xlu0 %878
        %vm882 = vcmask 93248
        %883 = vst.msk [vmem:[#allocation3] sm:$0xf] %vm882, %v877
        %884 = vst.msk [vmem:[#allocation3 + $0x4] sm:$0xf] %vm882, %v879
        %v885 = vld [vmem:[#allocation2] sm:$0xe]
        %v886 = vld [vmem:[#allocation2 + $0x4] sm:$0xf]
        %v887 = vld [vmem:[#allocation2 + $0x8] sm:$0x3]
        %vm888 = vsmask.f32 2304
        %vm889 = vsmask.f32 6416
        %vm890 = vmor %vm888, %vm889
        %v892 = vshrl.u32 %v885, 16
        %v894 = vrot.slane %v892, 5
        %v895 = vshll.u32 %v885, 16
        %v897 = vrot.slane %v895, 6
        %v898 = vor.u32 %v894, %v897
        %v899 = vrot.slane %v898, 4
        %v901 = vshrl.u32 %v886, 16
        %v903 = vrot.slane %v901, 5
        %v904 = vshll.u32 %v886, 16
        %v906 = vrot.slane %v904, 6
        %v907 = vor.u32 %v903, %v906
        %v908 = vsel %vm890, %v899, %v907
        %v909 = vrot.slane %v907, 4
        %v911 = vshrl.u32 %v887, 16
        %v913 = vrot.slane %v911, 5
        %v914 = vshll.u32 %v887, 16
        %v916 = vrot.slane %v914, 6
        %v917 = vor.u32 %v913, %v916
        %v918 = vsel %vm890, %v909, %v917
        %919 = vrot.lane.b32.xlu0 %v908, 12
        %v920 = vpop.permute.xlu0 %919
        %921 = vrot.lane.b32.xlu0 %v918, 12
        %v922 = vpop.permute.xlu0 %921
        %vm925 = vcmask 126048
        %926 = vst.msk [vmem:[#allocation3] sm:$0xf] %vm925, %v920
        %927 = vst.msk [vmem:[#allocation3 + $0x4] sm:$0xf] %vm925, %v922
        %v928 = vld [vmem:[#allocation2] sm:$0xc]
        %v929 = vld [vmem:[#allocation2 + $0x4] sm:$0xf]
        %v930 = vld [vmem:[#allocation2 + $0x8] sm:$0x3]
        %vm934 = vcmask 1041408
        %vm935 = vcmask 1045508
        %vm936 = vmor %vm934, %vm935
        %v937 = vrot.slane %v928, 6
        %v938 = vrot.slane %v937, 4
        %v939 = vrot.slane %v929, 6
        %v940 = vsel %vm936, %v938, %v939
        %v941 = vrot.slane %v939, 4
        %v942 = vrot.slane %v930, 6
        %v943 = vsel %vm936, %v941, %v942
        %944 = vrot.lane.b32.xlu0 %v940, 16
        %v945 = vpop.permute.xlu0 %944
        %946 = vrot.lane.b32.xlu0 %v943, 16
        %v947 = vpop.permute.xlu0 %946
        %vm950 = vcmask 158848
        %951 = vst.msk [vmem:[#allocation3] sm:$0xf] %vm950, %v945
        %952 = vst.msk [vmem:[#allocation3 + $0x4] sm:$0xf] %vm950, %v947
        %v953 = vld [vmem:[#allocation2] sm:$0xc]
        %v954 = vld [vmem:[#allocation2 + $0x4] sm:$0xf]
        %v955 = vld [vmem:[#allocation2 + $0x8] sm:$0x7]
        %v957 = vshrl.u32 %v953, 16
        %v959 = vrot.slane %v957, 6
        %v960 = vshll.u32 %v953, 16
        %v962 = vrot.slane %v960, 7
        %v963 = vor.u32 %v959, %v962
        %v964 = vrot.slane %v963, 4
        %v966 = vshrl.u32 %v954, 16
        %v968 = vrot.slane %v966, 6
        %v969 = vshll.u32 %v954, 16
        %v971 = vrot.slane %v969, 7
        %v972 = vor.u32 %v968, %v971
        %v973 = vsel %vm778, %v964, %v972
        %v974 = vrot.slane %v972, 4
        %v976 = vshrl.u32 %v955, 16
        %v978 = vrot.slane %v976, 6
        %v979 = vshll.u32 %v955, 16
        %v981 = vrot.slane %v979, 7
        %v982 = vor.u32 %v978, %v981
        %v983 = vsel %vm778, %v974, %v982
        %984 = vrot.lane.b32.xlu0 %v973, 20
        %v985 = vpop.permute.xlu0 %984
        %986 = vrot.lane.b32.xlu0 %v983, 20
        %v987 = vpop.permute.xlu0 %986
        %vm990 = vcmask 191648
        %991 = vst.msk [vmem:[#allocation3] sm:$0xf] %vm990, %v985
        %992 = vst.msk [vmem:[#allocation3 + $0x4] sm:$0xf] %vm990, %v987
        %v993 = vld [vmem:[#allocation2] sm:$0x8]
        %v994 = vld [vmem:[#allocation2 + $0x4] sm:$0xf]
        %v995 = vld [vmem:[#allocation2 + $0x8] sm:$0x7]
        %vm999 = vcmask 1040384
        %vm1000 = vcmask 1044484
        %vm1001 = vmor %vm999, %vm1000
        %v1002 = vrot.slane %v993, 7
        %v1003 = vrot.slane %v1002, 4
        %v1004 = vrot.slane %v994, 7
        %v1005 = vsel %vm1001, %v1003, %v1004
        %v1006 = vrot.slane %v1004, 4
        %v1007 = vrot.slane %v995, 7
        %v1008 = vsel %vm1001, %v1006, %v1007
        %1009 = vrot.lane.b32.xlu0 %v1005, 24
        %v1010 = vpop.permute.xlu0 %1009
        %1011 = vrot.lane.b32.xlu0 %v1008, 24
        %v1012 = vpop.permute.xlu0 %1011
        %vm1015 = vcmask 224448
        %1016 = vst.msk [vmem:[#allocation3] sm:$0xf] %vm1015, %v1010
        %1017 = vst.msk [vmem:[#allocation3 + $0x4] sm:$0xf] %vm1015, %v1012
        %v1018 = vld [vmem:[#allocation3] sm:$0xf]
        %v1019 = vld [vmem:[#allocation3 + $0x4] sm:$0xf]
        %v1020 = vld [vmem:[%s2] sm:$0xf]
        %v1021 = vld [vmem:[%s2 + $0x4] sm:$0xf]
        %v1022 = vld [vmem:[%s2 + $0x8] sm:$0xf]
        %v1023 = vld [vmem:[%s2 + $0xc] sm:$0x3]
        %v1026 = vunpack.c.l.b16 %v1018
        %v1027 = vunpack.c.l.b16 %v1019
        %v1028 = vpack.c.b16 %v1027, %v1026
        %v1033 = vunpack.c.l.b16 %v1020
        %v1034 = vunpack.c.l.b16 %v1021
        %v1035 = vunpack.c.l.b16 %v1022
        %v1036 = vunpack.c.l.b16 %v1023
        %v1037 = vpack.c.b16 %v1034, %v1033
        %v1038 = vpack.c.b16 %v1036, %v1035
        %vm1040 = vcmask 228352
        %v1042 = vsel %vm1040, %v1028, 0
        %vm1044 = vcmask 1045504
        %v1046 = vsel %vm1044, %v1038, 0
        %1048 = vmatprep.subr.bf16.mxu0 0
        %1049 = vmatpush1.bf16.msra.mxu0 0
        %1050 = vmatprep.subr.bf16.mxu0 0
        %1051 = vmatpush1.bf16.msra.mxu0 0
        %1052 = vmatprep.subr.bf16.mxu0 0
        %1053 = vmatpush1.bf16.msra.mxu0 0
        %1054 = vmatprep.subr.bf16.mxu0 0
        %1055 = vmatpush1.bf16.msra.mxu0 0
        %1056 = vmatprep.subr.bf16.mxu0 0
        %1057 = vmatpush1.bf16.msra.mxu0 0
        %1058 = vmatprep.subr.bf16.mxu0 0
        %1059 = vmatpush1.bf16.msra.mxu0 0
        %1060 = vmatprep.subr.bf16.mxu0 0
        %1061 = vmatpush1.bf16.msra.mxu0 %v1046
        %1062 = vmatprep.subr.bf16.mxu0 0
        %1063 = vmatpush1.bf16.msra.mxu0 %v1037
        %1064 = vmatprep.subr.bf16.mxu0 0
        %1065 = vmatpush2.bf16.msra.mxu0 0
        %1066 = vmatprep.subr.bf16.mxu0 0
        %1067 = vmatpush2.bf16.msra.mxu0 0
        %1068 = vmatprep.subr.bf16.mxu0 0
        %1069 = vmatpush2.bf16.msra.mxu0 0
        %1070 = vmatprep.subr.bf16.mxu0 0
        %1071 = vmatpush2.bf16.msra.mxu0 0
        %1072 = vmatprep.subr.bf16.mxu0 0
        %1073 = vmatpush2.bf16.msra.mxu0 0
        %1074 = vmatprep.subr.bf16.mxu0 0
        %1075 = vmatpush2.bf16.msra.mxu0 0
        %1076 = vmatprep.subr.bf16.mxu0 0
        %1077 = vmatpush2.bf16.msra.mxu0 0
        %1078 = vmatprep.subr.bf16.mxu0 0
        %1079 = vmatpush2.bf16.msra.mxu0 0
        %1080 = vmatprep.mubr.bf16.mxu0 0
        %1081 = vmatmul.mubr.bf16.gmra.mxu0 %v1042
        %v1082 = vpop.f32.mrf.mxu0
        %v1083 = vadd.f32 0.0, %v1082
        %v1084 = vpop.f32.mrf.mxu0
        %v1085 = vpop.f32.mrf.mxu0
        %v1086 = vadd.f32 0.0, %v1085
        %v1087 = vpop.f32.mrf.mxu0
        %1088 = vdwg.mxu0
        %v1089 = vld [vmem:[%s3] sm:$0x1]
        %v1091 = vlaneseq
        %v1092 = vshrl.u32 %v1091, 7
        %v1093 = vsub.s32 0, %v1092
        %v1094 = vrot.slane %v1089, %v1093
        %v1096 = vmul.f32 %v1083, %v1094
        %v1097 = vmul.f32 %v1086, %v1094
        %v1098 = vld [vmem:[%s4] sm:$0x1]
        %v1100 = vlaneseq
        %v1101 = vshrl.u32 %v1100, 7
        %v1102 = vsub.s32 0, %v1101
        %v1103 = vrot.slane %v1098, %v1102
        %v1105 = vadd.f32 %v1096, %v1103
        %v1106 = vadd.f32 %v1097, %v1103
        %v1107 = vmax.f32 %v1105, 0.0
        %v1108 = vmax.f32 %v1106, 0.0
        %v1109 = vld [vmem:[%s1] sm:$0xf]
        %v1110 = vld [vmem:[%s1 + $0x4] sm:$0x3]
        %v1111 = vpack.c.bf16 %v1108, %v1107
        %v1114 = vunpack.c.l.b16 %v1109
        %v1115 = vunpack.c.l.b16 %v1110
        %v1116 = vpack.c.b16 %v1115, %v1114
        %vm1117 = vcmask 130048
        %v1119 = vsel %vm1117, %v1116, 0
        %1121 = vmatprep.subr.bf16.mxu0 0
        %1122 = vmatpush1.bf16.msra.mxu0 0
        %1123 = vmatprep.subr.bf16.mxu0 0
        %1124 = vmatpush1.bf16.msra.mxu0 0
        %1125 = vmatprep.subr.bf16.mxu0 0
        %1126 = vmatpush1.bf16.msra.mxu0 0
        %1127 = vmatprep.subr.bf16.mxu0 0
        %1128 = vmatpush1.bf16.msra.mxu0 0
        %1129 = vmatprep.subr.bf16.mxu0 0
        %1130 = vmatpush1.bf16.msra.mxu0 0
        %1131 = vmatprep.subr.bf16.mxu0 0
        %1132 = vmatpush1.bf16.msra.mxu0 0
        %1133 = vmatprep.subr.bf16.mxu0 0
        %1134 = vmatpush1.bf16.msra.mxu0 0
        %1135 = vmatprep.subr.bf16.mxu0 0
        %1136 = vmatpush1.bf16.msra.mxu0 %v1111
        %1137 = vmatprep.subr.bf16.mxu0 0
        %1138 = vmatpush2.bf16.msra.mxu0 0
        %1139 = vmatprep.subr.bf16.mxu0 0
        %1140 = vmatpush2.bf16.msra.mxu0 0
        %1141 = vmatprep.subr.bf16.mxu0 0
        %1142 = vmatpush2.bf16.msra.mxu0 0
        %1143 = vmatprep.subr.bf16.mxu0 0
        %1144 = vmatpush2.bf16.msra.mxu0 0
        %1145 = vmatprep.subr.bf16.mxu0 0
        %1146 = vmatpush2.bf16.msra.mxu0 0
        %1147 = vmatprep.subr.bf16.mxu0 0
        %1148 = vmatpush2.bf16.msra.mxu0 0
        %1149 = vmatprep.subr.bf16.mxu0 0
        %1150 = vmatpush2.bf16.msra.mxu0 0
        %1151 = vmatprep.subr.bf16.mxu0 0
        %1152 = vmatpush2.bf16.msra.mxu0 0
        %1153 = vmatprep.mubr.bf16.mxu0 0
        %1154 = vmatmul.mubr.bf16.gmra.mxu0 %v1119
        %v1155 = vpop.f32.mrf.mxu0
        %v1156 = vadd.f32 0.0, %v1155
        %v1157 = vpop.f32.mrf.mxu0
        %v1158 = vpop.f32.mrf.mxu0
        %v1159 = vadd.f32 0.0, %v1158
        %v1160 = vpop.f32.mrf.mxu0
        %1161 = vdwg.mxu0
        %v1163 = vrot.slane %v1156, 4
        %v1165 = vmax.f32 %v1156, %v1163
        %v1166 = vmax.f32 %v1165, %v1159
        %v1167 = vpack.c.bf16 %v1166, %v1166
        %v1170 = vunpack.c.l.s4 1983009808
        %v1171 = vunpack.c.0.s8 %v1170
        %v1172 = vlaneseq
        %v1173 = vshrl.u32 %v1172, 7
        %v1174 = vsub.s32 %v1171, %v1173
        %v1175 = vrot.slane %v1167, %v1174
        %1176 = vrot.lane.b32.xlu0 %v1175, 64
        %v1177 = vpop.permute.xlu0 %1176
        %vm1179 = vcmask 1041920
        %1180 = vst.msk [vmem:[#allocation4] sm:$0x3] %vm1179, %v1177
        %vm1181 = vcmask 516096
        %vm1182 = vsmask.f32 256
        %vm1183 = vmand %vm1181, %vm1182
        %v1184 = vld [vmem:[#allocation4] sm:$0x1]
        %v1185 = vsel %vm1183, 0, %v1184
        %1186 = vst [vmem:[#allocation4] sm:$0x1] %v1185
        %v1188 = vshrl.u32 %v1175, 16
        %v1190 = vrot.slane %v1188, 7
        %v1191 = vshll.u32 %v1175, 16
        %v1193 = vor.u32 %v1190, %v1191
        %vm1195 = vcmask 517120
        %vm1196 = vsmask.f32 7938
        %vm1197 = vmand %vm1195, %vm1196
        %v1198 = vld [vmem:[#allocation4] sm:$0x3]
        %v1199 = vsel %vm1197, %v1193, %v1198
        %1200 = vst [vmem:[#allocation4] sm:$0x3] %v1199
        %v1201 = vrot.slane %v1188, 6
        %v1202 = vrot.slane %v1191, 7
        %v1203 = vor.u32 %v1201, %v1202
        %v1204 = vrot.slane %v1203, 2
        %vm1206 = vmand %vm1195, %vm764
        %v1207 = vld [vmem:[#allocation4 + $0x2] sm:$0x3]
        %v1208 = vsel %vm1206, %v1204, %v1207
        %1209 = vst [vmem:[#allocation4 + $0x2] sm:$0x3] %v1208
        %vm1210 = vcmask 517121
        %vm1211 = vmand %vm1210, %vm802
        %v1212 = vld [vmem:[#allocation4 + $0x2] sm:$0x2]
        %v1213 = vsel %vm1211, 0, %v1212
        %1214 = vst [vmem:[#allocation4 + $0x2] sm:$0x2] %v1213
        %v1215 = vld [vmem:[#allocation4] sm:$0xf]
        %v1216 = vld [vmem:[%s5] sm:$0xff]
        %v1217 = vld [vmem:[%s5 + $0x8] sm:$0xff]
        %v1218 = vld [vmem:[%s5 + $0x10] sm:$0xff]
        %v1219 = vld [vmem:[%s5 + $0x18] sm:$0xff]
        %v1220 = vld [vmem:[%s5 + $0x20] sm:$0xff]
        %v1221 = vld [vmem:[%s5 + $0x28] sm:$0xff]
        %v1222 = vld [vmem:[%s5 + $0x30] sm:$0xff]
        %v1223 = vld [vmem:[%s5 + $0x38] sm:$0xff]
        %v1224 = vld [vmem:[%s5 + $0x40] sm:$0xff]
        %v1225 = vld [vmem:[%s5 + $0x48] sm:$0xff]
        %v1226 = vld [vmem:[%s5 + $0x50] sm:$0xff]
        %v1227 = vld [vmem:[%s5 + $0x58] sm:$0xff]
        %v1228 = vld [vmem:[%s5 + $0x60] sm:$0xff]
        %v1229 = vld [vmem:[%s5 + $0x68] sm:$0xff]
        %v1230 = vld [vmem:[%s5 + $0x70] sm:$0xff]
        %v1231 = vld [vmem:[%s5 + $0x78] sm:$0xff]
        %v1232 = vld [vmem:[%s5 + $0x80] sm:$0xff]
        %v1233 = vld [vmem:[%s5 + $0x88] sm:$0xff]
        %v1234 = vld [vmem:[%s5 + $0x90] sm:$0xff]
        %v1235 = vld [vmem:[%s5 + $0x98] sm:$0xff]
        %v1236 = vld [vmem:[%s5 + $0xa0] sm:$0xff]
        %v1237 = vld [vmem:[%s5 + $0xa8] sm:$0xff]
        %v1238 = vld [vmem:[%s5 + $0xb0] sm:$0xff]
        %v1239 = vld [vmem:[%s5 + $0xb8] sm:$0xff]
        %v1242 = vunpack.c.l.s4 1983009808
        %v1243 = vunpack.c.0.s8 %v1242
        %v1244 = vlaneseq
        %v1245 = vshrl.u32 %v1244, 7
        %v1246 = vsub.s32 %v1243, %v1245
        %v1247 = vrot.slane %v1215, %v1246
        %v1248 = vcombine.high %v1247, %v1247
        %v1274 = vunpack.c.l.b16 %v1216
        %v1275 = vunpack.c.h.b16 %v1216
        %v1276 = vunpack.c.l.b16 %v1217
        %v1277 = vunpack.c.h.b16 %v1217
        %v1278 = vunpack.c.l.b16 %v1218
        %v1279 = vunpack.c.h.b16 %v1218
        %v1280 = vunpack.c.l.b16 %v1219
        %v1281 = vunpack.c.h.b16 %v1219
        %v1282 = vunpack.c.l.b16 %v1220
        %v1283 = vunpack.c.h.b16 %v1220
        %v1284 = vunpack.c.l.b16 %v1221
        %v1285 = vunpack.c.h.b16 %v1221
        %v1286 = vunpack.c.l.b16 %v1222
        %v1287 = vunpack.c.h.b16 %v1222
        %v1288 = vunpack.c.l.b16 %v1223
        %v1289 = vunpack.c.h.b16 %v1223
        %v1290 = vunpack.c.l.b16 %v1224
        %v1291 = vunpack.c.h.b16 %v1224
        %v1292 = vunpack.c.l.b16 %v1225
        %v1293 = vunpack.c.h.b16 %v1225
        %v1294 = vunpack.c.l.b16 %v1226
        %v1295 = vunpack.c.h.b16 %v1226
        %v1296 = vunpack.c.l.b16 %v1227
        %v1297 = vunpack.c.h.b16 %v1227
        %v1298 = vunpack.c.l.b16 %v1228
        %v1299 = vunpack.c.h.b16 %v1228
        %v1300 = vunpack.c.l.b16 %v1229
        %v1301 = vunpack.c.h.b16 %v1229
        %v1302 = vunpack.c.l.b16 %v1230
        %v1303 = vunpack.c.h.b16 %v1230
        %v1304 = vunpack.c.l.b16 %v1231
        %v1305 = vunpack.c.h.b16 %v1231
        %v1306 = vunpack.c.l.b16 %v1232
        %v1307 = vunpack.c.h.b16 %v1232
        %v1308 = vunpack.c.l.b16 %v1233
        %v1309 = vunpack.c.h.b16 %v1233
        %v1310 = vunpack.c.l.b16 %v1234
        %v1311 = vunpack.c.h.b16 %v1234
        %v1312 = vunpack.c.l.b16 %v1235
        %v1313 = vunpack.c.h.b16 %v1235
        %v1314 = vunpack.c.l.b16 %v1236
        %v1315 = vunpack.c.h.b16 %v1236
        %v1316 = vunpack.c.l.b16 %v1237
        %v1317 = vunpack.c.h.b16 %v1237
        %v1318 = vunpack.c.l.b16 %v1238
        %v1319 = vunpack.c.h.b16 %v1238
        %v1320 = vunpack.c.l.b16 %v1239
        %v1321 = vunpack.c.h.b16 %v1239
        %v1322 = vpack.c.b16 %v1276, %v1274
        %v1323 = vpack.c.b16 %v1277, %v1275
        %v1324 = vpack.c.b16 %v1280, %v1278
        %v1325 = vpack.c.b16 %v1281, %v1279
        %v1326 = vpack.c.b16 %v1284, %v1282
        %v1327 = vpack.c.b16 %v1285, %v1283
        %v1328 = vpack.c.b16 %v1288, %v1286
        %v1329 = vpack.c.b16 %v1289, %v1287
        %v1330 = vpack.c.b16 %v1292, %v1290
        %v1331 = vpack.c.b16 %v1293, %v1291
        %v1332 = vpack.c.b16 %v1296, %v1294
        %v1333 = vpack.c.b16 %v1297, %v1295
        %v1334 = vpack.c.b16 %v1300, %v1298
        %v1335 = vpack.c.b16 %v1301, %v1299
        %v1336 = vpack.c.b16 %v1304, %v1302
        %v1337 = vpack.c.b16 %v1305, %v1303
        %v1338 = vpack.c.b16 %v1308, %v1306
        %v1339 = vpack.c.b16 %v1309, %v1307
        %v1340 = vpack.c.b16 %v1312, %v1310
        %v1341 = vpack.c.b16 %v1313, %v1311
        %v1342 = vpack.c.b16 %v1316, %v1314
        %v1343 = vpack.c.b16 %v1317, %v1315
        %v1344 = vpack.c.b16 %v1320, %v1318
        %v1345 = vpack.c.b16 %v1321, %v1319
        %vm1370 = vcmask 523264
        %v1372 = vsel %vm1370, %v1248, 0
        %1374 = vmatprep.subr.bf16.mxu0 %v1337
        %1375 = vmatpush1.bf16.msra.mxu0 %v1336
        %1376 = vmatprep.subr.bf16.mxu0 %v1335
        %1377 = vmatpush1.bf16.msra.mxu0 %v1334
        %1378 = vmatprep.subr.bf16.mxu0 %v1333
        %1379 = vmatpush1.bf16.msra.mxu0 %v1332
        %1380 = vmatprep.subr.bf16.mxu0 %v1331
        %1381 = vmatpush1.bf16.msra.mxu0 %v1330
        %1382 = vmatprep.subr.bf16.mxu0 %v1329
        %1383 = vmatpush1.bf16.msra.mxu0 %v1328
        %1384 = vmatprep.subr.bf16.mxu0 %v1327
        %1385 = vmatpush1.bf16.msra.mxu0 %v1326
        %1386 = vmatprep.subr.bf16.mxu0 %v1325
        %1387 = vmatpush1.bf16.msra.mxu0 %v1324
        %1388 = vmatprep.subr.bf16.mxu0 %v1323
        %1389 = vmatpush1.bf16.msra.mxu0 %v1322
        %1390 = vmatprep.subr.bf16.mxu0 0
        %1391 = vmatpush2.bf16.msra.mxu0 0
        %1392 = vmatprep.subr.bf16.mxu0 0
        %1393 = vmatpush2.bf16.msra.mxu0 0
        %1394 = vmatprep.subr.bf16.mxu0 0
        %1395 = vmatpush2.bf16.msra.mxu0 0
        %1396 = vmatprep.subr.bf16.mxu0 0
        %1397 = vmatpush2.bf16.msra.mxu0 0
        %1398 = vmatprep.subr.bf16.mxu0 %v1345
        %1399 = vmatpush2.bf16.msra.mxu0 %v1344
        %1400 = vmatprep.subr.bf16.mxu0 %v1343
        %1401 = vmatpush2.bf16.msra.mxu0 %v1342
        %1402 = vmatprep.subr.bf16.mxu0 %v1341
        %1403 = vmatpush2.bf16.msra.mxu0 %v1340
        %1404 = vmatprep.subr.bf16.mxu0 %v1339
        %1405 = vmatpush2.bf16.msra.mxu0 %v1338
        %1406 = vmatprep.mubr.bf16.mxu0 %v1372
        %1407 = vmatmul.mubr.bf16.gmra.mxu0 %v1247
        %v1408 = vpop.f32.mrf.mxu0
        %v1409 = vadd.f32 0.0, %v1408
        %v1410 = vpop.f32.mrf.mxu0
        %v1411 = vadd.f32 0.0, %v1410
        %v1412 = vpop.f32.mrf.mxu0
        %v1413 = vpop.f32.mrf.mxu0
        %1414 = vdwg.mxu0
        %v1415 = vld [vmem:[%s6] sm:$0x3]
        %v1417 = vlaneseq
        %v1418 = vshrl.u32 %v1417, 7
        %v1419 = vsub.s32 0, %v1418
        %v1420 = vrot.slane %v1415, %v1419
        %v1421 = vlaneseq
        %v1422 = vshrl.u32 %v1421, 7
        %v1423 = vsub.s32 1, %v1422
        %v1424 = vrot.slane %v1415, %v1423
        %v1427 = vmul.f32 %v1409, %v1420
        %v1428 = vmul.f32 %v1411, %v1424
        %v1429 = vld [vmem:[%s7] sm:$0x3]
        %v1431 = vlaneseq
        %v1432 = vshrl.u32 %v1431, 7
        %v1433 = vsub.s32 0, %v1432
        %v1434 = vrot.slane %v1429, %v1433
        %v1435 = vlaneseq
        %v1436 = vshrl.u32 %v1435, 7
        %v1437 = vsub.s32 1, %v1436
        %v1438 = vrot.slane %v1429, %v1437
        %v1441 = vadd.f32 %v1427, %v1434
        %v1442 = vadd.f32 %v1428, %v1438
        %v1443 = vmax.f32 %v1441, 0.0
        %v1444 = vpack.c.bf16 %v1443, %v1443
        %1445 = vst [vmem:[#allocation5 + $0x2] sm:$0x3] %v1444
        %vm1446 = vmand %vm999, %vm1182
        %v1447 = vld [vmem:[#allocation5] sm:$0x1]
        %v1448 = vsel %vm1446, 0, %v1447
        %1449 = vst [vmem:[#allocation5] sm:$0x1] %v1448
        %v1452 = vunpack.c.l.s4 1983009808
        %v1453 = vunpack.c.0.s8 %v1452
        %v1454 = vlaneseq
        %v1455 = vshrl.u32 %v1454, 7
        %v1456 = vsub.s32 %v1453, %v1455
        %v1457 = vrot.slane %v1444, %v1456
        %v1459 = vshrl.u32 %v1457, 16
        %v1461 = vrot.slane %v1459, 7
        %v1462 = vshll.u32 %v1457, 16
        %v1464 = vor.u32 %v1461, %v1462
        %vm1466 = vmand %vm934, %vm1196
        %v1467 = vld [vmem:[#allocation5] sm:$0x3]
        %v1468 = vsel %vm1466, %v1464, %v1467
        %1469 = vst [vmem:[#allocation5] sm:$0x3] %v1468
        %v1470 = vrot.slane %v1459, 6
        %v1471 = vrot.slane %v1462, 7
        %v1472 = vor.u32 %v1470, %v1471
        %v1473 = vrot.slane %v1472, 2
        %vm1475 = vmand %vm934, %vm764
        %v1476 = vld [vmem:[#allocation5 + $0x4] sm:$0x3]
        %v1477 = vsel %vm1475, %v1473, %v1476
        %1478 = vst [vmem:[#allocation5 + $0x4] sm:$0x3] %v1477
        %vm1479 = vcmask 1041409
        %vm1480 = vmand %vm1479, %vm802
        %v1481 = vld [vmem:[#allocation5 + $0x4] sm:$0x2]
        %v1482 = vsel %vm1480, 0, %v1481
        %1483 = vst [vmem:[#allocation5 + $0x4] sm:$0x2] %v1482
        %v1484 = vld [vmem:[#allocation5] sm:$0x3f]
        %v1485 = vld [vmem:[%s8] sm:$0xf]
        %v1486 = vld [vmem:[%s8 + $0x4] sm:$0xf]
        %v1487 = vld [vmem:[%s8 + $0x8] sm:$0xf]
        %v1488 = vld [vmem:[%s8 + $0xc] sm:$0xf]
        %v1489 = vld [vmem:[%s8 + $0x10] sm:$0xf]
        %v1490 = vld [vmem:[%s8 + $0x14] sm:$0xf]
        %v1491 = vld [vmem:[%s8 + $0x18] sm:$0xf]
        %v1492 = vld [vmem:[%s8 + $0x1c] sm:$0xf]
        %v1493 = vld [vmem:[%s8 + $0x20] sm:$0xf]
        %v1494 = vld [vmem:[%s8 + $0x24] sm:$0xf]
        %v1495 = vld [vmem:[%s8 + $0x28] sm:$0xf]
        %v1496 = vld [vmem:[%s8 + $0x2c] sm:$0xf]
        %v1497 = vld [vmem:[%s8 + $0x30] sm:$0xf]
        %v1498 = vld [vmem:[%s8 + $0x34] sm:$0xf]
        %v1499 = vld [vmem:[%s8 + $0x38] sm:$0xf]
        %v1500 = vld [vmem:[%s8 + $0x3c] sm:$0xf]
        %v1501 = vld [vmem:[%s8 + $0x40] sm:$0xf]
        %v1502 = vld [vmem:[%s8 + $0x44] sm:$0xf]
        %v1503 = vld [vmem:[%s8 + $0x48] sm:$0xf]
        %v1504 = vld [vmem:[%s8 + $0x4c] sm:$0xf]
        %v1505 = vld [vmem:[%s8 + $0x50] sm:$0xf]
        %v1506 = vld [vmem:[%s8 + $0x54] sm:$0xf]
        %v1507 = vld [vmem:[%s8 + $0x58] sm:$0xf]
        %v1508 = vld [vmem:[%s8 + $0x5c] sm:$0xf]
        %v1509 = vld [vmem:[%s8 + $0x60] sm:$0xf]
        %v1510 = vld [vmem:[%s8 + $0x64] sm:$0xf]
        %v1511 = vld [vmem:[%s8 + $0x68] sm:$0xf]
        %v1512 = vld [vmem:[%s8 + $0x6c] sm:$0xf]
        %v1513 = vld [vmem:[%s8 + $0x70] sm:$0xf]
        %v1514 = vld [vmem:[%s8 + $0x74] sm:$0xf]
        %v1515 = vld [vmem:[%s8 + $0x78] sm:$0xf]
        %v1516 = vld [vmem:[%s8 + $0x7c] sm:$0xf]
        %v1517 = vld [vmem:[%s8 + $0x80] sm:$0xf]
        %v1518 = vld [vmem:[%s8 + $0x84] sm:$0xf]
        %v1519 = vld [vmem:[%s8 + $0x88] sm:$0xf]
        %v1520 = vld [vmem:[%s8 + $0x8c] sm:$0xf]
        %v1521 = vld [vmem:[%s8 + $0x90] sm:$0xf]
        %v1522 = vld [vmem:[%s8 + $0x94] sm:$0xf]
        %v1523 = vld [vmem:[%s8 + $0x98] sm:$0xf]
        %v1524 = vld [vmem:[%s8 + $0x9c] sm:$0xf]
        %v1525 = vld [vmem:[%s8 + $0xa0] sm:$0xf]
        %v1526 = vld [vmem:[%s8 + $0xa4] sm:$0xf]
        %v1527 = vld [vmem:[%s8 + $0xa8] sm:$0xf]
        %v1528 = vld [vmem:[%s8 + $0xac] sm:$0xf]
        %v1529 = vld [vmem:[%s8 + $0xb0] sm:$0xf]
        %v1530 = vld [vmem:[%s8 + $0xb4] sm:$0xf]
        %v1531 = vld [vmem:[%s8 + $0xb8] sm:$0xf]
        %v1532 = vld [vmem:[%s8 + $0xbc] sm:$0xf]
        %v1534 = vcombine.high %v1484, %v1484
        %v1536 = vunpack.c.l.s4 1983009808
        %v1537 = vunpack.c.0.s8 %v1536
        %v1538 = vlaneseq
        %v1539 = vshrl.u32 %v1538, 7
        %v1540 = vsub.s32 %v1537, %v1539
        %v1541 = vrot.slane %v1484, %v1540
        %v1543 = vunpack.c.l.s4 1983009808
        %v1544 = vunpack.c.0.s8 %v1543
        %v1545 = vlaneseq
        %v1546 = vshrl.u32 %v1545, 7
        %v1547 = vsub.s32 %v1544, %v1546
        %v1548 = vrot.slane %v1534, %v1547
        %v1549 = vcombine.high %v1541, %v1541
        %v1601 = vunpack.c.l.b16 %v1485
        %v1602 = vunpack.c.l.b16 %v1486
        %v1603 = vunpack.c.l.b16 %v1487
        %v1604 = vunpack.c.l.b16 %v1488
        %v1605 = vunpack.c.l.b16 %v1489
        %v1606 = vunpack.c.l.b16 %v1490
        %v1607 = vunpack.c.l.b16 %v1491
        %v1608 = vunpack.c.l.b16 %v1492
        %v1609 = vunpack.c.l.b16 %v1493
        %v1610 = vunpack.c.l.b16 %v1494
        %v1611 = vunpack.c.l.b16 %v1495
        %v1612 = vunpack.c.l.b16 %v1496
        %v1613 = vunpack.c.l.b16 %v1497
        %v1614 = vunpack.c.l.b16 %v1498
        %v1615 = vunpack.c.l.b16 %v1499
        %v1616 = vunpack.c.l.b16 %v1500
        %v1617 = vunpack.c.l.b16 %v1501
        %v1618 = vunpack.c.l.b16 %v1502
        %v1619 = vunpack.c.l.b16 %v1503
        %v1620 = vunpack.c.l.b16 %v1504
        %v1621 = vunpack.c.l.b16 %v1505
        %v1622 = vunpack.c.l.b16 %v1506
        %v1623 = vunpack.c.l.b16 %v1507
        %v1624 = vunpack.c.l.b16 %v1508
        %v1625 = vunpack.c.l.b16 %v1509
        %v1626 = vunpack.c.l.b16 %v1510
        %v1627 = vunpack.c.l.b16 %v1511
        %v1628 = vunpack.c.l.b16 %v1512
        %v1629 = vunpack.c.l.b16 %v1513
        %v1630 = vunpack.c.l.b16 %v1514
        %v1631 = vunpack.c.l.b16 %v1515
        %v1632 = vunpack.c.l.b16 %v1516
        %v1633 = vunpack.c.l.b16 %v1517
        %v1634 = vunpack.c.l.b16 %v1518
        %v1635 = vunpack.c.l.b16 %v1519
        %v1636 = vunpack.c.l.b16 %v1520
        %v1637 = vunpack.c.l.b16 %v1521
        %v1638 = vunpack.c.l.b16 %v1522
        %v1639 = vunpack.c.l.b16 %v1523
        %v1640 = vunpack.c.l.b16 %v1524
        %v1641 = vunpack.c.l.b16 %v1525
        %v1642 = vunpack.c.l.b16 %v1526
        %v1643 = vunpack.c.l.b16 %v1527
        %v1644 = vunpack.c.l.b16 %v1528
        %v1645 = vunpack.c.l.b16 %v1529
        %v1646 = vunpack.c.l.b16 %v1530
        %v1647 = vunpack.c.l.b16 %v1531
        %v1648 = vunpack.c.l.b16 %v1532
        %v1649 = vpack.c.b16 %v1602, %v1601
        %v1650 = vpack.c.b16 %v1604, %v1603
        %v1651 = vpack.c.b16 %v1606, %v1605
        %v1652 = vpack.c.b16 %v1608, %v1607
        %v1653 = vpack.c.b16 %v1610, %v1609
        %v1654 = vpack.c.b16 %v1612, %v1611
        %v1655 = vpack.c.b16 %v1614, %v1613
        %v1656 = vpack.c.b16 %v1616, %v1615
        %v1657 = vpack.c.b16 %v1618, %v1617
        %v1658 = vpack.c.b16 %v1620, %v1619
        %v1659 = vpack.c.b16 %v1622, %v1621
        %v1660 = vpack.c.b16 %v1624, %v1623
        %v1661 = vpack.c.b16 %v1626, %v1625
        %v1662 = vpack.c.b16 %v1628, %v1627
        %v1663 = vpack.c.b16 %v1630, %v1629
        %v1664 = vpack.c.b16 %v1632, %v1631
        %v1665 = vpack.c.b16 %v1634, %v1633
        %v1666 = vpack.c.b16 %v1636, %v1635
        %v1667 = vpack.c.b16 %v1638, %v1637
        %v1668 = vpack.c.b16 %v1640, %v1639
        %v1669 = vpack.c.b16 %v1642, %v1641
        %v1670 = vpack.c.b16 %v1644, %v1643
        %v1671 = vpack.c.b16 %v1646, %v1645
        %v1672 = vpack.c.b16 %v1648, %v1647
        %1697 = vmatprep.subr.bf16.mxu0 0
        %1698 = vmatpush1.bf16.msra.mxu0 %v1656
        %1699 = vmatprep.subr.bf16.mxu0 0
        %1700 = vmatpush1.bf16.msra.mxu0 %v1655
        %1701 = vmatprep.subr.bf16.mxu0 0
        %1702 = vmatpush1.bf16.msra.mxu0 %v1654
        %1703 = vmatprep.subr.bf16.mxu0 0
        %1704 = vmatpush1.bf16.msra.mxu0 %v1653
        %1705 = vmatprep.subr.bf16.mxu0 0
        %1706 = vmatpush1.bf16.msra.mxu0 %v1652
        %1707 = vmatprep.subr.bf16.mxu0 0
        %1708 = vmatpush1.bf16.msra.mxu0 %v1651
        %1709 = vmatprep.subr.bf16.mxu0 0
        %1710 = vmatpush1.bf16.msra.mxu0 %v1650
        %1711 = vmatprep.subr.bf16.mxu0 0
        %1712 = vmatpush1.bf16.msra.mxu0 %v1649
        %1713 = vmatprep.subr.bf16.mxu0 0
        %1714 = vmatpush2.bf16.msra.mxu0 %v1664
        %1715 = vmatprep.subr.bf16.mxu0 0
        %1716 = vmatpush2.bf16.msra.mxu0 %v1663
        %1717 = vmatprep.subr.bf16.mxu0 0
        %1718 = vmatpush2.bf16.msra.mxu0 %v1662
        %1719 = vmatprep.subr.bf16.mxu0 0
        %1720 = vmatpush2.bf16.msra.mxu0 %v1661
        %1721 = vmatprep.subr.bf16.mxu0 0
        %1722 = vmatpush2.bf16.msra.mxu0 %v1660
        %1723 = vmatprep.subr.bf16.mxu0 0
        %1724 = vmatpush2.bf16.msra.mxu0 %v1659
        %1725 = vmatprep.subr.bf16.mxu0 0
        %1726 = vmatpush2.bf16.msra.mxu0 %v1658
        %1727 = vmatprep.subr.bf16.mxu0 0
        %1728 = vmatpush2.bf16.msra.mxu0 %v1657
        %1729 = vmatprep.mubr.bf16.mxu0 %v1549
        %1730 = vmatmul.mubr.bf16.gmra.mxu0 %v1541
        %v1731 = vpop.f32.mrf.mxu0
        %v1732 = vadd.f32 0.0, %v1731
        %v1733 = vpop.f32.mrf.mxu0
        %v1734 = vpop.f32.mrf.mxu0
        %v1735 = vpop.f32.mrf.mxu0
        %1736 = vdwg.mxu0
        %1737 = vmatprep.subr.bf16.mxu0 0
        %1738 = vmatpush1.bf16.msra.mxu0 %v1672
        %1739 = vmatprep.subr.bf16.mxu0 0
        %1740 = vmatpush1.bf16.msra.mxu0 %v1671
        %1741 = vmatprep.subr.bf16.mxu0 0
        %1742 = vmatpush1.bf16.msra.mxu0 %v1670
        %1743 = vmatprep.subr.bf16.mxu0 0
        %1744 = vmatpush1.bf16.msra.mxu0 %v1669
        %1745 = vmatprep.subr.bf16.mxu0 0
        %1746 = vmatpush1.bf16.msra.mxu0 %v1668
        %1747 = vmatprep.subr.bf16.mxu0 0
        %1748 = vmatpush1.bf16.msra.mxu0 %v1667
        %1749 = vmatprep.subr.bf16.mxu0 0
        %1750 = vmatpush1.bf16.msra.mxu0 %v1666
        %1751 = vmatprep.subr.bf16.mxu0 0
        %1752 = vmatpush1.bf16.msra.mxu0 %v1665
        %1753 = vmatprep.subr.bf16.mxu0 0
        %1754 = vmatpush2.bf16.msra.mxu0 0
        %1755 = vmatprep.subr.bf16.mxu0 0
        %1756 = vmatpush2.bf16.msra.mxu0 0
        %1757 = vmatprep.subr.bf16.mxu0 0
        %1758 = vmatpush2.bf16.msra.mxu0 0
        %1759 = vmatprep.subr.bf16.mxu0 0
        %1760 = vmatpush2.bf16.msra.mxu0 0
        %1761 = vmatprep.subr.bf16.mxu0 0
        %1762 = vmatpush2.bf16.msra.mxu0 0
        %1763 = vmatprep.subr.bf16.mxu0 0
        %1764 = vmatpush2.bf16.msra.mxu0 0
        %1765 = vmatprep.subr.bf16.mxu0 0
        %1766 = vmatpush2.bf16.msra.mxu0 0
        %1767 = vmatprep.subr.bf16.mxu0 0
        %1768 = vmatpush2.bf16.msra.mxu0 0
        %1769 = vmatprep.mubr.bf16.mxu0 0
        %1770 = vmatmul.mubr.bf16.gmra.mxu0 %v1548
        %v1771 = vpop.f32.mrf.mxu0
        %v1772 = vadd.f32 %v1732, %v1771
        %v1773 = vpop.f32.mrf.mxu0
        %v1774 = vpop.f32.mrf.mxu0
        %v1775 = vpop.f32.mrf.mxu0
        %1776 = vdwg.mxu0
        %v1777 = vld [vmem:[%s9] sm:$0x1]
        %v1779 = vlaneseq
        %v1780 = vshrl.u32 %v1779, 7
        %v1781 = vsub.s32 0, %v1780
        %v1782 = vrot.slane %v1777, %v1781
        %v1784 = vmul.f32 %v1772, %v1782
        %v1785 = vld [vmem:[%s10] sm:$0x1]
        %v1787 = vlaneseq
        %v1788 = vshrl.u32 %v1787, 7
        %v1789 = vsub.s32 0, %v1788
        %v1790 = vrot.slane %v1785, %v1789
        %v1792 = vadd.f32 %v1784, %v1790
        %v1793 = vadd.f32 %v1792, %v1442
        %v1794 = vmax.f32 %v1793, 0.0
        %v1795 = vpack.c.bf16 %v1794, %v1794
        %1796 = vst [vmem:[#allocation6 + $0x2] sm:$0x3] %v1795
        %v1797 = vld [vmem:[#allocation6] sm:$0x1]
        %v1798 = vsel %vm1446, 0, %v1797
        %1799 = vst [vmem:[#allocation6] sm:$0x1] %v1798
        %v1802 = vunpack.c.l.s4 1983009808
        %v1803 = vunpack.c.0.s8 %v1802
        %v1804 = vlaneseq
        %v1805 = vshrl.u32 %v1804, 7
        %v1806 = vsub.s32 %v1803, %v1805
        %v1807 = vrot.slane %v1795, %v1806
        %v1809 = vshrl.u32 %v1807, 16
        %v1811 = vrot.slane %v1809, 7
        %v1812 = vshll.u32 %v1807, 16
        %v1814 = vor.u32 %v1811, %v1812
        %v1816 = vld [vmem:[#allocation6] sm:$0x3]
        %v1817 = vsel %vm1466, %v1814, %v1816
        %1818 = vst [vmem:[#allocation6] sm:$0x3] %v1817
        %v1819 = vrot.slane %v1809, 6
        %v1820 = vrot.slane %v1812, 7
        %v1821 = vor.u32 %v1819, %v1820
        %v1822 = vrot.slane %v1821, 2
        %v1824 = vld [vmem:[#allocation6 + $0x4] sm:$0x3]
        %v1825 = vsel %vm1475, %v1822, %v1824
        %1826 = vst [vmem:[#allocation6 + $0x4] sm:$0x3] %v1825
        %v1827 = vld [vmem:[#allocation6 + $0x4] sm:$0x2]
        %v1828 = vsel %vm1480, 0, %v1827
        %1829 = vst [vmem:[#allocation6 + $0x4] sm:$0x2] %v1828
        %v1830 = vld [vmem:[#allocation6] sm:$0x3f]
        %v1831 = vld [vmem:[%s11] sm:$0xff]
        %v1832 = vld [vmem:[%s11 + $0x8] sm:$0xff]
        %v1833 = vld [vmem:[%s11 + $0x10] sm:$0xff]
        %v1834 = vld [vmem:[%s11 + $0x18] sm:$0xff]
        %v1835 = vld [vmem:[%s11 + $0x20] sm:$0xff]
        %v1836 = vld [vmem:[%s11 + $0x28] sm:$0xff]
        %v1837 = vld [vmem:[%s11 + $0x30] sm:$0xff]
        %v1838 = vld [vmem:[%s11 + $0x38] sm:$0xff]
        %v1839 = vld [vmem:[%s11 + $0x40] sm:$0xff]
        %v1840 = vld [vmem:[%s11 + $0x48] sm:$0xff]
        %v1841 = vld [vmem:[%s11 + $0x50] sm:$0xff]
        %v1842 = vld [vmem:[%s11 + $0x58] sm:$0xff]
        %v1843 = vld [vmem:[%s11 + $0x60] sm:$0xff]
        %v1844 = vld [vmem:[%s11 + $0x68] sm:$0xff]
        %v1845 = vld [vmem:[%s11 + $0x70] sm:$0xff]
        %v1846 = vld [vmem:[%s11 + $0x78] sm:$0xff]
        %v1847 = vld [vmem:[%s11 + $0x80] sm:$0xff]
        %v1848 = vld [vmem:[%s11 + $0x88] sm:$0xff]
        %v1849 = vld [vmem:[%s11 + $0x90] sm:$0xff]
        %v1850 = vld [vmem:[%s11 + $0x98] sm:$0xff]
        %v1851 = vld [vmem:[%s11 + $0xa0] sm:$0xff]
        %v1852 = vld [vmem:[%s11 + $0xa8] sm:$0xff]
        %v1853 = vld [vmem:[%s11 + $0xb0] sm:$0xff]
        %v1854 = vld [vmem:[%s11 + $0xb8] sm:$0xff]
        %v1855 = vld [vmem:[%s11 + $0xc0] sm:$0xff]
        %v1856 = vld [vmem:[%s11 + $0xc8] sm:$0xff]
        %v1857 = vld [vmem:[%s11 + $0xd0] sm:$0xff]
        %v1858 = vld [vmem:[%s11 + $0xd8] sm:$0xff]
        %v1859 = vld [vmem:[%s11 + $0xe0] sm:$0xff]
        %v1860 = vld [vmem:[%s11 + $0xe8] sm:$0xff]
        %v1861 = vld [vmem:[%s11 + $0xf0] sm:$0xff]
        %v1862 = vld [vmem:[%s11 + $0xf8] sm:$0xff]
        %v1863 = vld [vmem:[%s11 + $0x100] sm:$0xff]
        %v1864 = vld [vmem:[%s11 + $0x108] sm:$0xff]
        %v1865 = vld [vmem:[%s11 + $0x110] sm:$0xff]
        %v1866 = vld [vmem:[%s11 + $0x118] sm:$0xff]
        %v1867 = vld [vmem:[%s11 + $0x120] sm:$0xff]
        %v1868 = vld [vmem:[%s11 + $0x128] sm:$0xff]
        %v1869 = vld [vmem:[%s11 + $0x130] sm:$0xff]
        %v1870 = vld [vmem:[%s11 + $0x138] sm:$0xff]
        %v1871 = vld [vmem:[%s11 + $0x140] sm:$0xff]
        %v1872 = vld [vmem:[%s11 + $0x148] sm:$0xff]
        %v1873 = vld [vmem:[%s11 + $0x150] sm:$0xff]
        %v1874 = vld [vmem:[%s11 + $0x158] sm:$0xff]
        %v1875 = vld [vmem:[%s11 + $0x160] sm:$0xff]
        %v1876 = vld [vmem:[%s11 + $0x168] sm:$0xff]
        %v1877 = vld [vmem:[%s11 + $0x170] sm:$0xff]
        %v1878 = vld [vmem:[%s11 + $0x178] sm:$0xff]
        %v1879 = vld [vmem:[%s11 + $0x180] sm:$0xff]
        %v1880 = vld [vmem:[%s11 + $0x188] sm:$0xff]
        %v1881 = vld [vmem:[%s11 + $0x190] sm:$0xff]
        %v1882 = vld [vmem:[%s11 + $0x198] sm:$0xff]
        %v1883 = vld [vmem:[%s11 + $0x1a0] sm:$0xff]
        %v1884 = vld [vmem:[%s11 + $0x1a8] sm:$0xff]
        %v1885 = vld [vmem:[%s11 + $0x1b0] sm:$0xff]
        %v1886 = vld [vmem:[%s11 + $0x1b8] sm:$0xff]
        %v1887 = vld [vmem:[%s11 + $0x1c0] sm:$0xff]
        %v1888 = vld [vmem:[%s11 + $0x1c8] sm:$0xff]
        %v1889 = vld [vmem:[%s11 + $0x1d0] sm:$0xff]
        %v1890 = vld [vmem:[%s11 + $0x1d8] sm:$0xff]
        %v1891 = vld [vmem:[%s11 + $0x1e0] sm:$0xff]
        %v1892 = vld [vmem:[%s11 + $0x1e8] sm:$0xff]
        %v1893 = vld [vmem:[%s11 + $0x1f0] sm:$0xff]
        %v1894 = vld [vmem:[%s11 + $0x1f8] sm:$0xff]
        %v1895 = vld [vmem:[%s11 + $0x200] sm:$0xff]
        %v1896 = vld [vmem:[%s11 + $0x208] sm:$0xff]
        %v1897 = vld [vmem:[%s11 + $0x210] sm:$0xff]
        %v1898 = vld [vmem:[%s11 + $0x218] sm:$0xff]
        %v1899 = vld [vmem:[%s11 + $0x220] sm:$0xff]
        %v1900 = vld [vmem:[%s11 + $0x228] sm:$0xff]
        %v1901 = vld [vmem:[%s11 + $0x230] sm:$0xff]
        %v1902 = vld [vmem:[%s11 + $0x238] sm:$0xff]
        %v1903 = vld [vmem:[%s11 + $0x240] sm:$0xff]
        %v1904 = vld [vmem:[%s11 + $0x248] sm:$0xff]
        %v1905 = vld [vmem:[%s11 + $0x250] sm:$0xff]
        %v1906 = vld [vmem:[%s11 + $0x258] sm:$0xff]
        %v1907 = vld [vmem:[%s11 + $0x260] sm:$0xff]
        %v1908 = vld [vmem:[%s11 + $0x268] sm:$0xff]
        %v1909 = vld [vmem:[%s11 + $0x270] sm:$0xff]
        %v1910 = vld [vmem:[%s11 + $0x278] sm:$0xff]
        %v1911 = vld [vmem:[%s11 + $0x280] sm:$0xff]
        %v1912 = vld [vmem:[%s11 + $0x288] sm:$0xff]
        %v1913 = vld [vmem:[%s11 + $0x290] sm:$0xff]
        %v1914 = vld [vmem:[%s11 + $0x298] sm:$0xff]
        %v1915 = vld [vmem:[%s11 + $0x2a0] sm:$0xff]
        %v1916 = vld [vmem:[%s11 + $0x2a8] sm:$0xff]
        %v1917 = vld [vmem:[%s11 + $0x2b0] sm:$0xff]
        %v1918 = vld [vmem:[%s11 + $0x2b8] sm:$0xff]
        %v1919 = vld [vmem:[%s11 + $0x2c0] sm:$0xff]
        %v1920 = vld [vmem:[%s11 + $0x2c8] sm:$0xff]
        %v1921 = vld [vmem:[%s11 + $0x2d0] sm:$0xff]
        %v1922 = vld [vmem:[%s11 + $0x2d8] sm:$0xff]
        %v1923 = vld [vmem:[%s11 + $0x2e0] sm:$0xff]
        %v1924 = vld [vmem:[%s11 + $0x2e8] sm:$0xff]
        %v1925 = vld [vmem:[%s11 + $0x2f0] sm:$0xff]
        %v1926 = vld [vmem:[%s11 + $0x2f8] sm:$0xff]
        %v1928 = vcombine.high %v1830, %v1830
        %v1930 = vunpack.c.l.s4 1983009808
        %v1931 = vunpack.c.0.s8 %v1930
        %v1932 = vlaneseq
        %v1933 = vshrl.u32 %v1932, 7
        %v1934 = vsub.s32 %v1931, %v1933
        %v1935 = vrot.slane %v1830, %v1934
        %v1937 = vunpack.c.l.s4 1983009808
        %v1938 = vunpack.c.0.s8 %v1937
        %v1939 = vlaneseq
        %v1940 = vshrl.u32 %v1939, 7
        %v1941 = vsub.s32 %v1938, %v1940
        %v1942 = vrot.slane %v1928, %v1941
        %v1943 = vcombine.high %v1935, %v1935
        %v2043 = vunpack.c.l.b16 %v1831
        %v2044 = vunpack.c.h.b16 %v1831
        %v2045 = vunpack.c.l.b16 %v1832
        %v2046 = vunpack.c.h.b16 %v1832
        %v2047 = vunpack.c.l.b16 %v1833
        %v2048 = vunpack.c.h.b16 %v1833
        %v2049 = vunpack.c.l.b16 %v1834
        %v2050 = vunpack.c.h.b16 %v1834
        %v2051 = vunpack.c.l.b16 %v1835
        %v2052 = vunpack.c.h.b16 %v1835
        %v2053 = vunpack.c.l.b16 %v1836
        %v2054 = vunpack.c.h.b16 %v1836
        %v2055 = vunpack.c.l.b16 %v1837
        %v2056 = vunpack.c.h.b16 %v1837
        %v2057 = vunpack.c.l.b16 %v1838
        %v2058 = vunpack.c.h.b16 %v1838
        %v2059 = vunpack.c.l.b16 %v1839
        %v2060 = vunpack.c.h.b16 %v1839
        %v2061 = vunpack.c.l.b16 %v1840
        %v2062 = vunpack.c.h.b16 %v1840
        %v2063 = vunpack.c.l.b16 %v1841
        %v2064 = vunpack.c.h.b16 %v1841
        %v2065 = vunpack.c.l.b16 %v1842
        %v2066 = vunpack.c.h.b16 %v1842
        %v2067 = vunpack.c.l.b16 %v1843
        %v2068 = vunpack.c.h.b16 %v1843
        %v2069 = vunpack.c.l.b16 %v1844
        %v2070 = vunpack.c.h.b16 %v1844
        %v2071 = vunpack.c.l.b16 %v1845
        %v2072 = vunpack.c.h.b16 %v1845
        %v2073 = vunpack.c.l.b16 %v1846
        %v2074 = vunpack.c.h.b16 %v1846
        %v2075 = vunpack.c.l.b16 %v1847
        %v2076 = vunpack.c.h.b16 %v1847
        %v2077 = vunpack.c.l.b16 %v1848
        %v2078 = vunpack.c.h.b16 %v1848
        %v2079 = vunpack.c.l.b16 %v1849
        %v2080 = vunpack.c.h.b16 %v1849
        %v2081 = vunpack.c.l.b16 %v1850
        %v2082 = vunpack.c.h.b16 %v1850
        %v2083 = vunpack.c.l.b16 %v1851
        %v2084 = vunpack.c.h.b16 %v1851
        %v2085 = vunpack.c.l.b16 %v1852
        %v2086 = vunpack.c.h.b16 %v1852
        %v2087 = vunpack.c.l.b16 %v1853
        %v2088 = vunpack.c.h.b16 %v1853
        %v2089 = vunpack.c.l.b16 %v1854
        %v2090 = vunpack.c.h.b16 %v1854
        %v2091 = vunpack.c.l.b16 %v1855
        %v2092 = vunpack.c.h.b16 %v1855
        %v2093 = vunpack.c.l.b16 %v1856
        %v2094 = vunpack.c.h.b16 %v1856
        %v2095 = vunpack.c.l.b16 %v1857
        %v2096 = vunpack.c.h.b16 %v1857
        %v2097 = vunpack.c.l.b16 %v1858
        %v2098 = vunpack.c.h.b16 %v1858
        %v2099 = vunpack.c.l.b16 %v1859
        %v2100 = vunpack.c.h.b16 %v1859
        %v2101 = vunpack.c.l.b16 %v1860
        %v2102 = vunpack.c.h.b16 %v1860
        %v2103 = vunpack.c.l.b16 %v1861
        %v2104 = vunpack.c.h.b16 %v1861
        %v2105 = vunpack.c.l.b16 %v1862
        %v2106 = vunpack.c.h.b16 %v1862
        %v2107 = vunpack.c.l.b16 %v1863
        %v2108 = vunpack.c.h.b16 %v1863
        %v2109 = vunpack.c.l.b16 %v1864
        %v2110 = vunpack.c.h.b16 %v1864
        %v2111 = vunpack.c.l.b16 %v1865
        %v2112 = vunpack.c.h.b16 %v1865
        %v2113 = vunpack.c.l.b16 %v1866
        %v2114 = vunpack.c.h.b16 %v1866
        %v2115 = vunpack.c.l.b16 %v1867
        %v2116 = vunpack.c.h.b16 %v1867
        %v2117 = vunpack.c.l.b16 %v1868
        %v2118 = vunpack.c.h.b16 %v1868
        %v2119 = vunpack.c.l.b16 %v1869
        %v2120 = vunpack.c.h.b16 %v1869
        %v2121 = vunpack.c.l.b16 %v1870
        %v2122 = vunpack.c.h.b16 %v1870
        %v2123 = vunpack.c.l.b16 %v1871
        %v2124 = vunpack.c.h.b16 %v1871
        %v2125 = vunpack.c.l.b16 %v1872
        %v2126 = vunpack.c.h.b16 %v1872
        %v2127 = vunpack.c.l.b16 %v1873
        %v2128 = vunpack.c.h.b16 %v1873
        %v2129 = vunpack.c.l.b16 %v1874
        %v2130 = vunpack.c.h.b16 %v1874
        %v2131 = vunpack.c.l.b16 %v1875
        %v2132 = vunpack.c.h.b16 %v1875
        %v2133 = vunpack.c.l.b16 %v1876
        %v2134 = vunpack.c.h.b16 %v1876
        %v2135 = vunpack.c.l.b16 %v1877
        %v2136 = vunpack.c.h.b16 %v1877
        %v2137 = vunpack.c.l.b16 %v1878
        %v2138 = vunpack.c.h.b16 %v1878
        %v2139 = vunpack.c.l.b16 %v1879
        %v2140 = vunpack.c.h.b16 %v1879
        %v2141 = vunpack.c.l.b16 %v1880
        %v2142 = vunpack.c.h.b16 %v1880
        %v2143 = vunpack.c.l.b16 %v1881
        %v2144 = vunpack.c.h.b16 %v1881
        %v2145 = vunpack.c.l.b16 %v1882
        %v2146 = vunpack.c.h.b16 %v1882
        %v2147 = vunpack.c.l.b16 %v1883
        %v2148 = vunpack.c.h.b16 %v1883
        %v2149 = vunpack.c.l.b16 %v1884
        %v2150 = vunpack.c.h.b16 %v1884
        %v2151 = vunpack.c.l.b16 %v1885
        %v2152 = vunpack.c.h.b16 %v1885
        %v2153 = vunpack.c.l.b16 %v1886
        %v2154 = vunpack.c.h.b16 %v1886
        %v2155 = vunpack.c.l.b16 %v1887
        %v2156 = vunpack.c.h.b16 %v1887
        %v2157 = vunpack.c.l.b16 %v1888
        %v2158 = vunpack.c.h.b16 %v1888
        %v2159 = vunpack.c.l.b16 %v1889
        %v2160 = vunpack.c.h.b16 %v1889
        %v2161 = vunpack.c.l.b16 %v1890
        %v2162 = vunpack.c.h.b16 %v1890
        %v2163 = vunpack.c.l.b16 %v1891
        %v2164 = vunpack.c.h.b16 %v1891
        %v2165 = vunpack.c.l.b16 %v1892
        %v2166 = vunpack.c.h.b16 %v1892
        %v2167 = vunpack.c.l.b16 %v1893
        %v2168 = vunpack.c.h.b16 %v1893
        %v2169 = vunpack.c.l.b16 %v1894
        %v2170 = vunpack.c.h.b16 %v1894
        %v2171 = vunpack.c.l.b16 %v1895
        %v2172 = vunpack.c.h.b16 %v1895
        %v2173 = vunpack.c.l.b16 %v1896
        %v2174 = vunpack.c.h.b16 %v1896
        %v2175 = vunpack.c.l.b16 %v1897
        %v2176 = vunpack.c.h.b16 %v1897
        %v2177 = vunpack.c.l.b16 %v1898
        %v2178 = vunpack.c.h.b16 %v1898
        %v2179 = vunpack.c.l.b16 %v1899
        %v2180 = vunpack.c.h.b16 %v1899
        %v2181 = vunpack.c.l.b16 %v1900
        %v2182 = vunpack.c.h.b16 %v1900
        %v2183 = vunpack.c.l.b16 %v1901
        %v2184 = vunpack.c.h.b16 %v1901
        %v2185 = vunpack.c.l.b16 %v1902
        %v2186 = vunpack.c.h.b16 %v1902
        %v2187 = vunpack.c.l.b16 %v1903
        %v2188 = vunpack.c.h.b16 %v1903
        %v2189 = vunpack.c.l.b16 %v1904
        %v2190 = vunpack.c.h.b16 %v1904
        %v2191 = vunpack.c.l.b16 %v1905
        %v2192 = vunpack.c.h.b16 %v1905
        %v2193 = vunpack.c.l.b16 %v1906
        %v2194 = vunpack.c.h.b16 %v1906
        %v2195 = vunpack.c.l.b16 %v1907
        %v2196 = vunpack.c.h.b16 %v1907
        %v2197 = vunpack.c.l.b16 %v1908
        %v2198 = vunpack.c.h.b16 %v1908
        %v2199 = vunpack.c.l.b16 %v1909
        %v2200 = vunpack.c.h.b16 %v1909
        %v2201 = vunpack.c.l.b16 %v1910
        %v2202 = vunpack.c.h.b16 %v1910
        %v2203 = vunpack.c.l.b16 %v1911
        %v2204 = vunpack.c.h.b16 %v1911
        %v2205 = vunpack.c.l.b16 %v1912
        %v2206 = vunpack.c.h.b16 %v1912
        %v2207 = vunpack.c.l.b16 %v1913
        %v2208 = vunpack.c.h.b16 %v1913
        %v2209 = vunpack.c.l.b16 %v1914
        %v2210 = vunpack.c.h.b16 %v1914
        %v2211 = vunpack.c.l.b16 %v1915
        %v2212 = vunpack.c.h.b16 %v1915
        %v2213 = vunpack.c.l.b16 %v1916
        %v2214 = vunpack.c.h.b16 %v1916
        %v2215 = vunpack.c.l.b16 %v1917
        %v2216 = vunpack.c.h.b16 %v1917
        %v2217 = vunpack.c.l.b16 %v1918
        %v2218 = vunpack.c.h.b16 %v1918
        %v2219 = vunpack.c.l.b16 %v1919
        %v2220 = vunpack.c.h.b16 %v1919
        %v2221 = vunpack.c.l.b16 %v1920
        %v2222 = vunpack.c.h.b16 %v1920
        %v2223 = vunpack.c.l.b16 %v1921
        %v2224 = vunpack.c.h.b16 %v1921
        %v2225 = vunpack.c.l.b16 %v1922
        %v2226 = vunpack.c.h.b16 %v1922
        %v2227 = vunpack.c.l.b16 %v1923
        %v2228 = vunpack.c.h.b16 %v1923
        %v2229 = vunpack.c.l.b16 %v1924
        %v2230 = vunpack.c.h.b16 %v1924
        %v2231 = vunpack.c.l.b16 %v1925
        %v2232 = vunpack.c.h.b16 %v1925
        %v2233 = vunpack.c.l.b16 %v1926
        %v2234 = vunpack.c.h.b16 %v1926
        %v2235 = vpack.c.b16 %v2047, %v2043
        %v2236 = vpack.c.b16 %v2048, %v2044
        %v2237 = vpack.c.b16 %v2049, %v2045
        %v2238 = vpack.c.b16 %v2050, %v2046
        %v2239 = vpack.c.b16 %v2055, %v2051
        %v2240 = vpack.c.b16 %v2056, %v2052
        %v2241 = vpack.c.b16 %v2057, %v2053
        %v2242 = vpack.c.b16 %v2058, %v2054
        %v2243 = vpack.c.b16 %v2063, %v2059
        %v2244 = vpack.c.b16 %v2064, %v2060
        %v2245 = vpack.c.b16 %v2065, %v2061
        %v2246 = vpack.c.b16 %v2066, %v2062
        %v2247 = vpack.c.b16 %v2071, %v2067
        %v2248 = vpack.c.b16 %v2072, %v2068
        %v2249 = vpack.c.b16 %v2073, %v2069
        %v2250 = vpack.c.b16 %v2074, %v2070
        %v2251 = vpack.c.b16 %v2079, %v2075
        %v2252 = vpack.c.b16 %v2080, %v2076
        %v2253 = vpack.c.b16 %v2081, %v2077
        %v2254 = vpack.c.b16 %v2082, %v2078
        %v2255 = vpack.c.b16 %v2087, %v2083
        %v2256 = vpack.c.b16 %v2088, %v2084
        %v2257 = vpack.c.b16 %v2089, %v2085
        %v2258 = vpack.c.b16 %v2090, %v2086
        %v2259 = vpack.c.b16 %v2095, %v2091
        %v2260 = vpack.c.b16 %v2096, %v2092
        %v2261 = vpack.c.b16 %v2097, %v2093
        %v2262 = vpack.c.b16 %v2098, %v2094
        %v2263 = vpack.c.b16 %v2103, %v2099
        %v2264 = vpack.c.b16 %v2104, %v2100
        %v2265 = vpack.c.b16 %v2105, %v2101
        %v2266 = vpack.c.b16 %v2106, %v2102
        %v2267 = vpack.c.b16 %v2111, %v2107
        %v2268 = vpack.c.b16 %v2112, %v2108
        %v2269 = vpack.c.b16 %v2113, %v2109
        %v2270 = vpack.c.b16 %v2114, %v2110
        %v2271 = vpack.c.b16 %v2119, %v2115
        %v2272 = vpack.c.b16 %v2120, %v2116
        %v2273 = vpack.c.b16 %v2121, %v2117
        %v2274 = vpack.c.b16 %v2122, %v2118
        %v2275 = vpack.c.b16 %v2127, %v2123
        %v2276 = vpack.c.b16 %v2128, %v2124
        %v2277 = vpack.c.b16 %v2129, %v2125
        %v2278 = vpack.c.b16 %v2130, %v2126
        %v2279 = vpack.c.b16 %v2135, %v2131
        %v2280 = vpack.c.b16 %v2136, %v2132
        %v2281 = vpack.c.b16 %v2137, %v2133
        %v2282 = vpack.c.b16 %v2138, %v2134
        %v2283 = vpack.c.b16 %v2143, %v2139
        %v2284 = vpack.c.b16 %v2144, %v2140
        %v2285 = vpack.c.b16 %v2145, %v2141
        %v2286 = vpack.c.b16 %v2146, %v2142
        %v2287 = vpack.c.b16 %v2151, %v2147
        %v2288 = vpack.c.b16 %v2152, %v2148
        %v2289 = vpack.c.b16 %v2153, %v2149
        %v2290 = vpack.c.b16 %v2154, %v2150
        %v2291 = vpack.c.b16 %v2159, %v2155
        %v2292 = vpack.c.b16 %v2160, %v2156
        %v2293 = vpack.c.b16 %v2161, %v2157
        %v2294 = vpack.c.b16 %v2162, %v2158
        %v2295 = vpack.c.b16 %v2167, %v2163
        %v2296 = vpack.c.b16 %v2168, %v2164
        %v2297 = vpack.c.b16 %v2169, %v2165
        %v2298 = vpack.c.b16 %v2170, %v2166
        %v2299 = vpack.c.b16 %v2175, %v2171
        %v2300 = vpack.c.b16 %v2176, %v2172
        %v2301 = vpack.c.b16 %v2177, %v2173
        %v2302 = vpack.c.b16 %v2178, %v2174
        %v2303 = vpack.c.b16 %v2183, %v2179
        %v2304 = vpack.c.b16 %v2184, %v2180
        %v2305 = vpack.c.b16 %v2185, %v2181
        %v2306 = vpack.c.b16 %v2186, %v2182
        %v2307 = vpack.c.b16 %v2191, %v2187
        %v2308 = vpack.c.b16 %v2192, %v2188
        %v2309 = vpack.c.b16 %v2193, %v2189
        %v2310 = vpack.c.b16 %v2194, %v2190
        %v2311 = vpack.c.b16 %v2199, %v2195
        %v2312 = vpack.c.b16 %v2200, %v2196
        %v2313 = vpack.c.b16 %v2201, %v2197
        %v2314 = vpack.c.b16 %v2202, %v2198
        %v2315 = vpack.c.b16 %v2207, %v2203
        %v2316 = vpack.c.b16 %v2208, %v2204
        %v2317 = vpack.c.b16 %v2209, %v2205
        %v2318 = vpack.c.b16 %v2210, %v2206
        %v2319 = vpack.c.b16 %v2215, %v2211
        %v2320 = vpack.c.b16 %v2216, %v2212
        %v2321 = vpack.c.b16 %v2217, %v2213
        %v2322 = vpack.c.b16 %v2218, %v2214
        %v2323 = vpack.c.b16 %v2223, %v2219
        %v2324 = vpack.c.b16 %v2224, %v2220
        %v2325 = vpack.c.b16 %v2225, %v2221
        %v2326 = vpack.c.b16 %v2226, %v2222
        %v2327 = vpack.c.b16 %v2231, %v2227
        %v2328 = vpack.c.b16 %v2232, %v2228
        %v2329 = vpack.c.b16 %v2233, %v2229
        %v2330 = vpack.c.b16 %v2234, %v2230
        %2427 = vmatprep.subr.bf16.mxu0 %v2264
        %2428 = vmatpush1.bf16.msra.mxu0 %v2263
        %2429 = vmatprep.subr.bf16.mxu0 %v2260
        %2430 = vmatpush1.bf16.msra.mxu0 %v2259
        %2431 = vmatprep.subr.bf16.mxu0 %v2256
        %2432 = vmatpush1.bf16.msra.mxu0 %v2255
        %2433 = vmatprep.subr.bf16.mxu0 %v2252
        %2434 = vmatpush1.bf16.msra.mxu0 %v2251
        %2435 = vmatprep.subr.bf16.mxu0 %v2248
        %2436 = vmatpush1.bf16.msra.mxu0 %v2247
        %2437 = vmatprep.subr.bf16.mxu0 %v2244
        %2438 = vmatpush1.bf16.msra.mxu0 %v2243
        %2439 = vmatprep.subr.bf16.mxu0 %v2240
        %2440 = vmatpush1.bf16.msra.mxu0 %v2239
        %2441 = vmatprep.subr.bf16.mxu0 %v2236
        %2442 = vmatpush1.bf16.msra.mxu0 %v2235
        %2443 = vmatprep.subr.bf16.mxu0 %v2296
        %2444 = vmatpush2.bf16.msra.mxu0 %v2295
        %2445 = vmatprep.subr.bf16.mxu0 %v2292
        %2446 = vmatpush2.bf16.msra.mxu0 %v2291
        %2447 = vmatprep.subr.bf16.mxu0 %v2288
        %2448 = vmatpush2.bf16.msra.mxu0 %v2287
        %2449 = vmatprep.subr.bf16.mxu0 %v2284
        %2450 = vmatpush2.bf16.msra.mxu0 %v2283
        %2451 = vmatprep.subr.bf16.mxu0 %v2280
        %2452 = vmatpush2.bf16.msra.mxu0 %v2279
        %2453 = vmatprep.subr.bf16.mxu0 %v2276
        %2454 = vmatpush2.bf16.msra.mxu0 %v2275
        %2455 = vmatprep.subr.bf16.mxu0 %v2272
        %2456 = vmatpush2.bf16.msra.mxu0 %v2271
        %2457 = vmatprep.subr.bf16.mxu0 %v2268
        %2458 = vmatpush2.bf16.msra.mxu0 %v2267
        %2459 = vmatprep.mubr.bf16.mxu0 %v1943
        %2460 = vmatmul.mubr.bf16.gmra.mxu0 %v1935
        %v2461 = vpop.f32.mrf.mxu0
        %v2462 = vadd.f32 0.0, %v2461
        %v2463 = vpop.f32.mrf.mxu0
        %v2464 = vadd.f32 0.0, %v2463
        %v2465 = vpop.f32.mrf.mxu0
        %v2466 = vpop.f32.mrf.mxu0
        %2467 = vdwg.mxu0
        %2468 = vmatprep.subr.bf16.mxu0 %v2328
        %2469 = vmatpush1.bf16.msra.mxu0 %v2327
        %2470 = vmatprep.subr.bf16.mxu0 %v2324
        %2471 = vmatpush1.bf16.msra.mxu0 %v2323
        %2472 = vmatprep.subr.bf16.mxu0 %v2320
        %2473 = vmatpush1.bf16.msra.mxu0 %v2319
        %2474 = vmatprep.subr.bf16.mxu0 %v2316
        %2475 = vmatpush1.bf16.msra.mxu0 %v2315
        %2476 = vmatprep.subr.bf16.mxu0 %v2312
        %2477 = vmatpush1.bf16.msra.mxu0 %v2311
        %2478 = vmatprep.subr.bf16.mxu0 %v2308
        %2479 = vmatpush1.bf16.msra.mxu0 %v2307
        %2480 = vmatprep.subr.bf16.mxu0 %v2304
        %2481 = vmatpush1.bf16.msra.mxu0 %v2303
        %2482 = vmatprep.subr.bf16.mxu0 %v2300
        %2483 = vmatpush1.bf16.msra.mxu0 %v2299
        %2484 = vmatprep.subr.bf16.mxu0 0
        %2485 = vmatpush2.bf16.msra.mxu0 0
        %2486 = vmatprep.subr.bf16.mxu0 0
        %2487 = vmatpush2.bf16.msra.mxu0 0
        %2488 = vmatprep.subr.bf16.mxu0 0
        %2489 = vmatpush2.bf16.msra.mxu0 0
        %2490 = vmatprep.subr.bf16.mxu0 0
        %2491 = vmatpush2.bf16.msra.mxu0 0
        %2492 = vmatprep.subr.bf16.mxu0 0
        %2493 = vmatpush2.bf16.msra.mxu0 0
        %2494 = vmatprep.subr.bf16.mxu0 0
        %2495 = vmatpush2.bf16.msra.mxu0 0
        %2496 = vmatprep.subr.bf16.mxu0 0
        %2497 = vmatpush2.bf16.msra.mxu0 0
        %2498 = vmatprep.subr.bf16.mxu0 0
        %2499 = vmatpush2.bf16.msra.mxu0 0
        %2500 = vmatprep.mubr.bf16.mxu0 0
        %2501 = vmatmul.mubr.bf16.gmra.mxu0 %v1942
        %v2502 = vpop.f32.mrf.mxu0
        %v2503 = vadd.f32 %v2462, %v2502
        %v2504 = vpop.f32.mrf.mxu0
        %v2505 = vadd.f32 %v2464, %v2504
        %v2506 = vpop.f32.mrf.mxu0
        %v2507 = vpop.f32.mrf.mxu0
        %2508 = vdwg.mxu0
        %2509 = vmatprep.subr.bf16.mxu0 %v2266
        %2510 = vmatpush1.bf16.msra.mxu0 %v2265
        %2511 = vmatprep.subr.bf16.mxu0 %v2262
        %2512 = vmatpush1.bf16.msra.mxu0 %v2261
        %2513 = vmatprep.subr.bf16.mxu0 %v2258
        %2514 = vmatpush1.bf16.msra.mxu0 %v2257
        %2515 = vmatprep.subr.bf16.mxu0 %v2254
        %2516 = vmatpush1.bf16.msra.mxu0 %v2253
        %2517 = vmatprep.subr.bf16.mxu0 %v2250
        %2518 = vmatpush1.bf16.msra.mxu0 %v2249
        %2519 = vmatprep.subr.bf16.mxu0 %v2246
        %2520 = vmatpush1.bf16.msra.mxu0 %v2245
        %2521 = vmatprep.subr.bf16.mxu0 %v2242
        %2522 = vmatpush1.bf16.msra.mxu0 %v2241
        %2523 = vmatprep.subr.bf16.mxu0 %v2238
        %2524 = vmatpush1.bf16.msra.mxu0 %v2237
        %2525 = vmatprep.subr.bf16.mxu0 %v2298
        %2526 = vmatpush2.bf16.msra.mxu0 %v2297
        %2527 = vmatprep.subr.bf16.mxu0 %v2294
        %2528 = vmatpush2.bf16.msra.mxu0 %v2293
        %2529 = vmatprep.subr.bf16.mxu0 %v2290
        %2530 = vmatpush2.bf16.msra.mxu0 %v2289
        %2531 = vmatprep.subr.bf16.mxu0 %v2286
        %2532 = vmatpush2.bf16.msra.mxu0 %v2285
        %2533 = vmatprep.subr.bf16.mxu0 %v2282
        %2534 = vmatpush2.bf16.msra.mxu0 %v2281
        %2535 = vmatprep.subr.bf16.mxu0 %v2278
        %2536 = vmatpush2.bf16.msra.mxu0 %v2277
        %2537 = vmatprep.subr.bf16.mxu0 %v2274
        %2538 = vmatpush2.bf16.msra.mxu0 %v2273
        %2539 = vmatprep.subr.bf16.mxu0 %v2270
        %2540 = vmatpush2.bf16.msra.mxu0 %v2269
        %2541 = vmatprep.mubr.bf16.mxu0 %v1943
        %2542 = vmatmul.mubr.bf16.gmra.mxu0 %v1935
        %v2543 = vpop.f32.mrf.mxu0
        %v2544 = vadd.f32 0.0, %v2543
        %v2545 = vpop.f32.mrf.mxu0
        %v2546 = vadd.f32 0.0, %v2545
        %v2547 = vpop.f32.mrf.mxu0
        %v2548 = vpop.f32.mrf.mxu0
        %2549 = vdwg.mxu0
        %2550 = vmatprep.subr.bf16.mxu0 %v2330
        %2551 = vmatpush1.bf16.msra.mxu0 %v2329
        %2552 = vmatprep.subr.bf16.mxu0 %v2326
        %2553 = vmatpush1.bf16.msra.mxu0 %v2325
        %2554 = vmatprep.subr.bf16.mxu0 %v2322
        %2555 = vmatpush1.bf16.msra.mxu0 %v2321
        %2556 = vmatprep.subr.bf16.mxu0 %v2318
        %2557 = vmatpush1.bf16.msra.mxu0 %v2317
        %2558 = vmatprep.subr.bf16.mxu0 %v2314
        %2559 = vmatpush1.bf16.msra.mxu0 %v2313
        %2560 = vmatprep.subr.bf16.mxu0 %v2310
        %2561 = vmatpush1.bf16.msra.mxu0 %v2309
        %2562 = vmatprep.subr.bf16.mxu0 %v2306
        %2563 = vmatpush1.bf16.msra.mxu0 %v2305
        %2564 = vmatprep.subr.bf16.mxu0 %v2302
        %2565 = vmatpush1.bf16.msra.mxu0 %v2301
        %2566 = vmatprep.subr.bf16.mxu0 0
        %2567 = vmatpush2.bf16.msra.mxu0 0
        %2568 = vmatprep.subr.bf16.mxu0 0
        %2569 = vmatpush2.bf16.msra.mxu0 0
        %2570 = vmatprep.subr.bf16.mxu0 0
        %2571 = vmatpush2.bf16.msra.mxu0 0
        %2572 = vmatprep.subr.bf16.mxu0 0
        %2573 = vmatpush2.bf16.msra.mxu0 0
        %2574 = vmatprep.subr.bf16.mxu0 0
        %2575 = vmatpush2.bf16.msra.mxu0 0
        %2576 = vmatprep.subr.bf16.mxu0 0
        %2577 = vmatpush2.bf16.msra.mxu0 0
        %2578 = vmatprep.subr.bf16.mxu0 0
        %2579 = vmatpush2.bf16.msra.mxu0 0
        %2580 = vmatprep.subr.bf16.mxu0 0
        %2581 = vmatpush2.bf16.msra.mxu0 0
        %2582 = vmatprep.mubr.bf16.mxu0 0
        %2583 = vmatmul.mubr.bf16.gmra.mxu0 %v1942
        %v2584 = vpop.f32.mrf.mxu0
        %v2585 = vadd.f32 %v2544, %v2584
        %v2586 = vpop.f32.mrf.mxu0
        %v2587 = vadd.f32 %v2546, %v2586
        %v2588 = vpop.f32.mrf.mxu0
        %v2589 = vpop.f32.mrf.mxu0
        %2590 = vdwg.mxu0
        %v2591 = vld [vmem:[%s12] sm:$0xf]
        %v2593 = vlaneseq
        %v2594 = vshrl.u32 %v2593, 7
        %v2595 = vsub.s32 0, %v2594
        %v2596 = vrot.slane %v2591, %v2595
        %v2597 = vlaneseq
        %v2598 = vshrl.u32 %v2597, 7
        %v2599 = vsub.s32 1, %v2598
        %v2600 = vrot.slane %v2591, %v2599
        %v2601 = vlaneseq
        %v2602 = vshrl.u32 %v2601, 7
        %v2603 = vsub.s32 2, %v2602
        %v2604 = vrot.slane %v2591, %v2603
        %v2605 = vlaneseq
        %v2606 = vshrl.u32 %v2605, 7
        %v2607 = vsub.s32 3, %v2606
        %v2608 = vrot.slane %v2591, %v2607
        %v2613 = vmul.f32 %v2503, %v2596
        %v2614 = vmul.f32 %v2505, %v2600
        %v2615 = vmul.f32 %v2585, %v2604
        %v2616 = vmul.f32 %v2587, %v2608
        %v2617 = vld [vmem:[%s13] sm:$0xf]
        %v2619 = vlaneseq
        %v2620 = vshrl.u32 %v2619, 7
        %v2621 = vsub.s32 0, %v2620
        %v2622 = vrot.slane %v2617, %v2621
        %v2623 = vlaneseq
        %v2624 = vshrl.u32 %v2623, 7
        %v2625 = vsub.s32 1, %v2624
        %v2626 = vrot.slane %v2617, %v2625
        %v2627 = vlaneseq
        %v2628 = vshrl.u32 %v2627, 7
        %v2629 = vsub.s32 2, %v2628
        %v2630 = vrot.slane %v2617, %v2629
        %v2631 = vlaneseq
        %v2632 = vshrl.u32 %v2631, 7
        %v2633 = vsub.s32 3, %v2632
        %v2634 = vrot.slane %v2617, %v2633
        %v2639 = vadd.f32 %v2613, %v2622
        %v2640 = vadd.f32 %v2614, %v2626
        %v2641 = vadd.f32 %v2615, %v2630
        %v2642 = vadd.f32 %v2616, %v2634
        %v2643 = vmax.f32 %v2639, 0.0
        %v2644 = vmax.f32 %v2640, 0.0
        %v2645 = vpack.c.bf16 %v2643, %v2643
        %v2646 = vpack.c.bf16 %v2644, %v2644
        %v2649 = vcombine.low %v2645, %v2646
        %v2651 = vunpack.c.l.s4 1983009808
        %v2652 = vunpack.c.0.s8 %v2651
        %v2653 = vlaneseq
        %v2654 = vshrl.u32 %v2653, 7
        %v2655 = vsub.s32 %v2652, %v2654
        %v2656 = vrot.slane %v2649, %v2655
        %2658 = vst [vmem:[#allocation7 + $0x4] sm:$0xf] %v2656
        %vm2659 = vcmask 1042434
        %vm2660 = vmand %vm2659, %vm888
        %vm2661 = vmor %vm2660, %vm1446
        %v2662 = vld [vmem:[#allocation7] sm:$0x5]
        %v2663 = vsel %vm2661, 0, %v2662
        %2664 = vst [vmem:[#allocation7] sm:$0x5] %v2663
        %v2666 = vshrl.u32 %v2656, 16
        %v2668 = vrot.slane %v2666, 7
        %v2669 = vshll.u32 %v2656, 16
        %v2671 = vor.u32 %v2668, %v2669
        %vm2673 = vcmask 1043458
        %vm2674 = vsmask.f32 7946
        %vm2675 = vmand %vm2673, %vm2674
        %vm2676 = vmor %vm2675, %vm1466
        %v2677 = vld [vmem:[#allocation7] sm:$0xf]
        %v2678 = vsel %vm2676, %v2671, %v2677
        %2679 = vst [vmem:[#allocation7] sm:$0xf] %v2678
        %v2680 = vrot.slane %v2666, 6
        %v2681 = vrot.slane %v2669, 7
        %v2682 = vor.u32 %v2680, %v2681
        %v2683 = vrot.slane %v2682, 2
        %vm2685 = vmand %vm2673, %vm824
        %vm2686 = vmor %vm2685, %vm1475
        %v2687 = vld [vmem:[#allocation7 + $0x8] sm:$0xf]
        %v2688 = vsel %vm2686, %v2683, %v2687
        %2689 = vst [vmem:[#allocation7 + $0x8] sm:$0xf] %v2688
        %vm2690 = vcmask 1043459
        %vm2691 = vsmask.f32 7950
        %vm2692 = vmand %vm2690, %vm2691
        %vm2693 = vmor %vm2692, %vm1480
        %v2694 = vld [vmem:[#allocation7 + $0x8] sm:$0xa]
        %v2695 = vsel %vm2693, 0, %v2694
        %2696 = vst [vmem:[#allocation7 + $0x8] sm:$0xa] %v2695
        %v2697 = vld [vmem:[#allocation7] sm:$0xff]
        %v2698 = vld [vmem:[#allocation7 + $0x8] sm:$0xf]
        %v2699 = vld [vmem:[%s14] sm:$0xff]
        %v2700 = vld [vmem:[%s14 + $0x8] sm:$0xff]
        %v2701 = vld [vmem:[%s14 + $0x10] sm:$0xff]
        %v2702 = vld [vmem:[%s14 + $0x18] sm:$0xff]
        %v2703 = vld [vmem:[%s14 + $0x20] sm:$0xff]
        %v2704 = vld [vmem:[%s14 + $0x28] sm:$0xff]
        %v2705 = vld [vmem:[%s14 + $0x30] sm:$0xff]
        %v2706 = vld [vmem:[%s14 + $0x38] sm:$0xff]
        %v2707 = vld [vmem:[%s14 + $0x40] sm:$0xff]
        %v2708 = vld [vmem:[%s14 + $0x48] sm:$0xff]
        %v2709 = vld [vmem:[%s14 + $0x50] sm:$0xff]
        %v2710 = vld [vmem:[%s14 + $0x58] sm:$0xff]
        %v2711 = vld [vmem:[%s14 + $0x60] sm:$0xff]
        %v2712 = vld [vmem:[%s14 + $0x68] sm:$0xff]
        %v2713 = vld [vmem:[%s14 + $0x70] sm:$0xff]
        %v2714 = vld [vmem:[%s14 + $0x78] sm:$0xff]
        %v2715 = vld [vmem:[%s14 + $0x80] sm:$0xff]
        %v2716 = vld [vmem:[%s14 + $0x88] sm:$0xff]
        %v2717 = vld [vmem:[%s14 + $0x90] sm:$0xff]
        %v2718 = vld [vmem:[%s14 + $0x98] sm:$0xff]
        %v2719 = vld [vmem:[%s14 + $0xa0] sm:$0xff]
        %v2720 = vld [vmem:[%s14 + $0xa8] sm:$0xff]
        %v2721 = vld [vmem:[%s14 + $0xb0] sm:$0xff]
        %v2722 = vld [vmem:[%s14 + $0xb8] sm:$0xff]
        %v2723 = vld [vmem:[%s14 + $0xc0] sm:$0xff]
        %v2724 = vld [vmem:[%s14 + $0xc8] sm:$0xff]
        %v2725 = vld [vmem:[%s14 + $0xd0] sm:$0xff]
        %v2726 = vld [vmem:[%s14 + $0xd8] sm:$0xff]
        %v2727 = vld [vmem:[%s14 + $0xe0] sm:$0xff]
        %v2728 = vld [vmem:[%s14 + $0xe8] sm:$0xff]
        %v2729 = vld [vmem:[%s14 + $0xf0] sm:$0xff]
        %v2730 = vld [vmem:[%s14 + $0xf8] sm:$0xff]
        %v2731 = vld [vmem:[%s14 + $0x100] sm:$0xff]
        %v2732 = vld [vmem:[%s14 + $0x108] sm:$0xff]
        %v2733 = vld [vmem:[%s14 + $0x110] sm:$0xff]
        %v2734 = vld [vmem:[%s14 + $0x118] sm:$0xff]
        %v2735 = vld [vmem:[%s14 + $0x120] sm:$0xff]
        %v2736 = vld [vmem:[%s14 + $0x128] sm:$0xff]
        %v2737 = vld [vmem:[%s14 + $0x130] sm:$0xff]
        %v2738 = vld [vmem:[%s14 + $0x138] sm:$0xff]
        %v2739 = vld [vmem:[%s14 + $0x140] sm:$0xff]
        %v2740 = vld [vmem:[%s14 + $0x148] sm:$0xff]
        %v2741 = vld [vmem:[%s14 + $0x150] sm:$0xff]
        %v2742 = vld [vmem:[%s14 + $0x158] sm:$0xff]
        %v2743 = vld [vmem:[%s14 + $0x160] sm:$0xff]
        %v2744 = vld [vmem:[%s14 + $0x168] sm:$0xff]
        %v2745 = vld [vmem:[%s14 + $0x170] sm:$0xff]
        %v2746 = vld [vmem:[%s14 + $0x178] sm:$0xff]
        %v2747 = vld [vmem:[%s14 + $0x180] sm:$0xff]
        %v2748 = vld [vmem:[%s14 + $0x188] sm:$0xff]
        %v2749 = vld [vmem:[%s14 + $0x190] sm:$0xff]
        %v2750 = vld [vmem:[%s14 + $0x198] sm:$0xff]
        %v2751 = vld [vmem:[%s14 + $0x1a0] sm:$0xff]
        %v2752 = vld [vmem:[%s14 + $0x1a8] sm:$0xff]
        %v2753 = vld [vmem:[%s14 + $0x1b0] sm:$0xff]
        %v2754 = vld [vmem:[%s14 + $0x1b8] sm:$0xff]
        %v2755 = vld [vmem:[%s14 + $0x1c0] sm:$0xff]
        %v2756 = vld [vmem:[%s14 + $0x1c8] sm:$0xff]
        %v2757 = vld [vmem:[%s14 + $0x1d0] sm:$0xff]
        %v2758 = vld [vmem:[%s14 + $0x1d8] sm:$0xff]
        %v2759 = vld [vmem:[%s14 + $0x1e0] sm:$0xff]
        %v2760 = vld [vmem:[%s14 + $0x1e8] sm:$0xff]
        %v2761 = vld [vmem:[%s14 + $0x1f0] sm:$0xff]
        %v2762 = vld [vmem:[%s14 + $0x1f8] sm:$0xff]
        %v2763 = vld [vmem:[%s14 + $0x200] sm:$0xff]
        %v2764 = vld [vmem:[%s14 + $0x208] sm:$0xff]
        %v2765 = vld [vmem:[%s14 + $0x210] sm:$0xff]
        %v2766 = vld [vmem:[%s14 + $0x218] sm:$0xff]
        %v2767 = vld [vmem:[%s14 + $0x220] sm:$0xff]
        %v2768 = vld [vmem:[%s14 + $0x228] sm:$0xff]
        %v2769 = vld [vmem:[%s14 + $0x230] sm:$0xff]
        %v2770 = vld [vmem:[%s14 + $0x238] sm:$0xff]
        %v2771 = vld [vmem:[%s14 + $0x240] sm:$0xff]
        %v2772 = vld [vmem:[%s14 + $0x248] sm:$0xff]
        %v2773 = vld [vmem:[%s14 + $0x250] sm:$0xff]
        %v2774 = vld [vmem:[%s14 + $0x258] sm:$0xff]
        %v2775 = vld [vmem:[%s14 + $0x260] sm:$0xff]
        %v2776 = vld [vmem:[%s14 + $0x268] sm:$0xff]
        %v2777 = vld [vmem:[%s14 + $0x270] sm:$0xff]
        %v2778 = vld [vmem:[%s14 + $0x278] sm:$0xff]
        %v2779 = vld [vmem:[%s14 + $0x280] sm:$0xff]
        %v2780 = vld [vmem:[%s14 + $0x288] sm:$0xff]
        %v2781 = vld [vmem:[%s14 + $0x290] sm:$0xff]
        %v2782 = vld [vmem:[%s14 + $0x298] sm:$0xff]
        %v2783 = vld [vmem:[%s14 + $0x2a0] sm:$0xff]
        %v2784 = vld [vmem:[%s14 + $0x2a8] sm:$0xff]
        %v2785 = vld [vmem:[%s14 + $0x2b0] sm:$0xff]
        %v2786 = vld [vmem:[%s14 + $0x2b8] sm:$0xff]
        %v2787 = vld [vmem:[%s14 + $0x2c0] sm:$0xff]
        %v2788 = vld [vmem:[%s14 + $0x2c8] sm:$0xff]
        %v2789 = vld [vmem:[%s14 + $0x2d0] sm:$0xff]
        %v2790 = vld [vmem:[%s14 + $0x2d8] sm:$0xff]
        %v2791 = vld [vmem:[%s14 + $0x2e0] sm:$0xff]
        %v2792 = vld [vmem:[%s14 + $0x2e8] sm:$0xff]
        %v2793 = vld [vmem:[%s14 + $0x2f0] sm:$0xff]
        %v2794 = vld [vmem:[%s14 + $0x2f8] sm:$0xff]
        %v2797 = vcombine.high %v2697, %v2697
        %v2799 = vunpack.c.l.s4 1983009808
        %v2800 = vunpack.c.0.s8 %v2799
        %v2801 = vlaneseq
        %v2802 = vshrl.u32 %v2801, 7
        %v2803 = vsub.s32 %v2800, %v2802
        %v2804 = vrot.slane %v2697, %v2803
        %v2806 = vunpack.c.l.s4 1983009808
        %v2807 = vunpack.c.0.s8 %v2806
        %v2808 = vlaneseq
        %v2809 = vshrl.u32 %v2808, 7
        %v2810 = vsub.s32 %v2807, %v2809
        %v2811 = vrot.slane %v2797, %v2810
        %v2812 = vcombine.high %v2804, %v2804
        %v2813 = vcombine.high %v2811, %v2811
        %v2815 = vunpack.c.l.s4 1983009808
        %v2816 = vunpack.c.0.s8 %v2815
        %v2817 = vlaneseq
        %v2818 = vshrl.u32 %v2817, 7
        %v2819 = vsub.s32 %v2816, %v2818
        %v2820 = vrot.slane %v2698, %v2819
        %v2821 = vcombine.high %v2820, %v2820
        %v2924 = vunpack.c.l.b16 %v2699
        %v2925 = vunpack.c.h.b16 %v2699
        %v2926 = vunpack.c.l.b16 %v2700
        %v2927 = vunpack.c.h.b16 %v2700
        %v2928 = vunpack.c.l.b16 %v2701
        %v2929 = vunpack.c.h.b16 %v2701
        %v2930 = vunpack.c.l.b16 %v2702
        %v2931 = vunpack.c.h.b16 %v2702
        %v2932 = vunpack.c.l.b16 %v2703
        %v2933 = vunpack.c.h.b16 %v2703
        %v2934 = vunpack.c.l.b16 %v2704
        %v2935 = vunpack.c.h.b16 %v2704
        %v2936 = vunpack.c.l.b16 %v2705
        %v2937 = vunpack.c.h.b16 %v2705
        %v2938 = vunpack.c.l.b16 %v2706
        %v2939 = vunpack.c.h.b16 %v2706
        %v2940 = vunpack.c.l.b16 %v2707
        %v2941 = vunpack.c.h.b16 %v2707
        %v2942 = vunpack.c.l.b16 %v2708
        %v2943 = vunpack.c.h.b16 %v2708
        %v2944 = vunpack.c.l.b16 %v2709
        %v2945 = vunpack.c.h.b16 %v2709
        %v2946 = vunpack.c.l.b16 %v2710
        %v2947 = vunpack.c.h.b16 %v2710
        %v2948 = vunpack.c.l.b16 %v2711
        %v2949 = vunpack.c.h.b16 %v2711
        %v2950 = vunpack.c.l.b16 %v2712
        %v2951 = vunpack.c.h.b16 %v2712
        %v2952 = vunpack.c.l.b16 %v2713
        %v2953 = vunpack.c.h.b16 %v2713
        %v2954 = vunpack.c.l.b16 %v2714
        %v2955 = vunpack.c.h.b16 %v2714
        %v2956 = vunpack.c.l.b16 %v2715
        %v2957 = vunpack.c.h.b16 %v2715
        %v2958 = vunpack.c.l.b16 %v2716
        %v2959 = vunpack.c.h.b16 %v2716
        %v2960 = vunpack.c.l.b16 %v2717
        %v2961 = vunpack.c.h.b16 %v2717
        %v2962 = vunpack.c.l.b16 %v2718
        %v2963 = vunpack.c.h.b16 %v2718
        %v2964 = vunpack.c.l.b16 %v2719
        %v2965 = vunpack.c.h.b16 %v2719
        %v2966 = vunpack.c.l.b16 %v2720
        %v2967 = vunpack.c.h.b16 %v2720
        %v2968 = vunpack.c.l.b16 %v2721
        %v2969 = vunpack.c.h.b16 %v2721
        %v2970 = vunpack.c.l.b16 %v2722
        %v2971 = vunpack.c.h.b16 %v2722
        %v2972 = vunpack.c.l.b16 %v2723
        %v2973 = vunpack.c.h.b16 %v2723
        %v2974 = vunpack.c.l.b16 %v2724
        %v2975 = vunpack.c.h.b16 %v2724
        %v2976 = vunpack.c.l.b16 %v2725
        %v2977 = vunpack.c.h.b16 %v2725
        %v2978 = vunpack.c.l.b16 %v2726
        %v2979 = vunpack.c.h.b16 %v2726
        %v2980 = vunpack.c.l.b16 %v2727
        %v2981 = vunpack.c.h.b16 %v2727
        %v2982 = vunpack.c.l.b16 %v2728
        %v2983 = vunpack.c.h.b16 %v2728
        %v2984 = vunpack.c.l.b16 %v2729
        %v2985 = vunpack.c.h.b16 %v2729
        %v2986 = vunpack.c.l.b16 %v2730
        %v2987 = vunpack.c.h.b16 %v2730
        %v2988 = vunpack.c.l.b16 %v2731
        %v2989 = vunpack.c.h.b16 %v2731
        %v2990 = vunpack.c.l.b16 %v2732
        %v2991 = vunpack.c.h.b16 %v2732
        %v2992 = vunpack.c.l.b16 %v2733
        %v2993 = vunpack.c.h.b16 %v2733
        %v2994 = vunpack.c.l.b16 %v2734
        %v2995 = vunpack.c.h.b16 %v2734
        %v2996 = vunpack.c.l.b16 %v2735
        %v2997 = vunpack.c.h.b16 %v2735
        %v2998 = vunpack.c.l.b16 %v2736
        %v2999 = vunpack.c.h.b16 %v2736
        %v3000 = vunpack.c.l.b16 %v2737
        %v3001 = vunpack.c.h.b16 %v2737
        %v3002 = vunpack.c.l.b16 %v2738
        %v3003 = vunpack.c.h.b16 %v2738
        %v3004 = vunpack.c.l.b16 %v2739
        %v3005 = vunpack.c.h.b16 %v2739
        %v3006 = vunpack.c.l.b16 %v2740
        %v3007 = vunpack.c.h.b16 %v2740
        %v3008 = vunpack.c.l.b16 %v2741
        %v3009 = vunpack.c.h.b16 %v2741
        %v3010 = vunpack.c.l.b16 %v2742
        %v3011 = vunpack.c.h.b16 %v2742
        %v3012 = vunpack.c.l.b16 %v2743
        %v3013 = vunpack.c.h.b16 %v2743
        %v3014 = vunpack.c.l.b16 %v2744
        %v3015 = vunpack.c.h.b16 %v2744
        %v3016 = vunpack.c.l.b16 %v2745
        %v3017 = vunpack.c.h.b16 %v2745
        %v3018 = vunpack.c.l.b16 %v2746
        %v3019 = vunpack.c.h.b16 %v2746
        %v3020 = vunpack.c.l.b16 %v2747
        %v3021 = vunpack.c.h.b16 %v2747
        %v3022 = vunpack.c.l.b16 %v2748
        %v3023 = vunpack.c.h.b16 %v2748
        %v3024 = vunpack.c.l.b16 %v2749
        %v3025 = vunpack.c.h.b16 %v2749
        %v3026 = vunpack.c.l.b16 %v2750
        %v3027 = vunpack.c.h.b16 %v2750
        %v3028 = vunpack.c.l.b16 %v2751
        %v3029 = vunpack.c.h.b16 %v2751
        %v3030 = vunpack.c.l.b16 %v2752
        %v3031 = vunpack.c.h.b16 %v2752
        %v3032 = vunpack.c.l.b16 %v2753
        %v3033 = vunpack.c.h.b16 %v2753
        %v3034 = vunpack.c.l.b16 %v2754
        %v3035 = vunpack.c.h.b16 %v2754
        %v3036 = vunpack.c.l.b16 %v2755
        %v3037 = vunpack.c.h.b16 %v2755
        %v3038 = vunpack.c.l.b16 %v2756
        %v3039 = vunpack.c.h.b16 %v2756
        %v3040 = vunpack.c.l.b16 %v2757
        %v3041 = vunpack.c.h.b16 %v2757
        %v3042 = vunpack.c.l.b16 %v2758
        %v3043 = vunpack.c.h.b16 %v2758
        %v3044 = vunpack.c.l.b16 %v2759
        %v3045 = vunpack.c.h.b16 %v2759
        %v3046 = vunpack.c.l.b16 %v2760
        %v3047 = vunpack.c.h.b16 %v2760
        %v3048 = vunpack.c.l.b16 %v2761
        %v3049 = vunpack.c.h.b16 %v2761
        %v3050 = vunpack.c.l.b16 %v2762
        %v3051 = vunpack.c.h.b16 %v2762
        %v3052 = vunpack.c.l.b16 %v2763
        %v3053 = vunpack.c.h.b16 %v2763
        %v3054 = vunpack.c.l.b16 %v2764
        %v3055 = vunpack.c.h.b16 %v2764
        %v3056 = vunpack.c.l.b16 %v2765
        %v3057 = vunpack.c.h.b16 %v2765
        %v3058 = vunpack.c.l.b16 %v2766
        %v3059 = vunpack.c.h.b16 %v2766
        %v3060 = vunpack.c.l.b16 %v2767
        %v3061 = vunpack.c.h.b16 %v2767
        %v3062 = vunpack.c.l.b16 %v2768
        %v3063 = vunpack.c.h.b16 %v2768
        %v3064 = vunpack.c.l.b16 %v2769
        %v3065 = vunpack.c.h.b16 %v2769
        %v3066 = vunpack.c.l.b16 %v2770
        %v3067 = vunpack.c.h.b16 %v2770
        %v3068 = vunpack.c.l.b16 %v2771
        %v3069 = vunpack.c.h.b16 %v2771
        %v3070 = vunpack.c.l.b16 %v2772
        %v3071 = vunpack.c.h.b16 %v2772
        %v3072 = vunpack.c.l.b16 %v2773
        %v3073 = vunpack.c.h.b16 %v2773
        %v3074 = vunpack.c.l.b16 %v2774
        %v3075 = vunpack.c.h.b16 %v2774
        %v3076 = vunpack.c.l.b16 %v2775
        %v3077 = vunpack.c.h.b16 %v2775
        %v3078 = vunpack.c.l.b16 %v2776
        %v3079 = vunpack.c.h.b16 %v2776
        %v3080 = vunpack.c.l.b16 %v2777
        %v3081 = vunpack.c.h.b16 %v2777
        %v3082 = vunpack.c.l.b16 %v2778
        %v3083 = vunpack.c.h.b16 %v2778
        %v3084 = vunpack.c.l.b16 %v2779
        %v3085 = vunpack.c.h.b16 %v2779
        %v3086 = vunpack.c.l.b16 %v2780
        %v3087 = vunpack.c.h.b16 %v2780
        %v3088 = vunpack.c.l.b16 %v2781
        %v3089 = vunpack.c.h.b16 %v2781
        %v3090 = vunpack.c.l.b16 %v2782
        %v3091 = vunpack.c.h.b16 %v2782
        %v3092 = vunpack.c.l.b16 %v2783
        %v3093 = vunpack.c.h.b16 %v2783
        %v3094 = vunpack.c.l.b16 %v2784
        %v3095 = vunpack.c.h.b16 %v2784
        %v3096 = vunpack.c.l.b16 %v2785
        %v3097 = vunpack.c.h.b16 %v2785
        %v3098 = vunpack.c.l.b16 %v2786
        %v3099 = vunpack.c.h.b16 %v2786
        %v3100 = vunpack.c.l.b16 %v2787
        %v3101 = vunpack.c.h.b16 %v2787
        %v3102 = vunpack.c.l.b16 %v2788
        %v3103 = vunpack.c.h.b16 %v2788
        %v3104 = vunpack.c.l.b16 %v2789
        %v3105 = vunpack.c.h.b16 %v2789
        %v3106 = vunpack.c.l.b16 %v2790
        %v3107 = vunpack.c.h.b16 %v2790
        %v3108 = vunpack.c.l.b16 %v2791
        %v3109 = vunpack.c.h.b16 %v2791
        %v3110 = vunpack.c.l.b16 %v2792
        %v3111 = vunpack.c.h.b16 %v2792
        %v3112 = vunpack.c.l.b16 %v2793
        %v3113 = vunpack.c.h.b16 %v2793
        %v3114 = vunpack.c.l.b16 %v2794
        %v3115 = vunpack.c.h.b16 %v2794
        %v3116 = vpack.c.b16 %v2926, %v2924
        %v3117 = vpack.c.b16 %v2927, %v2925
        %v3118 = vpack.c.b16 %v2930, %v2928
        %v3119 = vpack.c.b16 %v2931, %v2929
        %v3120 = vpack.c.b16 %v2934, %v2932
        %v3121 = vpack.c.b16 %v2935, %v2933
        %v3122 = vpack.c.b16 %v2938, %v2936
        %v3123 = vpack.c.b16 %v2939, %v2937
        %v3124 = vpack.c.b16 %v2942, %v2940
        %v3125 = vpack.c.b16 %v2943, %v2941
        %v3126 = vpack.c.b16 %v2946, %v2944
        %v3127 = vpack.c.b16 %v2947, %v2945
        %v3128 = vpack.c.b16 %v2950, %v2948
        %v3129 = vpack.c.b16 %v2951, %v2949
        %v3130 = vpack.c.b16 %v2954, %v2952
        %v3131 = vpack.c.b16 %v2955, %v2953
        %v3132 = vpack.c.b16 %v2958, %v2956
        %v3133 = vpack.c.b16 %v2959, %v2957
        %v3134 = vpack.c.b16 %v2962, %v2960
        %v3135 = vpack.c.b16 %v2963, %v2961
        %v3136 = vpack.c.b16 %v2966, %v2964
        %v3137 = vpack.c.b16 %v2967, %v2965
        %v3138 = vpack.c.b16 %v2970, %v2968
        %v3139 = vpack.c.b16 %v2971, %v2969
        %v3140 = vpack.c.b16 %v2974, %v2972
        %v3141 = vpack.c.b16 %v2975, %v2973
        %v3142 = vpack.c.b16 %v2978, %v2976
        %v3143 = vpack.c.b16 %v2979, %v2977
        %v3144 = vpack.c.b16 %v2982, %v2980
        %v3145 = vpack.c.b16 %v2983, %v2981
        %v3146 = vpack.c.b16 %v2986, %v2984
        %v3147 = vpack.c.b16 %v2987, %v2985
        %v3148 = vpack.c.b16 %v2990, %v2988
        %v3149 = vpack.c.b16 %v2991, %v2989
        %v3150 = vpack.c.b16 %v2994, %v2992
        %v3151 = vpack.c.b16 %v2995, %v2993
        %v3152 = vpack.c.b16 %v2998, %v2996
        %v3153 = vpack.c.b16 %v2999, %v2997
        %v3154 = vpack.c.b16 %v3002, %v3000
        %v3155 = vpack.c.b16 %v3003, %v3001
        %v3156 = vpack.c.b16 %v3006, %v3004
        %v3157 = vpack.c.b16 %v3007, %v3005
        %v3158 = vpack.c.b16 %v3010, %v3008
        %v3159 = vpack.c.b16 %v3011, %v3009
        %v3160 = vpack.c.b16 %v3014, %v3012
        %v3161 = vpack.c.b16 %v3015, %v3013
        %v3162 = vpack.c.b16 %v3018, %v3016
        %v3163 = vpack.c.b16 %v3019, %v3017
        %v3164 = vpack.c.b16 %v3022, %v3020
        %v3165 = vpack.c.b16 %v3023, %v3021
        %v3166 = vpack.c.b16 %v3026, %v3024
        %v3167 = vpack.c.b16 %v3027, %v3025
        %v3168 = vpack.c.b16 %v3030, %v3028
        %v3169 = vpack.c.b16 %v3031, %v3029
        %v3170 = vpack.c.b16 %v3034, %v3032
        %v3171 = vpack.c.b16 %v3035, %v3033
        %v3172 = vpack.c.b16 %v3038, %v3036
        %v3173 = vpack.c.b16 %v3039, %v3037
        %v3174 = vpack.c.b16 %v3042, %v3040
        %v3175 = vpack.c.b16 %v3043, %v3041
        %v3176 = vpack.c.b16 %v3046, %v3044
        %v3177 = vpack.c.b16 %v3047, %v3045
        %v3178 = vpack.c.b16 %v3050, %v3048
        %v3179 = vpack.c.b16 %v3051, %v3049
        %v3180 = vpack.c.b16 %v3054, %v3052
        %v3181 = vpack.c.b16 %v3055, %v3053
        %v3182 = vpack.c.b16 %v3058, %v3056
        %v3183 = vpack.c.b16 %v3059, %v3057
        %v3184 = vpack.c.b16 %v3062, %v3060
        %v3185 = vpack.c.b16 %v3063, %v3061
        %v3186 = vpack.c.b16 %v3066, %v3064
        %v3187 = vpack.c.b16 %v3067, %v3065
        %v3188 = vpack.c.b16 %v3070, %v3068
        %v3189 = vpack.c.b16 %v3071, %v3069
        %v3190 = vpack.c.b16 %v3074, %v3072
        %v3191 = vpack.c.b16 %v3075, %v3073
        %v3192 = vpack.c.b16 %v3078, %v3076
        %v3193 = vpack.c.b16 %v3079, %v3077
        %v3194 = vpack.c.b16 %v3082, %v3080
        %v3195 = vpack.c.b16 %v3083, %v3081
        %v3196 = vpack.c.b16 %v3086, %v3084
        %v3197 = vpack.c.b16 %v3087, %v3085
        %v3198 = vpack.c.b16 %v3090, %v3088
        %v3199 = vpack.c.b16 %v3091, %v3089
        %v3200 = vpack.c.b16 %v3094, %v3092
        %v3201 = vpack.c.b16 %v3095, %v3093
        %v3202 = vpack.c.b16 %v3098, %v3096
        %v3203 = vpack.c.b16 %v3099, %v3097
        %v3204 = vpack.c.b16 %v3102, %v3100
        %v3205 = vpack.c.b16 %v3103, %v3101
        %v3206 = vpack.c.b16 %v3106, %v3104
        %v3207 = vpack.c.b16 %v3107, %v3105
        %v3208 = vpack.c.b16 %v3110, %v3108
        %v3209 = vpack.c.b16 %v3111, %v3109
        %v3210 = vpack.c.b16 %v3114, %v3112
        %v3211 = vpack.c.b16 %v3115, %v3113
        %3308 = vmatprep.subr.bf16.mxu0 %v3131
        %3309 = vmatpush1.bf16.msra.mxu0 %v3130
        %3310 = vmatprep.subr.bf16.mxu0 %v3129
        %3311 = vmatpush1.bf16.msra.mxu0 %v3128
        %3312 = vmatprep.subr.bf16.mxu0 %v3127
        %3313 = vmatpush1.bf16.msra.mxu0 %v3126
        %3314 = vmatprep.subr.bf16.mxu0 %v3125
        %3315 = vmatpush1.bf16.msra.mxu0 %v3124
        %3316 = vmatprep.subr.bf16.mxu0 %v3123
        %3317 = vmatpush1.bf16.msra.mxu0 %v3122
        %3318 = vmatprep.subr.bf16.mxu0 %v3121
        %3319 = vmatpush1.bf16.msra.mxu0 %v3120
        %3320 = vmatprep.subr.bf16.mxu0 %v3119
        %3321 = vmatpush1.bf16.msra.mxu0 %v3118
        %3322 = vmatprep.subr.bf16.mxu0 %v3117
        %3323 = vmatpush1.bf16.msra.mxu0 %v3116
        %3324 = vmatprep.subr.bf16.mxu0 %v3147
        %3325 = vmatpush2.bf16.msra.mxu0 %v3146
        %3326 = vmatprep.subr.bf16.mxu0 %v3145
        %3327 = vmatpush2.bf16.msra.mxu0 %v3144
        %3328 = vmatprep.subr.bf16.mxu0 %v3143
        %3329 = vmatpush2.bf16.msra.mxu0 %v3142
        %3330 = vmatprep.subr.bf16.mxu0 %v3141
        %3331 = vmatpush2.bf16.msra.mxu0 %v3140
        %3332 = vmatprep.subr.bf16.mxu0 %v3139
        %3333 = vmatpush2.bf16.msra.mxu0 %v3138
        %3334 = vmatprep.subr.bf16.mxu0 %v3137
        %3335 = vmatpush2.bf16.msra.mxu0 %v3136
        %3336 = vmatprep.subr.bf16.mxu0 %v3135
        %3337 = vmatpush2.bf16.msra.mxu0 %v3134
        %3338 = vmatprep.subr.bf16.mxu0 %v3133
        %3339 = vmatpush2.bf16.msra.mxu0 %v3132
        %3340 = vmatprep.mubr.bf16.mxu0 %v2812
        %3341 = vmatmul.mubr.bf16.gmra.mxu0 %v2804
        %v3342 = vpop.f32.mrf.mxu0
        %v3343 = vadd.f32 0.0, %v3342
        %v3344 = vpop.f32.mrf.mxu0
        %v3345 = vadd.f32 0.0, %v3344
        %v3346 = vpop.f32.mrf.mxu0
        %v3347 = vpop.f32.mrf.mxu0
        %3348 = vdwg.mxu0
        %3349 = vmatprep.subr.bf16.mxu0 %v3163
        %3350 = vmatpush1.bf16.msra.mxu0 %v3162
        %3351 = vmatprep.subr.bf16.mxu0 %v3161
        %3352 = vmatpush1.bf16.msra.mxu0 %v3160
        %3353 = vmatprep.subr.bf16.mxu0 %v3159
        %3354 = vmatpush1.bf16.msra.mxu0 %v3158
        %3355 = vmatprep.subr.bf16.mxu0 %v3157
        %3356 = vmatpush1.bf16.msra.mxu0 %v3156
        %3357 = vmatprep.subr.bf16.mxu0 %v3155
        %3358 = vmatpush1.bf16.msra.mxu0 %v3154
        %3359 = vmatprep.subr.bf16.mxu0 %v3153
        %3360 = vmatpush1.bf16.msra.mxu0 %v3152
        %3361 = vmatprep.subr.bf16.mxu0 %v3151
        %3362 = vmatpush1.bf16.msra.mxu0 %v3150
        %3363 = vmatprep.subr.bf16.mxu0 %v3149
        %3364 = vmatpush1.bf16.msra.mxu0 %v3148
        %3365 = vmatprep.subr.bf16.mxu0 %v3179
        %3366 = vmatpush2.bf16.msra.mxu0 %v3178
        %3367 = vmatprep.subr.bf16.mxu0 %v3177
        %3368 = vmatpush2.bf16.msra.mxu0 %v3176
        %3369 = vmatprep.subr.bf16.mxu0 %v3175
        %3370 = vmatpush2.bf16.msra.mxu0 %v3174
        %3371 = vmatprep.subr.bf16.mxu0 %v3173
        %3372 = vmatpush2.bf16.msra.mxu0 %v3172
        %3373 = vmatprep.subr.bf16.mxu0 %v3171
        %3374 = vmatpush2.bf16.msra.mxu0 %v3170
        %3375 = vmatprep.subr.bf16.mxu0 %v3169
        %3376 = vmatpush2.bf16.msra.mxu0 %v3168
        %3377 = vmatprep.subr.bf16.mxu0 %v3167
        %3378 = vmatpush2.bf16.msra.mxu0 %v3166
        %3379 = vmatprep.subr.bf16.mxu0 %v3165
        %3380 = vmatpush2.bf16.msra.mxu0 %v3164
        %3381 = vmatprep.mubr.bf16.mxu0 %v2813
        %3382 = vmatmul.mubr.bf16.gmra.mxu0 %v2811
        %v3383 = vpop.f32.mrf.mxu0
        %v3384 = vadd.f32 %v3343, %v3383
        %v3385 = vpop.f32.mrf.mxu0
        %v3386 = vadd.f32 %v3345, %v3385
        %v3387 = vpop.f32.mrf.mxu0
        %v3388 = vpop.f32.mrf.mxu0
        %3389 = vdwg.mxu0
        %3390 = vmatprep.subr.bf16.mxu0 %v3195
        %3391 = vmatpush1.bf16.msra.mxu0 %v3194
        %3392 = vmatprep.subr.bf16.mxu0 %v3193
        %3393 = vmatpush1.bf16.msra.mxu0 %v3192
        %3394 = vmatprep.subr.bf16.mxu0 %v3191
        %3395 = vmatpush1.bf16.msra.mxu0 %v3190
        %3396 = vmatprep.subr.bf16.mxu0 %v3189
        %3397 = vmatpush1.bf16.msra.mxu0 %v3188
        %3398 = vmatprep.subr.bf16.mxu0 %v3187
        %3399 = vmatpush1.bf16.msra.mxu0 %v3186
        %3400 = vmatprep.subr.bf16.mxu0 %v3185
        %3401 = vmatpush1.bf16.msra.mxu0 %v3184
        %3402 = vmatprep.subr.bf16.mxu0 %v3183
        %3403 = vmatpush1.bf16.msra.mxu0 %v3182
        %3404 = vmatprep.subr.bf16.mxu0 %v3181
        %3405 = vmatpush1.bf16.msra.mxu0 %v3180
        %3406 = vmatprep.subr.bf16.mxu0 %v3211
        %3407 = vmatpush2.bf16.msra.mxu0 %v3210
        %3408 = vmatprep.subr.bf16.mxu0 %v3209
        %3409 = vmatpush2.bf16.msra.mxu0 %v3208
        %3410 = vmatprep.subr.bf16.mxu0 %v3207
        %3411 = vmatpush2.bf16.msra.mxu0 %v3206
        %3412 = vmatprep.subr.bf16.mxu0 %v3205
        %3413 = vmatpush2.bf16.msra.mxu0 %v3204
        %3414 = vmatprep.subr.bf16.mxu0 %v3203
        %3415 = vmatpush2.bf16.msra.mxu0 %v3202
        %3416 = vmatprep.subr.bf16.mxu0 %v3201
        %3417 = vmatpush2.bf16.msra.mxu0 %v3200
        %3418 = vmatprep.subr.bf16.mxu0 %v3199
        %3419 = vmatpush2.bf16.msra.mxu0 %v3198
        %3420 = vmatprep.subr.bf16.mxu0 %v3197
        %3421 = vmatpush2.bf16.msra.mxu0 %v3196
        %3422 = vmatprep.mubr.bf16.mxu0 %v2821
        %3423 = vmatmul.mubr.bf16.gmra.mxu0 %v2820
        %v3424 = vpop.f32.mrf.mxu0
        %v3425 = vadd.f32 %v3384, %v3424
        %v3426 = vpop.f32.mrf.mxu0
        %v3427 = vadd.f32 %v3386, %v3426
        %v3428 = vpop.f32.mrf.mxu0
        %v3429 = vpop.f32.mrf.mxu0
        %3430 = vdwg.mxu0
        %v3431 = vld [vmem:[%s15] sm:$0x3]
        %v3433 = vlaneseq
        %v3434 = vshrl.u32 %v3433, 7
        %v3435 = vsub.s32 0, %v3434
        %v3436 = vrot.slane %v3431, %v3435
        %v3437 = vlaneseq
        %v3438 = vshrl.u32 %v3437, 7
        %v3439 = vsub.s32 1, %v3438
        %v3440 = vrot.slane %v3431, %v3439
        %v3443 = vmul.f32 %v3425, %v3436
        %v3444 = vmul.f32 %v3427, %v3440
        %v3445 = vld [vmem:[%s16] sm:$0x3]
        %v3447 = vlaneseq
        %v3448 = vshrl.u32 %v3447, 7
        %v3449 = vsub.s32 0, %v3448
        %v3450 = vrot.slane %v3445, %v3449
        %v3451 = vlaneseq
        %v3452 = vshrl.u32 %v3451, 7
        %v3453 = vsub.s32 1, %v3452
        %v3454 = vrot.slane %v3445, %v3453
        %v3457 = vadd.f32 %v3443, %v3450
        %v3458 = vadd.f32 %v3444, %v3454
        %v3459 = vadd.f32 %v3457, %v2641
        %v3460 = vadd.f32 %v3458, %v2642
        %v3461 = vmax.f32 %v3459, 0.0
        %v3462 = vmax.f32 %v3460, 0.0
        %v3463 = vpack.c.bf16 %v3461, %v3461
        %v3464 = vpack.c.bf16 %v3462, %v3462
        %v3467 = vcombine.low %v3463, %v3464
        %v3469 = vunpack.c.l.s4 1983009808
        %v3470 = vunpack.c.0.s8 %v3469
        %v3471 = vlaneseq
        %v3472 = vshrl.u32 %v3471, 7
        %v3473 = vsub.s32 %v3470, %v3472
        %v3474 = vrot.slane %v3467, %v3473
        %3476 = vst [vmem:[#allocation8 + $0x4] sm:$0xf] %v3474
        %v3477 = vld [vmem:[#allocation8] sm:$0x5]
        %v3478 = vsel %vm2661, 0, %v3477
        %3479 = vst [vmem:[#allocation8] sm:$0x5] %v3478
        %v3481 = vshrl.u32 %v3474, 16
        %v3483 = vrot.slane %v3481, 7
        %v3484 = vshll.u32 %v3474, 16
        %v3486 = vor.u32 %v3483, %v3484
        %v3488 = vld [vmem:[#allocation8] sm:$0xf]
        %v3489 = vsel %vm2676, %v3486, %v3488
        %3490 = vst [vmem:[#allocation8] sm:$0xf] %v3489
        %v3491 = vrot.slane %v3481, 6
        %v3492 = vrot.slane %v3484, 7
        %v3493 = vor.u32 %v3491, %v3492
        %v3494 = vrot.slane %v3493, 2
        %v3496 = vld [vmem:[#allocation8 + $0x8] sm:$0xf]
        %v3497 = vsel %vm2686, %v3494, %v3496
        %3498 = vst [vmem:[#allocation8 + $0x8] sm:$0xf] %v3497
        %v3499 = vld [vmem:[#allocation8 + $0x8] sm:$0xa]
        %v3500 = vsel %vm2693, 0, %v3499
        %3501 = vst [vmem:[#allocation8 + $0x8] sm:$0xa] %v3500
        %v3502 = vld [vmem:[#allocation8] sm:$0xff]
        %v3503 = vld [vmem:[#allocation8 + $0x8] sm:$0xf]
        %v3504 = vld [vmem:[%s17] sm:$0xff]
        %v3505 = vld [vmem:[%s17 + $0x8] sm:$0xff]
        %v3506 = vld [vmem:[%s17 + $0x10] sm:$0xff]
        %v3507 = vld [vmem:[%s17 + $0x18] sm:$0xff]
        %v3508 = vld [vmem:[%s17 + $0x20] sm:$0xff]
        %v3509 = vld [vmem:[%s17 + $0x28] sm:$0xff]
        %v3510 = vld [vmem:[%s17 + $0x30] sm:$0xff]
        %v3511 = vld [vmem:[%s17 + $0x38] sm:$0xff]
        %v3512 = vld [vmem:[%s17 + $0x40] sm:$0xff]
        %v3513 = vld [vmem:[%s17 + $0x48] sm:$0xff]
        %v3514 = vld [vmem:[%s17 + $0x50] sm:$0xff]
        %v3515 = vld [vmem:[%s17 + $0x58] sm:$0xff]
        %v3516 = vld [vmem:[%s17 + $0x60] sm:$0xff]
        %v3517 = vld [vmem:[%s17 + $0x68] sm:$0xff]
        %v3518 = vld [vmem:[%s17 + $0x70] sm:$0xff]
        %v3519 = vld [vmem:[%s17 + $0x78] sm:$0xff]
        %v3520 = vld [vmem:[%s17 + $0x80] sm:$0xff]
        %v3521 = vld [vmem:[%s17 + $0x88] sm:$0xff]
        %v3522 = vld [vmem:[%s17 + $0x90] sm:$0xff]
        %v3523 = vld [vmem:[%s17 + $0x98] sm:$0xff]
        %v3524 = vld [vmem:[%s17 + $0xa0] sm:$0xff]
        %v3525 = vld [vmem:[%s17 + $0xa8] sm:$0xff]
        %v3526 = vld [vmem:[%s17 + $0xb0] sm:$0xff]
        %v3527 = vld [vmem:[%s17 + $0xb8] sm:$0xff]
        %v3528 = vld [vmem:[%s17 + $0xc0] sm:$0xff]
        %v3529 = vld [vmem:[%s17 + $0xc8] sm:$0xff]
        %v3530 = vld [vmem:[%s17 + $0xd0] sm:$0xff]
        %v3531 = vld [vmem:[%s17 + $0xd8] sm:$0xff]
        %v3532 = vld [vmem:[%s17 + $0xe0] sm:$0xff]
        %v3533 = vld [vmem:[%s17 + $0xe8] sm:$0xff]
        %v3534 = vld [vmem:[%s17 + $0xf0] sm:$0xff]
        %v3535 = vld [vmem:[%s17 + $0xf8] sm:$0xff]
        %v3536 = vld [vmem:[%s17 + $0x100] sm:$0xff]
        %v3537 = vld [vmem:[%s17 + $0x108] sm:$0xff]
        %v3538 = vld [vmem:[%s17 + $0x110] sm:$0xff]
        %v3539 = vld [vmem:[%s17 + $0x118] sm:$0xff]
        %v3540 = vld [vmem:[%s17 + $0x120] sm:$0xff]
        %v3541 = vld [vmem:[%s17 + $0x128] sm:$0xff]
        %v3542 = vld [vmem:[%s17 + $0x130] sm:$0xff]
        %v3543 = vld [vmem:[%s17 + $0x138] sm:$0xff]
        %v3544 = vld [vmem:[%s17 + $0x140] sm:$0xff]
        %v3545 = vld [vmem:[%s17 + $0x148] sm:$0xff]
        %v3546 = vld [vmem:[%s17 + $0x150] sm:$0xff]
        %v3547 = vld [vmem:[%s17 + $0x158] sm:$0xff]
        %v3548 = vld [vmem:[%s17 + $0x160] sm:$0xff]
        %v3549 = vld [vmem:[%s17 + $0x168] sm:$0xff]
        %v3550 = vld [vmem:[%s17 + $0x170] sm:$0xff]
        %v3551 = vld [vmem:[%s17 + $0x178] sm:$0xff]
        %v3552 = vld [vmem:[%s17 + $0x180] sm:$0xff]
        %v3553 = vld [vmem:[%s17 + $0x188] sm:$0xff]
        %v3554 = vld [vmem:[%s17 + $0x190] sm:$0xff]
        %v3555 = vld [vmem:[%s17 + $0x198] sm:$0xff]
        %v3556 = vld [vmem:[%s17 + $0x1a0] sm:$0xff]
        %v3557 = vld [vmem:[%s17 + $0x1a8] sm:$0xff]
        %v3558 = vld [vmem:[%s17 + $0x1b0] sm:$0xff]
        %v3559 = vld [vmem:[%s17 + $0x1b8] sm:$0xff]
        %v3560 = vld [vmem:[%s17 + $0x1c0] sm:$0xff]
        %v3561 = vld [vmem:[%s17 + $0x1c8] sm:$0xff]
        %v3562 = vld [vmem:[%s17 + $0x1d0] sm:$0xff]
        %v3563 = vld [vmem:[%s17 + $0x1d8] sm:$0xff]
        %v3564 = vld [vmem:[%s17 + $0x1e0] sm:$0xff]
        %v3565 = vld [vmem:[%s17 + $0x1e8] sm:$0xff]
        %v3566 = vld [vmem:[%s17 + $0x1f0] sm:$0xff]
        %v3567 = vld [vmem:[%s17 + $0x1f8] sm:$0xff]
        %v3568 = vld [vmem:[%s17 + $0x200] sm:$0xff]
        %v3569 = vld [vmem:[%s17 + $0x208] sm:$0xff]
        %v3570 = vld [vmem:[%s17 + $0x210] sm:$0xff]
        %v3571 = vld [vmem:[%s17 + $0x218] sm:$0xff]
        %v3572 = vld [vmem:[%s17 + $0x220] sm:$0xff]
        %v3573 = vld [vmem:[%s17 + $0x228] sm:$0xff]
        %v3574 = vld [vmem:[%s17 + $0x230] sm:$0xff]
        %v3575 = vld [vmem:[%s17 + $0x238] sm:$0xff]
        %v3576 = vld [vmem:[%s17 + $0x240] sm:$0xff]
        %v3577 = vld [vmem:[%s17 + $0x248] sm:$0xff]
        %v3578 = vld [vmem:[%s17 + $0x250] sm:$0xff]
        %v3579 = vld [vmem:[%s17 + $0x258] sm:$0xff]
        %v3580 = vld [vmem:[%s17 + $0x260] sm:$0xff]
        %v3581 = vld [vmem:[%s17 + $0x268] sm:$0xff]
        %v3582 = vld [vmem:[%s17 + $0x270] sm:$0xff]
        %v3583 = vld [vmem:[%s17 + $0x278] sm:$0xff]
        %v3584 = vld [vmem:[%s17 + $0x280] sm:$0xff]
        %v3585 = vld [vmem:[%s17 + $0x288] sm:$0xff]
        %v3586 = vld [vmem:[%s17 + $0x290] sm:$0xff]
        %v3587 = vld [vmem:[%s17 + $0x298] sm:$0xff]
        %v3588 = vld [vmem:[%s17 + $0x2a0] sm:$0xff]
        %v3589 = vld [vmem:[%s17 + $0x2a8] sm:$0xff]
        %v3590 = vld [vmem:[%s17 + $0x2b0] sm:$0xff]
        %v3591 = vld [vmem:[%s17 + $0x2b8] sm:$0xff]
        %v3592 = vld [vmem:[%s17 + $0x2c0] sm:$0xff]
        %v3593 = vld [vmem:[%s17 + $0x2c8] sm:$0xff]
        %v3594 = vld [vmem:[%s17 + $0x2d0] sm:$0xff]
        %v3595 = vld [vmem:[%s17 + $0x2d8] sm:$0xff]
        %v3596 = vld [vmem:[%s17 + $0x2e0] sm:$0xff]
        %v3597 = vld [vmem:[%s17 + $0x2e8] sm:$0xff]
        %v3598 = vld [vmem:[%s17 + $0x2f0] sm:$0xff]
        %v3599 = vld [vmem:[%s17 + $0x2f8] sm:$0xff]
        %v3600 = vld [vmem:[%s17 + $0x300] sm:$0xff]
        %v3601 = vld [vmem:[%s17 + $0x308] sm:$0xff]
        %v3602 = vld [vmem:[%s17 + $0x310] sm:$0xff]
        %v3603 = vld [vmem:[%s17 + $0x318] sm:$0xff]
        %v3604 = vld [vmem:[%s17 + $0x320] sm:$0xff]
        %v3605 = vld [vmem:[%s17 + $0x328] sm:$0xff]
        %v3606 = vld [vmem:[%s17 + $0x330] sm:$0xff]
        %v3607 = vld [vmem:[%s17 + $0x338] sm:$0xff]
        %v3608 = vld [vmem:[%s17 + $0x340] sm:$0xff]
        %v3609 = vld [vmem:[%s17 + $0x348] sm:$0xff]
        %v3610 = vld [vmem:[%s17 + $0x350] sm:$0xff]
        %v3611 = vld [vmem:[%s17 + $0x358] sm:$0xff]
        %v3612 = vld [vmem:[%s17 + $0x360] sm:$0xff]
        %v3613 = vld [vmem:[%s17 + $0x368] sm:$0xff]
        %v3614 = vld [vmem:[%s17 + $0x370] sm:$0xff]
        %v3615 = vld [vmem:[%s17 + $0x378] sm:$0xff]
        %v3616 = vld [vmem:[%s17 + $0x380] sm:$0xff]
        %v3617 = vld [vmem:[%s17 + $0x388] sm:$0xff]
        %v3618 = vld [vmem:[%s17 + $0x390] sm:$0xff]
        %v3619 = vld [vmem:[%s17 + $0x398] sm:$0xff]
        %v3620 = vld [vmem:[%s17 + $0x3a0] sm:$0xff]
        %v3621 = vld [vmem:[%s17 + $0x3a8] sm:$0xff]
        %v3622 = vld [vmem:[%s17 + $0x3b0] sm:$0xff]
        %v3623 = vld [vmem:[%s17 + $0x3b8] sm:$0xff]
        %v3624 = vld [vmem:[%s17 + $0x3c0] sm:$0xff]
        %v3625 = vld [vmem:[%s17 + $0x3c8] sm:$0xff]
        %v3626 = vld [vmem:[%s17 + $0x3d0] sm:$0xff]
        %v3627 = vld [vmem:[%s17 + $0x3d8] sm:$0xff]
        %v3628 = vld [vmem:[%s17 + $0x3e0] sm:$0xff]
        %v3629 = vld [vmem:[%s17 + $0x3e8] sm:$0xff]
        %v3630 = vld [vmem:[%s17 + $0x3f0] sm:$0xff]
        %v3631 = vld [vmem:[%s17 + $0x3f8] sm:$0xff]
        %v3632 = vld [vmem:[%s17 + $0x400] sm:$0xff]
        %v3633 = vld [vmem:[%s17 + $0x408] sm:$0xff]
        %v3634 = vld [vmem:[%s17 + $0x410] sm:$0xff]
        %v3635 = vld [vmem:[%s17 + $0x418] sm:$0xff]
        %v3636 = vld [vmem:[%s17 + $0x420] sm:$0xff]
        %v3637 = vld [vmem:[%s17 + $0x428] sm:$0xff]
        %v3638 = vld [vmem:[%s17 + $0x430] sm:$0xff]
        %v3639 = vld [vmem:[%s17 + $0x438] sm:$0xff]
        %v3640 = vld [vmem:[%s17 + $0x440] sm:$0xff]
        %v3641 = vld [vmem:[%s17 + $0x448] sm:$0xff]
        %v3642 = vld [vmem:[%s17 + $0x450] sm:$0xff]
        %v3643 = vld [vmem:[%s17 + $0x458] sm:$0xff]
        %v3644 = vld [vmem:[%s17 + $0x460] sm:$0xff]
        %v3645 = vld [vmem:[%s17 + $0x468] sm:$0xff]
        %v3646 = vld [vmem:[%s17 + $0x470] sm:$0xff]
        %v3647 = vld [vmem:[%s17 + $0x478] sm:$0xff]
        %v3648 = vld [vmem:[%s17 + $0x480] sm:$0xff]
        %v3649 = vld [vmem:[%s17 + $0x488] sm:$0xff]
        %v3650 = vld [vmem:[%s17 + $0x490] sm:$0xff]
        %v3651 = vld [vmem:[%s17 + $0x498] sm:$0xff]
        %v3652 = vld [vmem:[%s17 + $0x4a0] sm:$0xff]
        %v3653 = vld [vmem:[%s17 + $0x4a8] sm:$0xff]
        %v3654 = vld [vmem:[%s17 + $0x4b0] sm:$0xff]
        %v3655 = vld [vmem:[%s17 + $0x4b8] sm:$0xff]
        %v3656 = vld [vmem:[%s17 + $0x4c0] sm:$0xff]
        %v3657 = vld [vmem:[%s17 + $0x4c8] sm:$0xff]
        %v3658 = vld [vmem:[%s17 + $0x4d0] sm:$0xff]
        %v3659 = vld [vmem:[%s17 + $0x4d8] sm:$0xff]
        %v3660 = vld [vmem:[%s17 + $0x4e0] sm:$0xff]
        %v3661 = vld [vmem:[%s17 + $0x4e8] sm:$0xff]
        %v3662 = vld [vmem:[%s17 + $0x4f0] sm:$0xff]
        %v3663 = vld [vmem:[%s17 + $0x4f8] sm:$0xff]
        %v3664 = vld [vmem:[%s17 + $0x500] sm:$0xff]
        %v3665 = vld [vmem:[%s17 + $0x508] sm:$0xff]
        %v3666 = vld [vmem:[%s17 + $0x510] sm:$0xff]
        %v3667 = vld [vmem:[%s17 + $0x518] sm:$0xff]
        %v3668 = vld [vmem:[%s17 + $0x520] sm:$0xff]
        %v3669 = vld [vmem:[%s17 + $0x528] sm:$0xff]
        %v3670 = vld [vmem:[%s17 + $0x530] sm:$0xff]
        %v3671 = vld [vmem:[%s17 + $0x538] sm:$0xff]
        %v3672 = vld [vmem:[%s17 + $0x540] sm:$0xff]
        %v3673 = vld [vmem:[%s17 + $0x548] sm:$0xff]
        %v3674 = vld [vmem:[%s17 + $0x550] sm:$0xff]
        %v3675 = vld [vmem:[%s17 + $0x558] sm:$0xff]
        %v3676 = vld [vmem:[%s17 + $0x560] sm:$0xff]
        %v3677 = vld [vmem:[%s17 + $0x568] sm:$0xff]
        %v3678 = vld [vmem:[%s17 + $0x570] sm:$0xff]
        %v3679 = vld [vmem:[%s17 + $0x578] sm:$0xff]
        %v3680 = vld [vmem:[%s17 + $0x580] sm:$0xff]
        %v3681 = vld [vmem:[%s17 + $0x588] sm:$0xff]
        %v3682 = vld [vmem:[%s17 + $0x590] sm:$0xff]
        %v3683 = vld [vmem:[%s17 + $0x598] sm:$0xff]
        %v3684 = vld [vmem:[%s17 + $0x5a0] sm:$0xff]
        %v3685 = vld [vmem:[%s17 + $0x5a8] sm:$0xff]
        %v3686 = vld [vmem:[%s17 + $0x5b0] sm:$0xff]
        %v3687 = vld [vmem:[%s17 + $0x5b8] sm:$0xff]
        %v3688 = vld [vmem:[%s17 + $0x5c0] sm:$0xff]
        %v3689 = vld [vmem:[%s17 + $0x5c8] sm:$0xff]
        %v3690 = vld [vmem:[%s17 + $0x5d0] sm:$0xff]
        %v3691 = vld [vmem:[%s17 + $0x5d8] sm:$0xff]
        %v3692 = vld [vmem:[%s17 + $0x5e0] sm:$0xff]
        %v3693 = vld [vmem:[%s17 + $0x5e8] sm:$0xff]
        %v3694 = vld [vmem:[%s17 + $0x5f0] sm:$0xff]
        %v3695 = vld [vmem:[%s17 + $0x5f8] sm:$0xff]
        %v3696 = vld [vmem:[%s17 + $0x600] sm:$0xff]
        %v3697 = vld [vmem:[%s17 + $0x608] sm:$0xff]
        %v3698 = vld [vmem:[%s17 + $0x610] sm:$0xff]
        %v3699 = vld [vmem:[%s17 + $0x618] sm:$0xff]
        %v3700 = vld [vmem:[%s17 + $0x620] sm:$0xff]
        %v3701 = vld [vmem:[%s17 + $0x628] sm:$0xff]
        %v3702 = vld [vmem:[%s17 + $0x630] sm:$0xff]
        %v3703 = vld [vmem:[%s17 + $0x638] sm:$0xff]
        %v3704 = vld [vmem:[%s17 + $0x640] sm:$0xff]
        %v3705 = vld [vmem:[%s17 + $0x648] sm:$0xff]
        %v3706 = vld [vmem:[%s17 + $0x650] sm:$0xff]
        %v3707 = vld [vmem:[%s17 + $0x658] sm:$0xff]
        %v3708 = vld [vmem:[%s17 + $0x660] sm:$0xff]
        %v3709 = vld [vmem:[%s17 + $0x668] sm:$0xff]
        %v3710 = vld [vmem:[%s17 + $0x670] sm:$0xff]
        %v3711 = vld [vmem:[%s17 + $0x678] sm:$0xff]
        %v3712 = vld [vmem:[%s17 + $0x680] sm:$0xff]
        %v3713 = vld [vmem:[%s17 + $0x688] sm:$0xff]
        %v3714 = vld [vmem:[%s17 + $0x690] sm:$0xff]
        %v3715 = vld [vmem:[%s17 + $0x698] sm:$0xff]
        %v3716 = vld [vmem:[%s17 + $0x6a0] sm:$0xff]
        %v3717 = vld [vmem:[%s17 + $0x6a8] sm:$0xff]
        %v3718 = vld [vmem:[%s17 + $0x6b0] sm:$0xff]
        %v3719 = vld [vmem:[%s17 + $0x6b8] sm:$0xff]
        %v3720 = vld [vmem:[%s17 + $0x6c0] sm:$0xff]
        %v3721 = vld [vmem:[%s17 + $0x6c8] sm:$0xff]
        %v3722 = vld [vmem:[%s17 + $0x6d0] sm:$0xff]
        %v3723 = vld [vmem:[%s17 + $0x6d8] sm:$0xff]
        %v3724 = vld [vmem:[%s17 + $0x6e0] sm:$0xff]
        %v3725 = vld [vmem:[%s17 + $0x6e8] sm:$0xff]
        %v3726 = vld [vmem:[%s17 + $0x6f0] sm:$0xff]
        %v3727 = vld [vmem:[%s17 + $0x6f8] sm:$0xff]
        %v3728 = vld [vmem:[%s17 + $0x700] sm:$0xff]
        %v3729 = vld [vmem:[%s17 + $0x708] sm:$0xff]
        %v3730 = vld [vmem:[%s17 + $0x710] sm:$0xff]
        %v3731 = vld [vmem:[%s17 + $0x718] sm:$0xff]
        %v3732 = vld [vmem:[%s17 + $0x720] sm:$0xff]
        %v3733 = vld [vmem:[%s17 + $0x728] sm:$0xff]
        %v3734 = vld [vmem:[%s17 + $0x730] sm:$0xff]
        %v3735 = vld [vmem:[%s17 + $0x738] sm:$0xff]
        %v3736 = vld [vmem:[%s17 + $0x740] sm:$0xff]
        %v3737 = vld [vmem:[%s17 + $0x748] sm:$0xff]
        %v3738 = vld [vmem:[%s17 + $0x750] sm:$0xff]
        %v3739 = vld [vmem:[%s17 + $0x758] sm:$0xff]
        %v3740 = vld [vmem:[%s17 + $0x760] sm:$0xff]
        %v3741 = vld [vmem:[%s17 + $0x768] sm:$0xff]
        %v3742 = vld [vmem:[%s17 + $0x770] sm:$0xff]
        %v3743 = vld [vmem:[%s17 + $0x778] sm:$0xff]
        %v3744 = vld [vmem:[%s17 + $0x780] sm:$0xff]
        %v3745 = vld [vmem:[%s17 + $0x788] sm:$0xff]
        %v3746 = vld [vmem:[%s17 + $0x790] sm:$0xff]
        %v3747 = vld [vmem:[%s17 + $0x798] sm:$0xff]
        %v3748 = vld [vmem:[%s17 + $0x7a0] sm:$0xff]
        %v3749 = vld [vmem:[%s17 + $0x7a8] sm:$0xff]
        %v3750 = vld [vmem:[%s17 + $0x7b0] sm:$0xff]
        %v3751 = vld [vmem:[%s17 + $0x7b8] sm:$0xff]
        %v3752 = vld [vmem:[%s17 + $0x7c0] sm:$0xff]
        %v3753 = vld [vmem:[%s17 + $0x7c8] sm:$0xff]
        %v3754 = vld [vmem:[%s17 + $0x7d0] sm:$0xff]
        %v3755 = vld [vmem:[%s17 + $0x7d8] sm:$0xff]
        %v3756 = vld [vmem:[%s17 + $0x7e0] sm:$0xff]
        %v3757 = vld [vmem:[%s17 + $0x7e8] sm:$0xff]
        %v3758 = vld [vmem:[%s17 + $0x7f0] sm:$0xff]
        %v3759 = vld [vmem:[%s17 + $0x7f8] sm:$0xff]
        %v3760 = vld [vmem:[%s17 + $0x800] sm:$0xff]
        %v3761 = vld [vmem:[%s17 + $0x808] sm:$0xff]
        %v3762 = vld [vmem:[%s17 + $0x810] sm:$0xff]
        %v3763 = vld [vmem:[%s17 + $0x818] sm:$0xff]
        %v3764 = vld [vmem:[%s17 + $0x820] sm:$0xff]
        %v3765 = vld [vmem:[%s17 + $0x828] sm:$0xff]
        %v3766 = vld [vmem:[%s17 + $0x830] sm:$0xff]
        %v3767 = vld [vmem:[%s17 + $0x838] sm:$0xff]
        %v3768 = vld [vmem:[%s17 + $0x840] sm:$0xff]
        %v3769 = vld [vmem:[%s17 + $0x848] sm:$0xff]
        %v3770 = vld [vmem:[%s17 + $0x850] sm:$0xff]
        %v3771 = vld [vmem:[%s17 + $0x858] sm:$0xff]
        %v3772 = vld [vmem:[%s17 + $0x860] sm:$0xff]
        %v3773 = vld [vmem:[%s17 + $0x868] sm:$0xff]
        %v3774 = vld [vmem:[%s17 + $0x870] sm:$0xff]
        %v3775 = vld [vmem:[%s17 + $0x878] sm:$0xff]
        %v3776 = vld [vmem:[%s17 + $0x880] sm:$0xff]
        %v3777 = vld [vmem:[%s17 + $0x888] sm:$0xff]
        %v3778 = vld [vmem:[%s17 + $0x890] sm:$0xff]
        %v3779 = vld [vmem:[%s17 + $0x898] sm:$0xff]
        %v3780 = vld [vmem:[%s17 + $0x8a0] sm:$0xff]
        %v3781 = vld [vmem:[%s17 + $0x8a8] sm:$0xff]
        %v3782 = vld [vmem:[%s17 + $0x8b0] sm:$0xff]
        %v3783 = vld [vmem:[%s17 + $0x8b8] sm:$0xff]
        %v3784 = vld [vmem:[%s17 + $0x8c0] sm:$0xff]
        %v3785 = vld [vmem:[%s17 + $0x8c8] sm:$0xff]
        %v3786 = vld [vmem:[%s17 + $0x8d0] sm:$0xff]
        %v3787 = vld [vmem:[%s17 + $0x8d8] sm:$0xff]
        %v3788 = vld [vmem:[%s17 + $0x8e0] sm:$0xff]
        %v3789 = vld [vmem:[%s17 + $0x8e8] sm:$0xff]
        %v3790 = vld [vmem:[%s17 + $0x8f0] sm:$0xff]
        %v3791 = vld [vmem:[%s17 + $0x8f8] sm:$0xff]
        %v3792 = vld [vmem:[%s17 + $0x900] sm:$0xff]
        %v3793 = vld [vmem:[%s17 + $0x908] sm:$0xff]
        %v3794 = vld [vmem:[%s17 + $0x910] sm:$0xff]
        %v3795 = vld [vmem:[%s17 + $0x918] sm:$0xff]
        %v3796 = vld [vmem:[%s17 + $0x920] sm:$0xff]
        %v3797 = vld [vmem:[%s17 + $0x928] sm:$0xff]
        %v3798 = vld [vmem:[%s17 + $0x930] sm:$0xff]
        %v3799 = vld [vmem:[%s17 + $0x938] sm:$0xff]
        %v3800 = vld [vmem:[%s17 + $0x940] sm:$0xff]
        %v3801 = vld [vmem:[%s17 + $0x948] sm:$0xff]
        %v3802 = vld [vmem:[%s17 + $0x950] sm:$0xff]
        %v3803 = vld [vmem:[%s17 + $0x958] sm:$0xff]
        %v3804 = vld [vmem:[%s17 + $0x960] sm:$0xff]
        %v3805 = vld [vmem:[%s17 + $0x968] sm:$0xff]
        %v3806 = vld [vmem:[%s17 + $0x970] sm:$0xff]
        %v3807 = vld [vmem:[%s17 + $0x978] sm:$0xff]
        %v3808 = vld [vmem:[%s17 + $0x980] sm:$0xff]
        %v3809 = vld [vmem:[%s17 + $0x988] sm:$0xff]
        %v3810 = vld [vmem:[%s17 + $0x990] sm:$0xff]
        %v3811 = vld [vmem:[%s17 + $0x998] sm:$0xff]
        %v3812 = vld [vmem:[%s17 + $0x9a0] sm:$0xff]
        %v3813 = vld [vmem:[%s17 + $0x9a8] sm:$0xff]
        %v3814 = vld [vmem:[%s17 + $0x9b0] sm:$0xff]
        %v3815 = vld [vmem:[%s17 + $0x9b8] sm:$0xff]
        %v3816 = vld [vmem:[%s17 + $0x9c0] sm:$0xff]
        %v3817 = vld [vmem:[%s17 + $0x9c8] sm:$0xff]
        %v3818 = vld [vmem:[%s17 + $0x9d0] sm:$0xff]
        %v3819 = vld [vmem:[%s17 + $0x9d8] sm:$0xff]
        %v3820 = vld [vmem:[%s17 + $0x9e0] sm:$0xff]
        %v3821 = vld [vmem:[%s17 + $0x9e8] sm:$0xff]
        %v3822 = vld [vmem:[%s17 + $0x9f0] sm:$0xff]
        %v3823 = vld [vmem:[%s17 + $0x9f8] sm:$0xff]
        %v3824 = vld [vmem:[%s17 + $0xa00] sm:$0xff]
        %v3825 = vld [vmem:[%s17 + $0xa08] sm:$0xff]
        %v3826 = vld [vmem:[%s17 + $0xa10] sm:$0xff]
        %v3827 = vld [vmem:[%s17 + $0xa18] sm:$0xff]
        %v3828 = vld [vmem:[%s17 + $0xa20] sm:$0xff]
        %v3829 = vld [vmem:[%s17 + $0xa28] sm:$0xff]
        %v3830 = vld [vmem:[%s17 + $0xa30] sm:$0xff]
        %v3831 = vld [vmem:[%s17 + $0xa38] sm:$0xff]
        %v3832 = vld [vmem:[%s17 + $0xa40] sm:$0xff]
        %v3833 = vld [vmem:[%s17 + $0xa48] sm:$0xff]
        %v3834 = vld [vmem:[%s17 + $0xa50] sm:$0xff]
        %v3835 = vld [vmem:[%s17 + $0xa58] sm:$0xff]
        %v3836 = vld [vmem:[%s17 + $0xa60] sm:$0xff]
        %v3837 = vld [vmem:[%s17 + $0xa68] sm:$0xff]
        %v3838 = vld [vmem:[%s17 + $0xa70] sm:$0xff]
        %v3839 = vld [vmem:[%s17 + $0xa78] sm:$0xff]
        %v3840 = vld [vmem:[%s17 + $0xa80] sm:$0xff]
        %v3841 = vld [vmem:[%s17 + $0xa88] sm:$0xff]
        %v3842 = vld [vmem:[%s17 + $0xa90] sm:$0xff]
        %v3843 = vld [vmem:[%s17 + $0xa98] sm:$0xff]
        %v3844 = vld [vmem:[%s17 + $0xaa0] sm:$0xff]
        %v3845 = vld [vmem:[%s17 + $0xaa8] sm:$0xff]
        %v3846 = vld [vmem:[%s17 + $0xab0] sm:$0xff]
        %v3847 = vld [vmem:[%s17 + $0xab8] sm:$0xff]
        %v3848 = vld [vmem:[%s17 + $0xac0] sm:$0xff]
        %v3849 = vld [vmem:[%s17 + $0xac8] sm:$0xff]
        %v3850 = vld [vmem:[%s17 + $0xad0] sm:$0xff]
        %v3851 = vld [vmem:[%s17 + $0xad8] sm:$0xff]
        %v3852 = vld [vmem:[%s17 + $0xae0] sm:$0xff]
        %v3853 = vld [vmem:[%s17 + $0xae8] sm:$0xff]
        %v3854 = vld [vmem:[%s17 + $0xaf0] sm:$0xff]
        %v3855 = vld [vmem:[%s17 + $0xaf8] sm:$0xff]
        %v3856 = vld [vmem:[%s17 + $0xb00] sm:$0xff]
        %v3857 = vld [vmem:[%s17 + $0xb08] sm:$0xff]
        %v3858 = vld [vmem:[%s17 + $0xb10] sm:$0xff]
        %v3859 = vld [vmem:[%s17 + $0xb18] sm:$0xff]
        %v3860 = vld [vmem:[%s17 + $0xb20] sm:$0xff]
        %v3861 = vld [vmem:[%s17 + $0xb28] sm:$0xff]
        %v3862 = vld [vmem:[%s17 + $0xb30] sm:$0xff]
        %v3863 = vld [vmem:[%s17 + $0xb38] sm:$0xff]
        %v3864 = vld [vmem:[%s17 + $0xb40] sm:$0xff]
        %v3865 = vld [vmem:[%s17 + $0xb48] sm:$0xff]
        %v3866 = vld [vmem:[%s17 + $0xb50] sm:$0xff]
        %v3867 = vld [vmem:[%s17 + $0xb58] sm:$0xff]
        %v3868 = vld [vmem:[%s17 + $0xb60] sm:$0xff]
        %v3869 = vld [vmem:[%s17 + $0xb68] sm:$0xff]
        %v3870 = vld [vmem:[%s17 + $0xb70] sm:$0xff]
        %v3871 = vld [vmem:[%s17 + $0xb78] sm:$0xff]
        %v3872 = vld [vmem:[%s17 + $0xb80] sm:$0xff]
        %v3873 = vld [vmem:[%s17 + $0xb88] sm:$0xff]
        %v3874 = vld [vmem:[%s17 + $0xb90] sm:$0xff]
        %v3875 = vld [vmem:[%s17 + $0xb98] sm:$0xff]
        %v3876 = vld [vmem:[%s17 + $0xba0] sm:$0xff]
        %v3877 = vld [vmem:[%s17 + $0xba8] sm:$0xff]
        %v3878 = vld [vmem:[%s17 + $0xbb0] sm:$0xff]
        %v3879 = vld [vmem:[%s17 + $0xbb8] sm:$0xff]
        %v3880 = vld [vmem:[%s17 + $0xbc0] sm:$0xff]
        %v3881 = vld [vmem:[%s17 + $0xbc8] sm:$0xff]
        %v3882 = vld [vmem:[%s17 + $0xbd0] sm:$0xff]
        %v3883 = vld [vmem:[%s17 + $0xbd8] sm:$0xff]
        %v3884 = vld [vmem:[%s17 + $0xbe0] sm:$0xff]
        %v3885 = vld [vmem:[%s17 + $0xbe8] sm:$0xff]
        %v3886 = vld [vmem:[%s17 + $0xbf0] sm:$0xff]
        %v3887 = vld [vmem:[%s17 + $0xbf8] sm:$0xff]
        %v3890 = vcombine.high %v3502, %v3502
        %v3892 = vunpack.c.l.s4 1983009808
        %v3893 = vunpack.c.0.s8 %v3892
        %v3894 = vlaneseq
        %v3895 = vshrl.u32 %v3894, 7
        %v3896 = vsub.s32 %v3893, %v3895
        %v3897 = vrot.slane %v3502, %v3896
        %v3899 = vunpack.c.l.s4 1983009808
        %v3900 = vunpack.c.0.s8 %v3899
        %v3901 = vlaneseq
        %v3902 = vshrl.u32 %v3901, 7
        %v3903 = vsub.s32 %v3900, %v3902
        %v3904 = vrot.slane %v3890, %v3903
        %v3905 = vcombine.high %v3897, %v3897
        %v3906 = vcombine.high %v3904, %v3904
        %v3908 = vunpack.c.l.s4 1983009808
        %v3909 = vunpack.c.0.s8 %v3908
        %v3910 = vlaneseq
        %v3911 = vshrl.u32 %v3910, 7
        %v3912 = vsub.s32 %v3909, %v3911
        %v3913 = vrot.slane %v3503, %v3912
        %v3914 = vcombine.high %v3913, %v3913
        %v4305 = vunpack.c.l.b16 %v3504
        %v4306 = vunpack.c.h.b16 %v3504
        %v4307 = vunpack.c.l.b16 %v3505
        %v4308 = vunpack.c.h.b16 %v3505
        %v4309 = vunpack.c.l.b16 %v3506
        %v4310 = vunpack.c.h.b16 %v3506
        %v4311 = vunpack.c.l.b16 %v3507
        %v4312 = vunpack.c.h.b16 %v3507
        %v4313 = vunpack.c.l.b16 %v3508
        %v4314 = vunpack.c.h.b16 %v3508
        %v4315 = vunpack.c.l.b16 %v3509
        %v4316 = vunpack.c.h.b16 %v3509
        %v4317 = vunpack.c.l.b16 %v3510
        %v4318 = vunpack.c.h.b16 %v3510
        %v4319 = vunpack.c.l.b16 %v3511
        %v4320 = vunpack.c.h.b16 %v3511
        %v4321 = vunpack.c.l.b16 %v3512
        %v4322 = vunpack.c.h.b16 %v3512
        %v4323 = vunpack.c.l.b16 %v3513
        %v4324 = vunpack.c.h.b16 %v3513
        %v4325 = vunpack.c.l.b16 %v3514
        %v4326 = vunpack.c.h.b16 %v3514
        %v4327 = vunpack.c.l.b16 %v3515
        %v4328 = vunpack.c.h.b16 %v3515
        %v4329 = vunpack.c.l.b16 %v3516
        %v4330 = vunpack.c.h.b16 %v3516
        %v4331 = vunpack.c.l.b16 %v3517
        %v4332 = vunpack.c.h.b16 %v3517
        %v4333 = vunpack.c.l.b16 %v3518
        %v4334 = vunpack.c.h.b16 %v3518
        %v4335 = vunpack.c.l.b16 %v3519
        %v4336 = vunpack.c.h.b16 %v3519
        %v4337 = vunpack.c.l.b16 %v3520
        %v4338 = vunpack.c.h.b16 %v3520
        %v4339 = vunpack.c.l.b16 %v3521
        %v4340 = vunpack.c.h.b16 %v3521
        %v4341 = vunpack.c.l.b16 %v3522
        %v4342 = vunpack.c.h.b16 %v3522
        %v4343 = vunpack.c.l.b16 %v3523
        %v4344 = vunpack.c.h.b16 %v3523
        %v4345 = vunpack.c.l.b16 %v3524
        %v4346 = vunpack.c.h.b16 %v3524
        %v4347 = vunpack.c.l.b16 %v3525
        %v4348 = vunpack.c.h.b16 %v3525
        %v4349 = vunpack.c.l.b16 %v3526
        %v4350 = vunpack.c.h.b16 %v3526
        %v4351 = vunpack.c.l.b16 %v3527
        %v4352 = vunpack.c.h.b16 %v3527
        %v4353 = vunpack.c.l.b16 %v3528
        %v4354 = vunpack.c.h.b16 %v3528
        %v4355 = vunpack.c.l.b16 %v3529
        %v4356 = vunpack.c.h.b16 %v3529
        %v4357 = vunpack.c.l.b16 %v3530
        %v4358 = vunpack.c.h.b16 %v3530
        %v4359 = vunpack.c.l.b16 %v3531
        %v4360 = vunpack.c.h.b16 %v3531
        %v4361 = vunpack.c.l.b16 %v3532
        %v4362 = vunpack.c.h.b16 %v3532
        %v4363 = vunpack.c.l.b16 %v3533
        %v4364 = vunpack.c.h.b16 %v3533
        %v4365 = vunpack.c.l.b16 %v3534
        %v4366 = vunpack.c.h.b16 %v3534
        %v4367 = vunpack.c.l.b16 %v3535
        %v4368 = vunpack.c.h.b16 %v3535
        %v4369 = vunpack.c.l.b16 %v3536
        %v4370 = vunpack.c.h.b16 %v3536
        %v4371 = vunpack.c.l.b16 %v3537
        %v4372 = vunpack.c.h.b16 %v3537
        %v4373 = vunpack.c.l.b16 %v3538
        %v4374 = vunpack.c.h.b16 %v3538
        %v4375 = vunpack.c.l.b16 %v3539
        %v4376 = vunpack.c.h.b16 %v3539
        %v4377 = vunpack.c.l.b16 %v3540
        %v4378 = vunpack.c.h.b16 %v3540
        %v4379 = vunpack.c.l.b16 %v3541
        %v4380 = vunpack.c.h.b16 %v3541
        %v4381 = vunpack.c.l.b16 %v3542
        %v4382 = vunpack.c.h.b16 %v3542
        %v4383 = vunpack.c.l.b16 %v3543
        %v4384 = vunpack.c.h.b16 %v3543
        %v4385 = vunpack.c.l.b16 %v3544
        %v4386 = vunpack.c.h.b16 %v3544
        %v4387 = vunpack.c.l.b16 %v3545
        %v4388 = vunpack.c.h.b16 %v3545
        %v4389 = vunpack.c.l.b16 %v3546
        %v4390 = vunpack.c.h.b16 %v3546
        %v4391 = vunpack.c.l.b16 %v3547
        %v4392 = vunpack.c.h.b16 %v3547
        %v4393 = vunpack.c.l.b16 %v3548
        %v4394 = vunpack.c.h.b16 %v3548
        %v4395 = vunpack.c.l.b16 %v3549
        %v4396 = vunpack.c.h.b16 %v3549
        %v4397 = vunpack.c.l.b16 %v3550
        %v4398 = vunpack.c.h.b16 %v3550
        %v4399 = vunpack.c.l.b16 %v3551
        %v4400 = vunpack.c.h.b16 %v3551
        %v4401 = vunpack.c.l.b16 %v3552
        %v4402 = vunpack.c.h.b16 %v3552
        %v4403 = vunpack.c.l.b16 %v3553
        %v4404 = vunpack.c.h.b16 %v3553
        %v4405 = vunpack.c.l.b16 %v3554
        %v4406 = vunpack.c.h.b16 %v3554
        %v4407 = vunpack.c.l.b16 %v3555
        %v4408 = vunpack.c.h.b16 %v3555
        %v4409 = vunpack.c.l.b16 %v3556
        %v4410 = vunpack.c.h.b16 %v3556
        %v4411 = vunpack.c.l.b16 %v3557
        %v4412 = vunpack.c.h.b16 %v3557
        %v4413 = vunpack.c.l.b16 %v3558
        %v4414 = vunpack.c.h.b16 %v3558
        %v4415 = vunpack.c.l.b16 %v3559
        %v4416 = vunpack.c.h.b16 %v3559
        %v4417 = vunpack.c.l.b16 %v3560
        %v4418 = vunpack.c.h.b16 %v3560
        %v4419 = vunpack.c.l.b16 %v3561
        %v4420 = vunpack.c.h.b16 %v3561
        %v4421 = vunpack.c.l.b16 %v3562
        %v4422 = vunpack.c.h.b16 %v3562
        %v4423 = vunpack.c.l.b16 %v3563
        %v4424 = vunpack.c.h.b16 %v3563
        %v4425 = vunpack.c.l.b16 %v3564
        %v4426 = vunpack.c.h.b16 %v3564
        %v4427 = vunpack.c.l.b16 %v3565
        %v4428 = vunpack.c.h.b16 %v3565
        %v4429 = vunpack.c.l.b16 %v3566
        %v4430 = vunpack.c.h.b16 %v3566
        %v4431 = vunpack.c.l.b16 %v3567
        %v4432 = vunpack.c.h.b16 %v3567
        %v4433 = vunpack.c.l.b16 %v3568
        %v4434 = vunpack.c.h.b16 %v3568
        %v4435 = vunpack.c.l.b16 %v3569
        %v4436 = vunpack.c.h.b16 %v3569
        %v4437 = vunpack.c.l.b16 %v3570
        %v4438 = vunpack.c.h.b16 %v3570
        %v4439 = vunpack.c.l.b16 %v3571
        %v4440 = vunpack.c.h.b16 %v3571
        %v4441 = vunpack.c.l.b16 %v3572
        %v4442 = vunpack.c.h.b16 %v3572
        %v4443 = vunpack.c.l.b16 %v3573
        %v4444 = vunpack.c.h.b16 %v3573
        %v4445 = vunpack.c.l.b16 %v3574
        %v4446 = vunpack.c.h.b16 %v3574
        %v4447 = vunpack.c.l.b16 %v3575
        %v4448 = vunpack.c.h.b16 %v3575
        %v4449 = vunpack.c.l.b16 %v3576
        %v4450 = vunpack.c.h.b16 %v3576
        %v4451 = vunpack.c.l.b16 %v3577
        %v4452 = vunpack.c.h.b16 %v3577
        %v4453 = vunpack.c.l.b16 %v3578
        %v4454 = vunpack.c.h.b16 %v3578
        %v4455 = vunpack.c.l.b16 %v3579
        %v4456 = vunpack.c.h.b16 %v3579
        %v4457 = vunpack.c.l.b16 %v3580
        %v4458 = vunpack.c.h.b16 %v3580
        %v4459 = vunpack.c.l.b16 %v3581
        %v4460 = vunpack.c.h.b16 %v3581
        %v4461 = vunpack.c.l.b16 %v3582
        %v4462 = vunpack.c.h.b16 %v3582
        %v4463 = vunpack.c.l.b16 %v3583
        %v4464 = vunpack.c.h.b16 %v3583
        %v4465 = vunpack.c.l.b16 %v3584
        %v4466 = vunpack.c.h.b16 %v3584
        %v4467 = vunpack.c.l.b16 %v3585
        %v4468 = vunpack.c.h.b16 %v3585
        %v4469 = vunpack.c.l.b16 %v3586
        %v4470 = vunpack.c.h.b16 %v3586
        %v4471 = vunpack.c.l.b16 %v3587
        %v4472 = vunpack.c.h.b16 %v3587
        %v4473 = vunpack.c.l.b16 %v3588
        %v4474 = vunpack.c.h.b16 %v3588
        %v4475 = vunpack.c.l.b16 %v3589
        %v4476 = vunpack.c.h.b16 %v3589
        %v4477 = vunpack.c.l.b16 %v3590
        %v4478 = vunpack.c.h.b16 %v3590
        %v4479 = vunpack.c.l.b16 %v3591
        %v4480 = vunpack.c.h.b16 %v3591
        %v4481 = vunpack.c.l.b16 %v3592
        %v4482 = vunpack.c.h.b16 %v3592
        %v4483 = vunpack.c.l.b16 %v3593
        %v4484 = vunpack.c.h.b16 %v3593
        %v4485 = vunpack.c.l.b16 %v3594
        %v4486 = vunpack.c.h.b16 %v3594
        %v4487 = vunpack.c.l.b16 %v3595
        %v4488 = vunpack.c.h.b16 %v3595
        %v4489 = vunpack.c.l.b16 %v3596
        %v4490 = vunpack.c.h.b16 %v3596
        %v4491 = vunpack.c.l.b16 %v3597
        %v4492 = vunpack.c.h.b16 %v3597
        %v4493 = vunpack.c.l.b16 %v3598
        %v4494 = vunpack.c.h.b16 %v3598
        %v4495 = vunpack.c.l.b16 %v3599
        %v4496 = vunpack.c.h.b16 %v3599
        %v4497 = vunpack.c.l.b16 %v3600
        %v4498 = vunpack.c.h.b16 %v3600
        %v4499 = vunpack.c.l.b16 %v3601
        %v4500 = vunpack.c.h.b16 %v3601
        %v4501 = vunpack.c.l.b16 %v3602
        %v4502 = vunpack.c.h.b16 %v3602
        %v4503 = vunpack.c.l.b16 %v3603
        %v4504 = vunpack.c.h.b16 %v3603
        %v4505 = vunpack.c.l.b16 %v3604
        %v4506 = vunpack.c.h.b16 %v3604
        %v4507 = vunpack.c.l.b16 %v3605
        %v4508 = vunpack.c.h.b16 %v3605
        %v4509 = vunpack.c.l.b16 %v3606
        %v4510 = vunpack.c.h.b16 %v3606
        %v4511 = vunpack.c.l.b16 %v3607
        %v4512 = vunpack.c.h.b16 %v3607
        %v4513 = vunpack.c.l.b16 %v3608
        %v4514 = vunpack.c.h.b16 %v3608
        %v4515 = vunpack.c.l.b16 %v3609
        %v4516 = vunpack.c.h.b16 %v3609
        %v4517 = vunpack.c.l.b16 %v3610
        %v4518 = vunpack.c.h.b16 %v3610
        %v4519 = vunpack.c.l.b16 %v3611
        %v4520 = vunpack.c.h.b16 %v3611
        %v4521 = vunpack.c.l.b16 %v3612
        %v4522 = vunpack.c.h.b16 %v3612
        %v4523 = vunpack.c.l.b16 %v3613
        %v4524 = vunpack.c.h.b16 %v3613
        %v4525 = vunpack.c.l.b16 %v3614
        %v4526 = vunpack.c.h.b16 %v3614
        %v4527 = vunpack.c.l.b16 %v3615
        %v4528 = vunpack.c.h.b16 %v3615
        %v4529 = vunpack.c.l.b16 %v3616
        %v4530 = vunpack.c.h.b16 %v3616
        %v4531 = vunpack.c.l.b16 %v3617
        %v4532 = vunpack.c.h.b16 %v3617
        %v4533 = vunpack.c.l.b16 %v3618
        %v4534 = vunpack.c.h.b16 %v3618
        %v4535 = vunpack.c.l.b16 %v3619
        %v4536 = vunpack.c.h.b16 %v3619
        %v4537 = vunpack.c.l.b16 %v3620
        %v4538 = vunpack.c.h.b16 %v3620
        %v4539 = vunpack.c.l.b16 %v3621
        %v4540 = vunpack.c.h.b16 %v3621
        %v4541 = vunpack.c.l.b16 %v3622
        %v4542 = vunpack.c.h.b16 %v3622
        %v4543 = vunpack.c.l.b16 %v3623
        %v4544 = vunpack.c.h.b16 %v3623
        %v4545 = vunpack.c.l.b16 %v3624
        %v4546 = vunpack.c.h.b16 %v3624
        %v4547 = vunpack.c.l.b16 %v3625
        %v4548 = vunpack.c.h.b16 %v3625
        %v4549 = vunpack.c.l.b16 %v3626
        %v4550 = vunpack.c.h.b16 %v3626
        %v4551 = vunpack.c.l.b16 %v3627
        %v4552 = vunpack.c.h.b16 %v3627
        %v4553 = vunpack.c.l.b16 %v3628
        %v4554 = vunpack.c.h.b16 %v3628
        %v4555 = vunpack.c.l.b16 %v3629
        %v4556 = vunpack.c.h.b16 %v3629
        %v4557 = vunpack.c.l.b16 %v3630
        %v4558 = vunpack.c.h.b16 %v3630
        %v4559 = vunpack.c.l.b16 %v3631
        %v4560 = vunpack.c.h.b16 %v3631
        %v4561 = vunpack.c.l.b16 %v3632
        %v4562 = vunpack.c.h.b16 %v3632
        %v4563 = vunpack.c.l.b16 %v3633
        %v4564 = vunpack.c.h.b16 %v3633
        %v4565 = vunpack.c.l.b16 %v3634
        %v4566 = vunpack.c.h.b16 %v3634
        %v4567 = vunpack.c.l.b16 %v3635
        %v4568 = vunpack.c.h.b16 %v3635
        %v4569 = vunpack.c.l.b16 %v3636
        %v4570 = vunpack.c.h.b16 %v3636
        %v4571 = vunpack.c.l.b16 %v3637
        %v4572 = vunpack.c.h.b16 %v3637
        %v4573 = vunpack.c.l.b16 %v3638
        %v4574 = vunpack.c.h.b16 %v3638
        %v4575 = vunpack.c.l.b16 %v3639
        %v4576 = vunpack.c.h.b16 %v3639
        %v4577 = vunpack.c.l.b16 %v3640
        %v4578 = vunpack.c.h.b16 %v3640
        %v4579 = vunpack.c.l.b16 %v3641
        %v4580 = vunpack.c.h.b16 %v3641
        %v4581 = vunpack.c.l.b16 %v3642
        %v4582 = vunpack.c.h.b16 %v3642
        %v4583 = vunpack.c.l.b16 %v3643
        %v4584 = vunpack.c.h.b16 %v3643
        %v4585 = vunpack.c.l.b16 %v3644
        %v4586 = vunpack.c.h.b16 %v3644
        %v4587 = vunpack.c.l.b16 %v3645
        %v4588 = vunpack.c.h.b16 %v3645
        %v4589 = vunpack.c.l.b16 %v3646
        %v4590 = vunpack.c.h.b16 %v3646
        %v4591 = vunpack.c.l.b16 %v3647
        %v4592 = vunpack.c.h.b16 %v3647
        %v4593 = vunpack.c.l.b16 %v3648
        %v4594 = vunpack.c.h.b16 %v3648
        %v4595 = vunpack.c.l.b16 %v3649
        %v4596 = vunpack.c.h.b16 %v3649
        %v4597 = vunpack.c.l.b16 %v3650
        %v4598 = vunpack.c.h.b16 %v3650
        %v4599 = vunpack.c.l.b16 %v3651
        %v4600 = vunpack.c.h.b16 %v3651
        %v4601 = vunpack.c.l.b16 %v3652
        %v4602 = vunpack.c.h.b16 %v3652
        %v4603 = vunpack.c.l.b16 %v3653
        %v4604 = vunpack.c.h.b16 %v3653
        %v4605 = vunpack.c.l.b16 %v3654
        %v4606 = vunpack.c.h.b16 %v3654
        %v4607 = vunpack.c.l.b16 %v3655
        %v4608 = vunpack.c.h.b16 %v3655
        %v4609 = vunpack.c.l.b16 %v3656
        %v4610 = vunpack.c.h.b16 %v3656
        %v4611 = vunpack.c.l.b16 %v3657
        %v4612 = vunpack.c.h.b16 %v3657
        %v4613 = vunpack.c.l.b16 %v3658
        %v4614 = vunpack.c.h.b16 %v3658
        %v4615 = vunpack.c.l.b16 %v3659
        %v4616 = vunpack.c.h.b16 %v3659
        %v4617 = vunpack.c.l.b16 %v3660
        %v4618 = vunpack.c.h.b16 %v3660
        %v4619 = vunpack.c.l.b16 %v3661
        %v4620 = vunpack.c.h.b16 %v3661
        %v4621 = vunpack.c.l.b16 %v3662
        %v4622 = vunpack.c.h.b16 %v3662
        %v4623 = vunpack.c.l.b16 %v3663
        %v4624 = vunpack.c.h.b16 %v3663
        %v4625 = vunpack.c.l.b16 %v3664
        %v4626 = vunpack.c.h.b16 %v3664
        %v4627 = vunpack.c.l.b16 %v3665
        %v4628 = vunpack.c.h.b16 %v3665
        %v4629 = vunpack.c.l.b16 %v3666
        %v4630 = vunpack.c.h.b16 %v3666
        %v4631 = vunpack.c.l.b16 %v3667
        %v4632 = vunpack.c.h.b16 %v3667
        %v4633 = vunpack.c.l.b16 %v3668
        %v4634 = vunpack.c.h.b16 %v3668
        %v4635 = vunpack.c.l.b16 %v3669
        %v4636 = vunpack.c.h.b16 %v3669
        %v4637 = vunpack.c.l.b16 %v3670
        %v4638 = vunpack.c.h.b16 %v3670
        %v4639 = vunpack.c.l.b16 %v3671
        %v4640 = vunpack.c.h.b16 %v3671
        %v4641 = vunpack.c.l.b16 %v3672
        %v4642 = vunpack.c.h.b16 %v3672
        %v4643 = vunpack.c.l.b16 %v3673
        %v4644 = vunpack.c.h.b16 %v3673
        %v4645 = vunpack.c.l.b16 %v3674
        %v4646 = vunpack.c.h.b16 %v3674
        %v4647 = vunpack.c.l.b16 %v3675
        %v4648 = vunpack.c.h.b16 %v3675
        %v4649 = vunpack.c.l.b16 %v3676
        %v4650 = vunpack.c.h.b16 %v3676
        %v4651 = vunpack.c.l.b16 %v3677
        %v4652 = vunpack.c.h.b16 %v3677
        %v4653 = vunpack.c.l.b16 %v3678
        %v4654 = vunpack.c.h.b16 %v3678
        %v4655 = vunpack.c.l.b16 %v3679
        %v4656 = vunpack.c.h.b16 %v3679
        %v4657 = vunpack.c.l.b16 %v3680
        %v4658 = vunpack.c.h.b16 %v3680
        %v4659 = vunpack.c.l.b16 %v3681
        %v4660 = vunpack.c.h.b16 %v3681
        %v4661 = vunpack.c.l.b16 %v3682
        %v4662 = vunpack.c.h.b16 %v3682
        %v4663 = vunpack.c.l.b16 %v3683
        %v4664 = vunpack.c.h.b16 %v3683
        %v4665 = vunpack.c.l.b16 %v3684
        %v4666 = vunpack.c.h.b16 %v3684
        %v4667 = vunpack.c.l.b16 %v3685
        %v4668 = vunpack.c.h.b16 %v3685
        %v4669 = vunpack.c.l.b16 %v3686
        %v4670 = vunpack.c.h.b16 %v3686
        %v4671 = vunpack.c.l.b16 %v3687
        %v4672 = vunpack.c.h.b16 %v3687
        %v4673 = vunpack.c.l.b16 %v3688
        %v4674 = vunpack.c.h.b16 %v3688
        %v4675 = vunpack.c.l.b16 %v3689
        %v4676 = vunpack.c.h.b16 %v3689
        %v4677 = vunpack.c.l.b16 %v3690
        %v4678 = vunpack.c.h.b16 %v3690
        %v4679 = vunpack.c.l.b16 %v3691
        %v4680 = vunpack.c.h.b16 %v3691
        %v4681 = vunpack.c.l.b16 %v3692
        %v4682 = vunpack.c.h.b16 %v3692
        %v4683 = vunpack.c.l.b16 %v3693
        %v4684 = vunpack.c.h.b16 %v3693
        %v4685 = vunpack.c.l.b16 %v3694
        %v4686 = vunpack.c.h.b16 %v3694
        %v4687 = vunpack.c.l.b16 %v3695
        %v4688 = vunpack.c.h.b16 %v3695
        %v4689 = vunpack.c.l.b16 %v3696
        %v4690 = vunpack.c.h.b16 %v3696
        %v4691 = vunpack.c.l.b16 %v3697
        %v4692 = vunpack.c.h.b16 %v3697
        %v4693 = vunpack.c.l.b16 %v3698
        %v4694 = vunpack.c.h.b16 %v3698
        %v4695 = vunpack.c.l.b16 %v3699
        %v4696 = vunpack.c.h.b16 %v3699
        %v4697 = vunpack.c.l.b16 %v3700
        %v4698 = vunpack.c.h.b16 %v3700
        %v4699 = vunpack.c.l.b16 %v3701
        %v4700 = vunpack.c.h.b16 %v3701
        %v4701 = vunpack.c.l.b16 %v3702
        %v4702 = vunpack.c.h.b16 %v3702
        %v4703 = vunpack.c.l.b16 %v3703
        %v4704 = vunpack.c.h.b16 %v3703
        %v4705 = vunpack.c.l.b16 %v3704
        %v4706 = vunpack.c.h.b16 %v3704
        %v4707 = vunpack.c.l.b16 %v3705
        %v4708 = vunpack.c.h.b16 %v3705
        %v4709 = vunpack.c.l.b16 %v3706
        %v4710 = vunpack.c.h.b16 %v3706
        %v4711 = vunpack.c.l.b16 %v3707
        %v4712 = vunpack.c.h.b16 %v3707
        %v4713 = vunpack.c.l.b16 %v3708
        %v4714 = vunpack.c.h.b16 %v3708
        %v4715 = vunpack.c.l.b16 %v3709
        %v4716 = vunpack.c.h.b16 %v3709
        %v4717 = vunpack.c.l.b16 %v3710
        %v4718 = vunpack.c.h.b16 %v3710
        %v4719 = vunpack.c.l.b16 %v3711
        %v4720 = vunpack.c.h.b16 %v3711
        %v4721 = vunpack.c.l.b16 %v3712
        %v4722 = vunpack.c.h.b16 %v3712
        %v4723 = vunpack.c.l.b16 %v3713
        %v4724 = vunpack.c.h.b16 %v3713
        %v4725 = vunpack.c.l.b16 %v3714
        %v4726 = vunpack.c.h.b16 %v3714
        %v4727 = vunpack.c.l.b16 %v3715
        %v4728 = vunpack.c.h.b16 %v3715
        %v4729 = vunpack.c.l.b16 %v3716
        %v4730 = vunpack.c.h.b16 %v3716
        %v4731 = vunpack.c.l.b16 %v3717
        %v4732 = vunpack.c.h.b16 %v3717
        %v4733 = vunpack.c.l.b16 %v3718
        %v4734 = vunpack.c.h.b16 %v3718
        %v4735 = vunpack.c.l.b16 %v3719
        %v4736 = vunpack.c.h.b16 %v3719
        %v4737 = vunpack.c.l.b16 %v3720
        %v4738 = vunpack.c.h.b16 %v3720
        %v4739 = vunpack.c.l.b16 %v3721
        %v4740 = vunpack.c.h.b16 %v3721
        %v4741 = vunpack.c.l.b16 %v3722
        %v4742 = vunpack.c.h.b16 %v3722
        %v4743 = vunpack.c.l.b16 %v3723
        %v4744 = vunpack.c.h.b16 %v3723
        %v4745 = vunpack.c.l.b16 %v3724
        %v4746 = vunpack.c.h.b16 %v3724
        %v4747 = vunpack.c.l.b16 %v3725
        %v4748 = vunpack.c.h.b16 %v3725
        %v4749 = vunpack.c.l.b16 %v3726
        %v4750 = vunpack.c.h.b16 %v3726
        %v4751 = vunpack.c.l.b16 %v3727
        %v4752 = vunpack.c.h.b16 %v3727
        %v4753 = vunpack.c.l.b16 %v3728
        %v4754 = vunpack.c.h.b16 %v3728
        %v4755 = vunpack.c.l.b16 %v3729
        %v4756 = vunpack.c.h.b16 %v3729
        %v4757 = vunpack.c.l.b16 %v3730
        %v4758 = vunpack.c.h.b16 %v3730
        %v4759 = vunpack.c.l.b16 %v3731
        %v4760 = vunpack.c.h.b16 %v3731
        %v4761 = vunpack.c.l.b16 %v3732
        %v4762 = vunpack.c.h.b16 %v3732
        %v4763 = vunpack.c.l.b16 %v3733
        %v4764 = vunpack.c.h.b16 %v3733
        %v4765 = vunpack.c.l.b16 %v3734
        %v4766 = vunpack.c.h.b16 %v3734
        %v4767 = vunpack.c.l.b16 %v3735
        %v4768 = vunpack.c.h.b16 %v3735
        %v4769 = vunpack.c.l.b16 %v3736
        %v4770 = vunpack.c.h.b16 %v3736
        %v4771 = vunpack.c.l.b16 %v3737
        %v4772 = vunpack.c.h.b16 %v3737
        %v4773 = vunpack.c.l.b16 %v3738
        %v4774 = vunpack.c.h.b16 %v3738
        %v4775 = vunpack.c.l.b16 %v3739
        %v4776 = vunpack.c.h.b16 %v3739
        %v4777 = vunpack.c.l.b16 %v3740
        %v4778 = vunpack.c.h.b16 %v3740
        %v4779 = vunpack.c.l.b16 %v3741
        %v4780 = vunpack.c.h.b16 %v3741
        %v4781 = vunpack.c.l.b16 %v3742
        %v4782 = vunpack.c.h.b16 %v3742
        %v4783 = vunpack.c.l.b16 %v3743
        %v4784 = vunpack.c.h.b16 %v3743
        %v4785 = vunpack.c.l.b16 %v3744
        %v4786 = vunpack.c.h.b16 %v3744
        %v4787 = vunpack.c.l.b16 %v3745
        %v4788 = vunpack.c.h.b16 %v3745
        %v4789 = vunpack.c.l.b16 %v3746
        %v4790 = vunpack.c.h.b16 %v3746
        %v4791 = vunpack.c.l.b16 %v3747
        %v4792 = vunpack.c.h.b16 %v3747
        %v4793 = vunpack.c.l.b16 %v3748
        %v4794 = vunpack.c.h.b16 %v3748
        %v4795 = vunpack.c.l.b16 %v3749
        %v4796 = vunpack.c.h.b16 %v3749
        %v4797 = vunpack.c.l.b16 %v3750
        %v4798 = vunpack.c.h.b16 %v3750
        %v4799 = vunpack.c.l.b16 %v3751
        %v4800 = vunpack.c.h.b16 %v3751
        %v4801 = vunpack.c.l.b16 %v3752
        %v4802 = vunpack.c.h.b16 %v3752
        %v4803 = vunpack.c.l.b16 %v3753
        %v4804 = vunpack.c.h.b16 %v3753
        %v4805 = vunpack.c.l.b16 %v3754
        %v4806 = vunpack.c.h.b16 %v3754
        %v4807 = vunpack.c.l.b16 %v3755
        %v4808 = vunpack.c.h.b16 %v3755
        %v4809 = vunpack.c.l.b16 %v3756
        %v4810 = vunpack.c.h.b16 %v3756
        %v4811 = vunpack.c.l.b16 %v3757
        %v4812 = vunpack.c.h.b16 %v3757
        %v4813 = vunpack.c.l.b16 %v3758
        %v4814 = vunpack.c.h.b16 %v3758
        %v4815 = vunpack.c.l.b16 %v3759
        %v4816 = vunpack.c.h.b16 %v3759
        %v4817 = vunpack.c.l.b16 %v3760
        %v4818 = vunpack.c.h.b16 %v3760
        %v4819 = vunpack.c.l.b16 %v3761
        %v4820 = vunpack.c.h.b16 %v3761
        %v4821 = vunpack.c.l.b16 %v3762
        %v4822 = vunpack.c.h.b16 %v3762
        %v4823 = vunpack.c.l.b16 %v3763
        %v4824 = vunpack.c.h.b16 %v3763
        %v4825 = vunpack.c.l.b16 %v3764
        %v4826 = vunpack.c.h.b16 %v3764
        %v4827 = vunpack.c.l.b16 %v3765
        %v4828 = vunpack.c.h.b16 %v3765
        %v4829 = vunpack.c.l.b16 %v3766
        %v4830 = vunpack.c.h.b16 %v3766
        %v4831 = vunpack.c.l.b16 %v3767
        %v4832 = vunpack.c.h.b16 %v3767
        %v4833 = vunpack.c.l.b16 %v3768
        %v4834 = vunpack.c.h.b16 %v3768
        %v4835 = vunpack.c.l.b16 %v3769
        %v4836 = vunpack.c.h.b16 %v3769
        %v4837 = vunpack.c.l.b16 %v3770
        %v4838 = vunpack.c.h.b16 %v3770
        %v4839 = vunpack.c.l.b16 %v3771
        %v4840 = vunpack.c.h.b16 %v3771
        %v4841 = vunpack.c.l.b16 %v3772
        %v4842 = vunpack.c.h.b16 %v3772
        %v4843 = vunpack.c.l.b16 %v3773
        %v4844 = vunpack.c.h.b16 %v3773
        %v4845 = vunpack.c.l.b16 %v3774
        %v4846 = vunpack.c.h.b16 %v3774
        %v4847 = vunpack.c.l.b16 %v3775
        %v4848 = vunpack.c.h.b16 %v3775
        %v4849 = vunpack.c.l.b16 %v3776
        %v4850 = vunpack.c.h.b16 %v3776
        %v4851 = vunpack.c.l.b16 %v3777
        %v4852 = vunpack.c.h.b16 %v3777
        %v4853 = vunpack.c.l.b16 %v3778
        %v4854 = vunpack.c.h.b16 %v3778
        %v4855 = vunpack.c.l.b16 %v3779
        %v4856 = vunpack.c.h.b16 %v3779
        %v4857 = vunpack.c.l.b16 %v3780
        %v4858 = vunpack.c.h.b16 %v3780
        %v4859 = vunpack.c.l.b16 %v3781
        %v4860 = vunpack.c.h.b16 %v3781
        %v4861 = vunpack.c.l.b16 %v3782
        %v4862 = vunpack.c.h.b16 %v3782
        %v4863 = vunpack.c.l.b16 %v3783
        %v4864 = vunpack.c.h.b16 %v3783
        %v4865 = vunpack.c.l.b16 %v3784
        %v4866 = vunpack.c.h.b16 %v3784
        %v4867 = vunpack.c.l.b16 %v3785
        %v4868 = vunpack.c.h.b16 %v3785
        %v4869 = vunpack.c.l.b16 %v3786
        %v4870 = vunpack.c.h.b16 %v3786
        %v4871 = vunpack.c.l.b16 %v3787
        %v4872 = vunpack.c.h.b16 %v3787
        %v4873 = vunpack.c.l.b16 %v3788
        %v4874 = vunpack.c.h.b16 %v3788
        %v4875 = vunpack.c.l.b16 %v3789
        %v4876 = vunpack.c.h.b16 %v3789
        %v4877 = vunpack.c.l.b16 %v3790
        %v4878 = vunpack.c.h.b16 %v3790
        %v4879 = vunpack.c.l.b16 %v3791
        %v4880 = vunpack.c.h.b16 %v3791
        %v4881 = vunpack.c.l.b16 %v3792
        %v4882 = vunpack.c.h.b16 %v3792
        %v4883 = vunpack.c.l.b16 %v3793
        %v4884 = vunpack.c.h.b16 %v3793
        %v4885 = vunpack.c.l.b16 %v3794
        %v4886 = vunpack.c.h.b16 %v3794
        %v4887 = vunpack.c.l.b16 %v3795
        %v4888 = vunpack.c.h.b16 %v3795
        %v4889 = vunpack.c.l.b16 %v3796
        %v4890 = vunpack.c.h.b16 %v3796
        %v4891 = vunpack.c.l.b16 %v3797
        %v4892 = vunpack.c.h.b16 %v3797
        %v4893 = vunpack.c.l.b16 %v3798
        %v4894 = vunpack.c.h.b16 %v3798
        %v4895 = vunpack.c.l.b16 %v3799
        %v4896 = vunpack.c.h.b16 %v3799
        %v4897 = vunpack.c.l.b16 %v3800
        %v4898 = vunpack.c.h.b16 %v3800
        %v4899 = vunpack.c.l.b16 %v3801
        %v4900 = vunpack.c.h.b16 %v3801
        %v4901 = vunpack.c.l.b16 %v3802
        %v4902 = vunpack.c.h.b16 %v3802
        %v4903 = vunpack.c.l.b16 %v3803
        %v4904 = vunpack.c.h.b16 %v3803
        %v4905 = vunpack.c.l.b16 %v3804
        %v4906 = vunpack.c.h.b16 %v3804
        %v4907 = vunpack.c.l.b16 %v3805
        %v4908 = vunpack.c.h.b16 %v3805
        %v4909 = vunpack.c.l.b16 %v3806
        %v4910 = vunpack.c.h.b16 %v3806
        %v4911 = vunpack.c.l.b16 %v3807
        %v4912 = vunpack.c.h.b16 %v3807
        %v4913 = vunpack.c.l.b16 %v3808
        %v4914 = vunpack.c.h.b16 %v3808
        %v4915 = vunpack.c.l.b16 %v3809
        %v4916 = vunpack.c.h.b16 %v3809
        %v4917 = vunpack.c.l.b16 %v3810
        %v4918 = vunpack.c.h.b16 %v3810
        %v4919 = vunpack.c.l.b16 %v3811
        %v4920 = vunpack.c.h.b16 %v3811
        %v4921 = vunpack.c.l.b16 %v3812
        %v4922 = vunpack.c.h.b16 %v3812
        %v4923 = vunpack.c.l.b16 %v3813
        %v4924 = vunpack.c.h.b16 %v3813
        %v4925 = vunpack.c.l.b16 %v3814
        %v4926 = vunpack.c.h.b16 %v3814
        %v4927 = vunpack.c.l.b16 %v3815
        %v4928 = vunpack.c.h.b16 %v3815
        %v4929 = vunpack.c.l.b16 %v3816
        %v4930 = vunpack.c.h.b16 %v3816
        %v4931 = vunpack.c.l.b16 %v3817
        %v4932 = vunpack.c.h.b16 %v3817
        %v4933 = vunpack.c.l.b16 %v3818
        %v4934 = vunpack.c.h.b16 %v3818
        %v4935 = vunpack.c.l.b16 %v3819
        %v4936 = vunpack.c.h.b16 %v3819
        %v4937 = vunpack.c.l.b16 %v3820
        %v4938 = vunpack.c.h.b16 %v3820
        %v4939 = vunpack.c.l.b16 %v3821
        %v4940 = vunpack.c.h.b16 %v3821
        %v4941 = vunpack.c.l.b16 %v3822
        %v4942 = vunpack.c.h.b16 %v3822
        %v4943 = vunpack.c.l.b16 %v3823
        %v4944 = vunpack.c.h.b16 %v3823
        %v4945 = vunpack.c.l.b16 %v3824
        %v4946 = vunpack.c.h.b16 %v3824
        %v4947 = vunpack.c.l.b16 %v3825
        %v4948 = vunpack.c.h.b16 %v3825
        %v4949 = vunpack.c.l.b16 %v3826
        %v4950 = vunpack.c.h.b16 %v3826
        %v4951 = vunpack.c.l.b16 %v3827
        %v4952 = vunpack.c.h.b16 %v3827
        %v4953 = vunpack.c.l.b16 %v3828
        %v4954 = vunpack.c.h.b16 %v3828
        %v4955 = vunpack.c.l.b16 %v3829
        %v4956 = vunpack.c.h.b16 %v3829
        %v4957 = vunpack.c.l.b16 %v3830
        %v4958 = vunpack.c.h.b16 %v3830
        %v4959 = vunpack.c.l.b16 %v3831
        %v4960 = vunpack.c.h.b16 %v3831
        %v4961 = vunpack.c.l.b16 %v3832
        %v4962 = vunpack.c.h.b16 %v3832
        %v4963 = vunpack.c.l.b16 %v3833
        %v4964 = vunpack.c.h.b16 %v3833
        %v4965 = vunpack.c.l.b16 %v3834
        %v4966 = vunpack.c.h.b16 %v3834
        %v4967 = vunpack.c.l.b16 %v3835
        %v4968 = vunpack.c.h.b16 %v3835
        %v4969 = vunpack.c.l.b16 %v3836
        %v4970 = vunpack.c.h.b16 %v3836
        %v4971 = vunpack.c.l.b16 %v3837
        %v4972 = vunpack.c.h.b16 %v3837
        %v4973 = vunpack.c.l.b16 %v3838
        %v4974 = vunpack.c.h.b16 %v3838
        %v4975 = vunpack.c.l.b16 %v3839
        %v4976 = vunpack.c.h.b16 %v3839
        %v4977 = vunpack.c.l.b16 %v3840
        %v4978 = vunpack.c.h.b16 %v3840
        %v4979 = vunpack.c.l.b16 %v3841
        %v4980 = vunpack.c.h.b16 %v3841
        %v4981 = vunpack.c.l.b16 %v3842
        %v4982 = vunpack.c.h.b16 %v3842
        %v4983 = vunpack.c.l.b16 %v3843
        %v4984 = vunpack.c.h.b16 %v3843
        %v4985 = vunpack.c.l.b16 %v3844
        %v4986 = vunpack.c.h.b16 %v3844
        %v4987 = vunpack.c.l.b16 %v3845
        %v4988 = vunpack.c.h.b16 %v3845
        %v4989 = vunpack.c.l.b16 %v3846
        %v4990 = vunpack.c.h.b16 %v3846
        %v4991 = vunpack.c.l.b16 %v3847
        %v4992 = vunpack.c.h.b16 %v3847
        %v4993 = vunpack.c.l.b16 %v3848
        %v4994 = vunpack.c.h.b16 %v3848
        %v4995 = vunpack.c.l.b16 %v3849
        %v4996 = vunpack.c.h.b16 %v3849
        %v4997 = vunpack.c.l.b16 %v3850
        %v4998 = vunpack.c.h.b16 %v3850
        %v4999 = vunpack.c.l.b16 %v3851
        %v5000 = vunpack.c.h.b16 %v3851
        %v5001 = vunpack.c.l.b16 %v3852
        %v5002 = vunpack.c.h.b16 %v3852
        %v5003 = vunpack.c.l.b16 %v3853
        %v5004 = vunpack.c.h.b16 %v3853
        %v5005 = vunpack.c.l.b16 %v3854
        %v5006 = vunpack.c.h.b16 %v3854
        %v5007 = vunpack.c.l.b16 %v3855
        %v5008 = vunpack.c.h.b16 %v3855
        %v5009 = vunpack.c.l.b16 %v3856
        %v5010 = vunpack.c.h.b16 %v3856
        %v5011 = vunpack.c.l.b16 %v3857
        %v5012 = vunpack.c.h.b16 %v3857
        %v5013 = vunpack.c.l.b16 %v3858
        %v5014 = vunpack.c.h.b16 %v3858
        %v5015 = vunpack.c.l.b16 %v3859
        %v5016 = vunpack.c.h.b16 %v3859
        %v5017 = vunpack.c.l.b16 %v3860
        %v5018 = vunpack.c.h.b16 %v3860
        %v5019 = vunpack.c.l.b16 %v3861
        %v5020 = vunpack.c.h.b16 %v3861
        %v5021 = vunpack.c.l.b16 %v3862
        %v5022 = vunpack.c.h.b16 %v3862
        %v5023 = vunpack.c.l.b16 %v3863
        %v5024 = vunpack.c.h.b16 %v3863
        %v5025 = vunpack.c.l.b16 %v3864
        %v5026 = vunpack.c.h.b16 %v3864
        %v5027 = vunpack.c.l.b16 %v3865
        %v5028 = vunpack.c.h.b16 %v3865
        %v5029 = vunpack.c.l.b16 %v3866
        %v5030 = vunpack.c.h.b16 %v3866
        %v5031 = vunpack.c.l.b16 %v3867
        %v5032 = vunpack.c.h.b16 %v3867
        %v5033 = vunpack.c.l.b16 %v3868
        %v5034 = vunpack.c.h.b16 %v3868
        %v5035 = vunpack.c.l.b16 %v3869
        %v5036 = vunpack.c.h.b16 %v3869
        %v5037 = vunpack.c.l.b16 %v3870
        %v5038 = vunpack.c.h.b16 %v3870
        %v5039 = vunpack.c.l.b16 %v3871
        %v5040 = vunpack.c.h.b16 %v3871
        %v5041 = vunpack.c.l.b16 %v3872
        %v5042 = vunpack.c.h.b16 %v3872
        %v5043 = vunpack.c.l.b16 %v3873
        %v5044 = vunpack.c.h.b16 %v3873
        %v5045 = vunpack.c.l.b16 %v3874
        %v5046 = vunpack.c.h.b16 %v3874
        %v5047 = vunpack.c.l.b16 %v3875
        %v5048 = vunpack.c.h.b16 %v3875
        %v5049 = vunpack.c.l.b16 %v3876
        %v5050 = vunpack.c.h.b16 %v3876
        %v5051 = vunpack.c.l.b16 %v3877
        %v5052 = vunpack.c.h.b16 %v3877
        %v5053 = vunpack.c.l.b16 %v3878
        %v5054 = vunpack.c.h.b16 %v3878
        %v5055 = vunpack.c.l.b16 %v3879
        %v5056 = vunpack.c.h.b16 %v3879
        %v5057 = vunpack.c.l.b16 %v3880
        %v5058 = vunpack.c.h.b16 %v3880
        %v5059 = vunpack.c.l.b16 %v3881
        %v5060 = vunpack.c.h.b16 %v3881
        %v5061 = vunpack.c.l.b16 %v3882
        %v5062 = vunpack.c.h.b16 %v3882
        %v5063 = vunpack.c.l.b16 %v3883
        %v5064 = vunpack.c.h.b16 %v3883
        %v5065 = vunpack.c.l.b16 %v3884
        %v5066 = vunpack.c.h.b16 %v3884
        %v5067 = vunpack.c.l.b16 %v3885
        %v5068 = vunpack.c.h.b16 %v3885
        %v5069 = vunpack.c.l.b16 %v3886
        %v5070 = vunpack.c.h.b16 %v3886
        %v5071 = vunpack.c.l.b16 %v3887
        %v5072 = vunpack.c.h.b16 %v3887
        %v5073 = vpack.c.b16 %v4313, %v4305
        %v5074 = vpack.c.b16 %v4314, %v4306
        %v5075 = vpack.c.b16 %v4315, %v4307
        %v5076 = vpack.c.b16 %v4316, %v4308
        %v5077 = vpack.c.b16 %v4317, %v4309
        %v5078 = vpack.c.b16 %v4318, %v4310
        %v5079 = vpack.c.b16 %v4319, %v4311
        %v5080 = vpack.c.b16 %v4320, %v4312
        %v5081 = vpack.c.b16 %v4329, %v4321
        %v5082 = vpack.c.b16 %v4330, %v4322
        %v5083 = vpack.c.b16 %v4331, %v4323
        %v5084 = vpack.c.b16 %v4332, %v4324
        %v5085 = vpack.c.b16 %v4333, %v4325
        %v5086 = vpack.c.b16 %v4334, %v4326
        %v5087 = vpack.c.b16 %v4335, %v4327
        %v5088 = vpack.c.b16 %v4336, %v4328
        %v5089 = vpack.c.b16 %v4345, %v4337
        %v5090 = vpack.c.b16 %v4346, %v4338
        %v5091 = vpack.c.b16 %v4347, %v4339
        %v5092 = vpack.c.b16 %v4348, %v4340
        %v5093 = vpack.c.b16 %v4349, %v4341
        %v5094 = vpack.c.b16 %v4350, %v4342
        %v5095 = vpack.c.b16 %v4351, %v4343
        %v5096 = vpack.c.b16 %v4352, %v4344
        %v5097 = vpack.c.b16 %v4361, %v4353
        %v5098 = vpack.c.b16 %v4362, %v4354
        %v5099 = vpack.c.b16 %v4363, %v4355
        %v5100 = vpack.c.b16 %v4364, %v4356
        %v5101 = vpack.c.b16 %v4365, %v4357
        %v5102 = vpack.c.b16 %v4366, %v4358
        %v5103 = vpack.c.b16 %v4367, %v4359
        %v5104 = vpack.c.b16 %v4368, %v4360
        %v5105 = vpack.c.b16 %v4377, %v4369
        %v5106 = vpack.c.b16 %v4378, %v4370
        %v5107 = vpack.c.b16 %v4379, %v4371
        %v5108 = vpack.c.b16 %v4380, %v4372
        %v5109 = vpack.c.b16 %v4381, %v4373
        %v5110 = vpack.c.b16 %v4382, %v4374
        %v5111 = vpack.c.b16 %v4383, %v4375
        %v5112 = vpack.c.b16 %v4384, %v4376
        %v5113 = vpack.c.b16 %v4393, %v4385
        %v5114 = vpack.c.b16 %v4394, %v4386
        %v5115 = vpack.c.b16 %v4395, %v4387
        %v5116 = vpack.c.b16 %v4396, %v4388
        %v5117 = vpack.c.b16 %v4397, %v4389
        %v5118 = vpack.c.b16 %v4398, %v4390
        %v5119 = vpack.c.b16 %v4399, %v4391
        %v5120 = vpack.c.b16 %v4400, %v4392
        %v5121 = vpack.c.b16 %v4409, %v4401
        %v5122 = vpack.c.b16 %v4410, %v4402
        %v5123 = vpack.c.b16 %v4411, %v4403
        %v5124 = vpack.c.b16 %v4412, %v4404
        %v5125 = vpack.c.b16 %v4413, %v4405
        %v5126 = vpack.c.b16 %v4414, %v4406
        %v5127 = vpack.c.b16 %v4415, %v4407
        %v5128 = vpack.c.b16 %v4416, %v4408
        %v5129 = vpack.c.b16 %v4425, %v4417
        %v5130 = vpack.c.b16 %v4426, %v4418
        %v5131 = vpack.c.b16 %v4427, %v4419
        %v5132 = vpack.c.b16 %v4428, %v4420
        %v5133 = vpack.c.b16 %v4429, %v4421
        %v5134 = vpack.c.b16 %v4430, %v4422
        %v5135 = vpack.c.b16 %v4431, %v4423
        %v5136 = vpack.c.b16 %v4432, %v4424
        %v5137 = vpack.c.b16 %v4441, %v4433
        %v5138 = vpack.c.b16 %v4442, %v4434
        %v5139 = vpack.c.b16 %v4443, %v4435
        %v5140 = vpack.c.b16 %v4444, %v4436
        %v5141 = vpack.c.b16 %v4445, %v4437
        %v5142 = vpack.c.b16 %v4446, %v4438
        %v5143 = vpack.c.b16 %v4447, %v4439
        %v5144 = vpack.c.b16 %v4448, %v4440
        %v5145 = vpack.c.b16 %v4457, %v4449
        %v5146 = vpack.c.b16 %v4458, %v4450
        %v5147 = vpack.c.b16 %v4459, %v4451
        %v5148 = vpack.c.b16 %v4460, %v4452
        %v5149 = vpack.c.b16 %v4461, %v4453
        %v5150 = vpack.c.b16 %v4462, %v4454
        %v5151 = vpack.c.b16 %v4463, %v4455
        %v5152 = vpack.c.b16 %v4464, %v4456
        %v5153 = vpack.c.b16 %v4473, %v4465
        %v5154 = vpack.c.b16 %v4474, %v4466
        %v5155 = vpack.c.b16 %v4475, %v4467
        %v5156 = vpack.c.b16 %v4476, %v4468
        %v5157 = vpack.c.b16 %v4477, %v4469
        %v5158 = vpack.c.b16 %v4478, %v4470
        %v5159 = vpack.c.b16 %v4479, %v4471
        %v5160 = vpack.c.b16 %v4480, %v4472
        %v5161 = vpack.c.b16 %v4489, %v4481
        %v5162 = vpack.c.b16 %v4490, %v4482
        %v5163 = vpack.c.b16 %v4491, %v4483
        %v5164 = vpack.c.b16 %v4492, %v4484
        %v5165 = vpack.c.b16 %v4493, %v4485
        %v5166 = vpack.c.b16 %v4494, %v4486
        %v5167 = vpack.c.b16 %v4495, %v4487
        %v5168 = vpack.c.b16 %v4496, %v4488
        %v5169 = vpack.c.b16 %v4505, %v4497
        %v5170 = vpack.c.b16 %v4506, %v4498
        %v5171 = vpack.c.b16 %v4507, %v4499
        %v5172 = vpack.c.b16 %v4508, %v4500
        %v5173 = vpack.c.b16 %v4509, %v4501
        %v5174 = vpack.c.b16 %v4510, %v4502
        %v5175 = vpack.c.b16 %v4511, %v4503
        %v5176 = vpack.c.b16 %v4512, %v4504
        %v5177 = vpack.c.b16 %v4521, %v4513
        %v5178 = vpack.c.b16 %v4522, %v4514
        %v5179 = vpack.c.b16 %v4523, %v4515
        %v5180 = vpack.c.b16 %v4524, %v4516
        %v5181 = vpack.c.b16 %v4525, %v4517
        %v5182 = vpack.c.b16 %v4526, %v4518
        %v5183 = vpack.c.b16 %v4527, %v4519
        %v5184 = vpack.c.b16 %v4528, %v4520
        %v5185 = vpack.c.b16 %v4537, %v4529
        %v5186 = vpack.c.b16 %v4538, %v4530
        %v5187 = vpack.c.b16 %v4539, %v4531
        %v5188 = vpack.c.b16 %v4540, %v4532
        %v5189 = vpack.c.b16 %v4541, %v4533
        %v5190 = vpack.c.b16 %v4542, %v4534
        %v5191 = vpack.c.b16 %v4543, %v4535
        %v5192 = vpack.c.b16 %v4544, %v4536
        %v5193 = vpack.c.b16 %v4553, %v4545
        %v5194 = vpack.c.b16 %v4554, %v4546
        %v5195 = vpack.c.b16 %v4555, %v4547
        %v5196 = vpack.c.b16 %v4556, %v4548
        %v5197 = vpack.c.b16 %v4557, %v4549
        %v5198 = vpack.c.b16 %v4558, %v4550
        %v5199 = vpack.c.b16 %v4559, %v4551
        %v5200 = vpack.c.b16 %v4560, %v4552
        %v5201 = vpack.c.b16 %v4569, %v4561
        %v5202 = vpack.c.b16 %v4570, %v4562
        %v5203 = vpack.c.b16 %v4571, %v4563
        %v5204 = vpack.c.b16 %v4572, %v4564
        %v5205 = vpack.c.b16 %v4573, %v4565
        %v5206 = vpack.c.b16 %v4574, %v4566
        %v5207 = vpack.c.b16 %v4575, %v4567
        %v5208 = vpack.c.b16 %v4576, %v4568
        %v5209 = vpack.c.b16 %v4585, %v4577
        %v5210 = vpack.c.b16 %v4586, %v4578
        %v5211 = vpack.c.b16 %v4587, %v4579
        %v5212 = vpack.c.b16 %v4588, %v4580
        %v5213 = vpack.c.b16 %v4589, %v4581
        %v5214 = vpack.c.b16 %v4590, %v4582
        %v5215 = vpack.c.b16 %v4591, %v4583
        %v5216 = vpack.c.b16 %v4592, %v4584
        %v5217 = vpack.c.b16 %v4601, %v4593
        %v5218 = vpack.c.b16 %v4602, %v4594
        %v5219 = vpack.c.b16 %v4603, %v4595
        %v5220 = vpack.c.b16 %v4604, %v4596
        %v5221 = vpack.c.b16 %v4605, %v4597
        %v5222 = vpack.c.b16 %v4606, %v4598
        %v5223 = vpack.c.b16 %v4607, %v4599
        %v5224 = vpack.c.b16 %v4608, %v4600
        %v5225 = vpack.c.b16 %v4617, %v4609
        %v5226 = vpack.c.b16 %v4618, %v4610
        %v5227 = vpack.c.b16 %v4619, %v4611
        %v5228 = vpack.c.b16 %v4620, %v4612
        %v5229 = vpack.c.b16 %v4621, %v4613
        %v5230 = vpack.c.b16 %v4622, %v4614
        %v5231 = vpack.c.b16 %v4623, %v4615
        %v5232 = vpack.c.b16 %v4624, %v4616
        %v5233 = vpack.c.b16 %v4633, %v4625
        %v5234 = vpack.c.b16 %v4634, %v4626
        %v5235 = vpack.c.b16 %v4635, %v4627
        %v5236 = vpack.c.b16 %v4636, %v4628
        %v5237 = vpack.c.b16 %v4637, %v4629
        %v5238 = vpack.c.b16 %v4638, %v4630
        %v5239 = vpack.c.b16 %v4639, %v4631
        %v5240 = vpack.c.b16 %v4640, %v4632
        %v5241 = vpack.c.b16 %v4649, %v4641
        %v5242 = vpack.c.b16 %v4650, %v4642
        %v5243 = vpack.c.b16 %v4651, %v4643
        %v5244 = vpack.c.b16 %v4652, %v4644
        %v5245 = vpack.c.b16 %v4653, %v4645
        %v5246 = vpack.c.b16 %v4654, %v4646
        %v5247 = vpack.c.b16 %v4655, %v4647
        %v5248 = vpack.c.b16 %v4656, %v4648
        %v5249 = vpack.c.b16 %v4665, %v4657
        %v5250 = vpack.c.b16 %v4666, %v4658
        %v5251 = vpack.c.b16 %v4667, %v4659
        %v5252 = vpack.c.b16 %v4668, %v4660
        %v5253 = vpack.c.b16 %v4669, %v4661
        %v5254 = vpack.c.b16 %v4670, %v4662
        %v5255 = vpack.c.b16 %v4671, %v4663
        %v5256 = vpack.c.b16 %v4672, %v4664
        %v5257 = vpack.c.b16 %v4681, %v4673
        %v5258 = vpack.c.b16 %v4682, %v4674
        %v5259 = vpack.c.b16 %v4683, %v4675
        %v5260 = vpack.c.b16 %v4684, %v4676
        %v5261 = vpack.c.b16 %v4685, %v4677
        %v5262 = vpack.c.b16 %v4686, %v4678
        %v5263 = vpack.c.b16 %v4687, %v4679
        %v5264 = vpack.c.b16 %v4688, %v4680
        %v5265 = vpack.c.b16 %v4697, %v4689
        %v5266 = vpack.c.b16 %v4698, %v4690
        %v5267 = vpack.c.b16 %v4699, %v4691
        %v5268 = vpack.c.b16 %v4700, %v4692
        %v5269 = vpack.c.b16 %v4701, %v4693
        %v5270 = vpack.c.b16 %v4702, %v4694
        %v5271 = vpack.c.b16 %v4703, %v4695
        %v5272 = vpack.c.b16 %v4704, %v4696
        %v5273 = vpack.c.b16 %v4713, %v4705
        %v5274 = vpack.c.b16 %v4714, %v4706
        %v5275 = vpack.c.b16 %v4715, %v4707
        %v5276 = vpack.c.b16 %v4716, %v4708
        %v5277 = vpack.c.b16 %v4717, %v4709
        %v5278 = vpack.c.b16 %v4718, %v4710
        %v5279 = vpack.c.b16 %v4719, %v4711
        %v5280 = vpack.c.b16 %v4720, %v4712
        %v5281 = vpack.c.b16 %v4729, %v4721
        %v5282 = vpack.c.b16 %v4730, %v4722
        %v5283 = vpack.c.b16 %v4731, %v4723
        %v5284 = vpack.c.b16 %v4732, %v4724
        %v5285 = vpack.c.b16 %v4733, %v4725
        %v5286 = vpack.c.b16 %v4734, %v4726
        %v5287 = vpack.c.b16 %v4735, %v4727
        %v5288 = vpack.c.b16 %v4736, %v4728
        %v5289 = vpack.c.b16 %v4745, %v4737
        %v5290 = vpack.c.b16 %v4746, %v4738
        %v5291 = vpack.c.b16 %v4747, %v4739
        %v5292 = vpack.c.b16 %v4748, %v4740
        %v5293 = vpack.c.b16 %v4749, %v4741
        %v5294 = vpack.c.b16 %v4750, %v4742
        %v5295 = vpack.c.b16 %v4751, %v4743
        %v5296 = vpack.c.b16 %v4752, %v4744
        %v5297 = vpack.c.b16 %v4761, %v4753
        %v5298 = vpack.c.b16 %v4762, %v4754
        %v5299 = vpack.c.b16 %v4763, %v4755
        %v5300 = vpack.c.b16 %v4764, %v4756
        %v5301 = vpack.c.b16 %v4765, %v4757
        %v5302 = vpack.c.b16 %v4766, %v4758
        %v5303 = vpack.c.b16 %v4767, %v4759
        %v5304 = vpack.c.b16 %v4768, %v4760
        %v5305 = vpack.c.b16 %v4777, %v4769
        %v5306 = vpack.c.b16 %v4778, %v4770
        %v5307 = vpack.c.b16 %v4779, %v4771
        %v5308 = vpack.c.b16 %v4780, %v4772
        %v5309 = vpack.c.b16 %v4781, %v4773
        %v5310 = vpack.c.b16 %v4782, %v4774
        %v5311 = vpack.c.b16 %v4783, %v4775
        %v5312 = vpack.c.b16 %v4784, %v4776
        %v5313 = vpack.c.b16 %v4793, %v4785
        %v5314 = vpack.c.b16 %v4794, %v4786
        %v5315 = vpack.c.b16 %v4795, %v4787
        %v5316 = vpack.c.b16 %v4796, %v4788
        %v5317 = vpack.c.b16 %v4797, %v4789
        %v5318 = vpack.c.b16 %v4798, %v4790
        %v5319 = vpack.c.b16 %v4799, %v4791
        %v5320 = vpack.c.b16 %v4800, %v4792
        %v5321 = vpack.c.b16 %v4809, %v4801
        %v5322 = vpack.c.b16 %v4810, %v4802
        %v5323 = vpack.c.b16 %v4811, %v4803
        %v5324 = vpack.c.b16 %v4812, %v4804
        %v5325 = vpack.c.b16 %v4813, %v4805
        %v5326 = vpack.c.b16 %v4814, %v4806
        %v5327 = vpack.c.b16 %v4815, %v4807
        %v5328 = vpack.c.b16 %v4816, %v4808
        %v5329 = vpack.c.b16 %v4825, %v4817
        %v5330 = vpack.c.b16 %v4826, %v4818
        %v5331 = vpack.c.b16 %v4827, %v4819
        %v5332 = vpack.c.b16 %v4828, %v4820
        %v5333 = vpack.c.b16 %v4829, %v4821
        %v5334 = vpack.c.b16 %v4830, %v4822
        %v5335 = vpack.c.b16 %v4831, %v4823
        %v5336 = vpack.c.b16 %v4832, %v4824
        %v5337 = vpack.c.b16 %v4841, %v4833
        %v5338 = vpack.c.b16 %v4842, %v4834
        %v5339 = vpack.c.b16 %v4843, %v4835
        %v5340 = vpack.c.b16 %v4844, %v4836
        %v5341 = vpack.c.b16 %v4845, %v4837
        %v5342 = vpack.c.b16 %v4846, %v4838
        %v5343 = vpack.c.b16 %v4847, %v4839
        %v5344 = vpack.c.b16 %v4848, %v4840
        %v5345 = vpack.c.b16 %v4857, %v4849
        %v5346 = vpack.c.b16 %v4858, %v4850
        %v5347 = vpack.c.b16 %v4859, %v4851
        %v5348 = vpack.c.b16 %v4860, %v4852
        %v5349 = vpack.c.b16 %v4861, %v4853
        %v5350 = vpack.c.b16 %v4862, %v4854
        %v5351 = vpack.c.b16 %v4863, %v4855
        %v5352 = vpack.c.b16 %v4864, %v4856
        %v5353 = vpack.c.b16 %v4873, %v4865
        %v5354 = vpack.c.b16 %v4874, %v4866
        %v5355 = vpack.c.b16 %v4875, %v4867
        %v5356 = vpack.c.b16 %v4876, %v4868
        %v5357 = vpack.c.b16 %v4877, %v4869
        %v5358 = vpack.c.b16 %v4878, %v4870
        %v5359 = vpack.c.b16 %v4879, %v4871
        %v5360 = vpack.c.b16 %v4880, %v4872
        %v5361 = vpack.c.b16 %v4889, %v4881
        %v5362 = vpack.c.b16 %v4890, %v4882
        %v5363 = vpack.c.b16 %v4891, %v4883
        %v5364 = vpack.c.b16 %v4892, %v4884
        %v5365 = vpack.c.b16 %v4893, %v4885
        %v5366 = vpack.c.b16 %v4894, %v4886
        %v5367 = vpack.c.b16 %v4895, %v4887
        %v5368 = vpack.c.b16 %v4896, %v4888
        %v5369 = vpack.c.b16 %v4905, %v4897
        %v5370 = vpack.c.b16 %v4906, %v4898
        %v5371 = vpack.c.b16 %v4907, %v4899
        %v5372 = vpack.c.b16 %v4908, %v4900
        %v5373 = vpack.c.b16 %v4909, %v4901
        %v5374 = vpack.c.b16 %v4910, %v4902
        %v5375 = vpack.c.b16 %v4911, %v4903
        %v5376 = vpack.c.b16 %v4912, %v4904
        %v5377 = vpack.c.b16 %v4921, %v4913
        %v5378 = vpack.c.b16 %v4922, %v4914
        %v5379 = vpack.c.b16 %v4923, %v4915
        %v5380 = vpack.c.b16 %v4924, %v4916
        %v5381 = vpack.c.b16 %v4925, %v4917
        %v5382 = vpack.c.b16 %v4926, %v4918
        %v5383 = vpack.c.b16 %v4927, %v4919
        %v5384 = vpack.c.b16 %v4928, %v4920
        %v5385 = vpack.c.b16 %v4937, %v4929
        %v5386 = vpack.c.b16 %v4938, %v4930
        %v5387 = vpack.c.b16 %v4939, %v4931
        %v5388 = vpack.c.b16 %v4940, %v4932
        %v5389 = vpack.c.b16 %v4941, %v4933
        %v5390 = vpack.c.b16 %v4942, %v4934
        %v5391 = vpack.c.b16 %v4943, %v4935
        %v5392 = vpack.c.b16 %v4944, %v4936
        %v5393 = vpack.c.b16 %v4953, %v4945
        %v5394 = vpack.c.b16 %v4954, %v4946
        %v5395 = vpack.c.b16 %v4955, %v4947
        %v5396 = vpack.c.b16 %v4956, %v4948
        %v5397 = vpack.c.b16 %v4957, %v4949
        %v5398 = vpack.c.b16 %v4958, %v4950
        %v5399 = vpack.c.b16 %v4959, %v4951
        %v5400 = vpack.c.b16 %v4960, %v4952
        %v5401 = vpack.c.b16 %v4969, %v4961
        %v5402 = vpack.c.b16 %v4970, %v4962
        %v5403 = vpack.c.b16 %v4971, %v4963
        %v5404 = vpack.c.b16 %v4972, %v4964
        %v5405 = vpack.c.b16 %v4973, %v4965
        %v5406 = vpack.c.b16 %v4974, %v4966
        %v5407 = vpack.c.b16 %v4975, %v4967
        %v5408 = vpack.c.b16 %v4976, %v4968
        %v5409 = vpack.c.b16 %v4985, %v4977
        %v5410 = vpack.c.b16 %v4986, %v4978
        %v5411 = vpack.c.b16 %v4987, %v4979
        %v5412 = vpack.c.b16 %v4988, %v4980
        %v5413 = vpack.c.b16 %v4989, %v4981
        %v5414 = vpack.c.b16 %v4990, %v4982
        %v5415 = vpack.c.b16 %v4991, %v4983
        %v5416 = vpack.c.b16 %v4992, %v4984
        %v5417 = vpack.c.b16 %v5001, %v4993
        %v5418 = vpack.c.b16 %v5002, %v4994
        %v5419 = vpack.c.b16 %v5003, %v4995
        %v5420 = vpack.c.b16 %v5004, %v4996
        %v5421 = vpack.c.b16 %v5005, %v4997
        %v5422 = vpack.c.b16 %v5006, %v4998
        %v5423 = vpack.c.b16 %v5007, %v4999
        %v5424 = vpack.c.b16 %v5008, %v5000
        %v5425 = vpack.c.b16 %v5017, %v5009
        %v5426 = vpack.c.b16 %v5018, %v5010
        %v5427 = vpack.c.b16 %v5019, %v5011
        %v5428 = vpack.c.b16 %v5020, %v5012
        %v5429 = vpack.c.b16 %v5021, %v5013
        %v5430 = vpack.c.b16 %v5022, %v5014
        %v5431 = vpack.c.b16 %v5023, %v5015
        %v5432 = vpack.c.b16 %v5024, %v5016
        %v5433 = vpack.c.b16 %v5033, %v5025
        %v5434 = vpack.c.b16 %v5034, %v5026
        %v5435 = vpack.c.b16 %v5035, %v5027
        %v5436 = vpack.c.b16 %v5036, %v5028
        %v5437 = vpack.c.b16 %v5037, %v5029
        %v5438 = vpack.c.b16 %v5038, %v5030
        %v5439 = vpack.c.b16 %v5039, %v5031
        %v5440 = vpack.c.b16 %v5040, %v5032
        %v5441 = vpack.c.b16 %v5049, %v5041
        %v5442 = vpack.c.b16 %v5050, %v5042
        %v5443 = vpack.c.b16 %v5051, %v5043
        %v5444 = vpack.c.b16 %v5052, %v5044
        %v5445 = vpack.c.b16 %v5053, %v5045
        %v5446 = vpack.c.b16 %v5054, %v5046
        %v5447 = vpack.c.b16 %v5055, %v5047
        %v5448 = vpack.c.b16 %v5056, %v5048
        %v5449 = vpack.c.b16 %v5065, %v5057
        %v5450 = vpack.c.b16 %v5066, %v5058
        %v5451 = vpack.c.b16 %v5067, %v5059
        %v5452 = vpack.c.b16 %v5068, %v5060
        %v5453 = vpack.c.b16 %v5069, %v5061
        %v5454 = vpack.c.b16 %v5070, %v5062
        %v5455 = vpack.c.b16 %v5071, %v5063
        %v5456 = vpack.c.b16 %v5072, %v5064
        %5841 = vmatprep.subr.bf16.mxu0 %v5130
        %5842 = vmatpush1.bf16.msra.mxu0 %v5129
        %5843 = vmatprep.subr.bf16.mxu0 %v5122
        %5844 = vmatpush1.bf16.msra.mxu0 %v5121
        %5845 = vmatprep.subr.bf16.mxu0 %v5114
        %5846 = vmatpush1.bf16.msra.mxu0 %v5113
        %5847 = vmatprep.subr.bf16.mxu0 %v5106
        %5848 = vmatpush1.bf16.msra.mxu0 %v5105
        %5849 = vmatprep.subr.bf16.mxu0 %v5098
        %5850 = vmatpush1.bf16.msra.mxu0 %v5097
        %5851 = vmatprep.subr.bf16.mxu0 %v5090
        %5852 = vmatpush1.bf16.msra.mxu0 %v5089
        %5853 = vmatprep.subr.bf16.mxu0 %v5082
        %5854 = vmatpush1.bf16.msra.mxu0 %v5081
        %5855 = vmatprep.subr.bf16.mxu0 %v5074
        %5856 = vmatpush1.bf16.msra.mxu0 %v5073
        %5857 = vmatprep.subr.bf16.mxu0 %v5194
        %5858 = vmatpush2.bf16.msra.mxu0 %v5193
        %5859 = vmatprep.subr.bf16.mxu0 %v5186
        %5860 = vmatpush2.bf16.msra.mxu0 %v5185
        %5861 = vmatprep.subr.bf16.mxu0 %v5178
        %5862 = vmatpush2.bf16.msra.mxu0 %v5177
        %5863 = vmatprep.subr.bf16.mxu0 %v5170
        %5864 = vmatpush2.bf16.msra.mxu0 %v5169
        %5865 = vmatprep.subr.bf16.mxu0 %v5162
        %5866 = vmatpush2.bf16.msra.mxu0 %v5161
        %5867 = vmatprep.subr.bf16.mxu0 %v5154
        %5868 = vmatpush2.bf16.msra.mxu0 %v5153
        %5869 = vmatprep.subr.bf16.mxu0 %v5146
        %5870 = vmatpush2.bf16.msra.mxu0 %v5145
        %5871 = vmatprep.subr.bf16.mxu0 %v5138
        %5872 = vmatpush2.bf16.msra.mxu0 %v5137
        %5873 = vmatprep.mubr.bf16.mxu0 %v3905
        %5874 = vmatmul.mubr.bf16.gmra.mxu0 %v3897
        %v5875 = vpop.f32.mrf.mxu0
        %v5876 = vadd.f32 0.0, %v5875
        %v5877 = vpop.f32.mrf.mxu0
        %v5878 = vadd.f32 0.0, %v5877
        %v5879 = vpop.f32.mrf.mxu0
        %v5880 = vpop.f32.mrf.mxu0
        %5881 = vdwg.mxu0
        %5882 = vmatprep.subr.bf16.mxu0 %v5258
        %5883 = vmatpush1.bf16.msra.mxu0 %v5257
        %5884 = vmatprep.subr.bf16.mxu0 %v5250
        %5885 = vmatpush1.bf16.msra.mxu0 %v5249
        %5886 = vmatprep.subr.bf16.mxu0 %v5242
        %5887 = vmatpush1.bf16.msra.mxu0 %v5241
        %5888 = vmatprep.subr.bf16.mxu0 %v5234
        %5889 = vmatpush1.bf16.msra.mxu0 %v5233
        %5890 = vmatprep.subr.bf16.mxu0 %v5226
        %5891 = vmatpush1.bf16.msra.mxu0 %v5225
        %5892 = vmatprep.subr.bf16.mxu0 %v5218
        %5893 = vmatpush1.bf16.msra.mxu0 %v5217
        %5894 = vmatprep.subr.bf16.mxu0 %v5210
        %5895 = vmatpush1.bf16.msra.mxu0 %v5209
        %5896 = vmatprep.subr.bf16.mxu0 %v5202
        %5897 = vmatpush1.bf16.msra.mxu0 %v5201
        %5898 = vmatprep.subr.bf16.mxu0 %v5322
        %5899 = vmatpush2.bf16.msra.mxu0 %v5321
        %5900 = vmatprep.subr.bf16.mxu0 %v5314
        %5901 = vmatpush2.bf16.msra.mxu0 %v5313
        %5902 = vmatprep.subr.bf16.mxu0 %v5306
        %5903 = vmatpush2.bf16.msra.mxu0 %v5305
        %5904 = vmatprep.subr.bf16.mxu0 %v5298
        %5905 = vmatpush2.bf16.msra.mxu0 %v5297
        %5906 = vmatprep.subr.bf16.mxu0 %v5290
        %5907 = vmatpush2.bf16.msra.mxu0 %v5289
        %5908 = vmatprep.subr.bf16.mxu0 %v5282
        %5909 = vmatpush2.bf16.msra.mxu0 %v5281
        %5910 = vmatprep.subr.bf16.mxu0 %v5274
        %5911 = vmatpush2.bf16.msra.mxu0 %v5273
        %5912 = vmatprep.subr.bf16.mxu0 %v5266
        %5913 = vmatpush2.bf16.msra.mxu0 %v5265
        %5914 = vmatprep.mubr.bf16.mxu0 %v3906
        %5915 = vmatmul.mubr.bf16.gmra.mxu0 %v3904
        %v5916 = vpop.f32.mrf.mxu0
        %v5917 = vadd.f32 %v5876, %v5916
        %v5918 = vpop.f32.mrf.mxu0
        %v5919 = vadd.f32 %v5878, %v5918
        %v5920 = vpop.f32.mrf.mxu0
        %v5921 = vpop.f32.mrf.mxu0
        %5922 = vdwg.mxu0
        %5923 = vmatprep.subr.bf16.mxu0 %v5386
        %5924 = vmatpush1.bf16.msra.mxu0 %v5385
        %5925 = vmatprep.subr.bf16.mxu0 %v5378
        %5926 = vmatpush1.bf16.msra.mxu0 %v5377
        %5927 = vmatprep.subr.bf16.mxu0 %v5370
        %5928 = vmatpush1.bf16.msra.mxu0 %v5369
        %5929 = vmatprep.subr.bf16.mxu0 %v5362
        %5930 = vmatpush1.bf16.msra.mxu0 %v5361
        %5931 = vmatprep.subr.bf16.mxu0 %v5354
        %5932 = vmatpush1.bf16.msra.mxu0 %v5353
        %5933 = vmatprep.subr.bf16.mxu0 %v5346
        %5934 = vmatpush1.bf16.msra.mxu0 %v5345
        %5935 = vmatprep.subr.bf16.mxu0 %v5338
        %5936 = vmatpush1.bf16.msra.mxu0 %v5337
        %5937 = vmatprep.subr.bf16.mxu0 %v5330
        %5938 = vmatpush1.bf16.msra.mxu0 %v5329
        %5939 = vmatprep.subr.bf16.mxu0 %v5450
        %5940 = vmatpush2.bf16.msra.mxu0 %v5449
        %5941 = vmatprep.subr.bf16.mxu0 %v5442
        %5942 = vmatpush2.bf16.msra.mxu0 %v5441
        %5943 = vmatprep.subr.bf16.mxu0 %v5434
        %5944 = vmatpush2.bf16.msra.mxu0 %v5433
        %5945 = vmatprep.subr.bf16.mxu0 %v5426
        %5946 = vmatpush2.bf16.msra.mxu0 %v5425
        %5947 = vmatprep.subr.bf16.mxu0 %v5418
        %5948 = vmatpush2.bf16.msra.mxu0 %v5417
        %5949 = vmatprep.subr.bf16.mxu0 %v5410
        %5950 = vmatpush2.bf16.msra.mxu0 %v5409
        %5951 = vmatprep.subr.bf16.mxu0 %v5402
        %5952 = vmatpush2.bf16.msra.mxu0 %v5401
        %5953 = vmatprep.subr.bf16.mxu0 %v5394
        %5954 = vmatpush2.bf16.msra.mxu0 %v5393
        %5955 = vmatprep.mubr.bf16.mxu0 %v3914
        %5956 = vmatmul.mubr.bf16.gmra.mxu0 %v3913
        %v5957 = vpop.f32.mrf.mxu0
        %v5958 = vadd.f32 %v5917, %v5957
        %v5959 = vpop.f32.mrf.mxu0
        %v5960 = vadd.f32 %v5919, %v5959
        %v5961 = vpop.f32.mrf.mxu0
        %v5962 = vpop.f32.mrf.mxu0
        %5963 = vdwg.mxu0
        %5964 = vmatprep.subr.bf16.mxu0 %v5132
        %5965 = vmatpush1.bf16.msra.mxu0 %v5131
        %5966 = vmatprep.subr.bf16.mxu0 %v5124
        %5967 = vmatpush1.bf16.msra.mxu0 %v5123
        %5968 = vmatprep.subr.bf16.mxu0 %v5116
        %5969 = vmatpush1.bf16.msra.mxu0 %v5115
        %5970 = vmatprep.subr.bf16.mxu0 %v5108
        %5971 = vmatpush1.bf16.msra.mxu0 %v5107
        %5972 = vmatprep.subr.bf16.mxu0 %v5100
        %5973 = vmatpush1.bf16.msra.mxu0 %v5099
        %5974 = vmatprep.subr.bf16.mxu0 %v5092
        %5975 = vmatpush1.bf16.msra.mxu0 %v5091
        %5976 = vmatprep.subr.bf16.mxu0 %v5084
        %5977 = vmatpush1.bf16.msra.mxu0 %v5083
        %5978 = vmatprep.subr.bf16.mxu0 %v5076
        %5979 = vmatpush1.bf16.msra.mxu0 %v5075
        %5980 = vmatprep.subr.bf16.mxu0 %v5196
        %5981 = vmatpush2.bf16.msra.mxu0 %v5195
        %5982 = vmatprep.subr.bf16.mxu0 %v5188
        %5983 = vmatpush2.bf16.msra.mxu0 %v5187
        %5984 = vmatprep.subr.bf16.mxu0 %v5180
        %5985 = vmatpush2.bf16.msra.mxu0 %v5179
        %5986 = vmatprep.subr.bf16.mxu0 %v5172
        %5987 = vmatpush2.bf16.msra.mxu0 %v5171
        %5988 = vmatprep.subr.bf16.mxu0 %v5164
        %5989 = vmatpush2.bf16.msra.mxu0 %v5163
        %5990 = vmatprep.subr.bf16.mxu0 %v5156
        %5991 = vmatpush2.bf16.msra.mxu0 %v5155
        %5992 = vmatprep.subr.bf16.mxu0 %v5148
        %5993 = vmatpush2.bf16.msra.mxu0 %v5147
        %5994 = vmatprep.subr.bf16.mxu0 %v5140
        %5995 = vmatpush2.bf16.msra.mxu0 %v5139
        %5996 = vmatprep.mubr.bf16.mxu0 %v3905
        %5997 = vmatmul.mubr.bf16.gmra.mxu0 %v3897
        %v5998 = vpop.f32.mrf.mxu0
        %v5999 = vadd.f32 0.0, %v5998
        %v6000 = vpop.f32.mrf.mxu0
        %v6001 = vadd.f32 0.0, %v6000
        %v6002 = vpop.f32.mrf.mxu0
        %v6003 = vpop.f32.mrf.mxu0
        %6004 = vdwg.mxu0
        %6005 = vmatprep.subr.bf16.mxu0 %v5260
        %6006 = vmatpush1.bf16.msra.mxu0 %v5259
        %6007 = vmatprep.subr.bf16.mxu0 %v5252
        %6008 = vmatpush1.bf16.msra.mxu0 %v5251
        %6009 = vmatprep.subr.bf16.mxu0 %v5244
        %6010 = vmatpush1.bf16.msra.mxu0 %v5243
        %6011 = vmatprep.subr.bf16.mxu0 %v5236
        %6012 = vmatpush1.bf16.msra.mxu0 %v5235
        %6013 = vmatprep.subr.bf16.mxu0 %v5228
        %6014 = vmatpush1.bf16.msra.mxu0 %v5227
        %6015 = vmatprep.subr.bf16.mxu0 %v5220
        %6016 = vmatpush1.bf16.msra.mxu0 %v5219
        %6017 = vmatprep.subr.bf16.mxu0 %v5212
        %6018 = vmatpush1.bf16.msra.mxu0 %v5211
        %6019 = vmatprep.subr.bf16.mxu0 %v5204
        %6020 = vmatpush1.bf16.msra.mxu0 %v5203
        %6021 = vmatprep.subr.bf16.mxu0 %v5324
        %6022 = vmatpush2.bf16.msra.mxu0 %v5323
        %6023 = vmatprep.subr.bf16.mxu0 %v5316
        %6024 = vmatpush2.bf16.msra.mxu0 %v5315
        %6025 = vmatprep.subr.bf16.mxu0 %v5308
        %6026 = vmatpush2.bf16.msra.mxu0 %v5307
        %6027 = vmatprep.subr.bf16.mxu0 %v5300
        %6028 = vmatpush2.bf16.msra.mxu0 %v5299
        %6029 = vmatprep.subr.bf16.mxu0 %v5292
        %6030 = vmatpush2.bf16.msra.mxu0 %v5291
        %6031 = vmatprep.subr.bf16.mxu0 %v5284
        %6032 = vmatpush2.bf16.msra.mxu0 %v5283
        %6033 = vmatprep.subr.bf16.mxu0 %v5276
        %6034 = vmatpush2.bf16.msra.mxu0 %v5275
        %6035 = vmatprep.subr.bf16.mxu0 %v5268
        %6036 = vmatpush2.bf16.msra.mxu0 %v5267
        %6037 = vmatprep.mubr.bf16.mxu0 %v3906
        %6038 = vmatmul.mubr.bf16.gmra.mxu0 %v3904
        %v6039 = vpop.f32.mrf.mxu0
        %v6040 = vadd.f32 %v5999, %v6039
        %v6041 = vpop.f32.mrf.mxu0
        %v6042 = vadd.f32 %v6001, %v6041
        %v6043 = vpop.f32.mrf.mxu0
        %v6044 = vpop.f32.mrf.mxu0
        %6045 = vdwg.mxu0
        %6046 = vmatprep.subr.bf16.mxu0 %v5388
        %6047 = vmatpush1.bf16.msra.mxu0 %v5387
        %6048 = vmatprep.subr.bf16.mxu0 %v5380
        %6049 = vmatpush1.bf16.msra.mxu0 %v5379
        %6050 = vmatprep.subr.bf16.mxu0 %v5372
        %6051 = vmatpush1.bf16.msra.mxu0 %v5371
        %6052 = vmatprep.subr.bf16.mxu0 %v5364
        %6053 = vmatpush1.bf16.msra.mxu0 %v5363
        %6054 = vmatprep.subr.bf16.mxu0 %v5356
        %6055 = vmatpush1.bf16.msra.mxu0 %v5355
        %6056 = vmatprep.subr.bf16.mxu0 %v5348
        %6057 = vmatpush1.bf16.msra.mxu0 %v5347
        %6058 = vmatprep.subr.bf16.mxu0 %v5340
        %6059 = vmatpush1.bf16.msra.mxu0 %v5339
        %6060 = vmatprep.subr.bf16.mxu0 %v5332
        %6061 = vmatpush1.bf16.msra.mxu0 %v5331
        %6062 = vmatprep.subr.bf16.mxu0 %v5452
        %6063 = vmatpush2.bf16.msra.mxu0 %v5451
        %6064 = vmatprep.subr.bf16.mxu0 %v5444
        %6065 = vmatpush2.bf16.msra.mxu0 %v5443
        %6066 = vmatprep.subr.bf16.mxu0 %v5436
        %6067 = vmatpush2.bf16.msra.mxu0 %v5435
        %6068 = vmatprep.subr.bf16.mxu0 %v5428
        %6069 = vmatpush2.bf16.msra.mxu0 %v5427
        %6070 = vmatprep.subr.bf16.mxu0 %v5420
        %6071 = vmatpush2.bf16.msra.mxu0 %v5419
        %6072 = vmatprep.subr.bf16.mxu0 %v5412
        %6073 = vmatpush2.bf16.msra.mxu0 %v5411
        %6074 = vmatprep.subr.bf16.mxu0 %v5404
        %6075 = vmatpush2.bf16.msra.mxu0 %v5403
        %6076 = vmatprep.subr.bf16.mxu0 %v5396
        %6077 = vmatpush2.bf16.msra.mxu0 %v5395
        %6078 = vmatprep.mubr.bf16.mxu0 %v3914
        %6079 = vmatmul.mubr.bf16.gmra.mxu0 %v3913
        %v6080 = vpop.f32.mrf.mxu0
        %v6081 = vadd.f32 %v6040, %v6080
        %v6082 = vpop.f32.mrf.mxu0
        %v6083 = vadd.f32 %v6042, %v6082
        %v6084 = vpop.f32.mrf.mxu0
        %v6085 = vpop.f32.mrf.mxu0
        %6086 = vdwg.mxu0
        %6087 = vmatprep.subr.bf16.mxu0 %v5134
        %6088 = vmatpush1.bf16.msra.mxu0 %v5133
        %6089 = vmatprep.subr.bf16.mxu0 %v5126
        %6090 = vmatpush1.bf16.msra.mxu0 %v5125
        %6091 = vmatprep.subr.bf16.mxu0 %v5118
        %6092 = vmatpush1.bf16.msra.mxu0 %v5117
        %6093 = vmatprep.subr.bf16.mxu0 %v5110
        %6094 = vmatpush1.bf16.msra.mxu0 %v5109
        %6095 = vmatprep.subr.bf16.mxu0 %v5102
        %6096 = vmatpush1.bf16.msra.mxu0 %v5101
        %6097 = vmatprep.subr.bf16.mxu0 %v5094
        %6098 = vmatpush1.bf16.msra.mxu0 %v5093
        %6099 = vmatprep.subr.bf16.mxu0 %v5086
        %6100 = vmatpush1.bf16.msra.mxu0 %v5085
        %6101 = vmatprep.subr.bf16.mxu0 %v5078
        %6102 = vmatpush1.bf16.msra.mxu0 %v5077
        %6103 = vmatprep.subr.bf16.mxu0 %v5198
        %6104 = vmatpush2.bf16.msra.mxu0 %v5197
        %6105 = vmatprep.subr.bf16.mxu0 %v5190
        %6106 = vmatpush2.bf16.msra.mxu0 %v5189
        %6107 = vmatprep.subr.bf16.mxu0 %v5182
        %6108 = vmatpush2.bf16.msra.mxu0 %v5181
        %6109 = vmatprep.subr.bf16.mxu0 %v5174
        %6110 = vmatpush2.bf16.msra.mxu0 %v5173
        %6111 = vmatprep.subr.bf16.mxu0 %v5166
        %6112 = vmatpush2.bf16.msra.mxu0 %v5165
        %6113 = vmatprep.subr.bf16.mxu0 %v5158
        %6114 = vmatpush2.bf16.msra.mxu0 %v5157
        %6115 = vmatprep.subr.bf16.mxu0 %v5150
        %6116 = vmatpush2.bf16.msra.mxu0 %v5149
        %6117 = vmatprep.subr.bf16.mxu0 %v5142
        %6118 = vmatpush2.bf16.msra.mxu0 %v5141
        %6119 = vmatprep.mubr.bf16.mxu0 %v3905
        %6120 = vmatmul.mubr.bf16.gmra.mxu0 %v3897
        %v6121 = vpop.f32.mrf.mxu0
        %v6122 = vadd.f32 0.0, %v6121
        %v6123 = vpop.f32.mrf.mxu0
        %v6124 = vadd.f32 0.0, %v6123
        %v6125 = vpop.f32.mrf.mxu0
        %v6126 = vpop.f32.mrf.mxu0
        %6127 = vdwg.mxu0
        %6128 = vmatprep.subr.bf16.mxu0 %v5262
        %6129 = vmatpush1.bf16.msra.mxu0 %v5261
        %6130 = vmatprep.subr.bf16.mxu0 %v5254
        %6131 = vmatpush1.bf16.msra.mxu0 %v5253
        %6132 = vmatprep.subr.bf16.mxu0 %v5246
        %6133 = vmatpush1.bf16.msra.mxu0 %v5245
        %6134 = vmatprep.subr.bf16.mxu0 %v5238
        %6135 = vmatpush1.bf16.msra.mxu0 %v5237
        %6136 = vmatprep.subr.bf16.mxu0 %v5230
        %6137 = vmatpush1.bf16.msra.mxu0 %v5229
        %6138 = vmatprep.subr.bf16.mxu0 %v5222
        %6139 = vmatpush1.bf16.msra.mxu0 %v5221
        %6140 = vmatprep.subr.bf16.mxu0 %v5214
        %6141 = vmatpush1.bf16.msra.mxu0 %v5213
        %6142 = vmatprep.subr.bf16.mxu0 %v5206
        %6143 = vmatpush1.bf16.msra.mxu0 %v5205
        %6144 = vmatprep.subr.bf16.mxu0 %v5326
        %6145 = vmatpush2.bf16.msra.mxu0 %v5325
        %6146 = vmatprep.subr.bf16.mxu0 %v5318
        %6147 = vmatpush2.bf16.msra.mxu0 %v5317
        %6148 = vmatprep.subr.bf16.mxu0 %v5310
        %6149 = vmatpush2.bf16.msra.mxu0 %v5309
        %6150 = vmatprep.subr.bf16.mxu0 %v5302
        %6151 = vmatpush2.bf16.msra.mxu0 %v5301
        %6152 = vmatprep.subr.bf16.mxu0 %v5294
        %6153 = vmatpush2.bf16.msra.mxu0 %v5293
        %6154 = vmatprep.subr.bf16.mxu0 %v5286
        %6155 = vmatpush2.bf16.msra.mxu0 %v5285
        %6156 = vmatprep.subr.bf16.mxu0 %v5278
        %6157 = vmatpush2.bf16.msra.mxu0 %v5277
        %6158 = vmatprep.subr.bf16.mxu0 %v5270
        %6159 = vmatpush2.bf16.msra.mxu0 %v5269
        %6160 = vmatprep.mubr.bf16.mxu0 %v3906
        %6161 = vmatmul.mubr.bf16.gmra.mxu0 %v3904
        %v6162 = vpop.f32.mrf.mxu0
        %v6163 = vadd.f32 %v6122, %v6162
        %v6164 = vpop.f32.mrf.mxu0
        %v6165 = vadd.f32 %v6124, %v6164
        %v6166 = vpop.f32.mrf.mxu0
        %v6167 = vpop.f32.mrf.mxu0
        %6168 = vdwg.mxu0
        %6169 = vmatprep.subr.bf16.mxu0 %v5390
        %6170 = vmatpush1.bf16.msra.mxu0 %v5389
        %6171 = vmatprep.subr.bf16.mxu0 %v5382
        %6172 = vmatpush1.bf16.msra.mxu0 %v5381
        %6173 = vmatprep.subr.bf16.mxu0 %v5374
        %6174 = vmatpush1.bf16.msra.mxu0 %v5373
        %6175 = vmatprep.subr.bf16.mxu0 %v5366
        %6176 = vmatpush1.bf16.msra.mxu0 %v5365
        %6177 = vmatprep.subr.bf16.mxu0 %v5358
        %6178 = vmatpush1.bf16.msra.mxu0 %v5357
        %6179 = vmatprep.subr.bf16.mxu0 %v5350
        %6180 = vmatpush1.bf16.msra.mxu0 %v5349
        %6181 = vmatprep.subr.bf16.mxu0 %v5342
        %6182 = vmatpush1.bf16.msra.mxu0 %v5341
        %6183 = vmatprep.subr.bf16.mxu0 %v5334
        %6184 = vmatpush1.bf16.msra.mxu0 %v5333
        %6185 = vmatprep.subr.bf16.mxu0 %v5454
        %6186 = vmatpush2.bf16.msra.mxu0 %v5453
        %6187 = vmatprep.subr.bf16.mxu0 %v5446
        %6188 = vmatpush2.bf16.msra.mxu0 %v5445
        %6189 = vmatprep.subr.bf16.mxu0 %v5438
        %6190 = vmatpush2.bf16.msra.mxu0 %v5437
        %6191 = vmatprep.subr.bf16.mxu0 %v5430
        %6192 = vmatpush2.bf16.msra.mxu0 %v5429
        %6193 = vmatprep.subr.bf16.mxu0 %v5422
        %6194 = vmatpush2.bf16.msra.mxu0 %v5421
        %6195 = vmatprep.subr.bf16.mxu0 %v5414
        %6196 = vmatpush2.bf16.msra.mxu0 %v5413
        %6197 = vmatprep.subr.bf16.mxu0 %v5406
        %6198 = vmatpush2.bf16.msra.mxu0 %v5405
        %6199 = vmatprep.subr.bf16.mxu0 %v5398
        %6200 = vmatpush2.bf16.msra.mxu0 %v5397
        %6201 = vmatprep.mubr.bf16.mxu0 %v3914
        %6202 = vmatmul.mubr.bf16.gmra.mxu0 %v3913
        %v6203 = vpop.f32.mrf.mxu0
        %v6204 = vadd.f32 %v6163, %v6203
        %v6205 = vpop.f32.mrf.mxu0
        %v6206 = vadd.f32 %v6165, %v6205
        %v6207 = vpop.f32.mrf.mxu0
        %v6208 = vpop.f32.mrf.mxu0
        %6209 = vdwg.mxu0
        %6210 = vmatprep.subr.bf16.mxu0 %v5136
        %6211 = vmatpush1.bf16.msra.mxu0 %v5135
        %6212 = vmatprep.subr.bf16.mxu0 %v5128
        %6213 = vmatpush1.bf16.msra.mxu0 %v5127
        %6214 = vmatprep.subr.bf16.mxu0 %v5120
        %6215 = vmatpush1.bf16.msra.mxu0 %v5119
        %6216 = vmatprep.subr.bf16.mxu0 %v5112
        %6217 = vmatpush1.bf16.msra.mxu0 %v5111
        %6218 = vmatprep.subr.bf16.mxu0 %v5104
        %6219 = vmatpush1.bf16.msra.mxu0 %v5103
        %6220 = vmatprep.subr.bf16.mxu0 %v5096
        %6221 = vmatpush1.bf16.msra.mxu0 %v5095
        %6222 = vmatprep.subr.bf16.mxu0 %v5088
        %6223 = vmatpush1.bf16.msra.mxu0 %v5087
        %6224 = vmatprep.subr.bf16.mxu0 %v5080
        %6225 = vmatpush1.bf16.msra.mxu0 %v5079
        %6226 = vmatprep.subr.bf16.mxu0 %v5200
        %6227 = vmatpush2.bf16.msra.mxu0 %v5199
        %6228 = vmatprep.subr.bf16.mxu0 %v5192
        %6229 = vmatpush2.bf16.msra.mxu0 %v5191
        %6230 = vmatprep.subr.bf16.mxu0 %v5184
        %6231 = vmatpush2.bf16.msra.mxu0 %v5183
        %6232 = vmatprep.subr.bf16.mxu0 %v5176
        %6233 = vmatpush2.bf16.msra.mxu0 %v5175
        %6234 = vmatprep.subr.bf16.mxu0 %v5168
        %6235 = vmatpush2.bf16.msra.mxu0 %v5167
        %6236 = vmatprep.subr.bf16.mxu0 %v5160
        %6237 = vmatpush2.bf16.msra.mxu0 %v5159
        %6238 = vmatprep.subr.bf16.mxu0 %v5152
        %6239 = vmatpush2.bf16.msra.mxu0 %v5151
        %6240 = vmatprep.subr.bf16.mxu0 %v5144
        %6241 = vmatpush2.bf16.msra.mxu0 %v5143
        %6242 = vmatprep.mubr.bf16.mxu0 %v3905
        %6243 = vmatmul.mubr.bf16.gmra.mxu0 %v3897
        %v6244 = vpop.f32.mrf.mxu0
        %v6245 = vadd.f32 0.0, %v6244
        %v6246 = vpop.f32.mrf.mxu0
        %v6247 = vadd.f32 0.0, %v6246
        %v6248 = vpop.f32.mrf.mxu0
        %v6249 = vpop.f32.mrf.mxu0
        %6250 = vdwg.mxu0
        %6251 = vmatprep.subr.bf16.mxu0 %v5264
        %6252 = vmatpush1.bf16.msra.mxu0 %v5263
        %6253 = vmatprep.subr.bf16.mxu0 %v5256
        %6254 = vmatpush1.bf16.msra.mxu0 %v5255
        %6255 = vmatprep.subr.bf16.mxu0 %v5248
        %6256 = vmatpush1.bf16.msra.mxu0 %v5247
        %6257 = vmatprep.subr.bf16.mxu0 %v5240
        %6258 = vmatpush1.bf16.msra.mxu0 %v5239
        %6259 = vmatprep.subr.bf16.mxu0 %v5232
        %6260 = vmatpush1.bf16.msra.mxu0 %v5231
        %6261 = vmatprep.subr.bf16.mxu0 %v5224
        %6262 = vmatpush1.bf16.msra.mxu0 %v5223
        %6263 = vmatprep.subr.bf16.mxu0 %v5216
        %6264 = vmatpush1.bf16.msra.mxu0 %v5215
        %6265 = vmatprep.subr.bf16.mxu0 %v5208
        %6266 = vmatpush1.bf16.msra.mxu0 %v5207
        %6267 = vmatprep.subr.bf16.mxu0 %v5328
        %6268 = vmatpush2.bf16.msra.mxu0 %v5327
        %6269 = vmatprep.subr.bf16.mxu0 %v5320
        %6270 = vmatpush2.bf16.msra.mxu0 %v5319
        %6271 = vmatprep.subr.bf16.mxu0 %v5312
        %6272 = vmatpush2.bf16.msra.mxu0 %v5311
        %6273 = vmatprep.subr.bf16.mxu0 %v5304
        %6274 = vmatpush2.bf16.msra.mxu0 %v5303
        %6275 = vmatprep.subr.bf16.mxu0 %v5296
        %6276 = vmatpush2.bf16.msra.mxu0 %v5295
        %6277 = vmatprep.subr.bf16.mxu0 %v5288
        %6278 = vmatpush2.bf16.msra.mxu0 %v5287
        %6279 = vmatprep.subr.bf16.mxu0 %v5280
        %6280 = vmatpush2.bf16.msra.mxu0 %v5279
        %6281 = vmatprep.subr.bf16.mxu0 %v5272
        %6282 = vmatpush2.bf16.msra.mxu0 %v5271
        %6283 = vmatprep.mubr.bf16.mxu0 %v3906
        %6284 = vmatmul.mubr.bf16.gmra.mxu0 %v3904
        %v6285 = vpop.f32.mrf.mxu0
        %v6286 = vadd.f32 %v6245, %v6285
        %v6287 = vpop.f32.mrf.mxu0
        %v6288 = vadd.f32 %v6247, %v6287
        %v6289 = vpop.f32.mrf.mxu0
        %v6290 = vpop.f32.mrf.mxu0
        %6291 = vdwg.mxu0
        %6292 = vmatprep.subr.bf16.mxu0 %v5392
        %6293 = vmatpush1.bf16.msra.mxu0 %v5391
        %6294 = vmatprep.subr.bf16.mxu0 %v5384
        %6295 = vmatpush1.bf16.msra.mxu0 %v5383
        %6296 = vmatprep.subr.bf16.mxu0 %v5376
        %6297 = vmatpush1.bf16.msra.mxu0 %v5375
        %6298 = vmatprep.subr.bf16.mxu0 %v5368
        %6299 = vmatpush1.bf16.msra.mxu0 %v5367
        %6300 = vmatprep.subr.bf16.mxu0 %v5360
        %6301 = vmatpush1.bf16.msra.mxu0 %v5359
        %6302 = vmatprep.subr.bf16.mxu0 %v5352
        %6303 = vmatpush1.bf16.msra.mxu0 %v5351
        %6304 = vmatprep.subr.bf16.mxu0 %v5344
        %6305 = vmatpush1.bf16.msra.mxu0 %v5343
        %6306 = vmatprep.subr.bf16.mxu0 %v5336
        %6307 = vmatpush1.bf16.msra.mxu0 %v5335
        %6308 = vmatprep.subr.bf16.mxu0 %v5456
        %6309 = vmatpush2.bf16.msra.mxu0 %v5455
        %6310 = vmatprep.subr.bf16.mxu0 %v5448
        %6311 = vmatpush2.bf16.msra.mxu0 %v5447
        %6312 = vmatprep.subr.bf16.mxu0 %v5440
        %6313 = vmatpush2.bf16.msra.mxu0 %v5439
        %6314 = vmatprep.subr.bf16.mxu0 %v5432
        %6315 = vmatpush2.bf16.msra.mxu0 %v5431
        %6316 = vmatprep.subr.bf16.mxu0 %v5424
        %6317 = vmatpush2.bf16.msra.mxu0 %v5423
        %6318 = vmatprep.subr.bf16.mxu0 %v5416
        %6319 = vmatpush2.bf16.msra.mxu0 %v5415
        %6320 = vmatprep.subr.bf16.mxu0 %v5408
        %6321 = vmatpush2.bf16.msra.mxu0 %v5407
        %6322 = vmatprep.subr.bf16.mxu0 %v5400
        %6323 = vmatpush2.bf16.msra.mxu0 %v5399
        %6324 = vmatprep.mubr.bf16.mxu0 %v3914
        %6325 = vmatmul.mubr.bf16.gmra.mxu0 %v3913
        %v6326 = vpop.f32.mrf.mxu0
        %v6327 = vadd.f32 %v6286, %v6326
        %v6328 = vpop.f32.mrf.mxu0
        %v6329 = vadd.f32 %v6288, %v6328
        %v6330 = vpop.f32.mrf.mxu0
        %v6331 = vpop.f32.mrf.mxu0
        %6332 = vdwg.mxu0
        %v6333 = vld [vmem:[%s18] sm:$0xff]
        %v6335 = vlaneseq
        %v6336 = vshrl.u32 %v6335, 7
        %v6337 = vsub.s32 0, %v6336
        %v6338 = vrot.slane %v6333, %v6337
        %v6339 = vlaneseq
        %v6340 = vshrl.u32 %v6339, 7
        %v6341 = vsub.s32 1, %v6340
        %v6342 = vrot.slane %v6333, %v6341
        %v6343 = vlaneseq
        %v6344 = vshrl.u32 %v6343, 7
        %v6345 = vsub.s32 2, %v6344
        %v6346 = vrot.slane %v6333, %v6345
        %v6347 = vlaneseq
        %v6348 = vshrl.u32 %v6347, 7
        %v6349 = vsub.s32 3, %v6348
        %v6350 = vrot.slane %v6333, %v6349
        %v6351 = vlaneseq
        %v6352 = vshrl.u32 %v6351, 7
        %v6353 = vsub.s32 4, %v6352
        %v6354 = vrot.slane %v6333, %v6353
        %v6355 = vlaneseq
        %v6356 = vshrl.u32 %v6355, 7
        %v6357 = vsub.s32 5, %v6356
        %v6358 = vrot.slane %v6333, %v6357
        %v6359 = vlaneseq
        %v6360 = vshrl.u32 %v6359, 7
        %v6361 = vsub.s32 6, %v6360
        %v6362 = vrot.slane %v6333, %v6361
        %v6363 = vlaneseq
        %v6364 = vshrl.u32 %v6363, 7
        %v6365 = vsub.s32 7, %v6364
        %v6366 = vrot.slane %v6333, %v6365
        %v6375 = vmul.f32 %v5958, %v6338
        %v6376 = vmul.f32 %v5960, %v6342
        %v6377 = vmul.f32 %v6081, %v6346
        %v6378 = vmul.f32 %v6083, %v6350
        %v6379 = vmul.f32 %v6204, %v6354
        %v6380 = vmul.f32 %v6206, %v6358
        %v6381 = vmul.f32 %v6327, %v6362
        %v6382 = vmul.f32 %v6329, %v6366
        %v6383 = vld [vmem:[%s19] sm:$0xff]
        %v6385 = vlaneseq
        %v6386 = vshrl.u32 %v6385, 7
        %v6387 = vsub.s32 0, %v6386
        %v6388 = vrot.slane %v6383, %v6387
        %v6389 = vlaneseq
        %v6390 = vshrl.u32 %v6389, 7
        %v6391 = vsub.s32 1, %v6390
        %v6392 = vrot.slane %v6383, %v6391
        %v6393 = vlaneseq
        %v6394 = vshrl.u32 %v6393, 7
        %v6395 = vsub.s32 2, %v6394
        %v6396 = vrot.slane %v6383, %v6395
        %v6397 = vlaneseq
        %v6398 = vshrl.u32 %v6397, 7
        %v6399 = vsub.s32 3, %v6398
        %v6400 = vrot.slane %v6383, %v6399
        %v6401 = vlaneseq
        %v6402 = vshrl.u32 %v6401, 7
        %v6403 = vsub.s32 4, %v6402
        %v6404 = vrot.slane %v6383, %v6403
        %v6405 = vlaneseq
        %v6406 = vshrl.u32 %v6405, 7
        %v6407 = vsub.s32 5, %v6406
        %v6408 = vrot.slane %v6383, %v6407
        %v6409 = vlaneseq
        %v6410 = vshrl.u32 %v6409, 7
        %v6411 = vsub.s32 6, %v6410
        %v6412 = vrot.slane %v6383, %v6411
        %v6413 = vlaneseq
        %v6414 = vshrl.u32 %v6413, 7
        %v6415 = vsub.s32 7, %v6414
        %v6416 = vrot.slane %v6383, %v6415
        %v6425 = vadd.f32 %v6375, %v6388
        %v6426 = vadd.f32 %v6376, %v6392
        %v6427 = vadd.f32 %v6377, %v6396
        %v6428 = vadd.f32 %v6378, %v6400
        %v6429 = vadd.f32 %v6379, %v6404
        %v6430 = vadd.f32 %v6380, %v6408
        %v6431 = vadd.f32 %v6381, %v6412
        %v6432 = vadd.f32 %v6382, %v6416
        %v6433 = vmax.f32 %v6425, 0.0
        %v6434 = vmax.f32 %v6426, 0.0
        %v6435 = vmax.f32 %v6427, 0.0
        %v6436 = vmax.f32 %v6428, 0.0
        %v6437 = vpack.c.bf16 %v6433, %v6433
        %v6438 = vpack.c.bf16 %v6434, %v6434
        %v6439 = vpack.c.bf16 %v6435, %v6435
        %v6440 = vpack.c.bf16 %v6436, %v6436
        %v6445 = vcombine.low %v6437, %v6438
        %v6446 = vcombine.low %v6439, %v6440
        %v6448 = vunpack.c.l.s4 1983009808
        %v6449 = vunpack.c.0.s8 %v6448
        %v6450 = vlaneseq
        %v6451 = vshrl.u32 %v6450, 7
        %v6452 = vsub.s32 %v6449, %v6451
        %v6453 = vrot.slane %v6445, %v6452
        %v6455 = vunpack.c.l.s4 1983009808
        %v6456 = vunpack.c.0.s8 %v6455
        %v6457 = vlaneseq
        %v6458 = vshrl.u32 %v6457, 7
        %v6459 = vsub.s32 %v6456, %v6458
        %v6460 = vrot.slane %v6446, %v6459
        %v6461 = vcombine.low %v6453, %v6460
        %6463 = vst [vmem:[#allocation9 + $0x8] sm:$0xff] %v6461
        %vm6464 = vsmask.f32 4352
        %vm6465 = vmand %vm1000, %vm6464
        %vm6466 = vmor %vm6465, %vm2661
        %vm6467 = vcmask 1046534
        %vm6468 = vsmask.f32 6400
        %vm6469 = vmand %vm6467, %vm6468
        %vm6470 = vmor %vm6469, %vm6466
        %v6471 = vld [vmem:[#allocation9] sm:$0x55]
        %v6472 = vsel %vm6470, 0, %v6471
        %6473 = vst [vmem:[#allocation9] sm:$0x55] %v6472
        %v6475 = vshrl.u32 %v6461, 16
        %v6477 = vrot.slane %v6475, 7
        %v6478 = vshll.u32 %v6461, 16
        %v6480 = vor.u32 %v6477, %v6478
        %vm6482 = vsmask.f32 7954
        %vm6483 = vmand %vm935, %vm6482
        %vm6484 = vmor %vm6483, %vm2676
        %vm6485 = vcmask 1047558
        %vm6486 = vsmask.f32 7962
        %vm6487 = vmand %vm6485, %vm6486
        %vm6488 = vmor %vm6487, %vm6484
        %v6489 = vld [vmem:[#allocation9] sm:$0xff]
        %v6490 = vsel %vm6488, %v6480, %v6489
        %6491 = vst [vmem:[#allocation9] sm:$0xff] %v6490
        %v6492 = vrot.slane %v6475, 6
        %v6493 = vrot.slane %v6478, 7
        %v6494 = vor.u32 %v6492, %v6493
        %v6495 = vrot.slane %v6494, 2
        %vm6497 = vsmask.f32 5376
        %vm6498 = vmand %vm935, %vm6497
        %vm6499 = vmor %vm6498, %vm2686
        %vm6500 = vsmask.f32 7424
        %vm6501 = vmand %vm6485, %vm6500
        %vm6502 = vmor %vm6501, %vm6499
        %v6503 = vld [vmem:[#allocation9 + $0x10] sm:$0xff]
        %v6504 = vsel %vm6502, %v6495, %v6503
        %6505 = vst [vmem:[#allocation9 + $0x10] sm:$0xff] %v6504
        %vm6506 = vcmask 1045509
        %vm6507 = vsmask.f32 7958
        %vm6508 = vmand %vm6506, %vm6507
        %vm6509 = vmor %vm6508, %vm2693
        %vm6510 = vcmask 1047559
        %vm6511 = vsmask.f32 7966
        %vm6512 = vmand %vm6510, %vm6511
        %vm6513 = vmor %vm6512, %vm6509
        %v6514 = vld [vmem:[#allocation9 + $0x10] sm:$0xaa]
        %v6515 = vsel %vm6513, 0, %v6514
        %6516 = vst [vmem:[#allocation9 + $0x10] sm:$0xaa] %v6515
        %v6517 = vld [vmem:[#allocation9] sm:$0xff]
        %v6518 = vld [vmem:[#allocation9 + $0x8] sm:$0xff]
        %v6519 = vld [vmem:[#allocation9 + $0x10] sm:$0xff]
        %v6520 = vld [vmem:[%s20] sm:$0xff]
        %v6521 = vld [vmem:[%s20 + $0x8] sm:$0xff]
        %v6522 = vld [vmem:[%s20 + $0x10] sm:$0xff]
        %v6523 = vld [vmem:[%s20 + $0x18] sm:$0xff]
        %v6524 = vld [vmem:[%s20 + $0x20] sm:$0xff]
        %v6525 = vld [vmem:[%s20 + $0x28] sm:$0xff]
        %v6526 = vld [vmem:[%s20 + $0x30] sm:$0xff]
        %v6527 = vld [vmem:[%s20 + $0x38] sm:$0xff]
        %v6528 = vld [vmem:[%s20 + $0x40] sm:$0xff]
        %v6529 = vld [vmem:[%s20 + $0x48] sm:$0xff]
        %v6530 = vld [vmem:[%s20 + $0x50] sm:$0xff]
        %v6531 = vld [vmem:[%s20 + $0x58] sm:$0xff]
        %v6532 = vld [vmem:[%s20 + $0x60] sm:$0xff]
        %v6533 = vld [vmem:[%s20 + $0x68] sm:$0xff]
        %v6534 = vld [vmem:[%s20 + $0x70] sm:$0xff]
        %v6535 = vld [vmem:[%s20 + $0x78] sm:$0xff]
        %v6536 = vld [vmem:[%s20 + $0x80] sm:$0xff]
        %v6537 = vld [vmem:[%s20 + $0x88] sm:$0xff]
        %v6538 = vld [vmem:[%s20 + $0x90] sm:$0xff]
        %v6539 = vld [vmem:[%s20 + $0x98] sm:$0xff]
        %v6540 = vld [vmem:[%s20 + $0xa0] sm:$0xff]
        %v6541 = vld [vmem:[%s20 + $0xa8] sm:$0xff]
        %v6542 = vld [vmem:[%s20 + $0xb0] sm:$0xff]
        %v6543 = vld [vmem:[%s20 + $0xb8] sm:$0xff]
        %v6544 = vld [vmem:[%s20 + $0xc0] sm:$0xff]
        %v6545 = vld [vmem:[%s20 + $0xc8] sm:$0xff]
        %v6546 = vld [vmem:[%s20 + $0xd0] sm:$0xff]
        %v6547 = vld [vmem:[%s20 + $0xd8] sm:$0xff]
        %v6548 = vld [vmem:[%s20 + $0xe0] sm:$0xff]
        %v6549 = vld [vmem:[%s20 + $0xe8] sm:$0xff]
        %v6550 = vld [vmem:[%s20 + $0xf0] sm:$0xff]
        %v6551 = vld [vmem:[%s20 + $0xf8] sm:$0xff]
        %v6552 = vld [vmem:[%s20 + $0x100] sm:$0xff]
        %v6553 = vld [vmem:[%s20 + $0x108] sm:$0xff]
        %v6554 = vld [vmem:[%s20 + $0x110] sm:$0xff]
        %v6555 = vld [vmem:[%s20 + $0x118] sm:$0xff]
        %v6556 = vld [vmem:[%s20 + $0x120] sm:$0xff]
        %v6557 = vld [vmem:[%s20 + $0x128] sm:$0xff]
        %v6558 = vld [vmem:[%s20 + $0x130] sm:$0xff]
        %v6559 = vld [vmem:[%s20 + $0x138] sm:$0xff]
        %v6560 = vld [vmem:[%s20 + $0x140] sm:$0xff]
        %v6561 = vld [vmem:[%s20 + $0x148] sm:$0xff]
        %v6562 = vld [vmem:[%s20 + $0x150] sm:$0xff]
        %v6563 = vld [vmem:[%s20 + $0x158] sm:$0xff]
        %v6564 = vld [vmem:[%s20 + $0x160] sm:$0xff]
        %v6565 = vld [vmem:[%s20 + $0x168] sm:$0xff]
        %v6566 = vld [vmem:[%s20 + $0x170] sm:$0xff]
        %v6567 = vld [vmem:[%s20 + $0x178] sm:$0xff]
        %v6568 = vld [vmem:[%s20 + $0x180] sm:$0xff]
        %v6569 = vld [vmem:[%s20 + $0x188] sm:$0xff]
        %v6570 = vld [vmem:[%s20 + $0x190] sm:$0xff]
        %v6571 = vld [vmem:[%s20 + $0x198] sm:$0xff]
        %v6572 = vld [vmem:[%s20 + $0x1a0] sm:$0xff]
        %v6573 = vld [vmem:[%s20 + $0x1a8] sm:$0xff]
        %v6574 = vld [vmem:[%s20 + $0x1b0] sm:$0xff]
        %v6575 = vld [vmem:[%s20 + $0x1b8] sm:$0xff]
        %v6576 = vld [vmem:[%s20 + $0x1c0] sm:$0xff]
        %v6577 = vld [vmem:[%s20 + $0x1c8] sm:$0xff]
        %v6578 = vld [vmem:[%s20 + $0x1d0] sm:$0xff]
        %v6579 = vld [vmem:[%s20 + $0x1d8] sm:$0xff]
        %v6580 = vld [vmem:[%s20 + $0x1e0] sm:$0xff]
        %v6581 = vld [vmem:[%s20 + $0x1e8] sm:$0xff]
        %v6582 = vld [vmem:[%s20 + $0x1f0] sm:$0xff]
        %v6583 = vld [vmem:[%s20 + $0x1f8] sm:$0xff]
        %v6584 = vld [vmem:[%s20 + $0x200] sm:$0xff]
        %v6585 = vld [vmem:[%s20 + $0x208] sm:$0xff]
        %v6586 = vld [vmem:[%s20 + $0x210] sm:$0xff]
        %v6587 = vld [vmem:[%s20 + $0x218] sm:$0xff]
        %v6588 = vld [vmem:[%s20 + $0x220] sm:$0xff]
        %v6589 = vld [vmem:[%s20 + $0x228] sm:$0xff]
        %v6590 = vld [vmem:[%s20 + $0x230] sm:$0xff]
        %v6591 = vld [vmem:[%s20 + $0x238] sm:$0xff]
        %v6592 = vld [vmem:[%s20 + $0x240] sm:$0xff]
        %v6593 = vld [vmem:[%s20 + $0x248] sm:$0xff]
        %v6594 = vld [vmem:[%s20 + $0x250] sm:$0xff]
        %v6595 = vld [vmem:[%s20 + $0x258] sm:$0xff]
        %v6596 = vld [vmem:[%s20 + $0x260] sm:$0xff]
        %v6597 = vld [vmem:[%s20 + $0x268] sm:$0xff]
        %v6598 = vld [vmem:[%s20 + $0x270] sm:$0xff]
        %v6599 = vld [vmem:[%s20 + $0x278] sm:$0xff]
        %v6600 = vld [vmem:[%s20 + $0x280] sm:$0xff]
        %v6601 = vld [vmem:[%s20 + $0x288] sm:$0xff]
        %v6602 = vld [vmem:[%s20 + $0x290] sm:$0xff]
        %v6603 = vld [vmem:[%s20 + $0x298] sm:$0xff]
        %v6604 = vld [vmem:[%s20 + $0x2a0] sm:$0xff]
        %v6605 = vld [vmem:[%s20 + $0x2a8] sm:$0xff]
        %v6606 = vld [vmem:[%s20 + $0x2b0] sm:$0xff]
        %v6607 = vld [vmem:[%s20 + $0x2b8] sm:$0xff]
        %v6608 = vld [vmem:[%s20 + $0x2c0] sm:$0xff]
        %v6609 = vld [vmem:[%s20 + $0x2c8] sm:$0xff]
        %v6610 = vld [vmem:[%s20 + $0x2d0] sm:$0xff]
        %v6611 = vld [vmem:[%s20 + $0x2d8] sm:$0xff]
        %v6612 = vld [vmem:[%s20 + $0x2e0] sm:$0xff]
        %v6613 = vld [vmem:[%s20 + $0x2e8] sm:$0xff]
        %v6614 = vld [vmem:[%s20 + $0x2f0] sm:$0xff]
        %v6615 = vld [vmem:[%s20 + $0x2f8] sm:$0xff]
        %v6616 = vld [vmem:[%s20 + $0x300] sm:$0xff]
        %v6617 = vld [vmem:[%s20 + $0x308] sm:$0xff]
        %v6618 = vld [vmem:[%s20 + $0x310] sm:$0xff]
        %v6619 = vld [vmem:[%s20 + $0x318] sm:$0xff]
        %v6620 = vld [vmem:[%s20 + $0x320] sm:$0xff]
        %v6621 = vld [vmem:[%s20 + $0x328] sm:$0xff]
        %v6622 = vld [vmem:[%s20 + $0x330] sm:$0xff]
        %v6623 = vld [vmem:[%s20 + $0x338] sm:$0xff]
        %v6624 = vld [vmem:[%s20 + $0x340] sm:$0xff]
        %v6625 = vld [vmem:[%s20 + $0x348] sm:$0xff]
        %v6626 = vld [vmem:[%s20 + $0x350] sm:$0xff]
        %v6627 = vld [vmem:[%s20 + $0x358] sm:$0xff]
        %v6628 = vld [vmem:[%s20 + $0x360] sm:$0xff]
        %v6629 = vld [vmem:[%s20 + $0x368] sm:$0xff]
        %v6630 = vld [vmem:[%s20 + $0x370] sm:$0xff]
        %v6631 = vld [vmem:[%s20 + $0x378] sm:$0xff]
        %v6632 = vld [vmem:[%s20 + $0x380] sm:$0xff]
        %v6633 = vld [vmem:[%s20 + $0x388] sm:$0xff]
        %v6634 = vld [vmem:[%s20 + $0x390] sm:$0xff]
        %v6635 = vld [vmem:[%s20 + $0x398] sm:$0xff]
        %v6636 = vld [vmem:[%s20 + $0x3a0] sm:$0xff]
        %v6637 = vld [vmem:[%s20 + $0x3a8] sm:$0xff]
        %v6638 = vld [vmem:[%s20 + $0x3b0] sm:$0xff]
        %v6639 = vld [vmem:[%s20 + $0x3b8] sm:$0xff]
        %v6640 = vld [vmem:[%s20 + $0x3c0] sm:$0xff]
        %v6641 = vld [vmem:[%s20 + $0x3c8] sm:$0xff]
        %v6642 = vld [vmem:[%s20 + $0x3d0] sm:$0xff]
        %v6643 = vld [vmem:[%s20 + $0x3d8] sm:$0xff]
        %v6644 = vld [vmem:[%s20 + $0x3e0] sm:$0xff]
        %v6645 = vld [vmem:[%s20 + $0x3e8] sm:$0xff]
        %v6646 = vld [vmem:[%s20 + $0x3f0] sm:$0xff]
        %v6647 = vld [vmem:[%s20 + $0x3f8] sm:$0xff]
        %v6648 = vld [vmem:[%s20 + $0x400] sm:$0xff]
        %v6649 = vld [vmem:[%s20 + $0x408] sm:$0xff]
        %v6650 = vld [vmem:[%s20 + $0x410] sm:$0xff]
        %v6651 = vld [vmem:[%s20 + $0x418] sm:$0xff]
        %v6652 = vld [vmem:[%s20 + $0x420] sm:$0xff]
        %v6653 = vld [vmem:[%s20 + $0x428] sm:$0xff]
        %v6654 = vld [vmem:[%s20 + $0x430] sm:$0xff]
        %v6655 = vld [vmem:[%s20 + $0x438] sm:$0xff]
        %v6656 = vld [vmem:[%s20 + $0x440] sm:$0xff]
        %v6657 = vld [vmem:[%s20 + $0x448] sm:$0xff]
        %v6658 = vld [vmem:[%s20 + $0x450] sm:$0xff]
        %v6659 = vld [vmem:[%s20 + $0x458] sm:$0xff]
        %v6660 = vld [vmem:[%s20 + $0x460] sm:$0xff]
        %v6661 = vld [vmem:[%s20 + $0x468] sm:$0xff]
        %v6662 = vld [vmem:[%s20 + $0x470] sm:$0xff]
        %v6663 = vld [vmem:[%s20 + $0x478] sm:$0xff]
        %v6664 = vld [vmem:[%s20 + $0x480] sm:$0xff]
        %v6665 = vld [vmem:[%s20 + $0x488] sm:$0xff]
        %v6666 = vld [vmem:[%s20 + $0x490] sm:$0xff]
        %v6667 = vld [vmem:[%s20 + $0x498] sm:$0xff]
        %v6668 = vld [vmem:[%s20 + $0x4a0] sm:$0xff]
        %v6669 = vld [vmem:[%s20 + $0x4a8] sm:$0xff]
        %v6670 = vld [vmem:[%s20 + $0x4b0] sm:$0xff]
        %v6671 = vld [vmem:[%s20 + $0x4b8] sm:$0xff]
        %v6672 = vld [vmem:[%s20 + $0x4c0] sm:$0xff]
        %v6673 = vld [vmem:[%s20 + $0x4c8] sm:$0xff]
        %v6674 = vld [vmem:[%s20 + $0x4d0] sm:$0xff]
        %v6675 = vld [vmem:[%s20 + $0x4d8] sm:$0xff]
        %v6676 = vld [vmem:[%s20 + $0x4e0] sm:$0xff]
        %v6677 = vld [vmem:[%s20 + $0x4e8] sm:$0xff]
        %v6678 = vld [vmem:[%s20 + $0x4f0] sm:$0xff]
        %v6679 = vld [vmem:[%s20 + $0x4f8] sm:$0xff]
        %v6680 = vld [vmem:[%s20 + $0x500] sm:$0xff]
        %v6681 = vld [vmem:[%s20 + $0x508] sm:$0xff]
        %v6682 = vld [vmem:[%s20 + $0x510] sm:$0xff]
        %v6683 = vld [vmem:[%s20 + $0x518] sm:$0xff]
        %v6684 = vld [vmem:[%s20 + $0x520] sm:$0xff]
        %v6685 = vld [vmem:[%s20 + $0x528] sm:$0xff]
        %v6686 = vld [vmem:[%s20 + $0x530] sm:$0xff]
        %v6687 = vld [vmem:[%s20 + $0x538] sm:$0xff]
        %v6688 = vld [vmem:[%s20 + $0x540] sm:$0xff]
        %v6689 = vld [vmem:[%s20 + $0x548] sm:$0xff]
        %v6690 = vld [vmem:[%s20 + $0x550] sm:$0xff]
        %v6691 = vld [vmem:[%s20 + $0x558] sm:$0xff]
        %v6692 = vld [vmem:[%s20 + $0x560] sm:$0xff]
        %v6693 = vld [vmem:[%s20 + $0x568] sm:$0xff]
        %v6694 = vld [vmem:[%s20 + $0x570] sm:$0xff]
        %v6695 = vld [vmem:[%s20 + $0x578] sm:$0xff]
        %v6696 = vld [vmem:[%s20 + $0x580] sm:$0xff]
        %v6697 = vld [vmem:[%s20 + $0x588] sm:$0xff]
        %v6698 = vld [vmem:[%s20 + $0x590] sm:$0xff]
        %v6699 = vld [vmem:[%s20 + $0x598] sm:$0xff]
        %v6700 = vld [vmem:[%s20 + $0x5a0] sm:$0xff]
        %v6701 = vld [vmem:[%s20 + $0x5a8] sm:$0xff]
        %v6702 = vld [vmem:[%s20 + $0x5b0] sm:$0xff]
        %v6703 = vld [vmem:[%s20 + $0x5b8] sm:$0xff]
        %v6704 = vld [vmem:[%s20 + $0x5c0] sm:$0xff]
        %v6705 = vld [vmem:[%s20 + $0x5c8] sm:$0xff]
        %v6706 = vld [vmem:[%s20 + $0x5d0] sm:$0xff]
        %v6707 = vld [vmem:[%s20 + $0x5d8] sm:$0xff]
        %v6708 = vld [vmem:[%s20 + $0x5e0] sm:$0xff]
        %v6709 = vld [vmem:[%s20 + $0x5e8] sm:$0xff]
        %v6710 = vld [vmem:[%s20 + $0x5f0] sm:$0xff]
        %v6711 = vld [vmem:[%s20 + $0x5f8] sm:$0xff]
        %v6712 = vld [vmem:[%s20 + $0x600] sm:$0xff]
        %v6713 = vld [vmem:[%s20 + $0x608] sm:$0xff]
        %v6714 = vld [vmem:[%s20 + $0x610] sm:$0xff]
        %v6715 = vld [vmem:[%s20 + $0x618] sm:$0xff]
        %v6716 = vld [vmem:[%s20 + $0x620] sm:$0xff]
        %v6717 = vld [vmem:[%s20 + $0x628] sm:$0xff]
        %v6718 = vld [vmem:[%s20 + $0x630] sm:$0xff]
        %v6719 = vld [vmem:[%s20 + $0x638] sm:$0xff]
        %v6720 = vld [vmem:[%s20 + $0x640] sm:$0xff]
        %v6721 = vld [vmem:[%s20 + $0x648] sm:$0xff]
        %v6722 = vld [vmem:[%s20 + $0x650] sm:$0xff]
        %v6723 = vld [vmem:[%s20 + $0x658] sm:$0xff]
        %v6724 = vld [vmem:[%s20 + $0x660] sm:$0xff]
        %v6725 = vld [vmem:[%s20 + $0x668] sm:$0xff]
        %v6726 = vld [vmem:[%s20 + $0x670] sm:$0xff]
        %v6727 = vld [vmem:[%s20 + $0x678] sm:$0xff]
        %v6728 = vld [vmem:[%s20 + $0x680] sm:$0xff]
        %v6729 = vld [vmem:[%s20 + $0x688] sm:$0xff]
        %v6730 = vld [vmem:[%s20 + $0x690] sm:$0xff]
        %v6731 = vld [vmem:[%s20 + $0x698] sm:$0xff]
        %v6732 = vld [vmem:[%s20 + $0x6a0] sm:$0xff]
        %v6733 = vld [vmem:[%s20 + $0x6a8] sm:$0xff]
        %v6734 = vld [vmem:[%s20 + $0x6b0] sm:$0xff]
        %v6735 = vld [vmem:[%s20 + $0x6b8] sm:$0xff]
        %v6736 = vld [vmem:[%s20 + $0x6c0] sm:$0xff]
        %v6737 = vld [vmem:[%s20 + $0x6c8] sm:$0xff]
        %v6738 = vld [vmem:[%s20 + $0x6d0] sm:$0xff]
        %v6739 = vld [vmem:[%s20 + $0x6d8] sm:$0xff]
        %v6740 = vld [vmem:[%s20 + $0x6e0] sm:$0xff]
        %v6741 = vld [vmem:[%s20 + $0x6e8] sm:$0xff]
        %v6742 = vld [vmem:[%s20 + $0x6f0] sm:$0xff]
        %v6743 = vld [vmem:[%s20 + $0x6f8] sm:$0xff]
        %v6744 = vld [vmem:[%s20 + $0x700] sm:$0xff]
        %v6745 = vld [vmem:[%s20 + $0x708] sm:$0xff]
        %v6746 = vld [vmem:[%s20 + $0x710] sm:$0xff]
        %v6747 = vld [vmem:[%s20 + $0x718] sm:$0xff]
        %v6748 = vld [vmem:[%s20 + $0x720] sm:$0xff]
        %v6749 = vld [vmem:[%s20 + $0x728] sm:$0xff]
        %v6750 = vld [vmem:[%s20 + $0x730] sm:$0xff]
        %v6751 = vld [vmem:[%s20 + $0x738] sm:$0xff]
        %v6752 = vld [vmem:[%s20 + $0x740] sm:$0xff]
        %v6753 = vld [vmem:[%s20 + $0x748] sm:$0xff]
        %v6754 = vld [vmem:[%s20 + $0x750] sm:$0xff]
        %v6755 = vld [vmem:[%s20 + $0x758] sm:$0xff]
        %v6756 = vld [vmem:[%s20 + $0x760] sm:$0xff]
        %v6757 = vld [vmem:[%s20 + $0x768] sm:$0xff]
        %v6758 = vld [vmem:[%s20 + $0x770] sm:$0xff]
        %v6759 = vld [vmem:[%s20 + $0x778] sm:$0xff]
        %v6760 = vld [vmem:[%s20 + $0x780] sm:$0xff]
        %v6761 = vld [vmem:[%s20 + $0x788] sm:$0xff]
        %v6762 = vld [vmem:[%s20 + $0x790] sm:$0xff]
        %v6763 = vld [vmem:[%s20 + $0x798] sm:$0xff]
        %v6764 = vld [vmem:[%s20 + $0x7a0] sm:$0xff]
        %v6765 = vld [vmem:[%s20 + $0x7a8] sm:$0xff]
        %v6766 = vld [vmem:[%s20 + $0x7b0] sm:$0xff]
        %v6767 = vld [vmem:[%s20 + $0x7b8] sm:$0xff]
        %v6768 = vld [vmem:[%s20 + $0x7c0] sm:$0xff]
        %v6769 = vld [vmem:[%s20 + $0x7c8] sm:$0xff]
        %v6770 = vld [vmem:[%s20 + $0x7d0] sm:$0xff]
        %v6771 = vld [vmem:[%s20 + $0x7d8] sm:$0xff]
        %v6772 = vld [vmem:[%s20 + $0x7e0] sm:$0xff]
        %v6773 = vld [vmem:[%s20 + $0x7e8] sm:$0xff]
        %v6774 = vld [vmem:[%s20 + $0x7f0] sm:$0xff]
        %v6775 = vld [vmem:[%s20 + $0x7f8] sm:$0xff]
        %v6776 = vld [vmem:[%s20 + $0x800] sm:$0xff]
        %v6777 = vld [vmem:[%s20 + $0x808] sm:$0xff]
        %v6778 = vld [vmem:[%s20 + $0x810] sm:$0xff]
        %v6779 = vld [vmem:[%s20 + $0x818] sm:$0xff]
        %v6780 = vld [vmem:[%s20 + $0x820] sm:$0xff]
        %v6781 = vld [vmem:[%s20 + $0x828] sm:$0xff]
        %v6782 = vld [vmem:[%s20 + $0x830] sm:$0xff]
        %v6783 = vld [vmem:[%s20 + $0x838] sm:$0xff]
        %v6784 = vld [vmem:[%s20 + $0x840] sm:$0xff]
        %v6785 = vld [vmem:[%s20 + $0x848] sm:$0xff]
        %v6786 = vld [vmem:[%s20 + $0x850] sm:$0xff]
        %v6787 = vld [vmem:[%s20 + $0x858] sm:$0xff]
        %v6788 = vld [vmem:[%s20 + $0x860] sm:$0xff]
        %v6789 = vld [vmem:[%s20 + $0x868] sm:$0xff]
        %v6790 = vld [vmem:[%s20 + $0x870] sm:$0xff]
        %v6791 = vld [vmem:[%s20 + $0x878] sm:$0xff]
        %v6792 = vld [vmem:[%s20 + $0x880] sm:$0xff]
        %v6793 = vld [vmem:[%s20 + $0x888] sm:$0xff]
        %v6794 = vld [vmem:[%s20 + $0x890] sm:$0xff]
        %v6795 = vld [vmem:[%s20 + $0x898] sm:$0xff]
        %v6796 = vld [vmem:[%s20 + $0x8a0] sm:$0xff]
        %v6797 = vld [vmem:[%s20 + $0x8a8] sm:$0xff]
        %v6798 = vld [vmem:[%s20 + $0x8b0] sm:$0xff]
        %v6799 = vld [vmem:[%s20 + $0x8b8] sm:$0xff]
        %v6800 = vld [vmem:[%s20 + $0x8c0] sm:$0xff]
        %v6801 = vld [vmem:[%s20 + $0x8c8] sm:$0xff]
        %v6802 = vld [vmem:[%s20 + $0x8d0] sm:$0xff]
        %v6803 = vld [vmem:[%s20 + $0x8d8] sm:$0xff]
        %v6804 = vld [vmem:[%s20 + $0x8e0] sm:$0xff]
        %v6805 = vld [vmem:[%s20 + $0x8e8] sm:$0xff]
        %v6806 = vld [vmem:[%s20 + $0x8f0] sm:$0xff]
        %v6807 = vld [vmem:[%s20 + $0x8f8] sm:$0xff]
        %v6808 = vld [vmem:[%s20 + $0x900] sm:$0xff]
        %v6809 = vld [vmem:[%s20 + $0x908] sm:$0xff]
        %v6810 = vld [vmem:[%s20 + $0x910] sm:$0xff]
        %v6811 = vld [vmem:[%s20 + $0x918] sm:$0xff]
        %v6812 = vld [vmem:[%s20 + $0x920] sm:$0xff]
        %v6813 = vld [vmem:[%s20 + $0x928] sm:$0xff]
        %v6814 = vld [vmem:[%s20 + $0x930] sm:$0xff]
        %v6815 = vld [vmem:[%s20 + $0x938] sm:$0xff]
        %v6816 = vld [vmem:[%s20 + $0x940] sm:$0xff]
        %v6817 = vld [vmem:[%s20 + $0x948] sm:$0xff]
        %v6818 = vld [vmem:[%s20 + $0x950] sm:$0xff]
        %v6819 = vld [vmem:[%s20 + $0x958] sm:$0xff]
        %v6820 = vld [vmem:[%s20 + $0x960] sm:$0xff]
        %v6821 = vld [vmem:[%s20 + $0x968] sm:$0xff]
        %v6822 = vld [vmem:[%s20 + $0x970] sm:$0xff]
        %v6823 = vld [vmem:[%s20 + $0x978] sm:$0xff]
        %v6824 = vld [vmem:[%s20 + $0x980] sm:$0xff]
        %v6825 = vld [vmem:[%s20 + $0x988] sm:$0xff]
        %v6826 = vld [vmem:[%s20 + $0x990] sm:$0xff]
        %v6827 = vld [vmem:[%s20 + $0x998] sm:$0xff]
        %v6828 = vld [vmem:[%s20 + $0x9a0] sm:$0xff]
        %v6829 = vld [vmem:[%s20 + $0x9a8] sm:$0xff]
        %v6830 = vld [vmem:[%s20 + $0x9b0] sm:$0xff]
        %v6831 = vld [vmem:[%s20 + $0x9b8] sm:$0xff]
        %v6832 = vld [vmem:[%s20 + $0x9c0] sm:$0xff]
        %v6833 = vld [vmem:[%s20 + $0x9c8] sm:$0xff]
        %v6834 = vld [vmem:[%s20 + $0x9d0] sm:$0xff]
        %v6835 = vld [vmem:[%s20 + $0x9d8] sm:$0xff]
        %v6836 = vld [vmem:[%s20 + $0x9e0] sm:$0xff]
        %v6837 = vld [vmem:[%s20 + $0x9e8] sm:$0xff]
        %v6838 = vld [vmem:[%s20 + $0x9f0] sm:$0xff]
        %v6839 = vld [vmem:[%s20 + $0x9f8] sm:$0xff]
        %v6840 = vld [vmem:[%s20 + $0xa00] sm:$0xff]
        %v6841 = vld [vmem:[%s20 + $0xa08] sm:$0xff]
        %v6842 = vld [vmem:[%s20 + $0xa10] sm:$0xff]
        %v6843 = vld [vmem:[%s20 + $0xa18] sm:$0xff]
        %v6844 = vld [vmem:[%s20 + $0xa20] sm:$0xff]
        %v6845 = vld [vmem:[%s20 + $0xa28] sm:$0xff]
        %v6846 = vld [vmem:[%s20 + $0xa30] sm:$0xff]
        %v6847 = vld [vmem:[%s20 + $0xa38] sm:$0xff]
        %v6848 = vld [vmem:[%s20 + $0xa40] sm:$0xff]
        %v6849 = vld [vmem:[%s20 + $0xa48] sm:$0xff]
        %v6850 = vld [vmem:[%s20 + $0xa50] sm:$0xff]
        %v6851 = vld [vmem:[%s20 + $0xa58] sm:$0xff]
        %v6852 = vld [vmem:[%s20 + $0xa60] sm:$0xff]
        %v6853 = vld [vmem:[%s20 + $0xa68] sm:$0xff]
        %v6854 = vld [vmem:[%s20 + $0xa70] sm:$0xff]
        %v6855 = vld [vmem:[%s20 + $0xa78] sm:$0xff]
        %v6856 = vld [vmem:[%s20 + $0xa80] sm:$0xff]
        %v6857 = vld [vmem:[%s20 + $0xa88] sm:$0xff]
        %v6858 = vld [vmem:[%s20 + $0xa90] sm:$0xff]
        %v6859 = vld [vmem:[%s20 + $0xa98] sm:$0xff]
        %v6860 = vld [vmem:[%s20 + $0xaa0] sm:$0xff]
        %v6861 = vld [vmem:[%s20 + $0xaa8] sm:$0xff]
        %v6862 = vld [vmem:[%s20 + $0xab0] sm:$0xff]
        %v6863 = vld [vmem:[%s20 + $0xab8] sm:$0xff]
        %v6864 = vld [vmem:[%s20 + $0xac0] sm:$0xff]
        %v6865 = vld [vmem:[%s20 + $0xac8] sm:$0xff]
        %v6866 = vld [vmem:[%s20 + $0xad0] sm:$0xff]
        %v6867 = vld [vmem:[%s20 + $0xad8] sm:$0xff]
        %v6868 = vld [vmem:[%s20 + $0xae0] sm:$0xff]
        %v6869 = vld [vmem:[%s20 + $0xae8] sm:$0xff]
        %v6870 = vld [vmem:[%s20 + $0xaf0] sm:$0xff]
        %v6871 = vld [vmem:[%s20 + $0xaf8] sm:$0xff]
        %v6872 = vld [vmem:[%s20 + $0xb00] sm:$0xff]
        %v6873 = vld [vmem:[%s20 + $0xb08] sm:$0xff]
        %v6874 = vld [vmem:[%s20 + $0xb10] sm:$0xff]
        %v6875 = vld [vmem:[%s20 + $0xb18] sm:$0xff]
        %v6876 = vld [vmem:[%s20 + $0xb20] sm:$0xff]
        %v6877 = vld [vmem:[%s20 + $0xb28] sm:$0xff]
        %v6878 = vld [vmem:[%s20 + $0xb30] sm:$0xff]
        %v6879 = vld [vmem:[%s20 + $0xb38] sm:$0xff]
        %v6880 = vld [vmem:[%s20 + $0xb40] sm:$0xff]
        %v6881 = vld [vmem:[%s20 + $0xb48] sm:$0xff]
        %v6882 = vld [vmem:[%s20 + $0xb50] sm:$0xff]
        %v6883 = vld [vmem:[%s20 + $0xb58] sm:$0xff]
        %v6884 = vld [vmem:[%s20 + $0xb60] sm:$0xff]
        %v6885 = vld [vmem:[%s20 + $0xb68] sm:$0xff]
        %v6886 = vld [vmem:[%s20 + $0xb70] sm:$0xff]
        %v6887 = vld [vmem:[%s20 + $0xb78] sm:$0xff]
        %v6888 = vld [vmem:[%s20 + $0xb80] sm:$0xff]
        %v6889 = vld [vmem:[%s20 + $0xb88] sm:$0xff]
        %v6890 = vld [vmem:[%s20 + $0xb90] sm:$0xff]
        %v6891 = vld [vmem:[%s20 + $0xb98] sm:$0xff]
        %v6892 = vld [vmem:[%s20 + $0xba0] sm:$0xff]
        %v6893 = vld [vmem:[%s20 + $0xba8] sm:$0xff]
        %v6894 = vld [vmem:[%s20 + $0xbb0] sm:$0xff]
        %v6895 = vld [vmem:[%s20 + $0xbb8] sm:$0xff]
        %v6896 = vld [vmem:[%s20 + $0xbc0] sm:$0xff]
        %v6897 = vld [vmem:[%s20 + $0xbc8] sm:$0xff]
        %v6898 = vld [vmem:[%s20 + $0xbd0] sm:$0xff]
        %v6899 = vld [vmem:[%s20 + $0xbd8] sm:$0xff]
        %v6900 = vld [vmem:[%s20 + $0xbe0] sm:$0xff]
        %v6901 = vld [vmem:[%s20 + $0xbe8] sm:$0xff]
        %v6902 = vld [vmem:[%s20 + $0xbf0] sm:$0xff]
        %v6903 = vld [vmem:[%s20 + $0xbf8] sm:$0xff]
        %v6907 = vcombine.high %v6517, %v6517
        %v6909 = vunpack.c.l.s4 1983009808
        %v6910 = vunpack.c.0.s8 %v6909
        %v6911 = vlaneseq
        %v6912 = vshrl.u32 %v6911, 7
        %v6913 = vsub.s32 %v6910, %v6912
        %v6914 = vrot.slane %v6517, %v6913
        %v6916 = vunpack.c.l.s4 1983009808
        %v6917 = vunpack.c.0.s8 %v6916
        %v6918 = vlaneseq
        %v6919 = vshrl.u32 %v6918, 7
        %v6920 = vsub.s32 %v6917, %v6919
        %v6921 = vrot.slane %v6907, %v6920
        %v6922 = vcombine.high %v6914, %v6914
        %v6923 = vcombine.high %v6921, %v6921
        %v6924 = vcombine.high %v6518, %v6518
        %v6926 = vunpack.c.l.s4 1983009808
        %v6927 = vunpack.c.0.s8 %v6926
        %v6928 = vlaneseq
        %v6929 = vshrl.u32 %v6928, 7
        %v6930 = vsub.s32 %v6927, %v6929
        %v6931 = vrot.slane %v6518, %v6930
        %v6933 = vunpack.c.l.s4 1983009808
        %v6934 = vunpack.c.0.s8 %v6933
        %v6935 = vlaneseq
        %v6936 = vshrl.u32 %v6935, 7
        %v6937 = vsub.s32 %v6934, %v6936
        %v6938 = vrot.slane %v6924, %v6937
        %v6939 = vcombine.high %v6931, %v6931
        %v6940 = vcombine.high %v6938, %v6938
        %v6941 = vcombine.high %v6519, %v6519
        %v6943 = vunpack.c.l.s4 1983009808
        %v6944 = vunpack.c.0.s8 %v6943
        %v6945 = vlaneseq
        %v6946 = vshrl.u32 %v6945, 7
        %v6947 = vsub.s32 %v6944, %v6946
        %v6948 = vrot.slane %v6519, %v6947
        %v6950 = vunpack.c.l.s4 1983009808
        %v6951 = vunpack.c.0.s8 %v6950
        %v6952 = vlaneseq
        %v6953 = vshrl.u32 %v6952, 7
        %v6954 = vsub.s32 %v6951, %v6953
        %v6955 = vrot.slane %v6941, %v6954
        %v6956 = vcombine.high %v6948, %v6948
        %v6957 = vcombine.high %v6955, %v6955
        %v7354 = vunpack.c.l.b16 %v6520
        %v7355 = vunpack.c.h.b16 %v6520
        %v7356 = vunpack.c.l.b16 %v6521
        %v7357 = vunpack.c.h.b16 %v6521
        %v7358 = vunpack.c.l.b16 %v6522
        %v7359 = vunpack.c.h.b16 %v6522
        %v7360 = vunpack.c.l.b16 %v6523
        %v7361 = vunpack.c.h.b16 %v6523
        %v7362 = vunpack.c.l.b16 %v6524
        %v7363 = vunpack.c.h.b16 %v6524
        %v7364 = vunpack.c.l.b16 %v6525
        %v7365 = vunpack.c.h.b16 %v6525
        %v7366 = vunpack.c.l.b16 %v6526
        %v7367 = vunpack.c.h.b16 %v6526
        %v7368 = vunpack.c.l.b16 %v6527
        %v7369 = vunpack.c.h.b16 %v6527
        %v7370 = vunpack.c.l.b16 %v6528
        %v7371 = vunpack.c.h.b16 %v6528
        %v7372 = vunpack.c.l.b16 %v6529
        %v7373 = vunpack.c.h.b16 %v6529
        %v7374 = vunpack.c.l.b16 %v6530
        %v7375 = vunpack.c.h.b16 %v6530
        %v7376 = vunpack.c.l.b16 %v6531
        %v7377 = vunpack.c.h.b16 %v6531
        %v7378 = vunpack.c.l.b16 %v6532
        %v7379 = vunpack.c.h.b16 %v6532
        %v7380 = vunpack.c.l.b16 %v6533
        %v7381 = vunpack.c.h.b16 %v6533
        %v7382 = vunpack.c.l.b16 %v6534
        %v7383 = vunpack.c.h.b16 %v6534
        %v7384 = vunpack.c.l.b16 %v6535
        %v7385 = vunpack.c.h.b16 %v6535
        %v7386 = vunpack.c.l.b16 %v6536
        %v7387 = vunpack.c.h.b16 %v6536
        %v7388 = vunpack.c.l.b16 %v6537
        %v7389 = vunpack.c.h.b16 %v6537
        %v7390 = vunpack.c.l.b16 %v6538
        %v7391 = vunpack.c.h.b16 %v6538
        %v7392 = vunpack.c.l.b16 %v6539
        %v7393 = vunpack.c.h.b16 %v6539
        %v7394 = vunpack.c.l.b16 %v6540
        %v7395 = vunpack.c.h.b16 %v6540
        %v7396 = vunpack.c.l.b16 %v6541
        %v7397 = vunpack.c.h.b16 %v6541
        %v7398 = vunpack.c.l.b16 %v6542
        %v7399 = vunpack.c.h.b16 %v6542
        %v7400 = vunpack.c.l.b16 %v6543
        %v7401 = vunpack.c.h.b16 %v6543
        %v7402 = vunpack.c.l.b16 %v6544
        %v7403 = vunpack.c.h.b16 %v6544
        %v7404 = vunpack.c.l.b16 %v6545
        %v7405 = vunpack.c.h.b16 %v6545
        %v7406 = vunpack.c.l.b16 %v6546
        %v7407 = vunpack.c.h.b16 %v6546
        %v7408 = vunpack.c.l.b16 %v6547
        %v7409 = vunpack.c.h.b16 %v6547
        %v7410 = vunpack.c.l.b16 %v6548
        %v7411 = vunpack.c.h.b16 %v6548
        %v7412 = vunpack.c.l.b16 %v6549
        %v7413 = vunpack.c.h.b16 %v6549
        %v7414 = vunpack.c.l.b16 %v6550
        %v7415 = vunpack.c.h.b16 %v6550
        %v7416 = vunpack.c.l.b16 %v6551
        %v7417 = vunpack.c.h.b16 %v6551
        %v7418 = vunpack.c.l.b16 %v6552
        %v7419 = vunpack.c.h.b16 %v6552
        %v7420 = vunpack.c.l.b16 %v6553
        %v7421 = vunpack.c.h.b16 %v6553
        %v7422 = vunpack.c.l.b16 %v6554
        %v7423 = vunpack.c.h.b16 %v6554
        %v7424 = vunpack.c.l.b16 %v6555
        %v7425 = vunpack.c.h.b16 %v6555
        %v7426 = vunpack.c.l.b16 %v6556
        %v7427 = vunpack.c.h.b16 %v6556
        %v7428 = vunpack.c.l.b16 %v6557
        %v7429 = vunpack.c.h.b16 %v6557
        %v7430 = vunpack.c.l.b16 %v6558
        %v7431 = vunpack.c.h.b16 %v6558
        %v7432 = vunpack.c.l.b16 %v6559
        %v7433 = vunpack.c.h.b16 %v6559
        %v7434 = vunpack.c.l.b16 %v6560
        %v7435 = vunpack.c.h.b16 %v6560
        %v7436 = vunpack.c.l.b16 %v6561
        %v7437 = vunpack.c.h.b16 %v6561
        %v7438 = vunpack.c.l.b16 %v6562
        %v7439 = vunpack.c.h.b16 %v6562
        %v7440 = vunpack.c.l.b16 %v6563
        %v7441 = vunpack.c.h.b16 %v6563
        %v7442 = vunpack.c.l.b16 %v6564
        %v7443 = vunpack.c.h.b16 %v6564
        %v7444 = vunpack.c.l.b16 %v6565
        %v7445 = vunpack.c.h.b16 %v6565
        %v7446 = vunpack.c.l.b16 %v6566
        %v7447 = vunpack.c.h.b16 %v6566
        %v7448 = vunpack.c.l.b16 %v6567
        %v7449 = vunpack.c.h.b16 %v6567
        %v7450 = vunpack.c.l.b16 %v6568
        %v7451 = vunpack.c.h.b16 %v6568
        %v7452 = vunpack.c.l.b16 %v6569
        %v7453 = vunpack.c.h.b16 %v6569
        %v7454 = vunpack.c.l.b16 %v6570
        %v7455 = vunpack.c.h.b16 %v6570
        %v7456 = vunpack.c.l.b16 %v6571
        %v7457 = vunpack.c.h.b16 %v6571
        %v7458 = vunpack.c.l.b16 %v6572
        %v7459 = vunpack.c.h.b16 %v6572
        %v7460 = vunpack.c.l.b16 %v6573
        %v7461 = vunpack.c.h.b16 %v6573
        %v7462 = vunpack.c.l.b16 %v6574
        %v7463 = vunpack.c.h.b16 %v6574
        %v7464 = vunpack.c.l.b16 %v6575
        %v7465 = vunpack.c.h.b16 %v6575
        %v7466 = vunpack.c.l.b16 %v6576
        %v7467 = vunpack.c.h.b16 %v6576
        %v7468 = vunpack.c.l.b16 %v6577
        %v7469 = vunpack.c.h.b16 %v6577
        %v7470 = vunpack.c.l.b16 %v6578
        %v7471 = vunpack.c.h.b16 %v6578
        %v7472 = vunpack.c.l.b16 %v6579
        %v7473 = vunpack.c.h.b16 %v6579
        %v7474 = vunpack.c.l.b16 %v6580
        %v7475 = vunpack.c.h.b16 %v6580
        %v7476 = vunpack.c.l.b16 %v6581
        %v7477 = vunpack.c.h.b16 %v6581
        %v7478 = vunpack.c.l.b16 %v6582
        %v7479 = vunpack.c.h.b16 %v6582
        %v7480 = vunpack.c.l.b16 %v6583
        %v7481 = vunpack.c.h.b16 %v6583
        %v7482 = vunpack.c.l.b16 %v6584
        %v7483 = vunpack.c.h.b16 %v6584
        %v7484 = vunpack.c.l.b16 %v6585
        %v7485 = vunpack.c.h.b16 %v6585
        %v7486 = vunpack.c.l.b16 %v6586
        %v7487 = vunpack.c.h.b16 %v6586
        %v7488 = vunpack.c.l.b16 %v6587
        %v7489 = vunpack.c.h.b16 %v6587
        %v7490 = vunpack.c.l.b16 %v6588
        %v7491 = vunpack.c.h.b16 %v6588
        %v7492 = vunpack.c.l.b16 %v6589
        %v7493 = vunpack.c.h.b16 %v6589
        %v7494 = vunpack.c.l.b16 %v6590
        %v7495 = vunpack.c.h.b16 %v6590
        %v7496 = vunpack.c.l.b16 %v6591
        %v7497 = vunpack.c.h.b16 %v6591
        %v7498 = vunpack.c.l.b16 %v6592
        %v7499 = vunpack.c.h.b16 %v6592
        %v7500 = vunpack.c.l.b16 %v6593
        %v7501 = vunpack.c.h.b16 %v6593
        %v7502 = vunpack.c.l.b16 %v6594
        %v7503 = vunpack.c.h.b16 %v6594
        %v7504 = vunpack.c.l.b16 %v6595
        %v7505 = vunpack.c.h.b16 %v6595
        %v7506 = vunpack.c.l.b16 %v6596
        %v7507 = vunpack.c.h.b16 %v6596
        %v7508 = vunpack.c.l.b16 %v6597
        %v7509 = vunpack.c.h.b16 %v6597
        %v7510 = vunpack.c.l.b16 %v6598
        %v7511 = vunpack.c.h.b16 %v6598
        %v7512 = vunpack.c.l.b16 %v6599
        %v7513 = vunpack.c.h.b16 %v6599
        %v7514 = vunpack.c.l.b16 %v6600
        %v7515 = vunpack.c.h.b16 %v6600
        %v7516 = vunpack.c.l.b16 %v6601
        %v7517 = vunpack.c.h.b16 %v6601
        %v7518 = vunpack.c.l.b16 %v6602
        %v7519 = vunpack.c.h.b16 %v6602
        %v7520 = vunpack.c.l.b16 %v6603
        %v7521 = vunpack.c.h.b16 %v6603
        %v7522 = vunpack.c.l.b16 %v6604
        %v7523 = vunpack.c.h.b16 %v6604
        %v7524 = vunpack.c.l.b16 %v6605
        %v7525 = vunpack.c.h.b16 %v6605
        %v7526 = vunpack.c.l.b16 %v6606
        %v7527 = vunpack.c.h.b16 %v6606
        %v7528 = vunpack.c.l.b16 %v6607
        %v7529 = vunpack.c.h.b16 %v6607
        %v7530 = vunpack.c.l.b16 %v6608
        %v7531 = vunpack.c.h.b16 %v6608
        %v7532 = vunpack.c.l.b16 %v6609
        %v7533 = vunpack.c.h.b16 %v6609
        %v7534 = vunpack.c.l.b16 %v6610
        %v7535 = vunpack.c.h.b16 %v6610
        %v7536 = vunpack.c.l.b16 %v6611
        %v7537 = vunpack.c.h.b16 %v6611
        %v7538 = vunpack.c.l.b16 %v6612
        %v7539 = vunpack.c.h.b16 %v6612
        %v7540 = vunpack.c.l.b16 %v6613
        %v7541 = vunpack.c.h.b16 %v6613
        %v7542 = vunpack.c.l.b16 %v6614
        %v7543 = vunpack.c.h.b16 %v6614
        %v7544 = vunpack.c.l.b16 %v6615
        %v7545 = vunpack.c.h.b16 %v6615
        %v7546 = vunpack.c.l.b16 %v6616
        %v7547 = vunpack.c.h.b16 %v6616
        %v7548 = vunpack.c.l.b16 %v6617
        %v7549 = vunpack.c.h.b16 %v6617
        %v7550 = vunpack.c.l.b16 %v6618
        %v7551 = vunpack.c.h.b16 %v6618
        %v7552 = vunpack.c.l.b16 %v6619
        %v7553 = vunpack.c.h.b16 %v6619
        %v7554 = vunpack.c.l.b16 %v6620
        %v7555 = vunpack.c.h.b16 %v6620
        %v7556 = vunpack.c.l.b16 %v6621
        %v7557 = vunpack.c.h.b16 %v6621
        %v7558 = vunpack.c.l.b16 %v6622
        %v7559 = vunpack.c.h.b16 %v6622
        %v7560 = vunpack.c.l.b16 %v6623
        %v7561 = vunpack.c.h.b16 %v6623
        %v7562 = vunpack.c.l.b16 %v6624
        %v7563 = vunpack.c.h.b16 %v6624
        %v7564 = vunpack.c.l.b16 %v6625
        %v7565 = vunpack.c.h.b16 %v6625
        %v7566 = vunpack.c.l.b16 %v6626
        %v7567 = vunpack.c.h.b16 %v6626
        %v7568 = vunpack.c.l.b16 %v6627
        %v7569 = vunpack.c.h.b16 %v6627
        %v7570 = vunpack.c.l.b16 %v6628
        %v7571 = vunpack.c.h.b16 %v6628
        %v7572 = vunpack.c.l.b16 %v6629
        %v7573 = vunpack.c.h.b16 %v6629
        %v7574 = vunpack.c.l.b16 %v6630
        %v7575 = vunpack.c.h.b16 %v6630
        %v7576 = vunpack.c.l.b16 %v6631
        %v7577 = vunpack.c.h.b16 %v6631
        %v7578 = vunpack.c.l.b16 %v6632
        %v7579 = vunpack.c.h.b16 %v6632
        %v7580 = vunpack.c.l.b16 %v6633
        %v7581 = vunpack.c.h.b16 %v6633
        %v7582 = vunpack.c.l.b16 %v6634
        %v7583 = vunpack.c.h.b16 %v6634
        %v7584 = vunpack.c.l.b16 %v6635
        %v7585 = vunpack.c.h.b16 %v6635
        %v7586 = vunpack.c.l.b16 %v6636
        %v7587 = vunpack.c.h.b16 %v6636
        %v7588 = vunpack.c.l.b16 %v6637
        %v7589 = vunpack.c.h.b16 %v6637
        %v7590 = vunpack.c.l.b16 %v6638
        %v7591 = vunpack.c.h.b16 %v6638
        %v7592 = vunpack.c.l.b16 %v6639
        %v7593 = vunpack.c.h.b16 %v6639
        %v7594 = vunpack.c.l.b16 %v6640
        %v7595 = vunpack.c.h.b16 %v6640
        %v7596 = vunpack.c.l.b16 %v6641
        %v7597 = vunpack.c.h.b16 %v6641
        %v7598 = vunpack.c.l.b16 %v6642
        %v7599 = vunpack.c.h.b16 %v6642
        %v7600 = vunpack.c.l.b16 %v6643
        %v7601 = vunpack.c.h.b16 %v6643
        %v7602 = vunpack.c.l.b16 %v6644
        %v7603 = vunpack.c.h.b16 %v6644
        %v7604 = vunpack.c.l.b16 %v6645
        %v7605 = vunpack.c.h.b16 %v6645
        %v7606 = vunpack.c.l.b16 %v6646
        %v7607 = vunpack.c.h.b16 %v6646
        %v7608 = vunpack.c.l.b16 %v6647
        %v7609 = vunpack.c.h.b16 %v6647
        %v7610 = vunpack.c.l.b16 %v6648
        %v7611 = vunpack.c.h.b16 %v6648
        %v7612 = vunpack.c.l.b16 %v6649
        %v7613 = vunpack.c.h.b16 %v6649
        %v7614 = vunpack.c.l.b16 %v6650
        %v7615 = vunpack.c.h.b16 %v6650
        %v7616 = vunpack.c.l.b16 %v6651
        %v7617 = vunpack.c.h.b16 %v6651
        %v7618 = vunpack.c.l.b16 %v6652
        %v7619 = vunpack.c.h.b16 %v6652
        %v7620 = vunpack.c.l.b16 %v6653
        %v7621 = vunpack.c.h.b16 %v6653
        %v7622 = vunpack.c.l.b16 %v6654
        %v7623 = vunpack.c.h.b16 %v6654
        %v7624 = vunpack.c.l.b16 %v6655
        %v7625 = vunpack.c.h.b16 %v6655
        %v7626 = vunpack.c.l.b16 %v6656
        %v7627 = vunpack.c.h.b16 %v6656
        %v7628 = vunpack.c.l.b16 %v6657
        %v7629 = vunpack.c.h.b16 %v6657
        %v7630 = vunpack.c.l.b16 %v6658
        %v7631 = vunpack.c.h.b16 %v6658
        %v7632 = vunpack.c.l.b16 %v6659
        %v7633 = vunpack.c.h.b16 %v6659
        %v7634 = vunpack.c.l.b16 %v6660
        %v7635 = vunpack.c.h.b16 %v6660
        %v7636 = vunpack.c.l.b16 %v6661
        %v7637 = vunpack.c.h.b16 %v6661
        %v7638 = vunpack.c.l.b16 %v6662
        %v7639 = vunpack.c.h.b16 %v6662
        %v7640 = vunpack.c.l.b16 %v6663
        %v7641 = vunpack.c.h.b16 %v6663
        %v7642 = vunpack.c.l.b16 %v6664
        %v7643 = vunpack.c.h.b16 %v6664
        %v7644 = vunpack.c.l.b16 %v6665
        %v7645 = vunpack.c.h.b16 %v6665
        %v7646 = vunpack.c.l.b16 %v6666
        %v7647 = vunpack.c.h.b16 %v6666
        %v7648 = vunpack.c.l.b16 %v6667
        %v7649 = vunpack.c.h.b16 %v6667
        %v7650 = vunpack.c.l.b16 %v6668
        %v7651 = vunpack.c.h.b16 %v6668
        %v7652 = vunpack.c.l.b16 %v6669
        %v7653 = vunpack.c.h.b16 %v6669
        %v7654 = vunpack.c.l.b16 %v6670
        %v7655 = vunpack.c.h.b16 %v6670
        %v7656 = vunpack.c.l.b16 %v6671
        %v7657 = vunpack.c.h.b16 %v6671
        %v7658 = vunpack.c.l.b16 %v6672
        %v7659 = vunpack.c.h.b16 %v6672
        %v7660 = vunpack.c.l.b16 %v6673
        %v7661 = vunpack.c.h.b16 %v6673
        %v7662 = vunpack.c.l.b16 %v6674
        %v7663 = vunpack.c.h.b16 %v6674
        %v7664 = vunpack.c.l.b16 %v6675
        %v7665 = vunpack.c.h.b16 %v6675
        %v7666 = vunpack.c.l.b16 %v6676
        %v7667 = vunpack.c.h.b16 %v6676
        %v7668 = vunpack.c.l.b16 %v6677
        %v7669 = vunpack.c.h.b16 %v6677
        %v7670 = vunpack.c.l.b16 %v6678
        %v7671 = vunpack.c.h.b16 %v6678
        %v7672 = vunpack.c.l.b16 %v6679
        %v7673 = vunpack.c.h.b16 %v6679
        %v7674 = vunpack.c.l.b16 %v6680
        %v7675 = vunpack.c.h.b16 %v6680
        %v7676 = vunpack.c.l.b16 %v6681
        %v7677 = vunpack.c.h.b16 %v6681
        %v7678 = vunpack.c.l.b16 %v6682
        %v7679 = vunpack.c.h.b16 %v6682
        %v7680 = vunpack.c.l.b16 %v6683
        %v7681 = vunpack.c.h.b16 %v6683
        %v7682 = vunpack.c.l.b16 %v6684
        %v7683 = vunpack.c.h.b16 %v6684
        %v7684 = vunpack.c.l.b16 %v6685
        %v7685 = vunpack.c.h.b16 %v6685
        %v7686 = vunpack.c.l.b16 %v6686
        %v7687 = vunpack.c.h.b16 %v6686
        %v7688 = vunpack.c.l.b16 %v6687
        %v7689 = vunpack.c.h.b16 %v6687
        %v7690 = vunpack.c.l.b16 %v6688
        %v7691 = vunpack.c.h.b16 %v6688
        %v7692 = vunpack.c.l.b16 %v6689
        %v7693 = vunpack.c.h.b16 %v6689
        %v7694 = vunpack.c.l.b16 %v6690
        %v7695 = vunpack.c.h.b16 %v6690
        %v7696 = vunpack.c.l.b16 %v6691
        %v7697 = vunpack.c.h.b16 %v6691
        %v7698 = vunpack.c.l.b16 %v6692
        %v7699 = vunpack.c.h.b16 %v6692
        %v7700 = vunpack.c.l.b16 %v6693
        %v7701 = vunpack.c.h.b16 %v6693
        %v7702 = vunpack.c.l.b16 %v6694
        %v7703 = vunpack.c.h.b16 %v6694
        %v7704 = vunpack.c.l.b16 %v6695
        %v7705 = vunpack.c.h.b16 %v6695
        %v7706 = vunpack.c.l.b16 %v6696
        %v7707 = vunpack.c.h.b16 %v6696
        %v7708 = vunpack.c.l.b16 %v6697
        %v7709 = vunpack.c.h.b16 %v6697
        %v7710 = vunpack.c.l.b16 %v6698
        %v7711 = vunpack.c.h.b16 %v6698
        %v7712 = vunpack.c.l.b16 %v6699
        %v7713 = vunpack.c.h.b16 %v6699
        %v7714 = vunpack.c.l.b16 %v6700
        %v7715 = vunpack.c.h.b16 %v6700
        %v7716 = vunpack.c.l.b16 %v6701
        %v7717 = vunpack.c.h.b16 %v6701
        %v7718 = vunpack.c.l.b16 %v6702
        %v7719 = vunpack.c.h.b16 %v6702
        %v7720 = vunpack.c.l.b16 %v6703
        %v7721 = vunpack.c.h.b16 %v6703
        %v7722 = vunpack.c.l.b16 %v6704
        %v7723 = vunpack.c.h.b16 %v6704
        %v7724 = vunpack.c.l.b16 %v6705
        %v7725 = vunpack.c.h.b16 %v6705
        %v7726 = vunpack.c.l.b16 %v6706
        %v7727 = vunpack.c.h.b16 %v6706
        %v7728 = vunpack.c.l.b16 %v6707
        %v7729 = vunpack.c.h.b16 %v6707
        %v7730 = vunpack.c.l.b16 %v6708
        %v7731 = vunpack.c.h.b16 %v6708
        %v7732 = vunpack.c.l.b16 %v6709
        %v7733 = vunpack.c.h.b16 %v6709
        %v7734 = vunpack.c.l.b16 %v6710
        %v7735 = vunpack.c.h.b16 %v6710
        %v7736 = vunpack.c.l.b16 %v6711
        %v7737 = vunpack.c.h.b16 %v6711
        %v7738 = vunpack.c.l.b16 %v6712
        %v7739 = vunpack.c.h.b16 %v6712
        %v7740 = vunpack.c.l.b16 %v6713
        %v7741 = vunpack.c.h.b16 %v6713
        %v7742 = vunpack.c.l.b16 %v6714
        %v7743 = vunpack.c.h.b16 %v6714
        %v7744 = vunpack.c.l.b16 %v6715
        %v7745 = vunpack.c.h.b16 %v6715
        %v7746 = vunpack.c.l.b16 %v6716
        %v7747 = vunpack.c.h.b16 %v6716
        %v7748 = vunpack.c.l.b16 %v6717
        %v7749 = vunpack.c.h.b16 %v6717
        %v7750 = vunpack.c.l.b16 %v6718
        %v7751 = vunpack.c.h.b16 %v6718
        %v7752 = vunpack.c.l.b16 %v6719
        %v7753 = vunpack.c.h.b16 %v6719
        %v7754 = vunpack.c.l.b16 %v6720
        %v7755 = vunpack.c.h.b16 %v6720
        %v7756 = vunpack.c.l.b16 %v6721
        %v7757 = vunpack.c.h.b16 %v6721
        %v7758 = vunpack.c.l.b16 %v6722
        %v7759 = vunpack.c.h.b16 %v6722
        %v7760 = vunpack.c.l.b16 %v6723
        %v7761 = vunpack.c.h.b16 %v6723
        %v7762 = vunpack.c.l.b16 %v6724
        %v7763 = vunpack.c.h.b16 %v6724
        %v7764 = vunpack.c.l.b16 %v6725
        %v7765 = vunpack.c.h.b16 %v6725
        %v7766 = vunpack.c.l.b16 %v6726
        %v7767 = vunpack.c.h.b16 %v6726
        %v7768 = vunpack.c.l.b16 %v6727
        %v7769 = vunpack.c.h.b16 %v6727
        %v7770 = vunpack.c.l.b16 %v6728
        %v7771 = vunpack.c.h.b16 %v6728
        %v7772 = vunpack.c.l.b16 %v6729
        %v7773 = vunpack.c.h.b16 %v6729
        %v7774 = vunpack.c.l.b16 %v6730
        %v7775 = vunpack.c.h.b16 %v6730
        %v7776 = vunpack.c.l.b16 %v6731
        %v7777 = vunpack.c.h.b16 %v6731
        %v7778 = vunpack.c.l.b16 %v6732
        %v7779 = vunpack.c.h.b16 %v6732
        %v7780 = vunpack.c.l.b16 %v6733
        %v7781 = vunpack.c.h.b16 %v6733
        %v7782 = vunpack.c.l.b16 %v6734
        %v7783 = vunpack.c.h.b16 %v6734
        %v7784 = vunpack.c.l.b16 %v6735
        %v7785 = vunpack.c.h.b16 %v6735
        %v7786 = vunpack.c.l.b16 %v6736
        %v7787 = vunpack.c.h.b16 %v6736
        %v7788 = vunpack.c.l.b16 %v6737
        %v7789 = vunpack.c.h.b16 %v6737
        %v7790 = vunpack.c.l.b16 %v6738
        %v7791 = vunpack.c.h.b16 %v6738
        %v7792 = vunpack.c.l.b16 %v6739
        %v7793 = vunpack.c.h.b16 %v6739
        %v7794 = vunpack.c.l.b16 %v6740
        %v7795 = vunpack.c.h.b16 %v6740
        %v7796 = vunpack.c.l.b16 %v6741
        %v7797 = vunpack.c.h.b16 %v6741
        %v7798 = vunpack.c.l.b16 %v6742
        %v7799 = vunpack.c.h.b16 %v6742
        %v7800 = vunpack.c.l.b16 %v6743
        %v7801 = vunpack.c.h.b16 %v6743
        %v7802 = vunpack.c.l.b16 %v6744
        %v7803 = vunpack.c.h.b16 %v6744
        %v7804 = vunpack.c.l.b16 %v6745
        %v7805 = vunpack.c.h.b16 %v6745
        %v7806 = vunpack.c.l.b16 %v6746
        %v7807 = vunpack.c.h.b16 %v6746
        %v7808 = vunpack.c.l.b16 %v6747
        %v7809 = vunpack.c.h.b16 %v6747
        %v7810 = vunpack.c.l.b16 %v6748
        %v7811 = vunpack.c.h.b16 %v6748
        %v7812 = vunpack.c.l.b16 %v6749
        %v7813 = vunpack.c.h.b16 %v6749
        %v7814 = vunpack.c.l.b16 %v6750
        %v7815 = vunpack.c.h.b16 %v6750
        %v7816 = vunpack.c.l.b16 %v6751
        %v7817 = vunpack.c.h.b16 %v6751
        %v7818 = vunpack.c.l.b16 %v6752
        %v7819 = vunpack.c.h.b16 %v6752
        %v7820 = vunpack.c.l.b16 %v6753
        %v7821 = vunpack.c.h.b16 %v6753
        %v7822 = vunpack.c.l.b16 %v6754
        %v7823 = vunpack.c.h.b16 %v6754
        %v7824 = vunpack.c.l.b16 %v6755
        %v7825 = vunpack.c.h.b16 %v6755
        %v7826 = vunpack.c.l.b16 %v6756
        %v7827 = vunpack.c.h.b16 %v6756
        %v7828 = vunpack.c.l.b16 %v6757
        %v7829 = vunpack.c.h.b16 %v6757
        %v7830 = vunpack.c.l.b16 %v6758
        %v7831 = vunpack.c.h.b16 %v6758
        %v7832 = vunpack.c.l.b16 %v6759
        %v7833 = vunpack.c.h.b16 %v6759
        %v7834 = vunpack.c.l.b16 %v6760
        %v7835 = vunpack.c.h.b16 %v6760
        %v7836 = vunpack.c.l.b16 %v6761
        %v7837 = vunpack.c.h.b16 %v6761
        %v7838 = vunpack.c.l.b16 %v6762
        %v7839 = vunpack.c.h.b16 %v6762
        %v7840 = vunpack.c.l.b16 %v6763
        %v7841 = vunpack.c.h.b16 %v6763
        %v7842 = vunpack.c.l.b16 %v6764
        %v7843 = vunpack.c.h.b16 %v6764
        %v7844 = vunpack.c.l.b16 %v6765
        %v7845 = vunpack.c.h.b16 %v6765
        %v7846 = vunpack.c.l.b16 %v6766
        %v7847 = vunpack.c.h.b16 %v6766
        %v7848 = vunpack.c.l.b16 %v6767
        %v7849 = vunpack.c.h.b16 %v6767
        %v7850 = vunpack.c.l.b16 %v6768
        %v7851 = vunpack.c.h.b16 %v6768
        %v7852 = vunpack.c.l.b16 %v6769
        %v7853 = vunpack.c.h.b16 %v6769
        %v7854 = vunpack.c.l.b16 %v6770
        %v7855 = vunpack.c.h.b16 %v6770
        %v7856 = vunpack.c.l.b16 %v6771
        %v7857 = vunpack.c.h.b16 %v6771
        %v7858 = vunpack.c.l.b16 %v6772
        %v7859 = vunpack.c.h.b16 %v6772
        %v7860 = vunpack.c.l.b16 %v6773
        %v7861 = vunpack.c.h.b16 %v6773
        %v7862 = vunpack.c.l.b16 %v6774
        %v7863 = vunpack.c.h.b16 %v6774
        %v7864 = vunpack.c.l.b16 %v6775
        %v7865 = vunpack.c.h.b16 %v6775
        %v7866 = vunpack.c.l.b16 %v6776
        %v7867 = vunpack.c.h.b16 %v6776
        %v7868 = vunpack.c.l.b16 %v6777
        %v7869 = vunpack.c.h.b16 %v6777
        %v7870 = vunpack.c.l.b16 %v6778
        %v7871 = vunpack.c.h.b16 %v6778
        %v7872 = vunpack.c.l.b16 %v6779
        %v7873 = vunpack.c.h.b16 %v6779
        %v7874 = vunpack.c.l.b16 %v6780
        %v7875 = vunpack.c.h.b16 %v6780
        %v7876 = vunpack.c.l.b16 %v6781
        %v7877 = vunpack.c.h.b16 %v6781
        %v7878 = vunpack.c.l.b16 %v6782
        %v7879 = vunpack.c.h.b16 %v6782
        %v7880 = vunpack.c.l.b16 %v6783
        %v7881 = vunpack.c.h.b16 %v6783
        %v7882 = vunpack.c.l.b16 %v6784
        %v7883 = vunpack.c.h.b16 %v6784
        %v7884 = vunpack.c.l.b16 %v6785
        %v7885 = vunpack.c.h.b16 %v6785
        %v7886 = vunpack.c.l.b16 %v6786
        %v7887 = vunpack.c.h.b16 %v6786
        %v7888 = vunpack.c.l.b16 %v6787
        %v7889 = vunpack.c.h.b16 %v6787
        %v7890 = vunpack.c.l.b16 %v6788
        %v7891 = vunpack.c.h.b16 %v6788
        %v7892 = vunpack.c.l.b16 %v6789
        %v7893 = vunpack.c.h.b16 %v6789
        %v7894 = vunpack.c.l.b16 %v6790
        %v7895 = vunpack.c.h.b16 %v6790
        %v7896 = vunpack.c.l.b16 %v6791
        %v7897 = vunpack.c.h.b16 %v6791
        %v7898 = vunpack.c.l.b16 %v6792
        %v7899 = vunpack.c.h.b16 %v6792
        %v7900 = vunpack.c.l.b16 %v6793
        %v7901 = vunpack.c.h.b16 %v6793
        %v7902 = vunpack.c.l.b16 %v6794
        %v7903 = vunpack.c.h.b16 %v6794
        %v7904 = vunpack.c.l.b16 %v6795
        %v7905 = vunpack.c.h.b16 %v6795
        %v7906 = vunpack.c.l.b16 %v6796
        %v7907 = vunpack.c.h.b16 %v6796
        %v7908 = vunpack.c.l.b16 %v6797
        %v7909 = vunpack.c.h.b16 %v6797
        %v7910 = vunpack.c.l.b16 %v6798
        %v7911 = vunpack.c.h.b16 %v6798
        %v7912 = vunpack.c.l.b16 %v6799
        %v7913 = vunpack.c.h.b16 %v6799
        %v7914 = vunpack.c.l.b16 %v6800
        %v7915 = vunpack.c.h.b16 %v6800
        %v7916 = vunpack.c.l.b16 %v6801
        %v7917 = vunpack.c.h.b16 %v6801
        %v7918 = vunpack.c.l.b16 %v6802
        %v7919 = vunpack.c.h.b16 %v6802
        %v7920 = vunpack.c.l.b16 %v6803
        %v7921 = vunpack.c.h.b16 %v6803
        %v7922 = vunpack.c.l.b16 %v6804
        %v7923 = vunpack.c.h.b16 %v6804
        %v7924 = vunpack.c.l.b16 %v6805
        %v7925 = vunpack.c.h.b16 %v6805
        %v7926 = vunpack.c.l.b16 %v6806
        %v7927 = vunpack.c.h.b16 %v6806
        %v7928 = vunpack.c.l.b16 %v6807
        %v7929 = vunpack.c.h.b16 %v6807
        %v7930 = vunpack.c.l.b16 %v6808
        %v7931 = vunpack.c.h.b16 %v6808
        %v7932 = vunpack.c.l.b16 %v6809
        %v7933 = vunpack.c.h.b16 %v6809
        %v7934 = vunpack.c.l.b16 %v6810
        %v7935 = vunpack.c.h.b16 %v6810
        %v7936 = vunpack.c.l.b16 %v6811
        %v7937 = vunpack.c.h.b16 %v6811
        %v7938 = vunpack.c.l.b16 %v6812
        %v7939 = vunpack.c.h.b16 %v6812
        %v7940 = vunpack.c.l.b16 %v6813
        %v7941 = vunpack.c.h.b16 %v6813
        %v7942 = vunpack.c.l.b16 %v6814
        %v7943 = vunpack.c.h.b16 %v6814
        %v7944 = vunpack.c.l.b16 %v6815
        %v7945 = vunpack.c.h.b16 %v6815
        %v7946 = vunpack.c.l.b16 %v6816
        %v7947 = vunpack.c.h.b16 %v6816
        %v7948 = vunpack.c.l.b16 %v6817
        %v7949 = vunpack.c.h.b16 %v6817
        %v7950 = vunpack.c.l.b16 %v6818
        %v7951 = vunpack.c.h.b16 %v6818
        %v7952 = vunpack.c.l.b16 %v6819
        %v7953 = vunpack.c.h.b16 %v6819
        %v7954 = vunpack.c.l.b16 %v6820
        %v7955 = vunpack.c.h.b16 %v6820
        %v7956 = vunpack.c.l.b16 %v6821
        %v7957 = vunpack.c.h.b16 %v6821
        %v7958 = vunpack.c.l.b16 %v6822
        %v7959 = vunpack.c.h.b16 %v6822
        %v7960 = vunpack.c.l.b16 %v6823
        %v7961 = vunpack.c.h.b16 %v6823
        %v7962 = vunpack.c.l.b16 %v6824
        %v7963 = vunpack.c.h.b16 %v6824
        %v7964 = vunpack.c.l.b16 %v6825
        %v7965 = vunpack.c.h.b16 %v6825
        %v7966 = vunpack.c.l.b16 %v6826
        %v7967 = vunpack.c.h.b16 %v6826
        %v7968 = vunpack.c.l.b16 %v6827
        %v7969 = vunpack.c.h.b16 %v6827
        %v7970 = vunpack.c.l.b16 %v6828
        %v7971 = vunpack.c.h.b16 %v6828
        %v7972 = vunpack.c.l.b16 %v6829
        %v7973 = vunpack.c.h.b16 %v6829
        %v7974 = vunpack.c.l.b16 %v6830
        %v7975 = vunpack.c.h.b16 %v6830
        %v7976 = vunpack.c.l.b16 %v6831
        %v7977 = vunpack.c.h.b16 %v6831
        %v7978 = vunpack.c.l.b16 %v6832
        %v7979 = vunpack.c.h.b16 %v6832
        %v7980 = vunpack.c.l.b16 %v6833
        %v7981 = vunpack.c.h.b16 %v6833
        %v7982 = vunpack.c.l.b16 %v6834
        %v7983 = vunpack.c.h.b16 %v6834
        %v7984 = vunpack.c.l.b16 %v6835
        %v7985 = vunpack.c.h.b16 %v6835
        %v7986 = vunpack.c.l.b16 %v6836
        %v7987 = vunpack.c.h.b16 %v6836
        %v7988 = vunpack.c.l.b16 %v6837
        %v7989 = vunpack.c.h.b16 %v6837
        %v7990 = vunpack.c.l.b16 %v6838
        %v7991 = vunpack.c.h.b16 %v6838
        %v7992 = vunpack.c.l.b16 %v6839
        %v7993 = vunpack.c.h.b16 %v6839
        %v7994 = vunpack.c.l.b16 %v6840
        %v7995 = vunpack.c.h.b16 %v6840
        %v7996 = vunpack.c.l.b16 %v6841
        %v7997 = vunpack.c.h.b16 %v6841
        %v7998 = vunpack.c.l.b16 %v6842
        %v7999 = vunpack.c.h.b16 %v6842
        %v8000 = vunpack.c.l.b16 %v6843
        %v8001 = vunpack.c.h.b16 %v6843
        %v8002 = vunpack.c.l.b16 %v6844
        %v8003 = vunpack.c.h.b16 %v6844
        %v8004 = vunpack.c.l.b16 %v6845
        %v8005 = vunpack.c.h.b16 %v6845
        %v8006 = vunpack.c.l.b16 %v6846
        %v8007 = vunpack.c.h.b16 %v6846
        %v8008 = vunpack.c.l.b16 %v6847
        %v8009 = vunpack.c.h.b16 %v6847
        %v8010 = vunpack.c.l.b16 %v6848
        %v8011 = vunpack.c.h.b16 %v6848
        %v8012 = vunpack.c.l.b16 %v6849
        %v8013 = vunpack.c.h.b16 %v6849
        %v8014 = vunpack.c.l.b16 %v6850
        %v8015 = vunpack.c.h.b16 %v6850
        %v8016 = vunpack.c.l.b16 %v6851
        %v8017 = vunpack.c.h.b16 %v6851
        %v8018 = vunpack.c.l.b16 %v6852
        %v8019 = vunpack.c.h.b16 %v6852
        %v8020 = vunpack.c.l.b16 %v6853
        %v8021 = vunpack.c.h.b16 %v6853
        %v8022 = vunpack.c.l.b16 %v6854
        %v8023 = vunpack.c.h.b16 %v6854
        %v8024 = vunpack.c.l.b16 %v6855
        %v8025 = vunpack.c.h.b16 %v6855
        %v8026 = vunpack.c.l.b16 %v6856
        %v8027 = vunpack.c.h.b16 %v6856
        %v8028 = vunpack.c.l.b16 %v6857
        %v8029 = vunpack.c.h.b16 %v6857
        %v8030 = vunpack.c.l.b16 %v6858
        %v8031 = vunpack.c.h.b16 %v6858
        %v8032 = vunpack.c.l.b16 %v6859
        %v8033 = vunpack.c.h.b16 %v6859
        %v8034 = vunpack.c.l.b16 %v6860
        %v8035 = vunpack.c.h.b16 %v6860
        %v8036 = vunpack.c.l.b16 %v6861
        %v8037 = vunpack.c.h.b16 %v6861
        %v8038 = vunpack.c.l.b16 %v6862
        %v8039 = vunpack.c.h.b16 %v6862
        %v8040 = vunpack.c.l.b16 %v6863
        %v8041 = vunpack.c.h.b16 %v6863
        %v8042 = vunpack.c.l.b16 %v6864
        %v8043 = vunpack.c.h.b16 %v6864
        %v8044 = vunpack.c.l.b16 %v6865
        %v8045 = vunpack.c.h.b16 %v6865
        %v8046 = vunpack.c.l.b16 %v6866
        %v8047 = vunpack.c.h.b16 %v6866
        %v8048 = vunpack.c.l.b16 %v6867
        %v8049 = vunpack.c.h.b16 %v6867
        %v8050 = vunpack.c.l.b16 %v6868
        %v8051 = vunpack.c.h.b16 %v6868
        %v8052 = vunpack.c.l.b16 %v6869
        %v8053 = vunpack.c.h.b16 %v6869
        %v8054 = vunpack.c.l.b16 %v6870
        %v8055 = vunpack.c.h.b16 %v6870
        %v8056 = vunpack.c.l.b16 %v6871
        %v8057 = vunpack.c.h.b16 %v6871
        %v8058 = vunpack.c.l.b16 %v6872
        %v8059 = vunpack.c.h.b16 %v6872
        %v8060 = vunpack.c.l.b16 %v6873
        %v8061 = vunpack.c.h.b16 %v6873
        %v8062 = vunpack.c.l.b16 %v6874
        %v8063 = vunpack.c.h.b16 %v6874
        %v8064 = vunpack.c.l.b16 %v6875
        %v8065 = vunpack.c.h.b16 %v6875
        %v8066 = vunpack.c.l.b16 %v6876
        %v8067 = vunpack.c.h.b16 %v6876
        %v8068 = vunpack.c.l.b16 %v6877
        %v8069 = vunpack.c.h.b16 %v6877
        %v8070 = vunpack.c.l.b16 %v6878
        %v8071 = vunpack.c.h.b16 %v6878
        %v8072 = vunpack.c.l.b16 %v6879
        %v8073 = vunpack.c.h.b16 %v6879
        %v8074 = vunpack.c.l.b16 %v6880
        %v8075 = vunpack.c.h.b16 %v6880
        %v8076 = vunpack.c.l.b16 %v6881
        %v8077 = vunpack.c.h.b16 %v6881
        %v8078 = vunpack.c.l.b16 %v6882
        %v8079 = vunpack.c.h.b16 %v6882
        %v8080 = vunpack.c.l.b16 %v6883
        %v8081 = vunpack.c.h.b16 %v6883
        %v8082 = vunpack.c.l.b16 %v6884
        %v8083 = vunpack.c.h.b16 %v6884
        %v8084 = vunpack.c.l.b16 %v6885
        %v8085 = vunpack.c.h.b16 %v6885
        %v8086 = vunpack.c.l.b16 %v6886
        %v8087 = vunpack.c.h.b16 %v6886
        %v8088 = vunpack.c.l.b16 %v6887
        %v8089 = vunpack.c.h.b16 %v6887
        %v8090 = vunpack.c.l.b16 %v6888
        %v8091 = vunpack.c.h.b16 %v6888
        %v8092 = vunpack.c.l.b16 %v6889
        %v8093 = vunpack.c.h.b16 %v6889
        %v8094 = vunpack.c.l.b16 %v6890
        %v8095 = vunpack.c.h.b16 %v6890
        %v8096 = vunpack.c.l.b16 %v6891
        %v8097 = vunpack.c.h.b16 %v6891
        %v8098 = vunpack.c.l.b16 %v6892
        %v8099 = vunpack.c.h.b16 %v6892
        %v8100 = vunpack.c.l.b16 %v6893
        %v8101 = vunpack.c.h.b16 %v6893
        %v8102 = vunpack.c.l.b16 %v6894
        %v8103 = vunpack.c.h.b16 %v6894
        %v8104 = vunpack.c.l.b16 %v6895
        %v8105 = vunpack.c.h.b16 %v6895
        %v8106 = vunpack.c.l.b16 %v6896
        %v8107 = vunpack.c.h.b16 %v6896
        %v8108 = vunpack.c.l.b16 %v6897
        %v8109 = vunpack.c.h.b16 %v6897
        %v8110 = vunpack.c.l.b16 %v6898
        %v8111 = vunpack.c.h.b16 %v6898
        %v8112 = vunpack.c.l.b16 %v6899
        %v8113 = vunpack.c.h.b16 %v6899
        %v8114 = vunpack.c.l.b16 %v6900
        %v8115 = vunpack.c.h.b16 %v6900
        %v8116 = vunpack.c.l.b16 %v6901
        %v8117 = vunpack.c.h.b16 %v6901
        %v8118 = vunpack.c.l.b16 %v6902
        %v8119 = vunpack.c.h.b16 %v6902
        %v8120 = vunpack.c.l.b16 %v6903
        %v8121 = vunpack.c.h.b16 %v6903
        %v8122 = vpack.c.b16 %v7358, %v7354
        %v8123 = vpack.c.b16 %v7359, %v7355
        %v8124 = vpack.c.b16 %v7360, %v7356
        %v8125 = vpack.c.b16 %v7361, %v7357
        %v8126 = vpack.c.b16 %v7366, %v7362
        %v8127 = vpack.c.b16 %v7367, %v7363
        %v8128 = vpack.c.b16 %v7368, %v7364
        %v8129 = vpack.c.b16 %v7369, %v7365
        %v8130 = vpack.c.b16 %v7374, %v7370
        %v8131 = vpack.c.b16 %v7375, %v7371
        %v8132 = vpack.c.b16 %v7376, %v7372
        %v8133 = vpack.c.b16 %v7377, %v7373
        %v8134 = vpack.c.b16 %v7382, %v7378
        %v8135 = vpack.c.b16 %v7383, %v7379
        %v8136 = vpack.c.b16 %v7384, %v7380
        %v8137 = vpack.c.b16 %v7385, %v7381
        %v8138 = vpack.c.b16 %v7390, %v7386
        %v8139 = vpack.c.b16 %v7391, %v7387
        %v8140 = vpack.c.b16 %v7392, %v7388
        %v8141 = vpack.c.b16 %v7393, %v7389
        %v8142 = vpack.c.b16 %v7398, %v7394
        %v8143 = vpack.c.b16 %v7399, %v7395
        %v8144 = vpack.c.b16 %v7400, %v7396
        %v8145 = vpack.c.b16 %v7401, %v7397
        %v8146 = vpack.c.b16 %v7406, %v7402
        %v8147 = vpack.c.b16 %v7407, %v7403
        %v8148 = vpack.c.b16 %v7408, %v7404
        %v8149 = vpack.c.b16 %v7409, %v7405
        %v8150 = vpack.c.b16 %v7414, %v7410
        %v8151 = vpack.c.b16 %v7415, %v7411
        %v8152 = vpack.c.b16 %v7416, %v7412
        %v8153 = vpack.c.b16 %v7417, %v7413
        %v8154 = vpack.c.b16 %v7422, %v7418
        %v8155 = vpack.c.b16 %v7423, %v7419
        %v8156 = vpack.c.b16 %v7424, %v7420
        %v8157 = vpack.c.b16 %v7425, %v7421
        %v8158 = vpack.c.b16 %v7430, %v7426
        %v8159 = vpack.c.b16 %v7431, %v7427
        %v8160 = vpack.c.b16 %v7432, %v7428
        %v8161 = vpack.c.b16 %v7433, %v7429
        %v8162 = vpack.c.b16 %v7438, %v7434
        %v8163 = vpack.c.b16 %v7439, %v7435
        %v8164 = vpack.c.b16 %v7440, %v7436
        %v8165 = vpack.c.b16 %v7441, %v7437
        %v8166 = vpack.c.b16 %v7446, %v7442
        %v8167 = vpack.c.b16 %v7447, %v7443
        %v8168 = vpack.c.b16 %v7448, %v7444
        %v8169 = vpack.c.b16 %v7449, %v7445
        %v8170 = vpack.c.b16 %v7454, %v7450
        %v8171 = vpack.c.b16 %v7455, %v7451
        %v8172 = vpack.c.b16 %v7456, %v7452
        %v8173 = vpack.c.b16 %v7457, %v7453
        %v8174 = vpack.c.b16 %v7462, %v7458
        %v8175 = vpack.c.b16 %v7463, %v7459
        %v8176 = vpack.c.b16 %v7464, %v7460
        %v8177 = vpack.c.b16 %v7465, %v7461
        %v8178 = vpack.c.b16 %v7470, %v7466
        %v8179 = vpack.c.b16 %v7471, %v7467
        %v8180 = vpack.c.b16 %v7472, %v7468
        %v8181 = vpack.c.b16 %v7473, %v7469
        %v8182 = vpack.c.b16 %v7478, %v7474
        %v8183 = vpack.c.b16 %v7479, %v7475
        %v8184 = vpack.c.b16 %v7480, %v7476
        %v8185 = vpack.c.b16 %v7481, %v7477
        %v8186 = vpack.c.b16 %v7486, %v7482
        %v8187 = vpack.c.b16 %v7487, %v7483
        %v8188 = vpack.c.b16 %v7488, %v7484
        %v8189 = vpack.c.b16 %v7489, %v7485
        %v8190 = vpack.c.b16 %v7494, %v7490
        %v8191 = vpack.c.b16 %v7495, %v7491
        %v8192 = vpack.c.b16 %v7496, %v7492
        %v8193 = vpack.c.b16 %v7497, %v7493
        %v8194 = vpack.c.b16 %v7502, %v7498
        %v8195 = vpack.c.b16 %v7503, %v7499
        %v8196 = vpack.c.b16 %v7504, %v7500
        %v8197 = vpack.c.b16 %v7505, %v7501
        %v8198 = vpack.c.b16 %v7510, %v7506
        %v8199 = vpack.c.b16 %v7511, %v7507
        %v8200 = vpack.c.b16 %v7512, %v7508
        %v8201 = vpack.c.b16 %v7513, %v7509
        %v8202 = vpack.c.b16 %v7518, %v7514
        %v8203 = vpack.c.b16 %v7519, %v7515
        %v8204 = vpack.c.b16 %v7520, %v7516
        %v8205 = vpack.c.b16 %v7521, %v7517
        %v8206 = vpack.c.b16 %v7526, %v7522
        %v8207 = vpack.c.b16 %v7527, %v7523
        %v8208 = vpack.c.b16 %v7528, %v7524
        %v8209 = vpack.c.b16 %v7529, %v7525
        %v8210 = vpack.c.b16 %v7534, %v7530
        %v8211 = vpack.c.b16 %v7535, %v7531
        %v8212 = vpack.c.b16 %v7536, %v7532
        %v8213 = vpack.c.b16 %v7537, %v7533
        %v8214 = vpack.c.b16 %v7542, %v7538
        %v8215 = vpack.c.b16 %v7543, %v7539
        %v8216 = vpack.c.b16 %v7544, %v7540
        %v8217 = vpack.c.b16 %v7545, %v7541
        %v8218 = vpack.c.b16 %v7550, %v7546
        %v8219 = vpack.c.b16 %v7551, %v7547
        %v8220 = vpack.c.b16 %v7552, %v7548
        %v8221 = vpack.c.b16 %v7553, %v7549
        %v8222 = vpack.c.b16 %v7558, %v7554
        %v8223 = vpack.c.b16 %v7559, %v7555
        %v8224 = vpack.c.b16 %v7560, %v7556
        %v8225 = vpack.c.b16 %v7561, %v7557
        %v8226 = vpack.c.b16 %v7566, %v7562
        %v8227 = vpack.c.b16 %v7567, %v7563
        %v8228 = vpack.c.b16 %v7568, %v7564
        %v8229 = vpack.c.b16 %v7569, %v7565
        %v8230 = vpack.c.b16 %v7574, %v7570
        %v8231 = vpack.c.b16 %v7575, %v7571
        %v8232 = vpack.c.b16 %v7576, %v7572
        %v8233 = vpack.c.b16 %v7577, %v7573
        %v8234 = vpack.c.b16 %v7582, %v7578
        %v8235 = vpack.c.b16 %v7583, %v7579
        %v8236 = vpack.c.b16 %v7584, %v7580
        %v8237 = vpack.c.b16 %v7585, %v7581
        %v8238 = vpack.c.b16 %v7590, %v7586
        %v8239 = vpack.c.b16 %v7591, %v7587
        %v8240 = vpack.c.b16 %v7592, %v7588
        %v8241 = vpack.c.b16 %v7593, %v7589
        %v8242 = vpack.c.b16 %v7598, %v7594
        %v8243 = vpack.c.b16 %v7599, %v7595
        %v8244 = vpack.c.b16 %v7600, %v7596
        %v8245 = vpack.c.b16 %v7601, %v7597
        %v8246 = vpack.c.b16 %v7606, %v7602
        %v8247 = vpack.c.b16 %v7607, %v7603
        %v8248 = vpack.c.b16 %v7608, %v7604
        %v8249 = vpack.c.b16 %v7609, %v7605
        %v8250 = vpack.c.b16 %v7614, %v7610
        %v8251 = vpack.c.b16 %v7615, %v7611
        %v8252 = vpack.c.b16 %v7616, %v7612
        %v8253 = vpack.c.b16 %v7617, %v7613
        %v8254 = vpack.c.b16 %v7622, %v7618
        %v8255 = vpack.c.b16 %v7623, %v7619
        %v8256 = vpack.c.b16 %v7624, %v7620
        %v8257 = vpack.c.b16 %v7625, %v7621
        %v8258 = vpack.c.b16 %v7630, %v7626
        %v8259 = vpack.c.b16 %v7631, %v7627
        %v8260 = vpack.c.b16 %v7632, %v7628
        %v8261 = vpack.c.b16 %v7633, %v7629
        %v8262 = vpack.c.b16 %v7638, %v7634
        %v8263 = vpack.c.b16 %v7639, %v7635
        %v8264 = vpack.c.b16 %v7640, %v7636
        %v8265 = vpack.c.b16 %v7641, %v7637
        %v8266 = vpack.c.b16 %v7646, %v7642
        %v8267 = vpack.c.b16 %v7647, %v7643
        %v8268 = vpack.c.b16 %v7648, %v7644
        %v8269 = vpack.c.b16 %v7649, %v7645
        %v8270 = vpack.c.b16 %v7654, %v7650
        %v8271 = vpack.c.b16 %v7655, %v7651
        %v8272 = vpack.c.b16 %v7656, %v7652
        %v8273 = vpack.c.b16 %v7657, %v7653
        %v8274 = vpack.c.b16 %v7662, %v7658
        %v8275 = vpack.c.b16 %v7663, %v7659
        %v8276 = vpack.c.b16 %v7664, %v7660
        %v8277 = vpack.c.b16 %v7665, %v7661
        %v8278 = vpack.c.b16 %v7670, %v7666
        %v8279 = vpack.c.b16 %v7671, %v7667
        %v8280 = vpack.c.b16 %v7672, %v7668
        %v8281 = vpack.c.b16 %v7673, %v7669
        %v8282 = vpack.c.b16 %v7678, %v7674
        %v8283 = vpack.c.b16 %v7679, %v7675
        %v8284 = vpack.c.b16 %v7680, %v7676
        %v8285 = vpack.c.b16 %v7681, %v7677
        %v8286 = vpack.c.b16 %v7686, %v7682
        %v8287 = vpack.c.b16 %v7687, %v7683
        %v8288 = vpack.c.b16 %v7688, %v7684
        %v8289 = vpack.c.b16 %v7689, %v7685
        %v8290 = vpack.c.b16 %v7694, %v7690
        %v8291 = vpack.c.b16 %v7695, %v7691
        %v8292 = vpack.c.b16 %v7696, %v7692
        %v8293 = vpack.c.b16 %v7697, %v7693
        %v8294 = vpack.c.b16 %v7702, %v7698
        %v8295 = vpack.c.b16 %v7703, %v7699
        %v8296 = vpack.c.b16 %v7704, %v7700
        %v8297 = vpack.c.b16 %v7705, %v7701
        %v8298 = vpack.c.b16 %v7710, %v7706
        %v8299 = vpack.c.b16 %v7711, %v7707
        %v8300 = vpack.c.b16 %v7712, %v7708
        %v8301 = vpack.c.b16 %v7713, %v7709
        %v8302 = vpack.c.b16 %v7718, %v7714
        %v8303 = vpack.c.b16 %v7719, %v7715
        %v8304 = vpack.c.b16 %v7720, %v7716
        %v8305 = vpack.c.b16 %v7721, %v7717
        %v8306 = vpack.c.b16 %v7726, %v7722
        %v8307 = vpack.c.b16 %v7727, %v7723
        %v8308 = vpack.c.b16 %v7728, %v7724
        %v8309 = vpack.c.b16 %v7729, %v7725
        %v8310 = vpack.c.b16 %v7734, %v7730
        %v8311 = vpack.c.b16 %v7735, %v7731
        %v8312 = vpack.c.b16 %v7736, %v7732
        %v8313 = vpack.c.b16 %v7737, %v7733
        %v8314 = vpack.c.b16 %v7742, %v7738
        %v8315 = vpack.c.b16 %v7743, %v7739
        %v8316 = vpack.c.b16 %v7744, %v7740
        %v8317 = vpack.c.b16 %v7745, %v7741
        %v8318 = vpack.c.b16 %v7750, %v7746
        %v8319 = vpack.c.b16 %v7751, %v7747
        %v8320 = vpack.c.b16 %v7752, %v7748
        %v8321 = vpack.c.b16 %v7753, %v7749
        %v8322 = vpack.c.b16 %v7758, %v7754
        %v8323 = vpack.c.b16 %v7759, %v7755
        %v8324 = vpack.c.b16 %v7760, %v7756
        %v8325 = vpack.c.b16 %v7761, %v7757
        %v8326 = vpack.c.b16 %v7766, %v7762
        %v8327 = vpack.c.b16 %v7767, %v7763
        %v8328 = vpack.c.b16 %v7768, %v7764
        %v8329 = vpack.c.b16 %v7769, %v7765
        %v8330 = vpack.c.b16 %v7774, %v7770
        %v8331 = vpack.c.b16 %v7775, %v7771
        %v8332 = vpack.c.b16 %v7776, %v7772
        %v8333 = vpack.c.b16 %v7777, %v7773
        %v8334 = vpack.c.b16 %v7782, %v7778
        %v8335 = vpack.c.b16 %v7783, %v7779
        %v8336 = vpack.c.b16 %v7784, %v7780
        %v8337 = vpack.c.b16 %v7785, %v7781
        %v8338 = vpack.c.b16 %v7790, %v7786
        %v8339 = vpack.c.b16 %v7791, %v7787
        %v8340 = vpack.c.b16 %v7792, %v7788
        %v8341 = vpack.c.b16 %v7793, %v7789
        %v8342 = vpack.c.b16 %v7798, %v7794
        %v8343 = vpack.c.b16 %v7799, %v7795
        %v8344 = vpack.c.b16 %v7800, %v7796
        %v8345 = vpack.c.b16 %v7801, %v7797
        %v8346 = vpack.c.b16 %v7806, %v7802
        %v8347 = vpack.c.b16 %v7807, %v7803
        %v8348 = vpack.c.b16 %v7808, %v7804
        %v8349 = vpack.c.b16 %v7809, %v7805
        %v8350 = vpack.c.b16 %v7814, %v7810
        %v8351 = vpack.c.b16 %v7815, %v7811
        %v8352 = vpack.c.b16 %v7816, %v7812
        %v8353 = vpack.c.b16 %v7817, %v7813
        %v8354 = vpack.c.b16 %v7822, %v7818
        %v8355 = vpack.c.b16 %v7823, %v7819
        %v8356 = vpack.c.b16 %v7824, %v7820
        %v8357 = vpack.c.b16 %v7825, %v7821
        %v8358 = vpack.c.b16 %v7830, %v7826
        %v8359 = vpack.c.b16 %v7831, %v7827
        %v8360 = vpack.c.b16 %v7832, %v7828
        %v8361 = vpack.c.b16 %v7833, %v7829
        %v8362 = vpack.c.b16 %v7838, %v7834
        %v8363 = vpack.c.b16 %v7839, %v7835
        %v8364 = vpack.c.b16 %v7840, %v7836
        %v8365 = vpack.c.b16 %v7841, %v7837
        %v8366 = vpack.c.b16 %v7846, %v7842
        %v8367 = vpack.c.b16 %v7847, %v7843
        %v8368 = vpack.c.b16 %v7848, %v7844
        %v8369 = vpack.c.b16 %v7849, %v7845
        %v8370 = vpack.c.b16 %v7854, %v7850
        %v8371 = vpack.c.b16 %v7855, %v7851
        %v8372 = vpack.c.b16 %v7856, %v7852
        %v8373 = vpack.c.b16 %v7857, %v7853
        %v8374 = vpack.c.b16 %v7862, %v7858
        %v8375 = vpack.c.b16 %v7863, %v7859
        %v8376 = vpack.c.b16 %v7864, %v7860
        %v8377 = vpack.c.b16 %v7865, %v7861
        %v8378 = vpack.c.b16 %v7870, %v7866
        %v8379 = vpack.c.b16 %v7871, %v7867
        %v8380 = vpack.c.b16 %v7872, %v7868
        %v8381 = vpack.c.b16 %v7873, %v7869
        %v8382 = vpack.c.b16 %v7878, %v7874
        %v8383 = vpack.c.b16 %v7879, %v7875
        %v8384 = vpack.c.b16 %v7880, %v7876
        %v8385 = vpack.c.b16 %v7881, %v7877
        %v8386 = vpack.c.b16 %v7886, %v7882
        %v8387 = vpack.c.b16 %v7887, %v7883
        %v8388 = vpack.c.b16 %v7888, %v7884
        %v8389 = vpack.c.b16 %v7889, %v7885
        %v8390 = vpack.c.b16 %v7894, %v7890
        %v8391 = vpack.c.b16 %v7895, %v7891
        %v8392 = vpack.c.b16 %v7896, %v7892
        %v8393 = vpack.c.b16 %v7897, %v7893
        %v8394 = vpack.c.b16 %v7902, %v7898
        %v8395 = vpack.c.b16 %v7903, %v7899
        %v8396 = vpack.c.b16 %v7904, %v7900
        %v8397 = vpack.c.b16 %v7905, %v7901
        %v8398 = vpack.c.b16 %v7910, %v7906
        %v8399 = vpack.c.b16 %v7911, %v7907
        %v8400 = vpack.c.b16 %v7912, %v7908
        %v8401 = vpack.c.b16 %v7913, %v7909
        %v8402 = vpack.c.b16 %v7918, %v7914
        %v8403 = vpack.c.b16 %v7919, %v7915
        %v8404 = vpack.c.b16 %v7920, %v7916
        %v8405 = vpack.c.b16 %v7921, %v7917
        %v8406 = vpack.c.b16 %v7926, %v7922
        %v8407 = vpack.c.b16 %v7927, %v7923
        %v8408 = vpack.c.b16 %v7928, %v7924
        %v8409 = vpack.c.b16 %v7929, %v7925
        %v8410 = vpack.c.b16 %v7934, %v7930
        %v8411 = vpack.c.b16 %v7935, %v7931
        %v8412 = vpack.c.b16 %v7936, %v7932
        %v8413 = vpack.c.b16 %v7937, %v7933
        %v8414 = vpack.c.b16 %v7942, %v7938
        %v8415 = vpack.c.b16 %v7943, %v7939
        %v8416 = vpack.c.b16 %v7944, %v7940
        %v8417 = vpack.c.b16 %v7945, %v7941
        %v8418 = vpack.c.b16 %v7950, %v7946
        %v8419 = vpack.c.b16 %v7951, %v7947
        %v8420 = vpack.c.b16 %v7952, %v7948
        %v8421 = vpack.c.b16 %v7953, %v7949
        %v8422 = vpack.c.b16 %v7958, %v7954
        %v8423 = vpack.c.b16 %v7959, %v7955
        %v8424 = vpack.c.b16 %v7960, %v7956
        %v8425 = vpack.c.b16 %v7961, %v7957
        %v8426 = vpack.c.b16 %v7966, %v7962
        %v8427 = vpack.c.b16 %v7967, %v7963
        %v8428 = vpack.c.b16 %v7968, %v7964
        %v8429 = vpack.c.b16 %v7969, %v7965
        %v8430 = vpack.c.b16 %v7974, %v7970
        %v8431 = vpack.c.b16 %v7975, %v7971
        %v8432 = vpack.c.b16 %v7976, %v7972
        %v8433 = vpack.c.b16 %v7977, %v7973
        %v8434 = vpack.c.b16 %v7982, %v7978
        %v8435 = vpack.c.b16 %v7983, %v7979
        %v8436 = vpack.c.b16 %v7984, %v7980
        %v8437 = vpack.c.b16 %v7985, %v7981
        %v8438 = vpack.c.b16 %v7990, %v7986
        %v8439 = vpack.c.b16 %v7991, %v7987
        %v8440 = vpack.c.b16 %v7992, %v7988
        %v8441 = vpack.c.b16 %v7993, %v7989
        %v8442 = vpack.c.b16 %v7998, %v7994
        %v8443 = vpack.c.b16 %v7999, %v7995
        %v8444 = vpack.c.b16 %v8000, %v7996
        %v8445 = vpack.c.b16 %v8001, %v7997
        %v8446 = vpack.c.b16 %v8006, %v8002
        %v8447 = vpack.c.b16 %v8007, %v8003
        %v8448 = vpack.c.b16 %v8008, %v8004
        %v8449 = vpack.c.b16 %v8009, %v8005
        %v8450 = vpack.c.b16 %v8014, %v8010
        %v8451 = vpack.c.b16 %v8015, %v8011
        %v8452 = vpack.c.b16 %v8016, %v8012
        %v8453 = vpack.c.b16 %v8017, %v8013
        %v8454 = vpack.c.b16 %v8022, %v8018
        %v8455 = vpack.c.b16 %v8023, %v8019
        %v8456 = vpack.c.b16 %v8024, %v8020
        %v8457 = vpack.c.b16 %v8025, %v8021
        %v8458 = vpack.c.b16 %v8030, %v8026
        %v8459 = vpack.c.b16 %v8031, %v8027
        %v8460 = vpack.c.b16 %v8032, %v8028
        %v8461 = vpack.c.b16 %v8033, %v8029
        %v8462 = vpack.c.b16 %v8038, %v8034
        %v8463 = vpack.c.b16 %v8039, %v8035
        %v8464 = vpack.c.b16 %v8040, %v8036
        %v8465 = vpack.c.b16 %v8041, %v8037
        %v8466 = vpack.c.b16 %v8046, %v8042
        %v8467 = vpack.c.b16 %v8047, %v8043
        %v8468 = vpack.c.b16 %v8048, %v8044
        %v8469 = vpack.c.b16 %v8049, %v8045
        %v8470 = vpack.c.b16 %v8054, %v8050
        %v8471 = vpack.c.b16 %v8055, %v8051
        %v8472 = vpack.c.b16 %v8056, %v8052
        %v8473 = vpack.c.b16 %v8057, %v8053
        %v8474 = vpack.c.b16 %v8062, %v8058
        %v8475 = vpack.c.b16 %v8063, %v8059
        %v8476 = vpack.c.b16 %v8064, %v8060
        %v8477 = vpack.c.b16 %v8065, %v8061
        %v8478 = vpack.c.b16 %v8070, %v8066
        %v8479 = vpack.c.b16 %v8071, %v8067
        %v8480 = vpack.c.b16 %v8072, %v8068
        %v8481 = vpack.c.b16 %v8073, %v8069
        %v8482 = vpack.c.b16 %v8078, %v8074
        %v8483 = vpack.c.b16 %v8079, %v8075
        %v8484 = vpack.c.b16 %v8080, %v8076
        %v8485 = vpack.c.b16 %v8081, %v8077
        %v8486 = vpack.c.b16 %v8086, %v8082
        %v8487 = vpack.c.b16 %v8087, %v8083
        %v8488 = vpack.c.b16 %v8088, %v8084
        %v8489 = vpack.c.b16 %v8089, %v8085
        %v8490 = vpack.c.b16 %v8094, %v8090
        %v8491 = vpack.c.b16 %v8095, %v8091
        %v8492 = vpack.c.b16 %v8096, %v8092
        %v8493 = vpack.c.b16 %v8097, %v8093
        %v8494 = vpack.c.b16 %v8102, %v8098
        %v8495 = vpack.c.b16 %v8103, %v8099
        %v8496 = vpack.c.b16 %v8104, %v8100
        %v8497 = vpack.c.b16 %v8105, %v8101
        %v8498 = vpack.c.b16 %v8110, %v8106
        %v8499 = vpack.c.b16 %v8111, %v8107
        %v8500 = vpack.c.b16 %v8112, %v8108
        %v8501 = vpack.c.b16 %v8113, %v8109
        %v8502 = vpack.c.b16 %v8118, %v8114
        %v8503 = vpack.c.b16 %v8119, %v8115
        %v8504 = vpack.c.b16 %v8120, %v8116
        %v8505 = vpack.c.b16 %v8121, %v8117
        %8890 = vmatprep.subr.bf16.mxu0 %v8151
        %8891 = vmatpush1.bf16.msra.mxu0 %v8150
        %8892 = vmatprep.subr.bf16.mxu0 %v8147
        %8893 = vmatpush1.bf16.msra.mxu0 %v8146
        %8894 = vmatprep.subr.bf16.mxu0 %v8143
        %8895 = vmatpush1.bf16.msra.mxu0 %v8142
        %8896 = vmatprep.subr.bf16.mxu0 %v8139
        %8897 = vmatpush1.bf16.msra.mxu0 %v8138
        %8898 = vmatprep.subr.bf16.mxu0 %v8135
        %8899 = vmatpush1.bf16.msra.mxu0 %v8134
        %8900 = vmatprep.subr.bf16.mxu0 %v8131
        %8901 = vmatpush1.bf16.msra.mxu0 %v8130
        %8902 = vmatprep.subr.bf16.mxu0 %v8127
        %8903 = vmatpush1.bf16.msra.mxu0 %v8126
        %8904 = vmatprep.subr.bf16.mxu0 %v8123
        %8905 = vmatpush1.bf16.msra.mxu0 %v8122
        %8906 = vmatprep.subr.bf16.mxu0 %v8183
        %8907 = vmatpush2.bf16.msra.mxu0 %v8182
        %8908 = vmatprep.subr.bf16.mxu0 %v8179
        %8909 = vmatpush2.bf16.msra.mxu0 %v8178
        %8910 = vmatprep.subr.bf16.mxu0 %v8175
        %8911 = vmatpush2.bf16.msra.mxu0 %v8174
        %8912 = vmatprep.subr.bf16.mxu0 %v8171
        %8913 = vmatpush2.bf16.msra.mxu0 %v8170
        %8914 = vmatprep.subr.bf16.mxu0 %v8167
        %8915 = vmatpush2.bf16.msra.mxu0 %v8166
        %8916 = vmatprep.subr.bf16.mxu0 %v8163
        %8917 = vmatpush2.bf16.msra.mxu0 %v8162
        %8918 = vmatprep.subr.bf16.mxu0 %v8159
        %8919 = vmatpush2.bf16.msra.mxu0 %v8158
        %8920 = vmatprep.subr.bf16.mxu0 %v8155
        %8921 = vmatpush2.bf16.msra.mxu0 %v8154
        %8922 = vmatprep.mubr.bf16.mxu0 %v6922
        %8923 = vmatmul.mubr.bf16.gmra.mxu0 %v6914
        %v8924 = vpop.f32.mrf.mxu0
        %v8925 = vadd.f32 0.0, %v8924
        %v8926 = vpop.f32.mrf.mxu0
        %v8927 = vadd.f32 0.0, %v8926
        %v8928 = vpop.f32.mrf.mxu0
        %v8929 = vpop.f32.mrf.mxu0
        %8930 = vdwg.mxu0
        %8931 = vmatprep.subr.bf16.mxu0 %v8215
        %8932 = vmatpush1.bf16.msra.mxu0 %v8214
        %8933 = vmatprep.subr.bf16.mxu0 %v8211
        %8934 = vmatpush1.bf16.msra.mxu0 %v8210
        %8935 = vmatprep.subr.bf16.mxu0 %v8207
        %8936 = vmatpush1.bf16.msra.mxu0 %v8206
        %8937 = vmatprep.subr.bf16.mxu0 %v8203
        %8938 = vmatpush1.bf16.msra.mxu0 %v8202
        %8939 = vmatprep.subr.bf16.mxu0 %v8199
        %8940 = vmatpush1.bf16.msra.mxu0 %v8198
        %8941 = vmatprep.subr.bf16.mxu0 %v8195
        %8942 = vmatpush1.bf16.msra.mxu0 %v8194
        %8943 = vmatprep.subr.bf16.mxu0 %v8191
        %8944 = vmatpush1.bf16.msra.mxu0 %v8190
        %8945 = vmatprep.subr.bf16.mxu0 %v8187
        %8946 = vmatpush1.bf16.msra.mxu0 %v8186
        %8947 = vmatprep.subr.bf16.mxu0 %v8247
        %8948 = vmatpush2.bf16.msra.mxu0 %v8246
        %8949 = vmatprep.subr.bf16.mxu0 %v8243
        %8950 = vmatpush2.bf16.msra.mxu0 %v8242
        %8951 = vmatprep.subr.bf16.mxu0 %v8239
        %8952 = vmatpush2.bf16.msra.mxu0 %v8238
        %8953 = vmatprep.subr.bf16.mxu0 %v8235
        %8954 = vmatpush2.bf16.msra.mxu0 %v8234
        %8955 = vmatprep.subr.bf16.mxu0 %v8231
        %8956 = vmatpush2.bf16.msra.mxu0 %v8230
        %8957 = vmatprep.subr.bf16.mxu0 %v8227
        %8958 = vmatpush2.bf16.msra.mxu0 %v8226
        %8959 = vmatprep.subr.bf16.mxu0 %v8223
        %8960 = vmatpush2.bf16.msra.mxu0 %v8222
        %8961 = vmatprep.subr.bf16.mxu0 %v8219
        %8962 = vmatpush2.bf16.msra.mxu0 %v8218
        %8963 = vmatprep.mubr.bf16.mxu0 %v6923
        %8964 = vmatmul.mubr.bf16.gmra.mxu0 %v6921
        %v8965 = vpop.f32.mrf.mxu0
        %v8966 = vadd.f32 %v8925, %v8965
        %v8967 = vpop.f32.mrf.mxu0
        %v8968 = vadd.f32 %v8927, %v8967
        %v8969 = vpop.f32.mrf.mxu0
        %v8970 = vpop.f32.mrf.mxu0
        %8971 = vdwg.mxu0
        %8972 = vmatprep.subr.bf16.mxu0 %v8279
        %8973 = vmatpush1.bf16.msra.mxu0 %v8278
        %8974 = vmatprep.subr.bf16.mxu0 %v8275
        %8975 = vmatpush1.bf16.msra.mxu0 %v8274
        %8976 = vmatprep.subr.bf16.mxu0 %v8271
        %8977 = vmatpush1.bf16.msra.mxu0 %v8270
        %8978 = vmatprep.subr.bf16.mxu0 %v8267
        %8979 = vmatpush1.bf16.msra.mxu0 %v8266
        %8980 = vmatprep.subr.bf16.mxu0 %v8263
        %8981 = vmatpush1.bf16.msra.mxu0 %v8262
        %8982 = vmatprep.subr.bf16.mxu0 %v8259
        %8983 = vmatpush1.bf16.msra.mxu0 %v8258
        %8984 = vmatprep.subr.bf16.mxu0 %v8255
        %8985 = vmatpush1.bf16.msra.mxu0 %v8254
        %8986 = vmatprep.subr.bf16.mxu0 %v8251
        %8987 = vmatpush1.bf16.msra.mxu0 %v8250
        %8988 = vmatprep.subr.bf16.mxu0 %v8311
        %8989 = vmatpush2.bf16.msra.mxu0 %v8310
        %8990 = vmatprep.subr.bf16.mxu0 %v8307
        %8991 = vmatpush2.bf16.msra.mxu0 %v8306
        %8992 = vmatprep.subr.bf16.mxu0 %v8303
        %8993 = vmatpush2.bf16.msra.mxu0 %v8302
        %8994 = vmatprep.subr.bf16.mxu0 %v8299
        %8995 = vmatpush2.bf16.msra.mxu0 %v8298
        %8996 = vmatprep.subr.bf16.mxu0 %v8295
        %8997 = vmatpush2.bf16.msra.mxu0 %v8294
        %8998 = vmatprep.subr.bf16.mxu0 %v8291
        %8999 = vmatpush2.bf16.msra.mxu0 %v8290
        %9000 = vmatprep.subr.bf16.mxu0 %v8287
        %9001 = vmatpush2.bf16.msra.mxu0 %v8286
        %9002 = vmatprep.subr.bf16.mxu0 %v8283
        %9003 = vmatpush2.bf16.msra.mxu0 %v8282
        %9004 = vmatprep.mubr.bf16.mxu0 %v6939
        %9005 = vmatmul.mubr.bf16.gmra.mxu0 %v6931
        %v9006 = vpop.f32.mrf.mxu0
        %v9007 = vadd.f32 %v8966, %v9006
        %v9008 = vpop.f32.mrf.mxu0
        %v9009 = vadd.f32 %v8968, %v9008
        %v9010 = vpop.f32.mrf.mxu0
        %v9011 = vpop.f32.mrf.mxu0
        %9012 = vdwg.mxu0
        %9013 = vmatprep.subr.bf16.mxu0 %v8343
        %9014 = vmatpush1.bf16.msra.mxu0 %v8342
        %9015 = vmatprep.subr.bf16.mxu0 %v8339
        %9016 = vmatpush1.bf16.msra.mxu0 %v8338
        %9017 = vmatprep.subr.bf16.mxu0 %v8335
        %9018 = vmatpush1.bf16.msra.mxu0 %v8334
        %9019 = vmatprep.subr.bf16.mxu0 %v8331
        %9020 = vmatpush1.bf16.msra.mxu0 %v8330
        %9021 = vmatprep.subr.bf16.mxu0 %v8327
        %9022 = vmatpush1.bf16.msra.mxu0 %v8326
        %9023 = vmatprep.subr.bf16.mxu0 %v8323
        %9024 = vmatpush1.bf16.msra.mxu0 %v8322
        %9025 = vmatprep.subr.bf16.mxu0 %v8319
        %9026 = vmatpush1.bf16.msra.mxu0 %v8318
        %9027 = vmatprep.subr.bf16.mxu0 %v8315
        %9028 = vmatpush1.bf16.msra.mxu0 %v8314
        %9029 = vmatprep.subr.bf16.mxu0 %v8375
        %9030 = vmatpush2.bf16.msra.mxu0 %v8374
        %9031 = vmatprep.subr.bf16.mxu0 %v8371
        %9032 = vmatpush2.bf16.msra.mxu0 %v8370
        %9033 = vmatprep.subr.bf16.mxu0 %v8367
        %9034 = vmatpush2.bf16.msra.mxu0 %v8366
        %9035 = vmatprep.subr.bf16.mxu0 %v8363
        %9036 = vmatpush2.bf16.msra.mxu0 %v8362
        %9037 = vmatprep.subr.bf16.mxu0 %v8359
        %9038 = vmatpush2.bf16.msra.mxu0 %v8358
        %9039 = vmatprep.subr.bf16.mxu0 %v8355
        %9040 = vmatpush2.bf16.msra.mxu0 %v8354
        %9041 = vmatprep.subr.bf16.mxu0 %v8351
        %9042 = vmatpush2.bf16.msra.mxu0 %v8350
        %9043 = vmatprep.subr.bf16.mxu0 %v8347
        %9044 = vmatpush2.bf16.msra.mxu0 %v8346
        %9045 = vmatprep.mubr.bf16.mxu0 %v6940
        %9046 = vmatmul.mubr.bf16.gmra.mxu0 %v6938
        %v9047 = vpop.f32.mrf.mxu0
        %v9048 = vadd.f32 %v9007, %v9047
        %v9049 = vpop.f32.mrf.mxu0
        %v9050 = vadd.f32 %v9009, %v9049
        %v9051 = vpop.f32.mrf.mxu0
        %v9052 = vpop.f32.mrf.mxu0
        %9053 = vdwg.mxu0
        %9054 = vmatprep.subr.bf16.mxu0 %v8407
        %9055 = vmatpush1.bf16.msra.mxu0 %v8406
        %9056 = vmatprep.subr.bf16.mxu0 %v8403
        %9057 = vmatpush1.bf16.msra.mxu0 %v8402
        %9058 = vmatprep.subr.bf16.mxu0 %v8399
        %9059 = vmatpush1.bf16.msra.mxu0 %v8398
        %9060 = vmatprep.subr.bf16.mxu0 %v8395
        %9061 = vmatpush1.bf16.msra.mxu0 %v8394
        %9062 = vmatprep.subr.bf16.mxu0 %v8391
        %9063 = vmatpush1.bf16.msra.mxu0 %v8390
        %9064 = vmatprep.subr.bf16.mxu0 %v8387
        %9065 = vmatpush1.bf16.msra.mxu0 %v8386
        %9066 = vmatprep.subr.bf16.mxu0 %v8383
        %9067 = vmatpush1.bf16.msra.mxu0 %v8382
        %9068 = vmatprep.subr.bf16.mxu0 %v8379
        %9069 = vmatpush1.bf16.msra.mxu0 %v8378
        %9070 = vmatprep.subr.bf16.mxu0 %v8439
        %9071 = vmatpush2.bf16.msra.mxu0 %v8438
        %9072 = vmatprep.subr.bf16.mxu0 %v8435
        %9073 = vmatpush2.bf16.msra.mxu0 %v8434
        %9074 = vmatprep.subr.bf16.mxu0 %v8431
        %9075 = vmatpush2.bf16.msra.mxu0 %v8430
        %9076 = vmatprep.subr.bf16.mxu0 %v8427
        %9077 = vmatpush2.bf16.msra.mxu0 %v8426
        %9078 = vmatprep.subr.bf16.mxu0 %v8423
        %9079 = vmatpush2.bf16.msra.mxu0 %v8422
        %9080 = vmatprep.subr.bf16.mxu0 %v8419
        %9081 = vmatpush2.bf16.msra.mxu0 %v8418
        %9082 = vmatprep.subr.bf16.mxu0 %v8415
        %9083 = vmatpush2.bf16.msra.mxu0 %v8414
        %9084 = vmatprep.subr.bf16.mxu0 %v8411
        %9085 = vmatpush2.bf16.msra.mxu0 %v8410
        %9086 = vmatprep.mubr.bf16.mxu0 %v6956
        %9087 = vmatmul.mubr.bf16.gmra.mxu0 %v6948
        %v9088 = vpop.f32.mrf.mxu0
        %v9089 = vadd.f32 %v9048, %v9088
        %v9090 = vpop.f32.mrf.mxu0
        %v9091 = vadd.f32 %v9050, %v9090
        %v9092 = vpop.f32.mrf.mxu0
        %v9093 = vpop.f32.mrf.mxu0
        %9094 = vdwg.mxu0
        %9095 = vmatprep.subr.bf16.mxu0 %v8471
        %9096 = vmatpush1.bf16.msra.mxu0 %v8470
        %9097 = vmatprep.subr.bf16.mxu0 %v8467
        %9098 = vmatpush1.bf16.msra.mxu0 %v8466
        %9099 = vmatprep.subr.bf16.mxu0 %v8463
        %9100 = vmatpush1.bf16.msra.mxu0 %v8462
        %9101 = vmatprep.subr.bf16.mxu0 %v8459
        %9102 = vmatpush1.bf16.msra.mxu0 %v8458
        %9103 = vmatprep.subr.bf16.mxu0 %v8455
        %9104 = vmatpush1.bf16.msra.mxu0 %v8454
        %9105 = vmatprep.subr.bf16.mxu0 %v8451
        %9106 = vmatpush1.bf16.msra.mxu0 %v8450
        %9107 = vmatprep.subr.bf16.mxu0 %v8447
        %9108 = vmatpush1.bf16.msra.mxu0 %v8446
        %9109 = vmatprep.subr.bf16.mxu0 %v8443
        %9110 = vmatpush1.bf16.msra.mxu0 %v8442
        %9111 = vmatprep.subr.bf16.mxu0 %v8503
        %9112 = vmatpush2.bf16.msra.mxu0 %v8502
        %9113 = vmatprep.subr.bf16.mxu0 %v8499
        %9114 = vmatpush2.bf16.msra.mxu0 %v8498
        %9115 = vmatprep.subr.bf16.mxu0 %v8495
        %9116 = vmatpush2.bf16.msra.mxu0 %v8494
        %9117 = vmatprep.subr.bf16.mxu0 %v8491
        %9118 = vmatpush2.bf16.msra.mxu0 %v8490
        %9119 = vmatprep.subr.bf16.mxu0 %v8487
        %9120 = vmatpush2.bf16.msra.mxu0 %v8486
        %9121 = vmatprep.subr.bf16.mxu0 %v8483
        %9122 = vmatpush2.bf16.msra.mxu0 %v8482
        %9123 = vmatprep.subr.bf16.mxu0 %v8479
        %9124 = vmatpush2.bf16.msra.mxu0 %v8478
        %9125 = vmatprep.subr.bf16.mxu0 %v8475
        %9126 = vmatpush2.bf16.msra.mxu0 %v8474
        %9127 = vmatprep.mubr.bf16.mxu0 %v6957
        %9128 = vmatmul.mubr.bf16.gmra.mxu0 %v6955
        %v9129 = vpop.f32.mrf.mxu0
        %v9130 = vadd.f32 %v9089, %v9129
        %v9131 = vpop.f32.mrf.mxu0
        %v9132 = vadd.f32 %v9091, %v9131
        %v9133 = vpop.f32.mrf.mxu0
        %v9134 = vpop.f32.mrf.mxu0
        %9135 = vdwg.mxu0
        %9136 = vmatprep.subr.bf16.mxu0 %v8153
        %9137 = vmatpush1.bf16.msra.mxu0 %v8152
        %9138 = vmatprep.subr.bf16.mxu0 %v8149
        %9139 = vmatpush1.bf16.msra.mxu0 %v8148
        %9140 = vmatprep.subr.bf16.mxu0 %v8145
        %9141 = vmatpush1.bf16.msra.mxu0 %v8144
        %9142 = vmatprep.subr.bf16.mxu0 %v8141
        %9143 = vmatpush1.bf16.msra.mxu0 %v8140
        %9144 = vmatprep.subr.bf16.mxu0 %v8137
        %9145 = vmatpush1.bf16.msra.mxu0 %v8136
        %9146 = vmatprep.subr.bf16.mxu0 %v8133
        %9147 = vmatpush1.bf16.msra.mxu0 %v8132
        %9148 = vmatprep.subr.bf16.mxu0 %v8129
        %9149 = vmatpush1.bf16.msra.mxu0 %v8128
        %9150 = vmatprep.subr.bf16.mxu0 %v8125
        %9151 = vmatpush1.bf16.msra.mxu0 %v8124
        %9152 = vmatprep.subr.bf16.mxu0 %v8185
        %9153 = vmatpush2.bf16.msra.mxu0 %v8184
        %9154 = vmatprep.subr.bf16.mxu0 %v8181
        %9155 = vmatpush2.bf16.msra.mxu0 %v8180
        %9156 = vmatprep.subr.bf16.mxu0 %v8177
        %9157 = vmatpush2.bf16.msra.mxu0 %v8176
        %9158 = vmatprep.subr.bf16.mxu0 %v8173
        %9159 = vmatpush2.bf16.msra.mxu0 %v8172
        %9160 = vmatprep.subr.bf16.mxu0 %v8169
        %9161 = vmatpush2.bf16.msra.mxu0 %v8168
        %9162 = vmatprep.subr.bf16.mxu0 %v8165
        %9163 = vmatpush2.bf16.msra.mxu0 %v8164
        %9164 = vmatprep.subr.bf16.mxu0 %v8161
        %9165 = vmatpush2.bf16.msra.mxu0 %v8160
        %9166 = vmatprep.subr.bf16.mxu0 %v8157
        %9167 = vmatpush2.bf16.msra.mxu0 %v8156
        %9168 = vmatprep.mubr.bf16.mxu0 %v6922
        %9169 = vmatmul.mubr.bf16.gmra.mxu0 %v6914
        %v9170 = vpop.f32.mrf.mxu0
        %v9171 = vadd.f32 0.0, %v9170
        %v9172 = vpop.f32.mrf.mxu0
        %v9173 = vadd.f32 0.0, %v9172
        %v9174 = vpop.f32.mrf.mxu0
        %v9175 = vpop.f32.mrf.mxu0
        %9176 = vdwg.mxu0
        %9177 = vmatprep.subr.bf16.mxu0 %v8217
        %9178 = vmatpush1.bf16.msra.mxu0 %v8216
        %9179 = vmatprep.subr.bf16.mxu0 %v8213
        %9180 = vmatpush1.bf16.msra.mxu0 %v8212
        %9181 = vmatprep.subr.bf16.mxu0 %v8209
        %9182 = vmatpush1.bf16.msra.mxu0 %v8208
        %9183 = vmatprep.subr.bf16.mxu0 %v8205
        %9184 = vmatpush1.bf16.msra.mxu0 %v8204
        %9185 = vmatprep.subr.bf16.mxu0 %v8201
        %9186 = vmatpush1.bf16.msra.mxu0 %v8200
        %9187 = vmatprep.subr.bf16.mxu0 %v8197
        %9188 = vmatpush1.bf16.msra.mxu0 %v8196
        %9189 = vmatprep.subr.bf16.mxu0 %v8193
        %9190 = vmatpush1.bf16.msra.mxu0 %v8192
        %9191 = vmatprep.subr.bf16.mxu0 %v8189
        %9192 = vmatpush1.bf16.msra.mxu0 %v8188
        %9193 = vmatprep.subr.bf16.mxu0 %v8249
        %9194 = vmatpush2.bf16.msra.mxu0 %v8248
        %9195 = vmatprep.subr.bf16.mxu0 %v8245
        %9196 = vmatpush2.bf16.msra.mxu0 %v8244
        %9197 = vmatprep.subr.bf16.mxu0 %v8241
        %9198 = vmatpush2.bf16.msra.mxu0 %v8240
        %9199 = vmatprep.subr.bf16.mxu0 %v8237
        %9200 = vmatpush2.bf16.msra.mxu0 %v8236
        %9201 = vmatprep.subr.bf16.mxu0 %v8233
        %9202 = vmatpush2.bf16.msra.mxu0 %v8232
        %9203 = vmatprep.subr.bf16.mxu0 %v8229
        %9204 = vmatpush2.bf16.msra.mxu0 %v8228
        %9205 = vmatprep.subr.bf16.mxu0 %v8225
        %9206 = vmatpush2.bf16.msra.mxu0 %v8224
        %9207 = vmatprep.subr.bf16.mxu0 %v8221
        %9208 = vmatpush2.bf16.msra.mxu0 %v8220
        %9209 = vmatprep.mubr.bf16.mxu0 %v6923
        %9210 = vmatmul.mubr.bf16.gmra.mxu0 %v6921
        %v9211 = vpop.f32.mrf.mxu0
        %v9212 = vadd.f32 %v9171, %v9211
        %v9213 = vpop.f32.mrf.mxu0
        %v9214 = vadd.f32 %v9173, %v9213
        %v9215 = vpop.f32.mrf.mxu0
        %v9216 = vpop.f32.mrf.mxu0
        %9217 = vdwg.mxu0
        %9218 = vmatprep.subr.bf16.mxu0 %v8281
        %9219 = vmatpush1.bf16.msra.mxu0 %v8280
        %9220 = vmatprep.subr.bf16.mxu0 %v8277
        %9221 = vmatpush1.bf16.msra.mxu0 %v8276
        %9222 = vmatprep.subr.bf16.mxu0 %v8273
        %9223 = vmatpush1.bf16.msra.mxu0 %v8272
        %9224 = vmatprep.subr.bf16.mxu0 %v8269
        %9225 = vmatpush1.bf16.msra.mxu0 %v8268
        %9226 = vmatprep.subr.bf16.mxu0 %v8265
        %9227 = vmatpush1.bf16.msra.mxu0 %v8264
        %9228 = vmatprep.subr.bf16.mxu0 %v8261
        %9229 = vmatpush1.bf16.msra.mxu0 %v8260
        %9230 = vmatprep.subr.bf16.mxu0 %v8257
        %9231 = vmatpush1.bf16.msra.mxu0 %v8256
        %9232 = vmatprep.subr.bf16.mxu0 %v8253
        %9233 = vmatpush1.bf16.msra.mxu0 %v8252
        %9234 = vmatprep.subr.bf16.mxu0 %v8313
        %9235 = vmatpush2.bf16.msra.mxu0 %v8312
        %9236 = vmatprep.subr.bf16.mxu0 %v8309
        %9237 = vmatpush2.bf16.msra.mxu0 %v8308
        %9238 = vmatprep.subr.bf16.mxu0 %v8305
        %9239 = vmatpush2.bf16.msra.mxu0 %v8304
        %9240 = vmatprep.subr.bf16.mxu0 %v8301
        %9241 = vmatpush2.bf16.msra.mxu0 %v8300
        %9242 = vmatprep.subr.bf16.mxu0 %v8297
        %9243 = vmatpush2.bf16.msra.mxu0 %v8296
        %9244 = vmatprep.subr.bf16.mxu0 %v8293
        %9245 = vmatpush2.bf16.msra.mxu0 %v8292
        %9246 = vmatprep.subr.bf16.mxu0 %v8289
        %9247 = vmatpush2.bf16.msra.mxu0 %v8288
        %9248 = vmatprep.subr.bf16.mxu0 %v8285
        %9249 = vmatpush2.bf16.msra.mxu0 %v8284
        %9250 = vmatprep.mubr.bf16.mxu0 %v6939
        %9251 = vmatmul.mubr.bf16.gmra.mxu0 %v6931
        %v9252 = vpop.f32.mrf.mxu0
        %v9253 = vadd.f32 %v9212, %v9252
        %v9254 = vpop.f32.mrf.mxu0
        %v9255 = vadd.f32 %v9214, %v9254
        %v9256 = vpop.f32.mrf.mxu0
        %v9257 = vpop.f32.mrf.mxu0
        %9258 = vdwg.mxu0
        %9259 = vmatprep.subr.bf16.mxu0 %v8345
        %9260 = vmatpush1.bf16.msra.mxu0 %v8344
        %9261 = vmatprep.subr.bf16.mxu0 %v8341
        %9262 = vmatpush1.bf16.msra.mxu0 %v8340
        %9263 = vmatprep.subr.bf16.mxu0 %v8337
        %9264 = vmatpush1.bf16.msra.mxu0 %v8336
        %9265 = vmatprep.subr.bf16.mxu0 %v8333
        %9266 = vmatpush1.bf16.msra.mxu0 %v8332
        %9267 = vmatprep.subr.bf16.mxu0 %v8329
        %9268 = vmatpush1.bf16.msra.mxu0 %v8328
        %9269 = vmatprep.subr.bf16.mxu0 %v8325
        %9270 = vmatpush1.bf16.msra.mxu0 %v8324
        %9271 = vmatprep.subr.bf16.mxu0 %v8321
        %9272 = vmatpush1.bf16.msra.mxu0 %v8320
        %9273 = vmatprep.subr.bf16.mxu0 %v8317
        %9274 = vmatpush1.bf16.msra.mxu0 %v8316
        %9275 = vmatprep.subr.bf16.mxu0 %v8377
        %9276 = vmatpush2.bf16.msra.mxu0 %v8376
        %9277 = vmatprep.subr.bf16.mxu0 %v8373
        %9278 = vmatpush2.bf16.msra.mxu0 %v8372
        %9279 = vmatprep.subr.bf16.mxu0 %v8369
        %9280 = vmatpush2.bf16.msra.mxu0 %v8368
        %9281 = vmatprep.subr.bf16.mxu0 %v8365
        %9282 = vmatpush2.bf16.msra.mxu0 %v8364
        %9283 = vmatprep.subr.bf16.mxu0 %v8361
        %9284 = vmatpush2.bf16.msra.mxu0 %v8360
        %9285 = vmatprep.subr.bf16.mxu0 %v8357
        %9286 = vmatpush2.bf16.msra.mxu0 %v8356
        %9287 = vmatprep.subr.bf16.mxu0 %v8353
        %9288 = vmatpush2.bf16.msra.mxu0 %v8352
        %9289 = vmatprep.subr.bf16.mxu0 %v8349
        %9290 = vmatpush2.bf16.msra.mxu0 %v8348
        %9291 = vmatprep.mubr.bf16.mxu0 %v6940
        %9292 = vmatmul.mubr.bf16.gmra.mxu0 %v6938
        %v9293 = vpop.f32.mrf.mxu0
        %v9294 = vadd.f32 %v9253, %v9293
        %v9295 = vpop.f32.mrf.mxu0
        %v9296 = vadd.f32 %v9255, %v9295
        %v9297 = vpop.f32.mrf.mxu0
        %v9298 = vpop.f32.mrf.mxu0
        %9299 = vdwg.mxu0
        %9300 = vmatprep.subr.bf16.mxu0 %v8409
        %9301 = vmatpush1.bf16.msra.mxu0 %v8408
        %9302 = vmatprep.subr.bf16.mxu0 %v8405
        %9303 = vmatpush1.bf16.msra.mxu0 %v8404
        %9304 = vmatprep.subr.bf16.mxu0 %v8401
        %9305 = vmatpush1.bf16.msra.mxu0 %v8400
        %9306 = vmatprep.subr.bf16.mxu0 %v8397
        %9307 = vmatpush1.bf16.msra.mxu0 %v8396
        %9308 = vmatprep.subr.bf16.mxu0 %v8393
        %9309 = vmatpush1.bf16.msra.mxu0 %v8392
        %9310 = vmatprep.subr.bf16.mxu0 %v8389
        %9311 = vmatpush1.bf16.msra.mxu0 %v8388
        %9312 = vmatprep.subr.bf16.mxu0 %v8385
        %9313 = vmatpush1.bf16.msra.mxu0 %v8384
        %9314 = vmatprep.subr.bf16.mxu0 %v8381
        %9315 = vmatpush1.bf16.msra.mxu0 %v8380
        %9316 = vmatprep.subr.bf16.mxu0 %v8441
        %9317 = vmatpush2.bf16.msra.mxu0 %v8440
        %9318 = vmatprep.subr.bf16.mxu0 %v8437
        %9319 = vmatpush2.bf16.msra.mxu0 %v8436
        %9320 = vmatprep.subr.bf16.mxu0 %v8433
        %9321 = vmatpush2.bf16.msra.mxu0 %v8432
        %9322 = vmatprep.subr.bf16.mxu0 %v8429
        %9323 = vmatpush2.bf16.msra.mxu0 %v8428
        %9324 = vmatprep.subr.bf16.mxu0 %v8425
        %9325 = vmatpush2.bf16.msra.mxu0 %v8424
        %9326 = vmatprep.subr.bf16.mxu0 %v8421
        %9327 = vmatpush2.bf16.msra.mxu0 %v8420
        %9328 = vmatprep.subr.bf16.mxu0 %v8417
        %9329 = vmatpush2.bf16.msra.mxu0 %v8416
        %9330 = vmatprep.subr.bf16.mxu0 %v8413
        %9331 = vmatpush2.bf16.msra.mxu0 %v8412
        %9332 = vmatprep.mubr.bf16.mxu0 %v6956
        %9333 = vmatmul.mubr.bf16.gmra.mxu0 %v6948
        %v9334 = vpop.f32.mrf.mxu0
        %v9335 = vadd.f32 %v9294, %v9334
        %v9336 = vpop.f32.mrf.mxu0
        %v9337 = vadd.f32 %v9296, %v9336
        %v9338 = vpop.f32.mrf.mxu0
        %v9339 = vpop.f32.mrf.mxu0
        %9340 = vdwg.mxu0
        %9341 = vmatprep.subr.bf16.mxu0 %v8473
        %9342 = vmatpush1.bf16.msra.mxu0 %v8472
        %9343 = vmatprep.subr.bf16.mxu0 %v8469
        %9344 = vmatpush1.bf16.msra.mxu0 %v8468
        %9345 = vmatprep.subr.bf16.mxu0 %v8465
        %9346 = vmatpush1.bf16.msra.mxu0 %v8464
        %9347 = vmatprep.subr.bf16.mxu0 %v8461
        %9348 = vmatpush1.bf16.msra.mxu0 %v8460
        %9349 = vmatprep.subr.bf16.mxu0 %v8457
        %9350 = vmatpush1.bf16.msra.mxu0 %v8456
        %9351 = vmatprep.subr.bf16.mxu0 %v8453
        %9352 = vmatpush1.bf16.msra.mxu0 %v8452
        %9353 = vmatprep.subr.bf16.mxu0 %v8449
        %9354 = vmatpush1.bf16.msra.mxu0 %v8448
        %9355 = vmatprep.subr.bf16.mxu0 %v8445
        %9356 = vmatpush1.bf16.msra.mxu0 %v8444
        %9357 = vmatprep.subr.bf16.mxu0 %v8505
        %9358 = vmatpush2.bf16.msra.mxu0 %v8504
        %9359 = vmatprep.subr.bf16.mxu0 %v8501
        %9360 = vmatpush2.bf16.msra.mxu0 %v8500
        %9361 = vmatprep.subr.bf16.mxu0 %v8497
        %9362 = vmatpush2.bf16.msra.mxu0 %v8496
        %9363 = vmatprep.subr.bf16.mxu0 %v8493
        %9364 = vmatpush2.bf16.msra.mxu0 %v8492
        %9365 = vmatprep.subr.bf16.mxu0 %v8489
        %9366 = vmatpush2.bf16.msra.mxu0 %v8488
        %9367 = vmatprep.subr.bf16.mxu0 %v8485
        %9368 = vmatpush2.bf16.msra.mxu0 %v8484
        %9369 = vmatprep.subr.bf16.mxu0 %v8481
        %9370 = vmatpush2.bf16.msra.mxu0 %v8480
        %9371 = vmatprep.subr.bf16.mxu0 %v8477
        %9372 = vmatpush2.bf16.msra.mxu0 %v8476
        %9373 = vmatprep.mubr.bf16.mxu0 %v6957
        %9374 = vmatmul.mubr.bf16.gmra.mxu0 %v6955
        %v9375 = vpop.f32.mrf.mxu0
        %v9376 = vadd.f32 %v9335, %v9375
        %v9377 = vpop.f32.mrf.mxu0
        %v9378 = vadd.f32 %v9337, %v9377
        %v9379 = vpop.f32.mrf.mxu0
        %v9380 = vpop.f32.mrf.mxu0
        %9381 = vdwg.mxu0
        %v9382 = vld [vmem:[%s21] sm:$0xf]
        %v9384 = vlaneseq
        %v9385 = vshrl.u32 %v9384, 7
        %v9386 = vsub.s32 0, %v9385
        %v9387 = vrot.slane %v9382, %v9386
        %v9388 = vlaneseq
        %v9389 = vshrl.u32 %v9388, 7
        %v9390 = vsub.s32 1, %v9389
        %v9391 = vrot.slane %v9382, %v9390
        %v9392 = vlaneseq
        %v9393 = vshrl.u32 %v9392, 7
        %v9394 = vsub.s32 2, %v9393
        %v9395 = vrot.slane %v9382, %v9394
        %v9396 = vlaneseq
        %v9397 = vshrl.u32 %v9396, 7
        %v9398 = vsub.s32 3, %v9397
        %v9399 = vrot.slane %v9382, %v9398
        %v9404 = vmul.f32 %v9130, %v9387
        %v9405 = vmul.f32 %v9132, %v9391
        %v9406 = vmul.f32 %v9376, %v9395
        %v9407 = vmul.f32 %v9378, %v9399
        %v9408 = vld [vmem:[%s22] sm:$0xf]
        %v9410 = vlaneseq
        %v9411 = vshrl.u32 %v9410, 7
        %v9412 = vsub.s32 0, %v9411
        %v9413 = vrot.slane %v9408, %v9412
        %v9414 = vlaneseq
        %v9415 = vshrl.u32 %v9414, 7
        %v9416 = vsub.s32 1, %v9415
        %v9417 = vrot.slane %v9408, %v9416
        %v9418 = vlaneseq
        %v9419 = vshrl.u32 %v9418, 7
        %v9420 = vsub.s32 2, %v9419
        %v9421 = vrot.slane %v9408, %v9420
        %v9422 = vlaneseq
        %v9423 = vshrl.u32 %v9422, 7
        %v9424 = vsub.s32 3, %v9423
        %v9425 = vrot.slane %v9408, %v9424
        %v9430 = vadd.f32 %v9404, %v9413
        %v9431 = vadd.f32 %v9405, %v9417
        %v9432 = vadd.f32 %v9406, %v9421
        %v9433 = vadd.f32 %v9407, %v9425
        %v9434 = vadd.f32 %v9430, %v6429
        %v9435 = vadd.f32 %v9431, %v6430
        %v9436 = vadd.f32 %v9432, %v6431
        %v9437 = vadd.f32 %v9433, %v6432
        %v9438 = vmax.f32 %v9434, 0.0
        %v9439 = vmax.f32 %v9435, 0.0
        %v9440 = vmax.f32 %v9436, 0.0
        %v9441 = vmax.f32 %v9437, 0.0
        %vm9442 = vcmask 1043456
        %v9443 = vsel %vm9442, %v9438, 0.0
        %v9444 = vrot.slane %v9443, 4
        %v9445 = vadd.f32 %v9443, %v9444
        %v9446 = vrot.slane %v9445, 2
        %v9447 = vadd.f32 %v9445, %v9446
        %v9448 = vrot.slane %v9447, 1
        %v9449 = vadd.f32 %v9447, %v9448
        %v9450 = vsel %vm9442, %v9439, 0.0
        %v9451 = vrot.slane %v9450, 4
        %v9452 = vadd.f32 %v9450, %v9451
        %v9453 = vrot.slane %v9452, 2
        %v9454 = vadd.f32 %v9452, %v9453
        %v9455 = vrot.slane %v9454, 1
        %v9456 = vadd.f32 %v9454, %v9455
        %v9457 = vsel %vm9442, %v9440, 0.0
        %v9458 = vrot.slane %v9457, 4
        %v9459 = vadd.f32 %v9457, %v9458
        %v9460 = vrot.slane %v9459, 2
        %v9461 = vadd.f32 %v9459, %v9460
        %v9462 = vrot.slane %v9461, 1
        %v9463 = vadd.f32 %v9461, %v9462
        %v9464 = vsel %vm9442, %v9441, 0.0
        %v9465 = vrot.slane %v9464, 4
        %v9466 = vadd.f32 %v9464, %v9465
        %v9467 = vrot.slane %v9466, 2
        %v9468 = vadd.f32 %v9466, %v9467
        %v9469 = vrot.slane %v9468, 1
        %v9470 = vadd.f32 %v9468, %v9469
        %v9471 = vmul.f32 %v9449, 0.25
        %v9472 = vmul.f32 %v9456, 0.25
        %v9473 = vmul.f32 %v9463, 0.25
        %v9474 = vmul.f32 %v9470, 0.25
        %v9475 = vld [vmem:[%s23] sm:$0xff]
        %v9476 = vld [vmem:[%s23 + $0x8] sm:$0xff]
        %v9477 = vld [vmem:[%s23 + $0x10] sm:$0xff]
        %v9478 = vld [vmem:[%s23 + $0x18] sm:$0xff]
        %v9479 = vld [vmem:[%s23 + $0x20] sm:$0xff]
        %v9480 = vld [vmem:[%s23 + $0x28] sm:$0xff]
        %v9481 = vld [vmem:[%s23 + $0x30] sm:$0xff]
        %v9482 = vld [vmem:[%s23 + $0x38] sm:$0xff]
        %v9483 = vld [vmem:[%s23 + $0x40] sm:$0xff]
        %v9484 = vld [vmem:[%s23 + $0x48] sm:$0xff]
        %v9485 = vld [vmem:[%s23 + $0x50] sm:$0xff]
        %v9486 = vld [vmem:[%s23 + $0x58] sm:$0xff]
        %v9487 = vld [vmem:[%s23 + $0x60] sm:$0xff]
        %v9488 = vld [vmem:[%s23 + $0x68] sm:$0xff]
        %v9489 = vld [vmem:[%s23 + $0x70] sm:$0xff]
        %v9490 = vld [vmem:[%s23 + $0x78] sm:$0xff]
        %v9491 = vld [vmem:[%s23 + $0x80] sm:$0xff]
        %v9492 = vld [vmem:[%s23 + $0x88] sm:$0xff]
        %v9493 = vld [vmem:[%s23 + $0x90] sm:$0xff]
        %v9494 = vld [vmem:[%s23 + $0x98] sm:$0xff]
        %v9495 = vld [vmem:[%s23 + $0xa0] sm:$0xff]
        %v9496 = vld [vmem:[%s23 + $0xa8] sm:$0xff]
        %v9497 = vld [vmem:[%s23 + $0xb0] sm:$0xff]
        %v9498 = vld [vmem:[%s23 + $0xb8] sm:$0xff]
        %v9499 = vld [vmem:[%s23 + $0xc0] sm:$0xff]
        %v9500 = vld [vmem:[%s23 + $0xc8] sm:$0xff]
        %v9501 = vld [vmem:[%s23 + $0xd0] sm:$0xff]
        %v9502 = vld [vmem:[%s23 + $0xd8] sm:$0xff]
        %v9503 = vld [vmem:[%s23 + $0xe0] sm:$0xff]
        %v9504 = vld [vmem:[%s23 + $0xe8] sm:$0xff]
        %v9505 = vld [vmem:[%s23 + $0xf0] sm:$0xff]
        %v9506 = vld [vmem:[%s23 + $0xf8] sm:$0xff]
        %v9507 = vld [vmem:[%s23 + $0x100] sm:$0xff]
        %v9508 = vld [vmem:[%s23 + $0x108] sm:$0xff]
        %v9509 = vld [vmem:[%s23 + $0x110] sm:$0xff]
        %v9510 = vld [vmem:[%s23 + $0x118] sm:$0xff]
        %v9511 = vld [vmem:[%s23 + $0x120] sm:$0xff]
        %v9512 = vld [vmem:[%s23 + $0x128] sm:$0xff]
        %v9513 = vld [vmem:[%s23 + $0x130] sm:$0xff]
        %v9514 = vld [vmem:[%s23 + $0x138] sm:$0xff]
        %v9515 = vld [vmem:[%s23 + $0x140] sm:$0xff]
        %v9516 = vld [vmem:[%s23 + $0x148] sm:$0xff]
        %v9517 = vld [vmem:[%s23 + $0x150] sm:$0xff]
        %v9518 = vld [vmem:[%s23 + $0x158] sm:$0xff]
        %v9519 = vld [vmem:[%s23 + $0x160] sm:$0xff]
        %v9520 = vld [vmem:[%s23 + $0x168] sm:$0xff]
        %v9521 = vld [vmem:[%s23 + $0x170] sm:$0xff]
        %v9522 = vld [vmem:[%s23 + $0x178] sm:$0xff]
        %v9523 = vld [vmem:[%s23 + $0x180] sm:$0xff]
        %v9524 = vld [vmem:[%s23 + $0x188] sm:$0xff]
        %v9525 = vld [vmem:[%s23 + $0x190] sm:$0xff]
        %v9526 = vld [vmem:[%s23 + $0x198] sm:$0xff]
        %v9527 = vld [vmem:[%s23 + $0x1a0] sm:$0xff]
        %v9528 = vld [vmem:[%s23 + $0x1a8] sm:$0xff]
        %v9529 = vld [vmem:[%s23 + $0x1b0] sm:$0xff]
        %v9530 = vld [vmem:[%s23 + $0x1b8] sm:$0xff]
        %v9531 = vld [vmem:[%s23 + $0x1c0] sm:$0xff]
        %v9532 = vld [vmem:[%s23 + $0x1c8] sm:$0xff]
        %v9533 = vld [vmem:[%s23 + $0x1d0] sm:$0xff]
        %v9534 = vld [vmem:[%s23 + $0x1d8] sm:$0xff]
        %v9535 = vld [vmem:[%s23 + $0x1e0] sm:$0xff]
        %v9536 = vld [vmem:[%s23 + $0x1e8] sm:$0xff]
        %v9537 = vld [vmem:[%s23 + $0x1f0] sm:$0xff]
        %v9538 = vld [vmem:[%s23 + $0x1f8] sm:$0xff]
        %v9539 = vld [vmem:[%s24] sm:$0x1]
        %9540 = vmatprep.subr.mxu0 0.0
        %9541 = vmatpush1.msra.mxu0 %v9490
        %9542 = vmatprep.subr.mxu0 0.0
        %9543 = vmatpush1.msra.mxu0 %v9489
        %9544 = vmatprep.subr.mxu0 0.0
        %9545 = vmatpush1.msra.mxu0 %v9488
        %9546 = vmatprep.subr.mxu0 0.0
        %9547 = vmatpush1.msra.mxu0 %v9487
        %9548 = vmatprep.subr.mxu0 0.0
        %9549 = vmatpush1.msra.mxu0 %v9486
        %9550 = vmatprep.subr.mxu0 0.0
        %9551 = vmatpush1.msra.mxu0 %v9485
        %9552 = vmatprep.subr.mxu0 0.0
        %9553 = vmatpush1.msra.mxu0 %v9484
        %9554 = vmatprep.subr.mxu0 0.0
        %9555 = vmatpush1.msra.mxu0 %v9483
        %9556 = vmatprep.subr.mxu0 0.0
        %9557 = vmatpush1.msra.mxu0 %v9482
        %9558 = vmatprep.subr.mxu0 0.0
        %9559 = vmatpush1.msra.mxu0 %v9481
        %9560 = vmatprep.subr.mxu0 0.0
        %9561 = vmatpush1.msra.mxu0 %v9480
        %9562 = vmatprep.subr.mxu0 0.0
        %9563 = vmatpush1.msra.mxu0 %v9479
        %9564 = vmatprep.subr.mxu0 0.0
        %9565 = vmatpush1.msra.mxu0 %v9478
        %9566 = vmatprep.subr.mxu0 0.0
        %9567 = vmatpush1.msra.mxu0 %v9477
        %9568 = vmatprep.subr.mxu0 0.0
        %9569 = vmatpush1.msra.mxu0 %v9476
        %9570 = vmatprep.subr.mxu0 0.0
        %9571 = vmatpush1.msra.mxu0 %v9475
        %9572 = vmatprep.subr.mxu0 0.0
        %9573 = vmatpush2.msra.mxu0 %v9506
        %9574 = vmatprep.subr.mxu0 0.0
        %9575 = vmatpush2.msra.mxu0 %v9505
        %9576 = vmatprep.subr.mxu0 0.0
        %9577 = vmatpush2.msra.mxu0 %v9504
        %9578 = vmatprep.subr.mxu0 0.0
        %9579 = vmatpush2.msra.mxu0 %v9503
        %9580 = vmatprep.subr.mxu0 0.0
        %9581 = vmatpush2.msra.mxu0 %v9502
        %9582 = vmatprep.subr.mxu0 0.0
        %9583 = vmatpush2.msra.mxu0 %v9501
        %9584 = vmatprep.subr.mxu0 0.0
        %9585 = vmatpush2.msra.mxu0 %v9500
        %9586 = vmatprep.subr.mxu0 0.0
        %9587 = vmatpush2.msra.mxu0 %v9499
        %9588 = vmatprep.subr.mxu0 0.0
        %9589 = vmatpush2.msra.mxu0 %v9498
        %9590 = vmatprep.subr.mxu0 0.0
        %9591 = vmatpush2.msra.mxu0 %v9497
        %9592 = vmatprep.subr.mxu0 0.0
        %9593 = vmatpush2.msra.mxu0 %v9496
        %9594 = vmatprep.subr.mxu0 0.0
        %9595 = vmatpush2.msra.mxu0 %v9495
        %9596 = vmatprep.subr.mxu0 0.0
        %9597 = vmatpush2.msra.mxu0 %v9494
        %9598 = vmatprep.subr.mxu0 0.0
        %9599 = vmatpush2.msra.mxu0 %v9493
        %9600 = vmatprep.subr.mxu0 0.0
        %9601 = vmatpush2.msra.mxu0 %v9492
        %9602 = vmatprep.subr.mxu0 0.0
        %9603 = vmatpush2.msra.mxu0 %v9491
        %9604 = vmatprep.mubr.f32.mxu0 %v9472
        %9605 = vmatmul.mubr.f32.gmra.mxu0 %v9471
        %v9606 = vpop.f32.mrf.mxu0
        %v9607 = vadd.f32 %v9539, %v9606
        %v9608 = vpop.f32.mrf.mxu0
        %9609 = vdwg.mxu0
        %9610 = vmatprep.subr.mxu0 0.0
        %9611 = vmatpush1.msra.mxu0 %v9522
        %9612 = vmatprep.subr.mxu0 0.0
        %9613 = vmatpush1.msra.mxu0 %v9521
        %9614 = vmatprep.subr.mxu0 0.0
        %9615 = vmatpush1.msra.mxu0 %v9520
        %9616 = vmatprep.subr.mxu0 0.0
        %9617 = vmatpush1.msra.mxu0 %v9519
        %9618 = vmatprep.subr.mxu0 0.0
        %9619 = vmatpush1.msra.mxu0 %v9518
        %9620 = vmatprep.subr.mxu0 0.0
        %9621 = vmatpush1.msra.mxu0 %v9517
        %9622 = vmatprep.subr.mxu0 0.0
        %9623 = vmatpush1.msra.mxu0 %v9516
        %9624 = vmatprep.subr.mxu0 0.0
        %9625 = vmatpush1.msra.mxu0 %v9515
        %9626 = vmatprep.subr.mxu0 0.0
        %9627 = vmatpush1.msra.mxu0 %v9514
        %9628 = vmatprep.subr.mxu0 0.0
        %9629 = vmatpush1.msra.mxu0 %v9513
        %9630 = vmatprep.subr.mxu0 0.0
        %9631 = vmatpush1.msra.mxu0 %v9512
        %9632 = vmatprep.subr.mxu0 0.0
        %9633 = vmatpush1.msra.mxu0 %v9511
        %9634 = vmatprep.subr.mxu0 0.0
        %9635 = vmatpush1.msra.mxu0 %v9510
        %9636 = vmatprep.subr.mxu0 0.0
        %9637 = vmatpush1.msra.mxu0 %v9509
        %9638 = vmatprep.subr.mxu0 0.0
        %9639 = vmatpush1.msra.mxu0 %v9508
        %9640 = vmatprep.subr.mxu0 0.0
        %9641 = vmatpush1.msra.mxu0 %v9507
        %9642 = vmatprep.subr.mxu0 0.0
        %9643 = vmatpush2.msra.mxu0 %v9538
        %9644 = vmatprep.subr.mxu0 0.0
        %9645 = vmatpush2.msra.mxu0 %v9537
        %9646 = vmatprep.subr.mxu0 0.0
        %9647 = vmatpush2.msra.mxu0 %v9536
        %9648 = vmatprep.subr.mxu0 0.0
        %9649 = vmatpush2.msra.mxu0 %v9535
        %9650 = vmatprep.subr.mxu0 0.0
        %9651 = vmatpush2.msra.mxu0 %v9534
        %9652 = vmatprep.subr.mxu0 0.0
        %9653 = vmatpush2.msra.mxu0 %v9533
        %9654 = vmatprep.subr.mxu0 0.0
        %9655 = vmatpush2.msra.mxu0 %v9532
        %9656 = vmatprep.subr.mxu0 0.0
        %9657 = vmatpush2.msra.mxu0 %v9531
        %9658 = vmatprep.subr.mxu0 0.0
        %9659 = vmatpush2.msra.mxu0 %v9530
        %9660 = vmatprep.subr.mxu0 0.0
        %9661 = vmatpush2.msra.mxu0 %v9529
        %9662 = vmatprep.subr.mxu0 0.0
        %9663 = vmatpush2.msra.mxu0 %v9528
        %9664 = vmatprep.subr.mxu0 0.0
        %9665 = vmatpush2.msra.mxu0 %v9527
        %9666 = vmatprep.subr.mxu0 0.0
        %9667 = vmatpush2.msra.mxu0 %v9526
        %9668 = vmatprep.subr.mxu0 0.0
        %9669 = vmatpush2.msra.mxu0 %v9525
        %9670 = vmatprep.subr.mxu0 0.0
        %9671 = vmatpush2.msra.mxu0 %v9524
        %9672 = vmatprep.subr.mxu0 0.0
        %9673 = vmatpush2.msra.mxu0 %v9523
        %9674 = vmatprep.mubr.f32.mxu0 %v9474
        %9675 = vmatmul.mubr.f32.gmra.mxu0 %v9473
        %v9676 = vpop.f32.mrf.mxu0
        %v9677 = vadd.f32 %v9607, %v9676
        %v9678 = vpop.f32.mrf.mxu0
        %9679 = vdwg.mxu0
        %vm9680 = vcmask 73728
        %9681 = vst.msk [vmem:[%s756] sm:$0x1] %vm9680, %v9677
        %s9682 = sand.u32 %s577, 1
        %s9683 = scalar_lea.sflag [#allocation11], %s9682
        %s9684 = sand.u32 %s577, 1
        %s9685 = scalar_lea.vmem [#allocation10], %s9684
        // Predicated region
        $region121: #{cnn_model_forward.1} parent=119 // pred_check
          %p9686 = pneg %p587
        $region122: #{cnn_model_forward.1} parent=119 // pred_check_branch
          %9688 = sbr.rel (%p9686) target = $region124
        $region123: #{cnn_model_forward.1} parent=119 // pred_region
          %s9690 = ssub.s32 16, 16
          %9691 = vsyncadd %s9683, %s9690
          %s9692 = smul.addr %s39, 16
          %s9693 = scalar_lea.hbm %s25, %s9692
          %s9695 = sshll.u32 %s9685, 4
          %s9696 = int_to_ptr.vmem [resolvable:$true] %s9695
          %9698 = dma.vmem_to_hbm [thread:$0]  %s9696, 16, %s9693, %s9683
        $region124: #{cnn_model_forward.1} parent=119 // pred_fallthru
          _
      $region120: #{cnn_model_forward.1} parent=5 // pred_fallthru
        _
      %p9699 = scmp.le.s32.totalorder 2, %s34
      // Predicated region
      $region125: #{cnn_model_forward.1} parent=5 // pred_check
        %p9700 = pneg %p9699
      $region126: #{cnn_model_forward.1} parent=5 // pred_check_branch
        %9702 = sbr.rel (%p9700) target = $region128
      $region127: #{cnn_model_forward.1} parent=5 // pred_region
        %s9703 = ssub.s32 %s34, 2
        // Predicated region
        $region129: #{cnn_model_forward.1} parent=127 // pred_check
          %p9704 = pneg %p593
        $region130: #{cnn_model_forward.1} parent=127 // pred_check_branch
          %9706 = sbr.rel (%p9704) target = $region132
        $region131: #{cnn_model_forward.1} parent=127 // pred_region
          %s9707 = sand.u32 %s578, 1
          %s9708 = scalar_lea.sflag [#allocation11], %s9707
          %s9709 = sand.u32 %s578, 1
          %s9710 = scalar_lea.vmem [#allocation10], %s9709
          %9711 = dma.done %s9708, 16
        $region132: #{cnn_model_forward.1} parent=127 // pred_fallthru
          _
      $region128: #{cnn_model_forward.1} parent=5 // pred_fallthru
        _
    $region6: #{cnn_model_forward.1} parent=1 // loop_footer
      %s38 = sadd.s32 1, %s34
    $region7: #{cnn_model_forward.1} parent=1 // loop_footer_branch
      %33 = sbr.rel target = $region3
    $region8: #{cnn_model_forward.1} parent=1 // loop_exit
      _
    %9712 = vsyncpa [#allocation11], 1
    %s9713 = scalar_lea.sflag [#allocation11], 1
    %9714 = vsyncpa %s9713, 1

</llo_original>
